<compile_context>
chip_gen: v5e
topology: v5e:2x2
jax: 0.10.0
libtpu: 0.0.40
codegen_flags: <defaults>
</compile_context>

<pallas_src>
import functools

import jax
import jax.numpy as jnp
from jax import lax
from jax.experimental import pallas as pl
from jax.experimental.pallas import tpu as pltpu

_LANE = 128


# ---------------------------------------------------------------------------
# Pallas kernels
# ---------------------------------------------------------------------------
def _matmul_shift_lrelu_kernel(w_ref, x_ref, shift_ref, o_ref, *, slope):
    # (Cout, K) @ (K, tn) on the MXU (bf16 operands, f32 accumulation),
    # BN shift add + LeakyReLU in f32, bf16 cast at the store.
    y = jnp.dot(w_ref[...], x_ref[...], preferred_element_type=jnp.float32)
    y = y + shift_ref[...]
    o_ref[...] = jnp.maximum(y, slope * y).astype(o_ref.dtype)


def _matmul_sigmoid_kernel(w_ref, x_ref, o_ref):
    # Generic fallback head (exact sigmoid; the output is tiny).
    y = jnp.dot(w_ref[...], x_ref[...], preferred_element_type=jnp.float32)
    o_ref[...] = 1.0 / (1.0 + jnp.exp(-y))


def _tail_kernel(w4_ref, x4_ref, shift4_ref, wf_ref, sel_ref, o_ref, *, slope):
    # Fused: last hidden conv block (conv + BN shift + LeakyReLU) followed by
    # the final conv (whose receptive field is the whole feature map) and the
    # sigmoid.  Everything is VMEM-resident; grid=(1,).
    y = jnp.dot(w4_ref[...], x4_ref[...],
                preferred_element_type=jnp.float32)        # (C4, M4)
    y = y + shift4_ref[...]
    y = jnp.maximum(y, slope * y)
    prod = y * wf_ref[...]                                   # (C4, M4)
    row = jnp.sum(prod, axis=0, keepdims=True)               # (1, M4)
    logits = jnp.sum(row * sel_ref[...], axis=1, keepdims=True)  # (N, 1)
    o_ref[...] = 1.0 / (1.0 + jnp.exp(-logits))


# ---------------------------------------------------------------------------
# Wrapper-side plumbing
# ---------------------------------------------------------------------------
def _im2col_cf(x_cf, k, stride, pad):
    """Channels-first im2col.

    x_cf: (C, N, H, W)  ->  cols^T: (C*k*k, N*Ho*Wo), K order = (cin, kh, kw),
    column order = (n, ho, wo) row-major.  Dtype is preserved (bf16 in, bf16
    out), so only one bf16 cols matrix is ever materialized by XLA.
    """
    c, n, h, w = x_cf.shape
    xp = jnp.pad(x_cf, ((0, 0), (0, 0), (pad, pad), (pad, pad)))
    ho = (h + 2 * pad - k) // stride + 1
    wo = (w + 2 * pad - k) // stride + 1
    taps = []
    for i in range(k):
        for j in range(k):
            taps.append(
                xp[:, :, i:i + stride * ho:stride, j:j + stride * wo:stride])
    cols = jnp.stack(taps, axis=1)                 # (C, k*k, N, Ho, Wo)
    cols_t = cols.reshape(c * k * k, n * ho * wo)  # (K, M)
    return cols_t, n, ho, wo


def _weight_cf(w_hwio):
    """HWIO weight -> (Cout, Cin*k*k) with K order (cin, kh, kw)."""
    k, _, cin, cout = w_hwio.shape
    return jnp.transpose(w_hwio, (3, 2, 0, 1)).reshape(cout, cin * k * k)


def _vmem_budgets():
    """(tile budget, vmem_limit cap), gated by generation.

    Conservative on v7x (64 MiB VMEM per TC), larger on v5e/v6e (128 MiB).
    """
    cap = 64 << 20
    try:
        cap = int(getattr(pltpu.get_tpu_info(), "vmem_capacity_bytes", cap))
    except Exception:
        pass
    if cap >= (100 << 20):
        return 48 << 20, 100 << 20
    return 24 << 20, 32 << 20


def _pick_tile(m, k, cout, in_item, out_item, vmem_budget):
    """Largest lane tile (multiple of 128) within the VMEM budget.

    Keeps >= 2 grid steps when M allows (so the grid axis can be split across
    TensorCores), and bounds the f32 matmul intermediate (vreg/spill
    pressure).  Small / odd M uses one full-M block (block == full dim is
    legal).
    """
    def need(tn):
        # double-buffered cols + out tiles, plus weight + shift blocks
        return (2 * tn * (k * in_item + cout * out_item)
                + 2 * cout * (k * in_item + 4))

    if m % _LANE != 0 or m < 2 * _LANE:
        return m, need(m)
    for tn in (2048, 1024, 512, 256, 128):
        if (tn <= m // 2 and m % tn == 0 and need(tn) <= vmem_budget
                and cout * tn * 4 <= (256 << 10)):
            return tn, need(tn)
    return _LANE, need(_LANE)


def _vmem_limit(vmem_need, cap):
    return int(min(max(4 * vmem_need, 8 << 20), cap))


# ---------------------------------------------------------------------------
# Layer wrappers (channels-first activations)
# ---------------------------------------------------------------------------
def conv_bn_lrelu_cf(x_cf, w_hwio, scale, shift, *, stride, pad, slope,
                     vmem_budget, vmem_cap):
    """x_cf (Cin, N, H, W) bf16 -> (Cout, N, Ho, Wo) bf16."""
    k = w_hwio.shape[0]
    cout = w_hwio.shape[3]
    cols_t, n, ho, wo = _im2col_cf(x_cf, k, stride, pad)     # (K, M) bf16
    kk, m = cols_t.shape

    # Fold BN scale into the transposed weight matrix.
    w_t = (_weight_cf(w_hwio) * scale[:, None]).astype(x_cf.dtype)
    shift_col = shift.reshape(cout, 1).astype(jnp.float32)

    in_item = jnp.dtype(x_cf.dtype).itemsize
    tn, need = _pick_tile(m, kk, cout, in_item, out_item=2,
                          vmem_budget=vmem_budget)

    out_t = pl.pallas_call(
        functools.partial(_matmul_shift_lrelu_kernel, slope=slope),
        out_shape=jax.ShapeDtypeStruct((cout, m), jnp.bfloat16),
        grid=(m // tn,),
        in_specs=[
            pl.BlockSpec((cout, kk), lambda i: (0, 0)),
            pl.BlockSpec((kk, tn), lambda i: (0, i)),
            pl.BlockSpec((cout, 1), lambda i: (0, 0)),
        ],
        out_specs=pl.BlockSpec((cout, tn), lambda i: (0, i)),
        compiler_params=pltpu.CompilerParams(
            dimension_semantics=("parallel",),
            vmem_limit_bytes=_vmem_limit(need, vmem_cap)),
    )(w_t, cols_t, shift_col)
    return out_t.reshape(cout, n, ho, wo)


def conv_sigmoid_cf(x_cf, w_hwio, *, stride, pad, vmem_budget, vmem_cap):
    """Generic final conv + sigmoid fallback: (Cin,N,H,W) -> (Cout,N,Ho,Wo)."""
    k = w_hwio.shape[0]
    cout = w_hwio.shape[3]
    cols_t, n, ho, wo = _im2col_cf(x_cf, k, stride, pad)
    kk, m = cols_t.shape
    w_t = _weight_cf(w_hwio).astype(x_cf.dtype)

    in_item = jnp.dtype(x_cf.dtype).itemsize
    tn, need = _pick_tile(m, kk, cout, in_item, out_item=4,
                          vmem_budget=vmem_budget)

    out_t = pl.pallas_call(
        _matmul_sigmoid_kernel,
        out_shape=jax.ShapeDtypeStruct((cout, m), jnp.float32),
        grid=(m // tn,),
        in_specs=[
            pl.BlockSpec((cout, kk), lambda i: (0, 0)),
            pl.BlockSpec((kk, tn), lambda i: (0, i)),
        ],
        out_specs=pl.BlockSpec((cout, tn), lambda i: (0, i)),
        compiler_params=pltpu.CompilerParams(
            dimension_semantics=("parallel",),
            vmem_limit_bytes=_vmem_limit(need, vmem_cap)),
    )(w_t, cols_t)
    return out_t.reshape(cout, n, ho, wo)


def _can_fuse_tail(x_cf, w4, w_final, *, stride, pad):
    """True iff the last hidden block's output map is exactly the final
    conv's (pad=0) receptive field, i.e. the network ends in a 1x1 output."""
    k = w4.shape[0]
    _, _, h, w = x_cf.shape
    ho = (h + 2 * pad - k) // stride + 1
    wo = (w + 2 * pad - k) // stride + 1
    kf = w_final.shape[0]
    return (ho == kf and wo == kf and w_final.shape[1] == kf
            and w_final.shape[3] == 1 and w_final.shape[2] == w4.shape[3])


def fused_tail(x_cf, w4, scale4, shift4, w_final, *, stride, pad, slope):
    """Last hidden block + final conv + sigmoid in one pallas_call.

    x_cf: (C3, N, H, W) bf16.  Returns (N, 1, 1, 1) f32.
    """
    k = w4.shape[0]
    cout = w4.shape[3]
    cols_t, n, ho, wo = _im2col_cf(x_cf, k, stride, pad)     # (K4, M4) bf16
    kk, m = cols_t.shape
    hw = ho * wo
    kf = w_final.shape[0]
    assert ho == kf and wo == kf and m == n * hw

    w4_t = (_weight_cf(w4) * scale4[:, None]).astype(x_cf.dtype)   # (C4, K4)
    shift_col = shift4.reshape(cout, 1).astype(jnp.float32)
    # Final conv weight arranged to match y4's (n, ho, wo) column order and
    # tiled per sample:  wf_tiled[cin, n*hw + kh*kf + kw] = Wf[kh, kw, cin].
    wf_re = jnp.transpose(w_final[:, :, :, 0], (2, 0, 1)).reshape(cout, hw)
    wf_tiled = jnp.tile(wf_re, (1, n)).astype(jnp.float32)          # (C4, M4)
    sel = (jnp.arange(m)[None, :] // hw
           == jnp.arange(n)[:, None]).astype(jnp.float32)           # (N, M4)

    out = pl.pallas_call(
        functools.partial(_tail_kernel, slope=slope),
        out_shape=jax.ShapeDtypeStruct((n, 1), jnp.float32),
        grid=(1,),
        in_specs=[
            pl.BlockSpec((cout, kk), lambda i: (0, 0)),
            pl.BlockSpec((kk, m), lambda i: (0, 0)),
            pl.BlockSpec((cout, 1), lambda i: (0, 0)),
            pl.BlockSpec((cout, m), lambda i: (0, 0)),
            pl.BlockSpec((n, m), lambda i: (0, 0)),
        ],
        out_specs=pl.BlockSpec((n, 1), lambda i: (0, 0)),
        compiler_params=pltpu.CompilerParams(
            dimension_semantics=("arbitrary",)),
    )(w4_t, cols_t, shift_col, wf_tiled, sel)
    return out.reshape(n, 1, 1, 1)


# ---------------------------------------------------------------------------
# Parameter init (deterministic, synthetic)
# ---------------------------------------------------------------------------
def init_params(key, in_channels, hidden_dims, kernel_size):
    dims = [in_channels] + hidden_dims
    blocks = []
    for c1, c2 in zip(dims[:-1], dims[1:]):
        key, k1, k2, k3, k4, k5 = jax.random.split(key, 6)
        blocks.append(dict(
            w=0.05 * jax.random.normal(k1, (kernel_size, kernel_size, c1, c2),
                                       jnp.float32),            # HWIO weight
            gamma=1.0 + 0.1 * jax.random.normal(k2, (c2,), jnp.float32),
            beta=0.1 * jax.random.normal(k3, (c2,), jnp.float32),
            mean=0.1 * jax.random.normal(k4, (c2,), jnp.float32),
            var=jnp.abs(jax.random.normal(k5, (c2,), jnp.float32)) + 0.5,
        ))
    key, kf = jax.random.split(key)
    w_final = 0.05 * jax.random.normal(
        kf, (kernel_size, kernel_size, dims[-1], 1), jnp.float32)
    return blocks, w_final


# ---------------------------------------------------------------------------
# Forward passes (Pallas vs pure-JAX f32 reference)
# ---------------------------------------------------------------------------
def discriminator_forward(x_nchw, blocks, w_final, *, stride=2, eps=1e-5,
                          slope=0.02):
    # NCHW -> channels-first (C, N, H, W), bf16 once at the top so the cols
    # matrices are only ever materialized in bf16.
    x_cf = jnp.transpose(x_nchw, (1, 0, 2, 3)).astype(jnp.bfloat16)
    budget, cap = _vmem_budgets()
    nb = len(blocks)
    for li, p in enumerate(blocks):
        scale = p["gamma"] / jnp.sqrt(p["var"] + eps)
        shift = p["beta"] - p["mean"] * scale
        if li == nb - 1 and _can_fuse_tail(x_cf, p["w"], w_final,
                                           stride=stride, pad=1):
            return fused_tail(x_cf, p["w"], scale, shift, w_final,
                              stride=stride, pad=1, slope=slope)
        x_cf = conv_bn_lrelu_cf(x_cf, p["w"], scale, shift, stride=stride,
                                pad=1, slope=slope, vmem_budget=budget,
                                vmem_cap=cap)
    out_cf = conv_sigmoid_cf(x_cf, w_final, stride=stride, pad=0,
                             vmem_budget=budget, vmem_cap=cap)
    return jnp.transpose(out_cf, (1, 0, 2, 3))   # (N, 1, Ho, Wo)


def reference_forward(x_nchw, blocks, w_final, *, stride=2, eps=1e-5,
                      slope=0.02):
    x = jnp.transpose(x_nchw, (0, 2, 3, 1))      # NCHW -> NHWC, f32
    dn = ("NHWC", "HWIO", "NHWC")
    for p in blocks:
        y = lax.conv_general_dilated(x, p["w"], (stride, stride),
                                     [(1, 1), (1, 1)], dimension_numbers=dn)
        scale = p["gamma"] / jnp.sqrt(p["var"] + eps)
        shift = p["beta"] - p["mean"] * scale
        y = y * scale + shift
        x = jnp.where(y >= 0, y, slope * y)
    y = lax.conv_general_dilated(x, w_final, (stride, stride),
                                 [(0, 0), (0, 0)], dimension_numbers=dn)
    return jnp.transpose(jax.nn.sigmoid(y), (0, 3, 1, 2))


# ---------------------------------------------------------------------------
if __name__ == "__main__":
    # Module defaults: in_channels=3, hidden_dims=[32,64,128,256], k=4,
    # stride=2, pad=1 (hidden) / 0 (final), 64x64 image -> (N, 1, 1, 1).
    batch = 2
    in_channels = 3
    hidden_dims = [32, 64, 128, 256]
    kernel_size = 4
    image_size = 64

    key = jax.random.PRNGKey(0)
    key, kx = jax.random.split(key)
    x = jax.random.normal(
        kx, (batch, in_channels, image_size, image_size), jnp.float32)

    blocks, w_final = init_params(key, in_channels, hidden_dims, kernel_size)

    fwd = jax.jit(discriminator_forward)
    out = jax.block_until_ready(fwd(x, blocks, w_final))
    ref = jax.block_until_ready(reference_forward(x, blocks, w_final))

    assert out.shape == (batch, 1, 1, 1), out.shape
    # Tolerance loosened vs the pure-f32 reference: matmul operands and
    # intermediate activations are bf16 (f32 accumulation) — intentional.
    assert jnp.allclose(out, ref, atol=5e-2, rtol=5e-2), (
        f"max err {jnp.max(jnp.abs(out - ref))}")
    print("KERNEL_OK")
</pallas_src>

<mosaic_0001>
module attributes {stable_mosaic.version = 11 : i64} {
  func.func @_matmul_shift_lrelu_kernel(%arg0: i32, %arg1: memref<32x48xbf16, #tpu.memory_space<vmem>>, %arg2: memref<48x1024xbf16, #tpu.memory_space<vmem>>, %arg3: memref<32x1xf32, #tpu.memory_space<vmem>>, %arg4: memref<32x1024xbf16, #tpu.memory_space<vmem>>) attributes {dimension_semantics = [#tpu.dimension_semantics<parallel>], iteration_bounds = array<i64: 2>, scalar_prefetch = 0 : i64, scratch_operands = 0 : i64, tpu.core_type = #tpu.core_type<tc>, window_params = [{pipeline_mode = #tpu.pipeline_mode<synchronous>, transform_indices = @transform_0, window_bounds = array<i64: 32, 48>}, {transform_indices = @transform_1, window_bounds = array<i64: 48, 1024>}, {pipeline_mode = #tpu.pipeline_mode<synchronous>, transform_indices = @transform_2, window_bounds = array<i64: 32, 1>}, {transform_indices = @transform_3, window_bounds = array<i64: 32, 1024>}]} {
    %c0 = arith.constant 0 : index
    %c0_0 = arith.constant 0 : index
    %0 = vector.load %arg1[%c0, %c0_0] : memref<32x48xbf16, #tpu.memory_space<vmem>>, vector<32x48xbf16>
    %c0_1 = arith.constant 0 : index
    %c0_2 = arith.constant 0 : index
    %1 = vector.load %arg2[%c0_1, %c0_2] : memref<48x1024xbf16, #tpu.memory_space<vmem>>, vector<48x1024xbf16>
    %cst = arith.constant dense<0.000000e+00> : vector<32x1024xf32>
    %2 = tpu.matmul %0, %1, %cst {dimension_numbers = #tpu.dot_dimension_numbers<[1], [0], [0], [1], [0, 0, 1, 1], [], []>} : vector<32x48xbf16>, vector<48x1024xbf16>, vector<32x1024xf32> -> vector<32x1024xf32>
    %c0_3 = arith.constant 0 : index
    %c0_4 = arith.constant 0 : index
    %3 = vector.load %arg3[%c0_3, %c0_4] : memref<32x1xf32, #tpu.memory_space<vmem>>, vector<32x1xf32>
    %4 = vector.broadcast %3 : vector<32x1xf32> to vector<32x1024xf32>
    %5 = arith.addf %2, %4 : vector<32x1024xf32>
    %cst_5 = arith.constant 2.000000e-02 : f32
    %6 = vector.broadcast %cst_5 : f32 to vector<32x1024xf32>
    %7 = arith.mulf %6, %5 : vector<32x1024xf32>
    %8 = arith.maximumf %5, %7 : vector<32x1024xf32>
    %9 = arith.truncf %8 : vector<32x1024xf32> to vector<32x1024xbf16>
    %c0_6 = arith.constant 0 : index
    %c0_7 = arith.constant 0 : index
    %10 = vector.load %arg4[%c0_6, %c0_7] : memref<32x1024xbf16, #tpu.memory_space<vmem>>, vector<32x1024xbf16>
    tpu.vector_store %arg4[%c0_6, %c0_7], %9 {strides = array<i32>} : memref<32x1024xbf16, #tpu.memory_space<vmem>>, vector<32x1024xbf16>,
    return
  }
  func.func @transform_0(%arg0: i32) -> (i32, i32) {
    %c0_i32 = arith.constant 0 : i32
    %c0_i32_0 = arith.constant 0 : i32
    %c0_i32_1 = arith.constant 0 : i32
    return %c0_i32, %c0_i32_0 : i32, i32
  }
  func.func @transform_1(%arg0: i32) -> (i32, i32) {
    %c0_i32 = arith.constant 0 : i32
    %c0_i32_0 = arith.constant 0 : i32
    return %c0_i32, %arg0 : i32, i32
  }
  func.func @transform_2(%arg0: i32) -> (i32, i32) {
    %c0_i32 = arith.constant 0 : i32
    %c0_i32_0 = arith.constant 0 : i32
    %c0_i32_1 = arith.constant 0 : i32
    return %c0_i32, %c0_i32_0 : i32, i32
  }
  func.func @transform_3(%arg0: i32) -> (i32, i32) {
    %c0_i32 = arith.constant 0 : i32
    %c0_i32_0 = arith.constant 0 : i32
    return %c0_i32, %arg0 : i32, i32
  }
}

module attributes {stable_mosaic.version = 11 : i64} {
  func.func @_matmul_shift_lrelu_kernel(%arg0: i32, %arg1: memref<64x512xbf16, #tpu.memory_space<vmem>>, %arg2: memref<512x256xbf16, #tpu.memory_space<vmem>>, %arg3: memref<64x1xf32, #tpu.memory_space<vmem>>, %arg4: memref<64x256xbf16, #tpu.memory_space<vmem>>) attributes {dimension_semantics = [#tpu.dimension_semantics<parallel>], iteration_bounds = array<i64: 2>, scalar_prefetch = 0 : i64, scratch_operands = 0 : i64, tpu.core_type = #tpu.core_type<tc>, window_params = [{pipeline_mode = #tpu.pipeline_mode<synchronous>, transform_indices = @transform_0, window_bounds = array<i64: 64, 512>}, {transform_indices = @transform_1, window_bounds = array<i64: 512, 256>}, {pipeline_mode = #tpu.pipeline_mode<synchronous>, transform_indices = @transform_2, window_bounds = array<i64: 64, 1>}, {transform_indices = @transform_3, window_bounds = array<i64: 64, 256>}]} {
    %c0 = arith.constant 0 : index
    %c0_0 = arith.constant 0 : index
    %0 = vector.load %arg1[%c0, %c0_0] : memref<64x512xbf16, #tpu.memory_space<vmem>>, vector<64x512xbf16>
    %c0_1 = arith.constant 0 : index
    %c0_2 = arith.constant 0 : index
    %1 = vector.load %arg2[%c0_1, %c0_2] : memref<512x256xbf16, #tpu.memory_space<vmem>>, vector<512x256xbf16>
    %cst = arith.constant dense<0.000000e+00> : vector<64x256xf32>
    %2 = tpu.matmul %0, %1, %cst {dimension_numbers = #tpu.dot_dimension_numbers<[1], [0], [0], [1], [0, 0, 1, 1], [], []>} : vector<64x512xbf16>, vector<512x256xbf16>, vector<64x256xf32> -> vector<64x256xf32>
    %c0_3 = arith.constant 0 : index
    %c0_4 = arith.constant 0 : index
    %3 = vector.load %arg3[%c0_3, %c0_4] : memref<64x1xf32, #tpu.memory_space<vmem>>, vector<64x1xf32>
    %4 = vector.broadcast %3 : vector<64x1xf32> to vector<64x256xf32>
    %5 = arith.addf %2, %4 : vector<64x256xf32>
    %cst_5 = arith.constant 2.000000e-02 : f32
    %6 = vector.broadcast %cst_5 : f32 to vector<64x256xf32>
    %7 = arith.mulf %6, %5 : vector<64x256xf32>
    %8 = arith.maximumf %5, %7 : vector<64x256xf32>
    %9 = arith.truncf %8 : vector<64x256xf32> to vector<64x256xbf16>
    %c0_6 = arith.constant 0 : index
    %c0_7 = arith.constant 0 : index
    %10 = vector.load %arg4[%c0_6, %c0_7] : memref<64x256xbf16, #tpu.memory_space<vmem>>, vector<64x256xbf16>
    tpu.vector_store %arg4[%c0_6, %c0_7], %9 {strides = array<i32>} : memref<64x256xbf16, #tpu.memory_space<vmem>>, vector<64x256xbf16>,
    return
  }
  func.func @transform_0(%arg0: i32) -> (i32, i32) {
    %c0_i32 = arith.constant 0 : i32
    %c0_i32_0 = arith.constant 0 : i32
    %c0_i32_1 = arith.constant 0 : i32
    return %c0_i32, %c0_i32_0 : i32, i32
  }
  func.func @transform_1(%arg0: i32) -> (i32, i32) {
    %c0_i32 = arith.constant 0 : i32
    %c0_i32_0 = arith.constant 0 : i32
    return %c0_i32, %arg0 : i32, i32
  }
  func.func @transform_2(%arg0: i32) -> (i32, i32) {
    %c0_i32 = arith.constant 0 : i32
    %c0_i32_0 = arith.constant 0 : i32
    %c0_i32_1 = arith.constant 0 : i32
    return %c0_i32, %c0_i32_0 : i32, i32
  }
  func.func @transform_3(%arg0: i32) -> (i32, i32) {
    %c0_i32 = arith.constant 0 : i32
    %c0_i32_0 = arith.constant 0 : i32
    return %c0_i32, %arg0 : i32, i32
  }
}

module attributes {stable_mosaic.version = 11 : i64} {
  func.func @_matmul_shift_lrelu_kernel(%arg0: i32, %arg1: memref<128x1024xbf16, #tpu.memory_space<vmem>>, %arg2: memref<1024x128xbf16, #tpu.memory_space<vmem>>, %arg3: memref<128x1xf32, #tpu.memory_space<vmem>>, %arg4: memref<128x128xbf16, #tpu.memory_space<vmem>>) attributes {dimension_semantics = [#tpu.dimension_semantics<parallel>], iteration_bounds = array<i64: 1>, scalar_prefetch = 0 : i64, scratch_operands = 0 : i64, tpu.core_type = #tpu.core_type<tc>, window_params = [{pipeline_mode = #tpu.pipeline_mode<synchronous>, transform_indices = @transform_0, window_bounds = array<i64: 128, 1024>}, {transform_indices = @transform_1, window_bounds = array<i64: 1024, 128>}, {pipeline_mode = #tpu.pipeline_mode<synchronous>, transform_indices = @transform_2, window_bounds = array<i64: 128, 1>}, {transform_indices = @transform_3, window_bounds = array<i64: 128, 128>}]} {
    %c0 = arith.constant 0 : index
    %c0_0 = arith.constant 0 : index
    %0 = vector.load %arg1[%c0, %c0_0] : memref<128x1024xbf16, #tpu.memory_space<vmem>>, vector<128x1024xbf16>
    %c0_1 = arith.constant 0 : index
    %c0_2 = arith.constant 0 : index
    %1 = vector.load %arg2[%c0_1, %c0_2] : memref<1024x128xbf16, #tpu.memory_space<vmem>>, vector<1024x128xbf16>
    %cst = arith.constant dense<0.000000e+00> : vector<128x128xf32>
    %2 = tpu.matmul %0, %1, %cst {dimension_numbers = #tpu.dot_dimension_numbers<[1], [0], [0], [1], [0, 0, 1, 1], [], []>} : vector<128x1024xbf16>, vector<1024x128xbf16>, vector<128x128xf32> -> vector<128x128xf32>
    %c0_3 = arith.constant 0 : index
    %c0_4 = arith.constant 0 : index
    %3 = vector.load %arg3[%c0_3, %c0_4] : memref<128x1xf32, #tpu.memory_space<vmem>>, vector<128x1xf32>
    %4 = vector.broadcast %3 : vector<128x1xf32> to vector<128x128xf32>
    %5 = arith.addf %2, %4 : vector<128x128xf32>
    %cst_5 = arith.constant 2.000000e-02 : f32
    %6 = vector.broadcast %cst_5 : f32 to vector<128x128xf32>
    %7 = arith.mulf %6, %5 : vector<128x128xf32>
    %8 = arith.maximumf %5, %7 : vector<128x128xf32>
    %9 = arith.truncf %8 : vector<128x128xf32> to vector<128x128xbf16>
    %c0_6 = arith.constant 0 : index
    %c0_7 = arith.constant 0 : index
    %10 = vector.load %arg4[%c0_6, %c0_7] : memref<128x128xbf16, #tpu.memory_space<vmem>>, vector<128x128xbf16>
    tpu.vector_store %arg4[%c0_6, %c0_7], %9 {strides = array<i32>} : memref<128x128xbf16, #tpu.memory_space<vmem>>, vector<128x128xbf16>,
    return
  }
  func.func @transform_0(%arg0: i32) -> (i32, i32) {
    %c0_i32 = arith.constant 0 : i32
    %c0_i32_0 = arith.constant 0 : i32
    %c0_i32_1 = arith.constant 0 : i32
    return %c0_i32, %c0_i32_0 : i32, i32
  }
  func.func @transform_1(%arg0: i32) -> (i32, i32) {
    %c0_i32 = arith.constant 0 : i32
    %c0_i32_0 = arith.constant 0 : i32
    return %c0_i32, %arg0 : i32, i32
  }
  func.func @transform_2(%arg0: i32) -> (i32, i32) {
    %c0_i32 = arith.constant 0 : i32
    %c0_i32_0 = arith.constant 0 : i32
    %c0_i32_1 = arith.constant 0 : i32
    return %c0_i32, %c0_i32_0 : i32, i32
  }
  func.func @transform_3(%arg0: i32) -> (i32, i32) {
    %c0_i32 = arith.constant 0 : i32
    %c0_i32_0 = arith.constant 0 : i32
    return %c0_i32, %arg0 : i32, i32
  }
}

module attributes {stable_mosaic.version = 11 : i64} {
  func.func @_tail_kernel(%arg0: i32, %arg1: memref<256x2048xbf16, #tpu.memory_space<vmem>>, %arg2: memref<2048x32xbf16, #tpu.memory_space<vmem>>, %arg3: memref<256x1xf32, #tpu.memory_space<vmem>>, %arg4: memref<256x32xf32, #tpu.memory_space<vmem>>, %arg5: memref<2x32xf32, #tpu.memory_space<vmem>>, %arg6: memref<2x1xf32, #tpu.memory_space<vmem>>) attributes {dimension_semantics = [#tpu.dimension_semantics<arbitrary>], iteration_bounds = array<i64: 1>, scalar_prefetch = 0 : i64, scratch_operands = 0 : i64, tpu.core_type = #tpu.core_type<tc>, window_params = [{pipeline_mode = #tpu.pipeline_mode<synchronous>, transform_indices = @transform_0, window_bounds = array<i64: 256, 2048>}, {pipeline_mode = #tpu.pipeline_mode<synchronous>, transform_indices = @transform_1, window_bounds = array<i64: 2048, 32>}, {pipeline_mode = #tpu.pipeline_mode<synchronous>, transform_indices = @transform_2, window_bounds = array<i64: 256, 1>}, {pipeline_mode = #tpu.pipeline_mode<synchronous>, transform_indices = @transform_3, window_bounds = array<i64: 256, 32>}, {pipeline_mode = #tpu.pipeline_mode<synchronous>, transform_indices = @transform_4, window_bounds = array<i64: 2, 32>}, {pipeline_mode = #tpu.pipeline_mode<synchronous>, transform_indices = @transform_5, window_bounds = array<i64: 2, 1>}]} {
    %c0 = arith.constant 0 : index
    %c0_0 = arith.constant 0 : index
    %0 = vector.load %arg1[%c0, %c0_0] : memref<256x2048xbf16, #tpu.memory_space<vmem>>, vector<256x2048xbf16>
    %c0_1 = arith.constant 0 : index
    %c0_2 = arith.constant 0 : index
    %1 = vector.load %arg2[%c0_1, %c0_2] : memref<2048x32xbf16, #tpu.memory_space<vmem>>, vector<2048x32xbf16>
    %cst = arith.constant dense<0.000000e+00> : vector<256x32xf32>
    %2 = tpu.matmul %0, %1, %cst {dimension_numbers = #tpu.dot_dimension_numbers<[1], [0], [0], [1], [0, 0, 1, 1], [], []>} : vector<256x2048xbf16>, vector<2048x32xbf16>, vector<256x32xf32> -> vector<256x32xf32>
    %c0_3 = arith.constant 0 : index
    %c0_4 = arith.constant 0 : index
    %3 = vector.load %arg3[%c0_3, %c0_4] : memref<256x1xf32, #tpu.memory_space<vmem>>, vector<256x1xf32>
    %4 = vector.broadcast %3 : vector<256x1xf32> to vector<256x32xf32>
    %5 = arith.addf %2, %4 : vector<256x32xf32>
    %cst_5 = arith.constant 2.000000e-02 : f32
    %6 = vector.broadcast %cst_5 : f32 to vector<256x32xf32>
    %7 = arith.mulf %6, %5 : vector<256x32xf32>
    %8 = arith.maximumf %5, %7 : vector<256x32xf32>
    %c0_6 = arith.constant 0 : index
    %c0_7 = arith.constant 0 : index
    %9 = vector.load %arg4[%c0_6, %c0_7] : memref<256x32xf32, #tpu.memory_space<vmem>>, vector<256x32xf32>
    %10 = arith.mulf %8, %9 : vector<256x32xf32>
    %cst_8 = arith.constant dense<0.000000e+00> : vector<32xf32>
    %11 = vector.multi_reduction <add>, %10, %cst_8 [0] : vector<256x32xf32> to vector<32xf32>
    %12 = vector.shape_cast %11 : vector<32xf32> to vector<1x32xf32>
    %c0_9 = arith.constant 0 : index
    %c0_10 = arith.constant 0 : index
    %13 = vector.load %arg5[%c0_9, %c0_10] : memref<2x32xf32, #tpu.memory_space<vmem>>, vector<2x32xf32>
    %14 = vector.broadcast %12 : vector<1x32xf32> to vector<2x32xf32>
    %15 = arith.mulf %14, %13 : vector<2x32xf32>
    %cst_11 = arith.constant dense<0.000000e+00> : vector<2xf32>
    %16 = vector.multi_reduction <add>, %15, %cst_11 [1] : vector<2x32xf32> to vector<2xf32>
    %17 = vector.shape_cast %16 : vector<2xf32> to vector<2x1xf32>
    %cst_12 = arith.constant 0.000000e+00 : f32
    %18 = vector.broadcast %cst_12 : f32 to vector<2x1xf32>
    %19 = arith.subf %18, %17 : vector<2x1xf32>
    %20 = math.exp %19 : vector<2x1xf32>
    %cst_13 = arith.constant 1.000000e+00 : f32
    %21 = vector.broadcast %cst_13 : f32 to vector<2x1xf32>
    %22 = arith.addf %21, %20 : vector<2x1xf32>
    %cst_14 = arith.constant 1.000000e+00 : f32
    %23 = vector.broadcast %cst_14 : f32 to vector<2x1xf32>
    %24 = arith.divf %23, %22 : vector<2x1xf32>
    %c0_15 = arith.constant 0 : index
    %c0_16 = arith.constant 0 : index
    %25 = vector.load %arg6[%c0_15, %c0_16] : memref<2x1xf32, #tpu.memory_space<vmem>>, vector<2x1xf32>
    tpu.vector_store %arg6[%c0_15, %c0_16], %24 {strides = array<i32>} : memref<2x1xf32, #tpu.memory_space<vmem>>, vector<2x1xf32>,
    return
  }
  func.func @transform_0(%arg0: i32) -> (i32, i32) {
    %c0_i32 = arith.constant 0 : i32
    %c0_i32_0 = arith.constant 0 : i32
    %c0_i32_1 = arith.constant 0 : i32
    return %c0_i32, %c0_i32_0 : i32, i32
  }
  func.func @transform_1(%arg0: i32) -> (i32, i32) {
    %c0_i32 = arith.constant 0 : i32
    %c0_i32_0 = arith.constant 0 : i32
    %c0_i32_1 = arith.constant 0 : i32
    return %c0_i32, %c0_i32_0 : i32, i32
  }
  func.func @transform_2(%arg0: i32) -> (i32, i32) {
    %c0_i32 = arith.constant 0 : i32
    %c0_i32_0 = arith.constant 0 : i32
    %c0_i32_1 = arith.constant 0 : i32
    return %c0_i32, %c0_i32_0 : i32, i32
  }
  func.func @transform_3(%arg0: i32) -> (i32, i32) {
    %c0_i32 = arith.constant 0 : i32
    %c0_i32_0 = arith.constant 0 : i32
    %c0_i32_1 = arith.constant 0 : i32
    return %c0_i32, %c0_i32_0 : i32, i32
  }
  func.func @transform_4(%arg0: i32) -> (i32, i32) {
    %c0_i32 = arith.constant 0 : i32
    %c0_i32_0 = arith.constant 0 : i32
    %c0_i32_1 = arith.constant 0 : i32
    return %c0_i32, %c0_i32_0 : i32, i32
  }
  func.func @transform_5(%arg0: i32) -> (i32, i32) {
    %c0_i32 = arith.constant 0 : i32
    %c0_i32_0 = arith.constant 0 : i32
    %c0_i32_1 = arith.constant 0 : i32
    return %c0_i32, %c0_i32_0 : i32, i32
  }
}

</mosaic_0001>

<llo_original>
// kernel: discriminator_forward.4
$region0: #{discriminator_forward.4}
  #allocation0 [shape = 'u32[]', space=smem, size = 0x4, offset = 0x4, fixed_abs, tag = 'smem constant byte address 0x4 - core index']
  #allocation1 [shape = 'u32[72,128]{1,0:T(1,128)}', space=vmem, size = 0x9000, scoped, tag = 'internal scratch']
  %s0 = inlined_call_operand.vmem [shape: bf16[32,48], index: 0, kind: input, shape index: {}]
  %s1 = inlined_call_operand.vmem [shape: bf16[48,2048], index: 1, kind: input, shape index: {}]
  %s2 = inlined_call_operand.vmem [shape: f32[32,1], index: 2, kind: input, shape index: {}]
  %s3 = inlined_call_operand.vmem [shape: bf16[32,2048], index: 3, kind: output, shape index: {}]
  %s4 = sld [smem:[#allocation0]]
  $region87: #{discriminator_forward.4} parent=0
    _
  %s6 = ssub.s32 1, %s4
  %s7 = scalar_select 0, %s6, %s4
  $region1: #{discriminator_forward.4} parent=0
    #allocation2 [shape = 'u8[196608]{0}', space=vmem, size = 0x30000, scoped, tag = 'input window, operand 1']
    #allocation3 [shape = 'u8[131072]{0}', space=vmem, size = 0x20000, scoped, tag = 'output window, operand 0']
    loop: start=0, step=1, limit=4
    $region2: #{discriminator_forward.4} parent=1 // loop_pre_header
      _
    $region3: #{discriminator_forward.4} parent=1 // loop_header
      %s9 = sphi 0, %s13
      %p10 = scmp.ge.s32.totalorder %s9, 4
      %s17 = sphi 0, %s17
      %s19 = sphi 0, %s17
      %s20 = sphi 0, %s19
      %s34 = sphi 0, %s20
      %s40 = sphi 0, %s42
      %s43 = sphi 0, %s40
      %s44 = sphi 0, %s43
      %s60 = sphi 0, %s44
      %s64 = sphi 0, %s64
      %s66 = sphi 0, %s64
      %s67 = sphi 0, %s66
      %s81 = sphi 0, %s67
      %s87 = sphi 0, %s89
      %s90 = sphi 0, %s87
      %s91 = sphi 0, %s90
      %s107 = sphi 0, %s91
    $region4: #{discriminator_forward.4} parent=1 // loop_header_branch
      %12 = sbr.rel (%p10) target = $region8
    $region5: #{discriminator_forward.4} parent=1 // loop_body
      %s14 = ssub.s32 %s9, 1
      %s15 = ssub.s32 %s9, 2
      %s16 = sadd.s32 %s9, 1
      %s18 = sadd.s32 %s17, 1
      %p21 = scmp.eq.s32.totalorder %s9, 1
      %p22 = scmp.ne.s32.totalorder %s17, %s19
      %p23 = scmp.eq.s32.totalorder %s9, 0
      %p24 = por %p22, %p23
      %p25 = scmp.ne.s32.totalorder %s17, %s19
      %p26 = scmp.eq.s32.totalorder %s14, 1
      %p27 = por %p25, %p26
      %p28 = scmp.ne.s32.totalorder %s19, %s20
      %p29 = scmp.eq.s32.totalorder %s14, 0
      %p30 = por %p28, %p29
      %p31 = scmp.ne.s32.totalorder %s19, %s20
      %p32 = scmp.eq.s32.totalorder %s15, 1
      %p33 = por %p31, %p32
      %p35 = scmp.ne.s32.totalorder %s20, %s34
      %p36 = scmp.eq.s32.totalorder %s15, 0
      %p37 = por %p35, %p36
      %s38 = ssub.s32 %s9, %s16
      %p39 = scmp.eq.s32.totalorder %s38, 0
      %s41 = sadd.s32 %s40, 1
      %s42 = scalar_select %p39, %s40, %s41
      %p45 = pneg %p39
      %p46 = scmp.eq.s32.totalorder %s9, 1
      %p47 = por %p45, %p46
      %p48 = scmp.ne.s32.totalorder %s40, %s43
      %p49 = scmp.eq.s32.totalorder %s9, 0
      %p50 = por %p48, %p49
      %p51 = scmp.ne.s32.totalorder %s40, %s43
      %p52 = scmp.eq.s32.totalorder %s14, 1
      %p53 = por %p51, %p52
      %p54 = scmp.ne.s32.totalorder %s43, %s44
      %p55 = scmp.eq.s32.totalorder %s14, 0
      %p56 = por %p54, %p55
      %p57 = scmp.ne.s32.totalorder %s43, %s44
      %p58 = scmp.eq.s32.totalorder %s15, 1
      %p59 = por %p57, %p58
      %p61 = scmp.ne.s32.totalorder %s44, %s60
      %p62 = scmp.eq.s32.totalorder %s15, 0
      %p63 = por %p61, %p62
      %s65 = sadd.s32 %s64, 1
      %p68 = scmp.eq.s32.totalorder %s9, 1
      %p69 = scmp.ne.s32.totalorder %s64, %s66
      %p70 = scmp.eq.s32.totalorder %s9, 0
      %p71 = por %p69, %p70
      %p72 = scmp.ne.s32.totalorder %s64, %s66
      %p73 = scmp.eq.s32.totalorder %s14, 1
      %p74 = por %p72, %p73
      %p75 = scmp.ne.s32.totalorder %s66, %s67
      %p76 = scmp.eq.s32.totalorder %s14, 0
      %p77 = por %p75, %p76
      %p78 = scmp.ne.s32.totalorder %s66, %s67
      %p79 = scmp.eq.s32.totalorder %s15, 1
      %p80 = por %p78, %p79
      %p82 = scmp.ne.s32.totalorder %s67, %s81
      %p83 = scmp.eq.s32.totalorder %s15, 0
      %p84 = por %p82, %p83
      %s85 = ssub.s32 %s9, %s16
      %p86 = scmp.eq.s32.totalorder %s85, 0
      %s88 = sadd.s32 %s87, 1
      %s89 = scalar_select %p86, %s87, %s88
      %p92 = pneg %p86
      %p93 = scmp.eq.s32.totalorder %s9, 1
      %p94 = por %p92, %p93
      %p95 = scmp.ne.s32.totalorder %s87, %s90
      %p96 = scmp.eq.s32.totalorder %s9, 0
      %p97 = por %p95, %p96
      %p98 = scmp.ne.s32.totalorder %s87, %s90
      %p99 = scmp.eq.s32.totalorder %s14, 1
      %p100 = por %p98, %p99
      %p101 = scmp.ne.s32.totalorder %s90, %s91
      %p102 = scmp.eq.s32.totalorder %s14, 0
      %p103 = por %p101, %p102
      %p104 = scmp.ne.s32.totalorder %s90, %s91
      %p105 = scmp.eq.s32.totalorder %s15, 1
      %p106 = por %p104, %p105
      %p108 = scmp.ne.s32.totalorder %s91, %s107
      %p109 = scmp.eq.s32.totalorder %s15, 0
      %p110 = por %p108, %p109
      %p111 = scmp.le.s32.totalorder 1, %s9
      %p112 = scmp.lt.s32.totalorder %s9, 3
      %p113 = pnand %p111, %p112
      %p114 = pneg %p113
      // Predicated region
      $region9: #{discriminator_forward.4} parent=5 // pred_check
        _
      $region10: #{discriminator_forward.4} parent=5 // pred_check_branch
        %116 = sbr.rel (%p113) target = $region12
      $region11: #{discriminator_forward.4} parent=5 // pred_region
        %s117 = ssub.s32 %s9, 1
        // Predicated region
        $region13: #{discriminator_forward.4} parent=11 // pred_check
          %p118 = pneg %p30
        $region14: #{discriminator_forward.4} parent=11 // pred_check_branch
          %120 = sbr.rel (%p118) target = $region16
        $region15: #{discriminator_forward.4} parent=11 // pred_region
          _
        $region16: #{discriminator_forward.4} parent=11 // pred_fallthru
          _
        // Predicated region
        $region17: #{discriminator_forward.4} parent=11 // pred_check
          %p121 = pneg %p77
        $region18: #{discriminator_forward.4} parent=11 // pred_check_branch
          %123 = sbr.rel (%p121) target = $region20
        $region19: #{discriminator_forward.4} parent=11 // pred_region
          _
        $region20: #{discriminator_forward.4} parent=11 // pred_fallthru
          _
      $region12: #{discriminator_forward.4} parent=5 // pred_fallthru
        _
      %p124 = scmp.lt.s32.totalorder %s9, 2
      // Predicated region
      $region21: #{discriminator_forward.4} parent=5 // pred_check
        %p125 = pneg %p124
      $region22: #{discriminator_forward.4} parent=5 // pred_check_branch
        %127 = sbr.rel (%p125) target = $region24
      $region23: #{discriminator_forward.4} parent=5 // pred_region
        // Predicated region
        $region25: #{discriminator_forward.4} parent=23 // pred_check
          %p128 = pneg %p50
        $region26: #{discriminator_forward.4} parent=23 // pred_check_branch
          %130 = sbr.rel (%p128) target = $region28
        $region27: #{discriminator_forward.4} parent=23 // pred_region
          %s131 = sand.u32 %s40, 1
          %s132 = sand.u32 %s40, 1
          %s133 = smul.addr %s132, 192
          %s134 = scalar_lea.vmem [#allocation2], %s133
          %s135 = smul.u32 8, %s9
          %s136 = smul.addr %s135, 4
          %s137 = scalar_lea.vmem %s1, %s136
          // Predicated region
          $region29: #{discriminator_forward.4} parent=27 // pred_check
            _
          $region30: #{discriminator_forward.4} parent=27 // pred_check_branch
            %139 = sbr.rel (0) target = $region32
          $region31: #{discriminator_forward.4} parent=27 // pred_region
            // Predicated region
            $region33: #{discriminator_forward.4} parent=31 // pred_check
              _
            $region34: #{discriminator_forward.4} parent=31 // pred_check_branch
              %141 = sbr.rel (0) target = $region36
            $region35: #{discriminator_forward.4} parent=31 // pred_region
              loop: start=0, step=1, limit=1
              $region37: #{discriminator_forward.4} parent=35 // loop_pre_header
                _
              $region38: #{discriminator_forward.4} parent=35 // loop_header
                %s143 = sphi 0, %s147
                %p144 = scmp.ge.s32.totalorder %s143, 1
                %s148 = sphi %s137, %s137
                %s149 = sphi %s134, %s134
              $region39: #{discriminator_forward.4} parent=35 // loop_header_branch
                %146 = sbr.rel (%p144) target = $region43
              $region40: #{discriminator_forward.4} parent=35 // loop_body
                %v150 = vld [vmem:[%s148] sm:$0xff]
                %151 = vst [vmem:[%s149] sm:$0xff] %v150
                %v152 = vld [vmem:[%s148 + $0x8] sm:$0xff]
                %153 = vst [vmem:[%s149 + $0x8] sm:$0xff] %v152
                %v154 = vld [vmem:[%s148 + $0x10] sm:$0xff]
                %155 = vst [vmem:[%s149 + $0x10] sm:$0xff] %v154
                %v156 = vld [vmem:[%s148 + $0x18] sm:$0xff]
                %157 = vst [vmem:[%s149 + $0x18] sm:$0xff] %v156
                %v158 = vld [vmem:[%s148 + $0x40] sm:$0xff]
                %159 = vst [vmem:[%s149 + $0x20] sm:$0xff] %v158
                %v160 = vld [vmem:[%s148 + $0x48] sm:$0xff]
                %161 = vst [vmem:[%s149 + $0x28] sm:$0xff] %v160
                %v162 = vld [vmem:[%s148 + $0x50] sm:$0xff]
                %163 = vst [vmem:[%s149 + $0x30] sm:$0xff] %v162
                %v164 = vld [vmem:[%s148 + $0x58] sm:$0xff]
                %165 = vst [vmem:[%s149 + $0x38] sm:$0xff] %v164
                %v166 = vld [vmem:[%s148 + $0x80] sm:$0xff]
                %167 = vst [vmem:[%s149 + $0x40] sm:$0xff] %v166
                %v168 = vld [vmem:[%s148 + $0x88] sm:$0xff]
                %169 = vst [vmem:[%s149 + $0x48] sm:$0xff] %v168
                %v170 = vld [vmem:[%s148 + $0x90] sm:$0xff]
                %171 = vst [vmem:[%s149 + $0x50] sm:$0xff] %v170
                %v172 = vld [vmem:[%s148 + $0x98] sm:$0xff]
                %173 = vst [vmem:[%s149 + $0x58] sm:$0xff] %v172
                %v174 = vld [vmem:[%s148 + $0xc0] sm:$0xff]
                %175 = vst [vmem:[%s149 + $0x60] sm:$0xff] %v174
                %v176 = vld [vmem:[%s148 + $0xc8] sm:$0xff]
                %177 = vst [vmem:[%s149 + $0x68] sm:$0xff] %v176
                %v178 = vld [vmem:[%s148 + $0xd0] sm:$0xff]
                %179 = vst [vmem:[%s149 + $0x70] sm:$0xff] %v178
                %v180 = vld [vmem:[%s148 + $0xd8] sm:$0xff]
                %181 = vst [vmem:[%s149 + $0x78] sm:$0xff] %v180
                %v182 = vld [vmem:[%s148 + $0x100] sm:$0xff]
                %183 = vst [vmem:[%s149 + $0x80] sm:$0xff] %v182
                %v184 = vld [vmem:[%s148 + $0x108] sm:$0xff]
                %185 = vst [vmem:[%s149 + $0x88] sm:$0xff] %v184
                %v186 = vld [vmem:[%s148 + $0x110] sm:$0xff]
                %187 = vst [vmem:[%s149 + $0x90] sm:$0xff] %v186
                %v188 = vld [vmem:[%s148 + $0x118] sm:$0xff]
                %189 = vst [vmem:[%s149 + $0x98] sm:$0xff] %v188
                %v190 = vld [vmem:[%s148 + $0x140] sm:$0xff]
                %191 = vst [vmem:[%s149 + $0xa0] sm:$0xff] %v190
                %v192 = vld [vmem:[%s148 + $0x148] sm:$0xff]
                %193 = vst [vmem:[%s149 + $0xa8] sm:$0xff] %v192
                %v194 = vld [vmem:[%s148 + $0x150] sm:$0xff]
                %195 = vst [vmem:[%s149 + $0xb0] sm:$0xff] %v194
                %v196 = vld [vmem:[%s148 + $0x158] sm:$0xff]
                %197 = vst [vmem:[%s149 + $0xb8] sm:$0xff] %v196
              $region41: #{discriminator_forward.4} parent=35 // loop_footer
                %s147 = sadd.s32 1, %s143
              $region42: #{discriminator_forward.4} parent=35 // loop_footer_branch
                %142 = sbr.rel target = $region38
              $region43: #{discriminator_forward.4} parent=35 // loop_exit
                _
            $region36: #{discriminator_forward.4} parent=31 // pred_fallthru
              _
            // Predicated region
            $region44: #{discriminator_forward.4} parent=31 // pred_check
              _
            $region45: #{discriminator_forward.4} parent=31 // pred_check_branch
              %199 = sbr.rel target = $region47
            $region46: #{discriminator_forward.4} parent=31 // pred_region
              _
            $region47: #{discriminator_forward.4} parent=31 // pred_fallthru
              _
          $region32: #{discriminator_forward.4} parent=27 // pred_fallthru
            _
          %200 = vnop
        $region28: #{discriminator_forward.4} parent=23 // pred_fallthru
          _
      $region24: #{discriminator_forward.4} parent=5 // pred_fallthru
        _
      %p201 = scmp.le.s32.totalorder 1, %s9
      %p202 = scmp.lt.s32.totalorder %s9, 3
      %p203 = pnand %p201, %p202
      %p204 = pneg %p203
      // Predicated region
      $region48: #{discriminator_forward.4} parent=5 // pred_check
        _
      $region49: #{discriminator_forward.4} parent=5 // pred_check_branch
        %206 = sbr.rel (%p203) target = $region51
      $region50: #{discriminator_forward.4} parent=5 // pred_region
        %s207 = ssub.s32 %s9, 1
        %s208 = sand.u32 %s43, 1
        %s209 = sand.u32 %s43, 1
        %s210 = smul.addr %s209, 192
        %s211 = scalar_lea.vmem [#allocation2], %s210
        // Predicated region
        $region52: #{discriminator_forward.4} parent=50 // pred_check
          %p212 = pneg %p56
        $region53: #{discriminator_forward.4} parent=50 // pred_check_branch
          %214 = sbr.rel (%p212) target = $region55
        $region54: #{discriminator_forward.4} parent=50 // pred_region
          _
        $region55: #{discriminator_forward.4} parent=50 // pred_fallthru
          _
        %p215 = pneg %p30
        %p216 = pneg %p27
        %s217 = sand.u32 %s43, 1
        %s218 = sand.u32 %s43, 1
        %s219 = smul.addr %s218, 192
        %s220 = scalar_lea.vmem [#allocation2], %s219
        %p221 = pneg %p56
        %p222 = pneg %p53
        %p223 = pneg %p77
        %p224 = pneg %p74
        %p225 = pneg %p103
        %p226 = pneg %p100
        %s227 = sand.u32 %s90, 1
        %s228 = sand.u32 %s90, 1
        %s229 = smul.addr %s228, 128
        %s230 = scalar_lea.vmem [#allocation3], %s229
        %s231 = smul.u32 8, %s14
        %s232 = smul.u32 8, %s14
        %v234 = vld [vmem:[%s0] sm:$0xf]
        %v235 = vld [vmem:[%s0 + $0x4] sm:$0xf]
        %v236 = vld [vmem:[%s0 + $0x8] sm:$0xf]
        %v237 = vld [vmem:[%s0 + $0xc] sm:$0xf]
        %v238 = vld [vmem:[%s211] sm:$0xff]
        %v239 = vld [vmem:[%s211 + $0x8] sm:$0xff]
        %v240 = vld [vmem:[%s211 + $0x10] sm:$0xff]
        %v241 = vld [vmem:[%s211 + $0x18] sm:$0xff]
        %v242 = vld [vmem:[%s211 + $0x20] sm:$0xff]
        %v243 = vld [vmem:[%s211 + $0x28] sm:$0xff]
        %v244 = vld [vmem:[%s211 + $0x30] sm:$0xff]
        %v245 = vld [vmem:[%s211 + $0x38] sm:$0xff]
        %v246 = vld [vmem:[%s211 + $0x40] sm:$0xff]
        %v247 = vld [vmem:[%s211 + $0x48] sm:$0xff]
        %v248 = vld [vmem:[%s211 + $0x50] sm:$0xff]
        %v249 = vld [vmem:[%s211 + $0x58] sm:$0xff]
        %v250 = vld [vmem:[%s211 + $0x60] sm:$0xff]
        %v251 = vld [vmem:[%s211 + $0x68] sm:$0xff]
        %v252 = vld [vmem:[%s211 + $0x70] sm:$0xff]
        %v253 = vld [vmem:[%s211 + $0x78] sm:$0xff]
        %v254 = vld [vmem:[%s211 + $0x80] sm:$0xff]
        %v255 = vld [vmem:[%s211 + $0x88] sm:$0xff]
        %v256 = vld [vmem:[%s211 + $0x90] sm:$0xff]
        %v257 = vld [vmem:[%s211 + $0x98] sm:$0xff]
        %v258 = vld [vmem:[%s211 + $0xa0] sm:$0xff]
        %v259 = vld [vmem:[%s211 + $0xa8] sm:$0xff]
        %v260 = vld [vmem:[%s211 + $0xb0] sm:$0xff]
        %v261 = vld [vmem:[%s211 + $0xb8] sm:$0xff]
        %v262 = vld [vmem:[%s2] sm:$0xff]
        %v263 = vld [vmem:[%s2 + $0x8] sm:$0xff]
        %v264 = vld [vmem:[%s2 + $0x10] sm:$0xff]
        %v265 = vld [vmem:[%s2 + $0x18] sm:$0xff]
        %267 = vset.pattern.permute.xlu0 0
        %268 = vperm.xlu0 %267, %v262
        %v269 = vpop.permute.xlu0 %268
        %272 = vset.pattern.permute.xlu0 0
        %273 = vperm.xlu0 %272, %v263
        %v274 = vpop.permute.xlu0 %273
        %277 = vset.pattern.permute.xlu0 0
        %278 = vperm.xlu0 %277, %v264
        %v279 = vpop.permute.xlu0 %278
        %282 = vset.pattern.permute.xlu0 0
        %283 = vperm.xlu0 %282, %v265
        %v284 = vpop.permute.xlu0 %283
        %v290 = vunpack.c.l.b16 %v234
        %v291 = vunpack.c.l.b16 %v235
        %v292 = vunpack.c.l.b16 %v236
        %v293 = vunpack.c.l.b16 %v237
        %v294 = vpack.c.b16 %v291, %v290
        %v295 = vpack.c.b16 %v293, %v292
        %v320 = vunpack.c.l.b16 %v238
        %v321 = vunpack.c.h.b16 %v238
        %v322 = vunpack.c.l.b16 %v239
        %v323 = vunpack.c.h.b16 %v239
        %v324 = vunpack.c.l.b16 %v240
        %v325 = vunpack.c.h.b16 %v240
        %v326 = vunpack.c.l.b16 %v241
        %v327 = vunpack.c.h.b16 %v241
        %v328 = vunpack.c.l.b16 %v242
        %v329 = vunpack.c.h.b16 %v242
        %v330 = vunpack.c.l.b16 %v243
        %v331 = vunpack.c.h.b16 %v243
        %v332 = vunpack.c.l.b16 %v244
        %v333 = vunpack.c.h.b16 %v244
        %v334 = vunpack.c.l.b16 %v245
        %v335 = vunpack.c.h.b16 %v245
        %v336 = vunpack.c.l.b16 %v246
        %v337 = vunpack.c.h.b16 %v246
        %v338 = vunpack.c.l.b16 %v247
        %v339 = vunpack.c.h.b16 %v247
        %v340 = vunpack.c.l.b16 %v248
        %v341 = vunpack.c.h.b16 %v248
        %v342 = vunpack.c.l.b16 %v249
        %v343 = vunpack.c.h.b16 %v249
        %v344 = vunpack.c.l.b16 %v250
        %v345 = vunpack.c.h.b16 %v250
        %v346 = vunpack.c.l.b16 %v251
        %v347 = vunpack.c.h.b16 %v251
        %v348 = vunpack.c.l.b16 %v252
        %v349 = vunpack.c.h.b16 %v252
        %v350 = vunpack.c.l.b16 %v253
        %v351 = vunpack.c.h.b16 %v253
        %v352 = vunpack.c.l.b16 %v254
        %v353 = vunpack.c.h.b16 %v254
        %v354 = vunpack.c.l.b16 %v255
        %v355 = vunpack.c.h.b16 %v255
        %v356 = vunpack.c.l.b16 %v256
        %v357 = vunpack.c.h.b16 %v256
        %v358 = vunpack.c.l.b16 %v257
        %v359 = vunpack.c.h.b16 %v257
        %v360 = vunpack.c.l.b16 %v258
        %v361 = vunpack.c.h.b16 %v258
        %v362 = vunpack.c.l.b16 %v259
        %v363 = vunpack.c.h.b16 %v259
        %v364 = vunpack.c.l.b16 %v260
        %v365 = vunpack.c.h.b16 %v260
        %v366 = vunpack.c.l.b16 %v261
        %v367 = vunpack.c.h.b16 %v261
        %v368 = vpack.c.b16 %v328, %v320
        %v369 = vpack.c.b16 %v329, %v321
        %v370 = vpack.c.b16 %v330, %v322
        %v371 = vpack.c.b16 %v331, %v323
        %v372 = vpack.c.b16 %v332, %v324
        %v373 = vpack.c.b16 %v333, %v325
        %v374 = vpack.c.b16 %v334, %v326
        %v375 = vpack.c.b16 %v335, %v327
        %v376 = vpack.c.b16 %v344, %v336
        %v377 = vpack.c.b16 %v345, %v337
        %v378 = vpack.c.b16 %v346, %v338
        %v379 = vpack.c.b16 %v347, %v339
        %v380 = vpack.c.b16 %v348, %v340
        %v381 = vpack.c.b16 %v349, %v341
        %v382 = vpack.c.b16 %v350, %v342
        %v383 = vpack.c.b16 %v351, %v343
        %v384 = vpack.c.b16 %v360, %v352
        %v385 = vpack.c.b16 %v361, %v353
        %v386 = vpack.c.b16 %v362, %v354
        %v387 = vpack.c.b16 %v363, %v355
        %v388 = vpack.c.b16 %v364, %v356
        %v389 = vpack.c.b16 %v365, %v357
        %v390 = vpack.c.b16 %v366, %v358
        %v391 = vpack.c.b16 %v367, %v359
        %vm416 = vcmask 392192
        %v418 = vsel %vm416, %v294, 0
        %v421 = vsel %vm416, %v295, 0
        %423 = vmatpush.bf16.msra.mxu0 0
        %424 = vmatpush.bf16.msra.mxu0 0
        %425 = vmatpush.bf16.msra.mxu0 0
        %426 = vmatpush.bf16.msra.mxu0 0
        %427 = vmatpush.bf16.msra.mxu0 0
        %428 = vmatpush.bf16.msra.mxu0 %v384
        %429 = vmatpush.bf16.msra.mxu0 %v376
        %430 = vmatpush.bf16.msra.mxu0 %v368
        %431 = vmatmul.bf16.gmra.mxu0 %v418
        %v432 = vpop.f32.mrf.mxu0
        %v433 = vadd.f32 %v269, %v432
        %v434 = vpop.f32.mrf.mxu0
        %v435 = vadd.f32 %v274, %v434
        %436 = vmatmul.bf16.gmra.mxu0 %v421
        %v437 = vpop.f32.mrf.mxu0
        %v438 = vadd.f32 %v279, %v437
        %v439 = vpop.f32.mrf.mxu0
        %v440 = vadd.f32 %v284, %v439
        %441 = vdwg.mxu0
        %442 = vmatpush.bf16.msra.mxu0 0
        %443 = vmatpush.bf16.msra.mxu0 0
        %444 = vmatpush.bf16.msra.mxu0 0
        %445 = vmatpush.bf16.msra.mxu0 0
        %446 = vmatpush.bf16.msra.mxu0 0
        %447 = vmatpush.bf16.msra.mxu0 %v385
        %448 = vmatpush.bf16.msra.mxu0 %v377
        %449 = vmatpush.bf16.msra.mxu0 %v369
        %450 = vmatmul.bf16.gmra.mxu0 %v418
        %v451 = vpop.f32.mrf.mxu0
        %v452 = vadd.f32 %v269, %v451
        %v453 = vpop.f32.mrf.mxu0
        %v454 = vadd.f32 %v274, %v453
        %455 = vmatmul.bf16.gmra.mxu0 %v421
        %v456 = vpop.f32.mrf.mxu0
        %v457 = vadd.f32 %v279, %v456
        %v458 = vpop.f32.mrf.mxu0
        %v459 = vadd.f32 %v284, %v458
        %460 = vdwg.mxu0
        %461 = vmatpush.bf16.msra.mxu0 0
        %462 = vmatpush.bf16.msra.mxu0 0
        %463 = vmatpush.bf16.msra.mxu0 0
        %464 = vmatpush.bf16.msra.mxu0 0
        %465 = vmatpush.bf16.msra.mxu0 0
        %466 = vmatpush.bf16.msra.mxu0 %v386
        %467 = vmatpush.bf16.msra.mxu0 %v378
        %468 = vmatpush.bf16.msra.mxu0 %v370
        %469 = vmatmul.bf16.gmra.mxu0 %v418
        %v470 = vpop.f32.mrf.mxu0
        %v471 = vadd.f32 %v269, %v470
        %v472 = vpop.f32.mrf.mxu0
        %v473 = vadd.f32 %v274, %v472
        %474 = vmatmul.bf16.gmra.mxu0 %v421
        %v475 = vpop.f32.mrf.mxu0
        %v476 = vadd.f32 %v279, %v475
        %v477 = vpop.f32.mrf.mxu0
        %v478 = vadd.f32 %v284, %v477
        %479 = vdwg.mxu0
        %480 = vmatpush.bf16.msra.mxu0 0
        %481 = vmatpush.bf16.msra.mxu0 0
        %482 = vmatpush.bf16.msra.mxu0 0
        %483 = vmatpush.bf16.msra.mxu0 0
        %484 = vmatpush.bf16.msra.mxu0 0
        %485 = vmatpush.bf16.msra.mxu0 %v387
        %486 = vmatpush.bf16.msra.mxu0 %v379
        %487 = vmatpush.bf16.msra.mxu0 %v371
        %488 = vmatmul.bf16.gmra.mxu0 %v418
        %v489 = vpop.f32.mrf.mxu0
        %v490 = vadd.f32 %v269, %v489
        %v491 = vpop.f32.mrf.mxu0
        %v492 = vadd.f32 %v274, %v491
        %493 = vmatmul.bf16.gmra.mxu0 %v421
        %v494 = vpop.f32.mrf.mxu0
        %v495 = vadd.f32 %v279, %v494
        %v496 = vpop.f32.mrf.mxu0
        %v497 = vadd.f32 %v284, %v496
        %498 = vdwg.mxu0
        %499 = vmatpush.bf16.msra.mxu0 0
        %500 = vmatpush.bf16.msra.mxu0 0
        %501 = vmatpush.bf16.msra.mxu0 0
        %502 = vmatpush.bf16.msra.mxu0 0
        %503 = vmatpush.bf16.msra.mxu0 0
        %504 = vmatpush.bf16.msra.mxu0 %v388
        %505 = vmatpush.bf16.msra.mxu0 %v380
        %506 = vmatpush.bf16.msra.mxu0 %v372
        %507 = vmatmul.bf16.gmra.mxu0 %v418
        %v508 = vpop.f32.mrf.mxu0
        %v509 = vadd.f32 %v269, %v508
        %v510 = vpop.f32.mrf.mxu0
        %v511 = vadd.f32 %v274, %v510
        %512 = vmatmul.bf16.gmra.mxu0 %v421
        %v513 = vpop.f32.mrf.mxu0
        %v514 = vadd.f32 %v279, %v513
        %v515 = vpop.f32.mrf.mxu0
        %v516 = vadd.f32 %v284, %v515
        %517 = vdwg.mxu0
        %518 = vmatpush.bf16.msra.mxu0 0
        %519 = vmatpush.bf16.msra.mxu0 0
        %520 = vmatpush.bf16.msra.mxu0 0
        %521 = vmatpush.bf16.msra.mxu0 0
        %522 = vmatpush.bf16.msra.mxu0 0
        %523 = vmatpush.bf16.msra.mxu0 %v389
        %524 = vmatpush.bf16.msra.mxu0 %v381
        %525 = vmatpush.bf16.msra.mxu0 %v373
        %526 = vmatmul.bf16.gmra.mxu0 %v418
        %v527 = vpop.f32.mrf.mxu0
        %v528 = vadd.f32 %v269, %v527
        %v529 = vpop.f32.mrf.mxu0
        %v530 = vadd.f32 %v274, %v529
        %531 = vmatmul.bf16.gmra.mxu0 %v421
        %v532 = vpop.f32.mrf.mxu0
        %v533 = vadd.f32 %v279, %v532
        %v534 = vpop.f32.mrf.mxu0
        %v535 = vadd.f32 %v284, %v534
        %536 = vdwg.mxu0
        %537 = vmatpush.bf16.msra.mxu0 0
        %538 = vmatpush.bf16.msra.mxu0 0
        %539 = vmatpush.bf16.msra.mxu0 0
        %540 = vmatpush.bf16.msra.mxu0 0
        %541 = vmatpush.bf16.msra.mxu0 0
        %542 = vmatpush.bf16.msra.mxu0 %v390
        %543 = vmatpush.bf16.msra.mxu0 %v382
        %544 = vmatpush.bf16.msra.mxu0 %v374
        %545 = vmatmul.bf16.gmra.mxu0 %v418
        %v546 = vpop.f32.mrf.mxu0
        %v547 = vadd.f32 %v269, %v546
        %v548 = vpop.f32.mrf.mxu0
        %v549 = vadd.f32 %v274, %v548
        %550 = vmatmul.bf16.gmra.mxu0 %v421
        %v551 = vpop.f32.mrf.mxu0
        %v552 = vadd.f32 %v279, %v551
        %v553 = vpop.f32.mrf.mxu0
        %v554 = vadd.f32 %v284, %v553
        %555 = vdwg.mxu0
        %556 = vmatpush.bf16.msra.mxu0 0
        %557 = vmatpush.bf16.msra.mxu0 0
        %558 = vmatpush.bf16.msra.mxu0 0
        %559 = vmatpush.bf16.msra.mxu0 0
        %560 = vmatpush.bf16.msra.mxu0 0
        %561 = vmatpush.bf16.msra.mxu0 %v391
        %562 = vmatpush.bf16.msra.mxu0 %v383
        %563 = vmatpush.bf16.msra.mxu0 %v375
        %564 = vmatmul.bf16.gmra.mxu0 %v418
        %v565 = vpop.f32.mrf.mxu0
        %v566 = vadd.f32 %v269, %v565
        %v567 = vpop.f32.mrf.mxu0
        %v568 = vadd.f32 %v274, %v567
        %569 = vmatmul.bf16.gmra.mxu0 %v421
        %v570 = vpop.f32.mrf.mxu0
        %v571 = vadd.f32 %v279, %v570
        %v572 = vpop.f32.mrf.mxu0
        %v573 = vadd.f32 %v284, %v572
        %574 = vdwg.mxu0
        %v575 = vmul.f32 %v433, 0.02
        %v576 = vmul.f32 %v452, 0.02
        %v577 = vmul.f32 %v471, 0.02
        %v578 = vmul.f32 %v490, 0.02
        %v579 = vmul.f32 %v509, 0.02
        %v580 = vmul.f32 %v528, 0.02
        %v581 = vmul.f32 %v547, 0.02
        %v582 = vmul.f32 %v566, 0.02
        %v583 = vmul.f32 %v435, 0.02
        %v584 = vmul.f32 %v454, 0.02
        %v585 = vmul.f32 %v473, 0.02
        %v586 = vmul.f32 %v492, 0.02
        %v587 = vmul.f32 %v511, 0.02
        %v588 = vmul.f32 %v530, 0.02
        %v589 = vmul.f32 %v549, 0.02
        %v590 = vmul.f32 %v568, 0.02
        %v591 = vmul.f32 %v438, 0.02
        %v592 = vmul.f32 %v457, 0.02
        %v593 = vmul.f32 %v476, 0.02
        %v594 = vmul.f32 %v495, 0.02
        %v595 = vmul.f32 %v514, 0.02
        %v596 = vmul.f32 %v533, 0.02
        %v597 = vmul.f32 %v552, 0.02
        %v598 = vmul.f32 %v571, 0.02
        %v599 = vmul.f32 %v440, 0.02
        %v600 = vmul.f32 %v459, 0.02
        %v601 = vmul.f32 %v478, 0.02
        %v602 = vmul.f32 %v497, 0.02
        %v603 = vmul.f32 %v516, 0.02
        %v604 = vmul.f32 %v535, 0.02
        %v605 = vmul.f32 %v554, 0.02
        %v606 = vmul.f32 %v573, 0.02
        %v607 = vmax.f32 %v433, %v575
        %v608 = vmax.f32 %v452, %v576
        %v609 = vmax.f32 %v471, %v577
        %v610 = vmax.f32 %v490, %v578
        %v611 = vmax.f32 %v509, %v579
        %v612 = vmax.f32 %v528, %v580
        %v613 = vmax.f32 %v547, %v581
        %v614 = vmax.f32 %v566, %v582
        %v615 = vmax.f32 %v435, %v583
        %v616 = vmax.f32 %v454, %v584
        %v617 = vmax.f32 %v473, %v585
        %v618 = vmax.f32 %v492, %v586
        %v619 = vmax.f32 %v511, %v587
        %v620 = vmax.f32 %v530, %v588
        %v621 = vmax.f32 %v549, %v589
        %v622 = vmax.f32 %v568, %v590
        %v623 = vmax.f32 %v438, %v591
        %v624 = vmax.f32 %v457, %v592
        %v625 = vmax.f32 %v476, %v593
        %v626 = vmax.f32 %v495, %v594
        %v627 = vmax.f32 %v514, %v595
        %v628 = vmax.f32 %v533, %v596
        %v629 = vmax.f32 %v552, %v597
        %v630 = vmax.f32 %v571, %v598
        %v631 = vmax.f32 %v440, %v599
        %v632 = vmax.f32 %v459, %v600
        %v633 = vmax.f32 %v478, %v601
        %v634 = vmax.f32 %v497, %v602
        %v635 = vmax.f32 %v516, %v603
        %v636 = vmax.f32 %v535, %v604
        %v637 = vmax.f32 %v554, %v605
        %v638 = vmax.f32 %v573, %v606
        %v639 = vpack.c.bf16 %v608, %v607
        %v640 = vpack.c.bf16 %v610, %v609
        %v641 = vpack.c.bf16 %v612, %v611
        %v642 = vpack.c.bf16 %v614, %v613
        %v643 = vpack.c.bf16 %v616, %v615
        %v644 = vpack.c.bf16 %v618, %v617
        %v645 = vpack.c.bf16 %v620, %v619
        %v646 = vpack.c.bf16 %v622, %v621
        %v647 = vpack.c.bf16 %v624, %v623
        %v648 = vpack.c.bf16 %v626, %v625
        %v649 = vpack.c.bf16 %v628, %v627
        %v650 = vpack.c.bf16 %v630, %v629
        %v651 = vpack.c.bf16 %v632, %v631
        %v652 = vpack.c.bf16 %v634, %v633
        %v653 = vpack.c.bf16 %v636, %v635
        %v654 = vpack.c.bf16 %v638, %v637
        %655 = vst [vmem:[%s230] sm:$0xff] %v639
        %656 = vst [vmem:[%s230 + $0x8] sm:$0xff] %v640
        %657 = vst [vmem:[%s230 + $0x10] sm:$0xff] %v641
        %658 = vst [vmem:[%s230 + $0x18] sm:$0xff] %v642
        %659 = vst [vmem:[%s230 + $0x20] sm:$0xff] %v643
        %660 = vst [vmem:[%s230 + $0x28] sm:$0xff] %v644
        %661 = vst [vmem:[%s230 + $0x30] sm:$0xff] %v645
        %662 = vst [vmem:[%s230 + $0x38] sm:$0xff] %v646
        %663 = vst [vmem:[%s230 + $0x40] sm:$0xff] %v647
        %664 = vst [vmem:[%s230 + $0x48] sm:$0xff] %v648
        %665 = vst [vmem:[%s230 + $0x50] sm:$0xff] %v649
        %666 = vst [vmem:[%s230 + $0x58] sm:$0xff] %v650
        %667 = vst [vmem:[%s230 + $0x60] sm:$0xff] %v651
        %668 = vst [vmem:[%s230 + $0x68] sm:$0xff] %v652
        %669 = vst [vmem:[%s230 + $0x70] sm:$0xff] %v653
        %670 = vst [vmem:[%s230 + $0x78] sm:$0xff] %v654
        %s671 = sand.u32 %s90, 1
        %s672 = sand.u32 %s90, 1
        %s673 = smul.addr %s672, 128
        %s674 = scalar_lea.vmem [#allocation3], %s673
        // Predicated region
        $region56: #{discriminator_forward.4} parent=50 // pred_check
          %p675 = pneg %p100
        $region57: #{discriminator_forward.4} parent=50 // pred_check_branch
          %677 = sbr.rel (%p675) target = $region59
        $region58: #{discriminator_forward.4} parent=50 // pred_region
          %s678 = smul.u32 8, %s14
          %s679 = smul.addr %s678, 4
          %s680 = scalar_lea.vmem %s3, %s679
          // Predicated region
          $region60: #{discriminator_forward.4} parent=58 // pred_check
            _
          $region61: #{discriminator_forward.4} parent=58 // pred_check_branch
            %682 = sbr.rel (0) target = $region63
          $region62: #{discriminator_forward.4} parent=58 // pred_region
            // Predicated region
            $region64: #{discriminator_forward.4} parent=62 // pred_check
              _
            $region65: #{discriminator_forward.4} parent=62 // pred_check_branch
              %684 = sbr.rel (0) target = $region67
            $region66: #{discriminator_forward.4} parent=62 // pred_region
              loop: start=0, step=1, limit=1
              $region68: #{discriminator_forward.4} parent=66 // loop_pre_header
                _
              $region69: #{discriminator_forward.4} parent=66 // loop_header
                %s686 = sphi 0, %s690
                %p687 = scmp.ge.s32.totalorder %s686, 1
                %s691 = sphi %s674, %s674
                %s692 = sphi %s680, %s680
              $region70: #{discriminator_forward.4} parent=66 // loop_header_branch
                %689 = sbr.rel (%p687) target = $region74
              $region71: #{discriminator_forward.4} parent=66 // loop_body
                %v693 = vld [vmem:[%s691] sm:$0xff]
                %694 = vst [vmem:[%s692] sm:$0xff] %v693
                %v695 = vld [vmem:[%s691 + $0x8] sm:$0xff]
                %696 = vst [vmem:[%s692 + $0x8] sm:$0xff] %v695
                %v697 = vld [vmem:[%s691 + $0x10] sm:$0xff]
                %698 = vst [vmem:[%s692 + $0x10] sm:$0xff] %v697
                %v699 = vld [vmem:[%s691 + $0x18] sm:$0xff]
                %700 = vst [vmem:[%s692 + $0x18] sm:$0xff] %v699
                %v701 = vld [vmem:[%s691 + $0x20] sm:$0xff]
                %702 = vst [vmem:[%s692 + $0x40] sm:$0xff] %v701
                %v703 = vld [vmem:[%s691 + $0x28] sm:$0xff]
                %704 = vst [vmem:[%s692 + $0x48] sm:$0xff] %v703
                %v705 = vld [vmem:[%s691 + $0x30] sm:$0xff]
                %706 = vst [vmem:[%s692 + $0x50] sm:$0xff] %v705
                %v707 = vld [vmem:[%s691 + $0x38] sm:$0xff]
                %708 = vst [vmem:[%s692 + $0x58] sm:$0xff] %v707
                %v709 = vld [vmem:[%s691 + $0x40] sm:$0xff]
                %710 = vst [vmem:[%s692 + $0x80] sm:$0xff] %v709
                %v711 = vld [vmem:[%s691 + $0x48] sm:$0xff]
                %712 = vst [vmem:[%s692 + $0x88] sm:$0xff] %v711
                %v713 = vld [vmem:[%s691 + $0x50] sm:$0xff]
                %714 = vst [vmem:[%s692 + $0x90] sm:$0xff] %v713
                %v715 = vld [vmem:[%s691 + $0x58] sm:$0xff]
                %716 = vst [vmem:[%s692 + $0x98] sm:$0xff] %v715
                %v717 = vld [vmem:[%s691 + $0x60] sm:$0xff]
                %718 = vst [vmem:[%s692 + $0xc0] sm:$0xff] %v717
                %v719 = vld [vmem:[%s691 + $0x68] sm:$0xff]
                %720 = vst [vmem:[%s692 + $0xc8] sm:$0xff] %v719
                %v721 = vld [vmem:[%s691 + $0x70] sm:$0xff]
                %722 = vst [vmem:[%s692 + $0xd0] sm:$0xff] %v721
                %v723 = vld [vmem:[%s691 + $0x78] sm:$0xff]
                %724 = vst [vmem:[%s692 + $0xd8] sm:$0xff] %v723
              $region72: #{discriminator_forward.4} parent=66 // loop_footer
                %s690 = sadd.s32 1, %s686
              $region73: #{discriminator_forward.4} parent=66 // loop_footer_branch
                %685 = sbr.rel target = $region69
              $region74: #{discriminator_forward.4} parent=66 // loop_exit
                _
            $region67: #{discriminator_forward.4} parent=62 // pred_fallthru
              _
            // Predicated region
            $region75: #{discriminator_forward.4} parent=62 // pred_check
              _
            $region76: #{discriminator_forward.4} parent=62 // pred_check_branch
              %726 = sbr.rel target = $region78
            $region77: #{discriminator_forward.4} parent=62 // pred_region
              _
            $region78: #{discriminator_forward.4} parent=62 // pred_fallthru
              _
          $region63: #{discriminator_forward.4} parent=58 // pred_fallthru
            _
          %727 = vnop
        $region59: #{discriminator_forward.4} parent=50 // pred_fallthru
          _
      $region51: #{discriminator_forward.4} parent=5 // pred_fallthru
        _
      %p728 = scmp.le.s32.totalorder 2, %s9
      // Predicated region
      $region79: #{discriminator_forward.4} parent=5 // pred_check
        %p729 = pneg %p728
      $region80: #{discriminator_forward.4} parent=5 // pred_check_branch
        %731 = sbr.rel (%p729) target = $region82
      $region81: #{discriminator_forward.4} parent=5 // pred_region
        %s732 = ssub.s32 %s9, 2
        // Predicated region
        $region83: #{discriminator_forward.4} parent=81 // pred_check
          %p733 = pneg %p106
        $region84: #{discriminator_forward.4} parent=81 // pred_check_branch
          %735 = sbr.rel (%p733) target = $region86
        $region85: #{discriminator_forward.4} parent=81 // pred_region
          %s736 = sand.u32 %s91, 1
          %s737 = sand.u32 %s91, 1
          %s738 = smul.addr %s737, 128
          %s739 = scalar_lea.vmem [#allocation3], %s738
        $region86: #{discriminator_forward.4} parent=81 // pred_fallthru
          _
      $region82: #{discriminator_forward.4} parent=5 // pred_fallthru
        _
    $region6: #{discriminator_forward.4} parent=1 // loop_footer
      %s13 = sadd.s32 1, %s9
    $region7: #{discriminator_forward.4} parent=1 // loop_footer_branch
      %8 = sbr.rel target = $region3
    $region8: #{discriminator_forward.4} parent=1 // loop_exit
      _

// kernel: discriminator_forward.5
$region0: #{discriminator_forward.5}
  #allocation0 [shape = 'u32[]', space=smem, size = 0x4, offset = 0x4, fixed_abs, tag = 'smem constant byte address 0x4 - core index']
  #allocation1 [shape = 'u32[72,128]{1,0:T(1,128)}', space=vmem, size = 0x9000, scoped, tag = 'internal scratch']
  %s0 = inlined_call_operand.vmem [shape: bf16[64,512], index: 0, kind: input, shape index: {}]
  %s1 = inlined_call_operand.vmem [shape: bf16[512,512], index: 1, kind: input, shape index: {}]
  %s2 = inlined_call_operand.vmem [shape: f32[64,1], index: 2, kind: input, shape index: {}]
  %s3 = inlined_call_operand.vmem [shape: bf16[64,512], index: 3, kind: output, shape index: {}]
  %s4 = sld [smem:[#allocation0]]
  $region117: #{discriminator_forward.5} parent=0
    _
  %s6 = ssub.s32 1, %s4
  %s7 = scalar_select 0, %s6, %s4
  $region1: #{discriminator_forward.5} parent=0
    #allocation2 [shape = 'u8[524288]{0}', space=vmem, size = 0x80000, scoped, tag = 'input window, operand 1']
    #allocation3 [shape = 'u8[65536]{0}', space=vmem, size = 0x10000, scoped, tag = 'output window, operand 0']
    loop: start=0, step=1, limit=4
    $region2: #{discriminator_forward.5} parent=1 // loop_pre_header
      _
    $region3: #{discriminator_forward.5} parent=1 // loop_header
      %s9 = sphi 0, %s13
      %p10 = scmp.ge.s32.totalorder %s9, 4
      %s17 = sphi 0, %s17
      %s19 = sphi 0, %s17
      %s20 = sphi 0, %s19
      %s34 = sphi 0, %s20
      %s40 = sphi 0, %s42
      %s43 = sphi 0, %s40
      %s44 = sphi 0, %s43
      %s60 = sphi 0, %s44
      %s64 = sphi 0, %s64
      %s66 = sphi 0, %s64
      %s67 = sphi 0, %s66
      %s81 = sphi 0, %s67
      %s87 = sphi 0, %s89
      %s90 = sphi 0, %s87
      %s91 = sphi 0, %s90
      %s107 = sphi 0, %s91
    $region4: #{discriminator_forward.5} parent=1 // loop_header_branch
      %12 = sbr.rel (%p10) target = $region8
    $region5: #{discriminator_forward.5} parent=1 // loop_body
      %s14 = ssub.s32 %s9, 1
      %s15 = ssub.s32 %s9, 2
      %s16 = sadd.s32 %s9, 1
      %s18 = sadd.s32 %s17, 1
      %p21 = scmp.eq.s32.totalorder %s9, 1
      %p22 = scmp.ne.s32.totalorder %s17, %s19
      %p23 = scmp.eq.s32.totalorder %s9, 0
      %p24 = por %p22, %p23
      %p25 = scmp.ne.s32.totalorder %s17, %s19
      %p26 = scmp.eq.s32.totalorder %s14, 1
      %p27 = por %p25, %p26
      %p28 = scmp.ne.s32.totalorder %s19, %s20
      %p29 = scmp.eq.s32.totalorder %s14, 0
      %p30 = por %p28, %p29
      %p31 = scmp.ne.s32.totalorder %s19, %s20
      %p32 = scmp.eq.s32.totalorder %s15, 1
      %p33 = por %p31, %p32
      %p35 = scmp.ne.s32.totalorder %s20, %s34
      %p36 = scmp.eq.s32.totalorder %s15, 0
      %p37 = por %p35, %p36
      %s38 = ssub.s32 %s9, %s16
      %p39 = scmp.eq.s32.totalorder %s38, 0
      %s41 = sadd.s32 %s40, 1
      %s42 = scalar_select %p39, %s40, %s41
      %p45 = pneg %p39
      %p46 = scmp.eq.s32.totalorder %s9, 1
      %p47 = por %p45, %p46
      %p48 = scmp.ne.s32.totalorder %s40, %s43
      %p49 = scmp.eq.s32.totalorder %s9, 0
      %p50 = por %p48, %p49
      %p51 = scmp.ne.s32.totalorder %s40, %s43
      %p52 = scmp.eq.s32.totalorder %s14, 1
      %p53 = por %p51, %p52
      %p54 = scmp.ne.s32.totalorder %s43, %s44
      %p55 = scmp.eq.s32.totalorder %s14, 0
      %p56 = por %p54, %p55
      %p57 = scmp.ne.s32.totalorder %s43, %s44
      %p58 = scmp.eq.s32.totalorder %s15, 1
      %p59 = por %p57, %p58
      %p61 = scmp.ne.s32.totalorder %s44, %s60
      %p62 = scmp.eq.s32.totalorder %s15, 0
      %p63 = por %p61, %p62
      %s65 = sadd.s32 %s64, 1
      %p68 = scmp.eq.s32.totalorder %s9, 1
      %p69 = scmp.ne.s32.totalorder %s64, %s66
      %p70 = scmp.eq.s32.totalorder %s9, 0
      %p71 = por %p69, %p70
      %p72 = scmp.ne.s32.totalorder %s64, %s66
      %p73 = scmp.eq.s32.totalorder %s14, 1
      %p74 = por %p72, %p73
      %p75 = scmp.ne.s32.totalorder %s66, %s67
      %p76 = scmp.eq.s32.totalorder %s14, 0
      %p77 = por %p75, %p76
      %p78 = scmp.ne.s32.totalorder %s66, %s67
      %p79 = scmp.eq.s32.totalorder %s15, 1
      %p80 = por %p78, %p79
      %p82 = scmp.ne.s32.totalorder %s67, %s81
      %p83 = scmp.eq.s32.totalorder %s15, 0
      %p84 = por %p82, %p83
      %s85 = ssub.s32 %s9, %s16
      %p86 = scmp.eq.s32.totalorder %s85, 0
      %s88 = sadd.s32 %s87, 1
      %s89 = scalar_select %p86, %s87, %s88
      %p92 = pneg %p86
      %p93 = scmp.eq.s32.totalorder %s9, 1
      %p94 = por %p92, %p93
      %p95 = scmp.ne.s32.totalorder %s87, %s90
      %p96 = scmp.eq.s32.totalorder %s9, 0
      %p97 = por %p95, %p96
      %p98 = scmp.ne.s32.totalorder %s87, %s90
      %p99 = scmp.eq.s32.totalorder %s14, 1
      %p100 = por %p98, %p99
      %p101 = scmp.ne.s32.totalorder %s90, %s91
      %p102 = scmp.eq.s32.totalorder %s14, 0
      %p103 = por %p101, %p102
      %p104 = scmp.ne.s32.totalorder %s90, %s91
      %p105 = scmp.eq.s32.totalorder %s15, 1
      %p106 = por %p104, %p105
      %p108 = scmp.ne.s32.totalorder %s91, %s107
      %p109 = scmp.eq.s32.totalorder %s15, 0
      %p110 = por %p108, %p109
      %p111 = scmp.le.s32.totalorder 1, %s9
      %p112 = scmp.lt.s32.totalorder %s9, 3
      %p113 = pnand %p111, %p112
      %p114 = pneg %p113
      // Predicated region
      $region9: #{discriminator_forward.5} parent=5 // pred_check
        _
      $region10: #{discriminator_forward.5} parent=5 // pred_check_branch
        %116 = sbr.rel (%p113) target = $region12
      $region11: #{discriminator_forward.5} parent=5 // pred_region
        %s117 = ssub.s32 %s9, 1
        // Predicated region
        $region13: #{discriminator_forward.5} parent=11 // pred_check
          %p118 = pneg %p30
        $region14: #{discriminator_forward.5} parent=11 // pred_check_branch
          %120 = sbr.rel (%p118) target = $region16
        $region15: #{discriminator_forward.5} parent=11 // pred_region
          _
        $region16: #{discriminator_forward.5} parent=11 // pred_fallthru
          _
        // Predicated region
        $region17: #{discriminator_forward.5} parent=11 // pred_check
          %p121 = pneg %p77
        $region18: #{discriminator_forward.5} parent=11 // pred_check_branch
          %123 = sbr.rel (%p121) target = $region20
        $region19: #{discriminator_forward.5} parent=11 // pred_region
          _
        $region20: #{discriminator_forward.5} parent=11 // pred_fallthru
          _
      $region12: #{discriminator_forward.5} parent=5 // pred_fallthru
        _
      %p124 = scmp.lt.s32.totalorder %s9, 2
      // Predicated region
      $region21: #{discriminator_forward.5} parent=5 // pred_check
        %p125 = pneg %p124
      $region22: #{discriminator_forward.5} parent=5 // pred_check_branch
        %127 = sbr.rel (%p125) target = $region24
      $region23: #{discriminator_forward.5} parent=5 // pred_region
        // Predicated region
        $region25: #{discriminator_forward.5} parent=23 // pred_check
          %p128 = pneg %p50
        $region26: #{discriminator_forward.5} parent=23 // pred_check_branch
          %130 = sbr.rel (%p128) target = $region28
        $region27: #{discriminator_forward.5} parent=23 // pred_region
          %s131 = sand.u32 %s40, 1
          %s132 = sand.u32 %s40, 1
          %s133 = smul.addr %s132, 512
          %s134 = scalar_lea.vmem [#allocation2], %s133
          %s135 = smul.u32 2, %s9
          %s136 = smul.addr %s135, 4
          %s137 = scalar_lea.vmem %s1, %s136
          // Predicated region
          $region29: #{discriminator_forward.5} parent=27 // pred_check
            _
          $region30: #{discriminator_forward.5} parent=27 // pred_check_branch
            %139 = sbr.rel (0) target = $region32
          $region31: #{discriminator_forward.5} parent=27 // pred_region
            // Predicated region
            $region33: #{discriminator_forward.5} parent=31 // pred_check
              _
            $region34: #{discriminator_forward.5} parent=31 // pred_check_branch
              %141 = sbr.rel (0) target = $region36
            $region35: #{discriminator_forward.5} parent=31 // pred_region
              // Predicated region
              $region48: #{discriminator_forward.5} parent=35 // pred_check
                _
              $region49: #{discriminator_forward.5} parent=35 // pred_check_branch
                %283 = sbr.rel (0) target = $region51
              $region50: #{discriminator_forward.5} parent=35 // pred_region
                loop: start=0, step=1, limit=1
                $region52: #{discriminator_forward.5} parent=50 // loop_pre_header
                  _
                $region53: #{discriminator_forward.5} parent=50 // loop_header
                  %s285 = sphi 0, %s289
                  %p286 = scmp.ge.s32.totalorder %s285, 1
                  %s290 = sphi %s137, %s137
                  %s291 = sphi %s134, %s134
                $region54: #{discriminator_forward.5} parent=50 // loop_header_branch
                  %288 = sbr.rel (%p286) target = $region58
                $region55: #{discriminator_forward.5} parent=50 // loop_body
                  %v292 = vld [vmem:[%s290] sm:$0xff]
                  %293 = vst [vmem:[%s291] sm:$0xff] %v292
                  %v294 = vld [vmem:[%s290 + $0x10] sm:$0xff]
                  %295 = vst [vmem:[%s291 + $0x8] sm:$0xff] %v294
                  %v296 = vld [vmem:[%s290 + $0x20] sm:$0xff]
                  %297 = vst [vmem:[%s291 + $0x10] sm:$0xff] %v296
                  %v298 = vld [vmem:[%s290 + $0x30] sm:$0xff]
                  %299 = vst [vmem:[%s291 + $0x18] sm:$0xff] %v298
                  %v300 = vld [vmem:[%s290 + $0x40] sm:$0xff]
                  %301 = vst [vmem:[%s291 + $0x20] sm:$0xff] %v300
                  %v302 = vld [vmem:[%s290 + $0x50] sm:$0xff]
                  %303 = vst [vmem:[%s291 + $0x28] sm:$0xff] %v302
                  %v304 = vld [vmem:[%s290 + $0x60] sm:$0xff]
                  %305 = vst [vmem:[%s291 + $0x30] sm:$0xff] %v304
                  %v306 = vld [vmem:[%s290 + $0x70] sm:$0xff]
                  %307 = vst [vmem:[%s291 + $0x38] sm:$0xff] %v306
                  %v308 = vld [vmem:[%s290 + $0x80] sm:$0xff]
                  %309 = vst [vmem:[%s291 + $0x40] sm:$0xff] %v308
                  %v310 = vld [vmem:[%s290 + $0x90] sm:$0xff]
                  %311 = vst [vmem:[%s291 + $0x48] sm:$0xff] %v310
                  %v312 = vld [vmem:[%s290 + $0xa0] sm:$0xff]
                  %313 = vst [vmem:[%s291 + $0x50] sm:$0xff] %v312
                  %v314 = vld [vmem:[%s290 + $0xb0] sm:$0xff]
                  %315 = vst [vmem:[%s291 + $0x58] sm:$0xff] %v314
                  %v316 = vld [vmem:[%s290 + $0xc0] sm:$0xff]
                  %317 = vst [vmem:[%s291 + $0x60] sm:$0xff] %v316
                  %v318 = vld [vmem:[%s290 + $0xd0] sm:$0xff]
                  %319 = vst [vmem:[%s291 + $0x68] sm:$0xff] %v318
                  %v320 = vld [vmem:[%s290 + $0xe0] sm:$0xff]
                  %321 = vst [vmem:[%s291 + $0x70] sm:$0xff] %v320
                  %v322 = vld [vmem:[%s290 + $0xf0] sm:$0xff]
                  %323 = vst [vmem:[%s291 + $0x78] sm:$0xff] %v322
                  %v324 = vld [vmem:[%s290 + $0x100] sm:$0xff]
                  %325 = vst [vmem:[%s291 + $0x80] sm:$0xff] %v324
                  %v326 = vld [vmem:[%s290 + $0x110] sm:$0xff]
                  %327 = vst [vmem:[%s291 + $0x88] sm:$0xff] %v326
                  %v328 = vld [vmem:[%s290 + $0x120] sm:$0xff]
                  %329 = vst [vmem:[%s291 + $0x90] sm:$0xff] %v328
                  %v330 = vld [vmem:[%s290 + $0x130] sm:$0xff]
                  %331 = vst [vmem:[%s291 + $0x98] sm:$0xff] %v330
                  %v332 = vld [vmem:[%s290 + $0x140] sm:$0xff]
                  %333 = vst [vmem:[%s291 + $0xa0] sm:$0xff] %v332
                  %v334 = vld [vmem:[%s290 + $0x150] sm:$0xff]
                  %335 = vst [vmem:[%s291 + $0xa8] sm:$0xff] %v334
                  %v336 = vld [vmem:[%s290 + $0x160] sm:$0xff]
                  %337 = vst [vmem:[%s291 + $0xb0] sm:$0xff] %v336
                  %v338 = vld [vmem:[%s290 + $0x170] sm:$0xff]
                  %339 = vst [vmem:[%s291 + $0xb8] sm:$0xff] %v338
                  %v340 = vld [vmem:[%s290 + $0x180] sm:$0xff]
                  %341 = vst [vmem:[%s291 + $0xc0] sm:$0xff] %v340
                  %v342 = vld [vmem:[%s290 + $0x190] sm:$0xff]
                  %343 = vst [vmem:[%s291 + $0xc8] sm:$0xff] %v342
                  %v344 = vld [vmem:[%s290 + $0x1a0] sm:$0xff]
                  %345 = vst [vmem:[%s291 + $0xd0] sm:$0xff] %v344
                  %v346 = vld [vmem:[%s290 + $0x1b0] sm:$0xff]
                  %347 = vst [vmem:[%s291 + $0xd8] sm:$0xff] %v346
                  %v348 = vld [vmem:[%s290 + $0x1c0] sm:$0xff]
                  %349 = vst [vmem:[%s291 + $0xe0] sm:$0xff] %v348
                  %v350 = vld [vmem:[%s290 + $0x1d0] sm:$0xff]
                  %351 = vst [vmem:[%s291 + $0xe8] sm:$0xff] %v350
                  %v352 = vld [vmem:[%s290 + $0x1e0] sm:$0xff]
                  %353 = vst [vmem:[%s291 + $0xf0] sm:$0xff] %v352
                  %v354 = vld [vmem:[%s290 + $0x1f0] sm:$0xff]
                  %355 = vst [vmem:[%s291 + $0xf8] sm:$0xff] %v354
                  %v356 = vld [vmem:[%s290 + $0x200] sm:$0xff]
                  %357 = vst [vmem:[%s291 + $0x100] sm:$0xff] %v356
                  %v358 = vld [vmem:[%s290 + $0x210] sm:$0xff]
                  %359 = vst [vmem:[%s291 + $0x108] sm:$0xff] %v358
                  %v360 = vld [vmem:[%s290 + $0x220] sm:$0xff]
                  %361 = vst [vmem:[%s291 + $0x110] sm:$0xff] %v360
                  %v362 = vld [vmem:[%s290 + $0x230] sm:$0xff]
                  %363 = vst [vmem:[%s291 + $0x118] sm:$0xff] %v362
                  %v364 = vld [vmem:[%s290 + $0x240] sm:$0xff]
                  %365 = vst [vmem:[%s291 + $0x120] sm:$0xff] %v364
                  %v366 = vld [vmem:[%s290 + $0x250] sm:$0xff]
                  %367 = vst [vmem:[%s291 + $0x128] sm:$0xff] %v366
                  %v368 = vld [vmem:[%s290 + $0x260] sm:$0xff]
                  %369 = vst [vmem:[%s291 + $0x130] sm:$0xff] %v368
                  %v370 = vld [vmem:[%s290 + $0x270] sm:$0xff]
                  %371 = vst [vmem:[%s291 + $0x138] sm:$0xff] %v370
                  %v372 = vld [vmem:[%s290 + $0x280] sm:$0xff]
                  %373 = vst [vmem:[%s291 + $0x140] sm:$0xff] %v372
                  %v374 = vld [vmem:[%s290 + $0x290] sm:$0xff]
                  %375 = vst [vmem:[%s291 + $0x148] sm:$0xff] %v374
                  %v376 = vld [vmem:[%s290 + $0x2a0] sm:$0xff]
                  %377 = vst [vmem:[%s291 + $0x150] sm:$0xff] %v376
                  %v378 = vld [vmem:[%s290 + $0x2b0] sm:$0xff]
                  %379 = vst [vmem:[%s291 + $0x158] sm:$0xff] %v378
                  %v380 = vld [vmem:[%s290 + $0x2c0] sm:$0xff]
                  %381 = vst [vmem:[%s291 + $0x160] sm:$0xff] %v380
                  %v382 = vld [vmem:[%s290 + $0x2d0] sm:$0xff]
                  %383 = vst [vmem:[%s291 + $0x168] sm:$0xff] %v382
                  %v384 = vld [vmem:[%s290 + $0x2e0] sm:$0xff]
                  %385 = vst [vmem:[%s291 + $0x170] sm:$0xff] %v384
                  %v386 = vld [vmem:[%s290 + $0x2f0] sm:$0xff]
                  %387 = vst [vmem:[%s291 + $0x178] sm:$0xff] %v386
                  %v388 = vld [vmem:[%s290 + $0x300] sm:$0xff]
                  %389 = vst [vmem:[%s291 + $0x180] sm:$0xff] %v388
                  %v390 = vld [vmem:[%s290 + $0x310] sm:$0xff]
                  %391 = vst [vmem:[%s291 + $0x188] sm:$0xff] %v390
                  %v392 = vld [vmem:[%s290 + $0x320] sm:$0xff]
                  %393 = vst [vmem:[%s291 + $0x190] sm:$0xff] %v392
                  %v394 = vld [vmem:[%s290 + $0x330] sm:$0xff]
                  %395 = vst [vmem:[%s291 + $0x198] sm:$0xff] %v394
                  %v396 = vld [vmem:[%s290 + $0x340] sm:$0xff]
                  %397 = vst [vmem:[%s291 + $0x1a0] sm:$0xff] %v396
                  %v398 = vld [vmem:[%s290 + $0x350] sm:$0xff]
                  %399 = vst [vmem:[%s291 + $0x1a8] sm:$0xff] %v398
                  %v400 = vld [vmem:[%s290 + $0x360] sm:$0xff]
                  %401 = vst [vmem:[%s291 + $0x1b0] sm:$0xff] %v400
                  %v402 = vld [vmem:[%s290 + $0x370] sm:$0xff]
                  %403 = vst [vmem:[%s291 + $0x1b8] sm:$0xff] %v402
                  %v404 = vld [vmem:[%s290 + $0x380] sm:$0xff]
                  %405 = vst [vmem:[%s291 + $0x1c0] sm:$0xff] %v404
                  %v406 = vld [vmem:[%s290 + $0x390] sm:$0xff]
                  %407 = vst [vmem:[%s291 + $0x1c8] sm:$0xff] %v406
                  %v408 = vld [vmem:[%s290 + $0x3a0] sm:$0xff]
                  %409 = vst [vmem:[%s291 + $0x1d0] sm:$0xff] %v408
                  %v410 = vld [vmem:[%s290 + $0x3b0] sm:$0xff]
                  %411 = vst [vmem:[%s291 + $0x1d8] sm:$0xff] %v410
                  %v412 = vld [vmem:[%s290 + $0x3c0] sm:$0xff]
                  %413 = vst [vmem:[%s291 + $0x1e0] sm:$0xff] %v412
                  %v414 = vld [vmem:[%s290 + $0x3d0] sm:$0xff]
                  %415 = vst [vmem:[%s291 + $0x1e8] sm:$0xff] %v414
                  %v416 = vld [vmem:[%s290 + $0x3e0] sm:$0xff]
                  %417 = vst [vmem:[%s291 + $0x1f0] sm:$0xff] %v416
                  %v418 = vld [vmem:[%s290 + $0x3f0] sm:$0xff]
                  %419 = vst [vmem:[%s291 + $0x1f8] sm:$0xff] %v418
                $region56: #{discriminator_forward.5} parent=50 // loop_footer
                  %s289 = sadd.s32 1, %s285
                $region57: #{discriminator_forward.5} parent=50 // loop_footer_branch
                  %284 = sbr.rel target = $region53
                $region58: #{discriminator_forward.5} parent=50 // loop_exit
                  _
              $region51: #{discriminator_forward.5} parent=35 // pred_fallthru
                _
              // Predicated region
              $region59: #{discriminator_forward.5} parent=35 // pred_check
                _
              $region60: #{discriminator_forward.5} parent=35 // pred_check_branch
                %421 = sbr.rel target = $region62
              $region61: #{discriminator_forward.5} parent=35 // pred_region
                _
              $region62: #{discriminator_forward.5} parent=35 // pred_fallthru
                _
            $region36: #{discriminator_forward.5} parent=31 // pred_fallthru
              _
            // Predicated region
            $region37: #{discriminator_forward.5} parent=31 // pred_check
              _
            $region38: #{discriminator_forward.5} parent=31 // pred_check_branch
              %143 = sbr.rel target = $region40
            $region39: #{discriminator_forward.5} parent=31 // pred_region
              %s145 = ssub.s32 256, 1
              loop: start=0, step=1, limit=1
              $region41: #{discriminator_forward.5} parent=39 // loop_pre_header
                _
              $region42: #{discriminator_forward.5} parent=39 // loop_header
                %s147 = sphi 0, %s151
                %p148 = scmp.ge.s32.totalorder %s147, 1
                %s152 = sphi %s137, %s137
                %s153 = sphi %s134, %s134
              $region43: #{discriminator_forward.5} parent=39 // loop_header_branch
                %150 = sbr.rel (%p148) target = $region47
              $region44: #{discriminator_forward.5} parent=39 // loop_body
                %v154 = vld [vmem:[%s152] sm:%s145]
                %155 = vst [vmem:[%s153] sm:%s145] %v154
                %v156 = vld [vmem:[%s152 + $0x10] sm:%s145]
                %157 = vst [vmem:[%s153 + $0x8] sm:%s145] %v156
                %v158 = vld [vmem:[%s152 + $0x20] sm:%s145]
                %159 = vst [vmem:[%s153 + $0x10] sm:%s145] %v158
                %v160 = vld [vmem:[%s152 + $0x30] sm:%s145]
                %161 = vst [vmem:[%s153 + $0x18] sm:%s145] %v160
                %v162 = vld [vmem:[%s152 + $0x40] sm:%s145]
                %163 = vst [vmem:[%s153 + $0x20] sm:%s145] %v162
                %v164 = vld [vmem:[%s152 + $0x50] sm:%s145]
                %165 = vst [vmem:[%s153 + $0x28] sm:%s145] %v164
                %v166 = vld [vmem:[%s152 + $0x60] sm:%s145]
                %167 = vst [vmem:[%s153 + $0x30] sm:%s145] %v166
                %v168 = vld [vmem:[%s152 + $0x70] sm:%s145]
                %169 = vst [vmem:[%s153 + $0x38] sm:%s145] %v168
                %v170 = vld [vmem:[%s152 + $0x80] sm:%s145]
                %171 = vst [vmem:[%s153 + $0x40] sm:%s145] %v170
                %v172 = vld [vmem:[%s152 + $0x90] sm:%s145]
                %173 = vst [vmem:[%s153 + $0x48] sm:%s145] %v172
                %v174 = vld [vmem:[%s152 + $0xa0] sm:%s145]
                %175 = vst [vmem:[%s153 + $0x50] sm:%s145] %v174
                %v176 = vld [vmem:[%s152 + $0xb0] sm:%s145]
                %177 = vst [vmem:[%s153 + $0x58] sm:%s145] %v176
                %v178 = vld [vmem:[%s152 + $0xc0] sm:%s145]
                %179 = vst [vmem:[%s153 + $0x60] sm:%s145] %v178
                %v180 = vld [vmem:[%s152 + $0xd0] sm:%s145]
                %181 = vst [vmem:[%s153 + $0x68] sm:%s145] %v180
                %v182 = vld [vmem:[%s152 + $0xe0] sm:%s145]
                %183 = vst [vmem:[%s153 + $0x70] sm:%s145] %v182
                %v184 = vld [vmem:[%s152 + $0xf0] sm:%s145]
                %185 = vst [vmem:[%s153 + $0x78] sm:%s145] %v184
                %v186 = vld [vmem:[%s152 + $0x100] sm:%s145]
                %187 = vst [vmem:[%s153 + $0x80] sm:%s145] %v186
                %v188 = vld [vmem:[%s152 + $0x110] sm:%s145]
                %189 = vst [vmem:[%s153 + $0x88] sm:%s145] %v188
                %v190 = vld [vmem:[%s152 + $0x120] sm:%s145]
                %191 = vst [vmem:[%s153 + $0x90] sm:%s145] %v190
                %v192 = vld [vmem:[%s152 + $0x130] sm:%s145]
                %193 = vst [vmem:[%s153 + $0x98] sm:%s145] %v192
                %v194 = vld [vmem:[%s152 + $0x140] sm:%s145]
                %195 = vst [vmem:[%s153 + $0xa0] sm:%s145] %v194
                %v196 = vld [vmem:[%s152 + $0x150] sm:%s145]
                %197 = vst [vmem:[%s153 + $0xa8] sm:%s145] %v196
                %v198 = vld [vmem:[%s152 + $0x160] sm:%s145]
                %199 = vst [vmem:[%s153 + $0xb0] sm:%s145] %v198
                %v200 = vld [vmem:[%s152 + $0x170] sm:%s145]
                %201 = vst [vmem:[%s153 + $0xb8] sm:%s145] %v200
                %v202 = vld [vmem:[%s152 + $0x180] sm:%s145]
                %203 = vst [vmem:[%s153 + $0xc0] sm:%s145] %v202
                %v204 = vld [vmem:[%s152 + $0x190] sm:%s145]
                %205 = vst [vmem:[%s153 + $0xc8] sm:%s145] %v204
                %v206 = vld [vmem:[%s152 + $0x1a0] sm:%s145]
                %207 = vst [vmem:[%s153 + $0xd0] sm:%s145] %v206
                %v208 = vld [vmem:[%s152 + $0x1b0] sm:%s145]
                %209 = vst [vmem:[%s153 + $0xd8] sm:%s145] %v208
                %v210 = vld [vmem:[%s152 + $0x1c0] sm:%s145]
                %211 = vst [vmem:[%s153 + $0xe0] sm:%s145] %v210
                %v212 = vld [vmem:[%s152 + $0x1d0] sm:%s145]
                %213 = vst [vmem:[%s153 + $0xe8] sm:%s145] %v212
                %v214 = vld [vmem:[%s152 + $0x1e0] sm:%s145]
                %215 = vst [vmem:[%s153 + $0xf0] sm:%s145] %v214
                %v216 = vld [vmem:[%s152 + $0x1f0] sm:%s145]
                %217 = vst [vmem:[%s153 + $0xf8] sm:%s145] %v216
                %v218 = vld [vmem:[%s152 + $0x200] sm:%s145]
                %219 = vst [vmem:[%s153 + $0x100] sm:%s145] %v218
                %v220 = vld [vmem:[%s152 + $0x210] sm:%s145]
                %221 = vst [vmem:[%s153 + $0x108] sm:%s145] %v220
                %v222 = vld [vmem:[%s152 + $0x220] sm:%s145]
                %223 = vst [vmem:[%s153 + $0x110] sm:%s145] %v222
                %v224 = vld [vmem:[%s152 + $0x230] sm:%s145]
                %225 = vst [vmem:[%s153 + $0x118] sm:%s145] %v224
                %v226 = vld [vmem:[%s152 + $0x240] sm:%s145]
                %227 = vst [vmem:[%s153 + $0x120] sm:%s145] %v226
                %v228 = vld [vmem:[%s152 + $0x250] sm:%s145]
                %229 = vst [vmem:[%s153 + $0x128] sm:%s145] %v228
                %v230 = vld [vmem:[%s152 + $0x260] sm:%s145]
                %231 = vst [vmem:[%s153 + $0x130] sm:%s145] %v230
                %v232 = vld [vmem:[%s152 + $0x270] sm:%s145]
                %233 = vst [vmem:[%s153 + $0x138] sm:%s145] %v232
                %v234 = vld [vmem:[%s152 + $0x280] sm:%s145]
                %235 = vst [vmem:[%s153 + $0x140] sm:%s145] %v234
                %v236 = vld [vmem:[%s152 + $0x290] sm:%s145]
                %237 = vst [vmem:[%s153 + $0x148] sm:%s145] %v236
                %v238 = vld [vmem:[%s152 + $0x2a0] sm:%s145]
                %239 = vst [vmem:[%s153 + $0x150] sm:%s145] %v238
                %v240 = vld [vmem:[%s152 + $0x2b0] sm:%s145]
                %241 = vst [vmem:[%s153 + $0x158] sm:%s145] %v240
                %v242 = vld [vmem:[%s152 + $0x2c0] sm:%s145]
                %243 = vst [vmem:[%s153 + $0x160] sm:%s145] %v242
                %v244 = vld [vmem:[%s152 + $0x2d0] sm:%s145]
                %245 = vst [vmem:[%s153 + $0x168] sm:%s145] %v244
                %v246 = vld [vmem:[%s152 + $0x2e0] sm:%s145]
                %247 = vst [vmem:[%s153 + $0x170] sm:%s145] %v246
                %v248 = vld [vmem:[%s152 + $0x2f0] sm:%s145]
                %249 = vst [vmem:[%s153 + $0x178] sm:%s145] %v248
                %v250 = vld [vmem:[%s152 + $0x300] sm:%s145]
                %251 = vst [vmem:[%s153 + $0x180] sm:%s145] %v250
                %v252 = vld [vmem:[%s152 + $0x310] sm:%s145]
                %253 = vst [vmem:[%s153 + $0x188] sm:%s145] %v252
                %v254 = vld [vmem:[%s152 + $0x320] sm:%s145]
                %255 = vst [vmem:[%s153 + $0x190] sm:%s145] %v254
                %v256 = vld [vmem:[%s152 + $0x330] sm:%s145]
                %257 = vst [vmem:[%s153 + $0x198] sm:%s145] %v256
                %v258 = vld [vmem:[%s152 + $0x340] sm:%s145]
                %259 = vst [vmem:[%s153 + $0x1a0] sm:%s145] %v258
                %v260 = vld [vmem:[%s152 + $0x350] sm:%s145]
                %261 = vst [vmem:[%s153 + $0x1a8] sm:%s145] %v260
                %v262 = vld [vmem:[%s152 + $0x360] sm:%s145]
                %263 = vst [vmem:[%s153 + $0x1b0] sm:%s145] %v262
                %v264 = vld [vmem:[%s152 + $0x370] sm:%s145]
                %265 = vst [vmem:[%s153 + $0x1b8] sm:%s145] %v264
                %v266 = vld [vmem:[%s152 + $0x380] sm:%s145]
                %267 = vst [vmem:[%s153 + $0x1c0] sm:%s145] %v266
                %v268 = vld [vmem:[%s152 + $0x390] sm:%s145]
                %269 = vst [vmem:[%s153 + $0x1c8] sm:%s145] %v268
                %v270 = vld [vmem:[%s152 + $0x3a0] sm:%s145]
                %271 = vst [vmem:[%s153 + $0x1d0] sm:%s145] %v270
                %v272 = vld [vmem:[%s152 + $0x3b0] sm:%s145]
                %273 = vst [vmem:[%s153 + $0x1d8] sm:%s145] %v272
                %v274 = vld [vmem:[%s152 + $0x3c0] sm:%s145]
                %275 = vst [vmem:[%s153 + $0x1e0] sm:%s145] %v274
                %v276 = vld [vmem:[%s152 + $0x3d0] sm:%s145]
                %277 = vst [vmem:[%s153 + $0x1e8] sm:%s145] %v276
                %v278 = vld [vmem:[%s152 + $0x3e0] sm:%s145]
                %279 = vst [vmem:[%s153 + $0x1f0] sm:%s145] %v278
                %v280 = vld [vmem:[%s152 + $0x3f0] sm:%s145]
                %281 = vst [vmem:[%s153 + $0x1f8] sm:%s145] %v280
              $region45: #{discriminator_forward.5} parent=39 // loop_footer
                %s151 = sadd.s32 1, %s147
              $region46: #{discriminator_forward.5} parent=39 // loop_footer_branch
                %146 = sbr.rel target = $region42
              $region47: #{discriminator_forward.5} parent=39 // loop_exit
                _
            $region40: #{discriminator_forward.5} parent=31 // pred_fallthru
              _
          $region32: #{discriminator_forward.5} parent=27 // pred_fallthru
            _
          %422 = vnop
        $region28: #{discriminator_forward.5} parent=23 // pred_fallthru
          _
      $region24: #{discriminator_forward.5} parent=5 // pred_fallthru
        _
      %p423 = scmp.le.s32.totalorder 1, %s9
      %p424 = scmp.lt.s32.totalorder %s9, 3
      %p425 = pnand %p423, %p424
      %p426 = pneg %p425
      // Predicated region
      $region63: #{discriminator_forward.5} parent=5 // pred_check
        _
      $region64: #{discriminator_forward.5} parent=5 // pred_check_branch
        %428 = sbr.rel (%p425) target = $region66
      $region65: #{discriminator_forward.5} parent=5 // pred_region
        %s429 = ssub.s32 %s9, 1
        %s430 = sand.u32 %s43, 1
        %s431 = sand.u32 %s43, 1
        %s432 = smul.addr %s431, 512
        %s433 = scalar_lea.vmem [#allocation2], %s432
        // Predicated region
        $region67: #{discriminator_forward.5} parent=65 // pred_check
          %p434 = pneg %p56
        $region68: #{discriminator_forward.5} parent=65 // pred_check_branch
          %436 = sbr.rel (%p434) target = $region70
        $region69: #{discriminator_forward.5} parent=65 // pred_region
          _
        $region70: #{discriminator_forward.5} parent=65 // pred_fallthru
          _
        %p437 = pneg %p30
        %p438 = pneg %p27
        %s439 = sand.u32 %s43, 1
        %s440 = sand.u32 %s43, 1
        %s441 = smul.addr %s440, 512
        %s442 = scalar_lea.vmem [#allocation2], %s441
        %p443 = pneg %p56
        %p444 = pneg %p53
        %p445 = pneg %p77
        %p446 = pneg %p74
        %p447 = pneg %p103
        %p448 = pneg %p100
        %s449 = sand.u32 %s90, 1
        %s450 = sand.u32 %s90, 1
        %s451 = smul.addr %s450, 64
        %s452 = scalar_lea.vmem [#allocation3], %s451
        %s453 = smul.u32 2, %s14
        %s454 = smul.u32 2, %s14
        %v455 = vld [vmem:[%s0] sm:$0xff]
        %v456 = vld [vmem:[%s0 + $0x8] sm:$0xff]
        %v457 = vld [vmem:[%s0 + $0x10] sm:$0xff]
        %v458 = vld [vmem:[%s0 + $0x18] sm:$0xff]
        %v459 = vld [vmem:[%s0 + $0x20] sm:$0xff]
        %v460 = vld [vmem:[%s0 + $0x28] sm:$0xff]
        %v461 = vld [vmem:[%s0 + $0x30] sm:$0xff]
        %v462 = vld [vmem:[%s0 + $0x38] sm:$0xff]
        %v463 = vld [vmem:[%s0 + $0x40] sm:$0xff]
        %v464 = vld [vmem:[%s0 + $0x48] sm:$0xff]
        %v465 = vld [vmem:[%s0 + $0x50] sm:$0xff]
        %v466 = vld [vmem:[%s0 + $0x58] sm:$0xff]
        %v467 = vld [vmem:[%s0 + $0x60] sm:$0xff]
        %v468 = vld [vmem:[%s0 + $0x68] sm:$0xff]
        %v469 = vld [vmem:[%s0 + $0x70] sm:$0xff]
        %v470 = vld [vmem:[%s0 + $0x78] sm:$0xff]
        %v471 = vld [vmem:[%s433] sm:$0xff]
        %v472 = vld [vmem:[%s433 + $0x8] sm:$0xff]
        %v473 = vld [vmem:[%s433 + $0x10] sm:$0xff]
        %v474 = vld [vmem:[%s433 + $0x18] sm:$0xff]
        %v475 = vld [vmem:[%s433 + $0x20] sm:$0xff]
        %v476 = vld [vmem:[%s433 + $0x28] sm:$0xff]
        %v477 = vld [vmem:[%s433 + $0x30] sm:$0xff]
        %v478 = vld [vmem:[%s433 + $0x38] sm:$0xff]
        %v479 = vld [vmem:[%s433 + $0x40] sm:$0xff]
        %v480 = vld [vmem:[%s433 + $0x48] sm:$0xff]
        %v481 = vld [vmem:[%s433 + $0x50] sm:$0xff]
        %v482 = vld [vmem:[%s433 + $0x58] sm:$0xff]
        %v483 = vld [vmem:[%s433 + $0x60] sm:$0xff]
        %v484 = vld [vmem:[%s433 + $0x68] sm:$0xff]
        %v485 = vld [vmem:[%s433 + $0x70] sm:$0xff]
        %v486 = vld [vmem:[%s433 + $0x78] sm:$0xff]
        %v487 = vld [vmem:[%s433 + $0x80] sm:$0xff]
        %v488 = vld [vmem:[%s433 + $0x88] sm:$0xff]
        %v489 = vld [vmem:[%s433 + $0x90] sm:$0xff]
        %v490 = vld [vmem:[%s433 + $0x98] sm:$0xff]
        %v491 = vld [vmem:[%s433 + $0xa0] sm:$0xff]
        %v492 = vld [vmem:[%s433 + $0xa8] sm:$0xff]
        %v493 = vld [vmem:[%s433 + $0xb0] sm:$0xff]
        %v494 = vld [vmem:[%s433 + $0xb8] sm:$0xff]
        %v495 = vld [vmem:[%s433 + $0xc0] sm:$0xff]
        %v496 = vld [vmem:[%s433 + $0xc8] sm:$0xff]
        %v497 = vld [vmem:[%s433 + $0xd0] sm:$0xff]
        %v498 = vld [vmem:[%s433 + $0xd8] sm:$0xff]
        %v499 = vld [vmem:[%s433 + $0xe0] sm:$0xff]
        %v500 = vld [vmem:[%s433 + $0xe8] sm:$0xff]
        %v501 = vld [vmem:[%s433 + $0xf0] sm:$0xff]
        %v502 = vld [vmem:[%s433 + $0xf8] sm:$0xff]
        %v503 = vld [vmem:[%s433 + $0x100] sm:$0xff]
        %v504 = vld [vmem:[%s433 + $0x108] sm:$0xff]
        %v505 = vld [vmem:[%s433 + $0x110] sm:$0xff]
        %v506 = vld [vmem:[%s433 + $0x118] sm:$0xff]
        %v507 = vld [vmem:[%s433 + $0x120] sm:$0xff]
        %v508 = vld [vmem:[%s433 + $0x128] sm:$0xff]
        %v509 = vld [vmem:[%s433 + $0x130] sm:$0xff]
        %v510 = vld [vmem:[%s433 + $0x138] sm:$0xff]
        %v511 = vld [vmem:[%s433 + $0x140] sm:$0xff]
        %v512 = vld [vmem:[%s433 + $0x148] sm:$0xff]
        %v513 = vld [vmem:[%s433 + $0x150] sm:$0xff]
        %v514 = vld [vmem:[%s433 + $0x158] sm:$0xff]
        %v515 = vld [vmem:[%s433 + $0x160] sm:$0xff]
        %v516 = vld [vmem:[%s433 + $0x168] sm:$0xff]
        %v517 = vld [vmem:[%s433 + $0x170] sm:$0xff]
        %v518 = vld [vmem:[%s433 + $0x178] sm:$0xff]
        %v519 = vld [vmem:[%s433 + $0x180] sm:$0xff]
        %v520 = vld [vmem:[%s433 + $0x188] sm:$0xff]
        %v521 = vld [vmem:[%s433 + $0x190] sm:$0xff]
        %v522 = vld [vmem:[%s433 + $0x198] sm:$0xff]
        %v523 = vld [vmem:[%s433 + $0x1a0] sm:$0xff]
        %v524 = vld [vmem:[%s433 + $0x1a8] sm:$0xff]
        %v525 = vld [vmem:[%s433 + $0x1b0] sm:$0xff]
        %v526 = vld [vmem:[%s433 + $0x1b8] sm:$0xff]
        %v527 = vld [vmem:[%s433 + $0x1c0] sm:$0xff]
        %v528 = vld [vmem:[%s433 + $0x1c8] sm:$0xff]
        %v529 = vld [vmem:[%s433 + $0x1d0] sm:$0xff]
        %v530 = vld [vmem:[%s433 + $0x1d8] sm:$0xff]
        %v531 = vld [vmem:[%s433 + $0x1e0] sm:$0xff]
        %v532 = vld [vmem:[%s433 + $0x1e8] sm:$0xff]
        %v533 = vld [vmem:[%s433 + $0x1f0] sm:$0xff]
        %v534 = vld [vmem:[%s433 + $0x1f8] sm:$0xff]
        %v535 = vld [vmem:[%s2] sm:$0xff]
        %v536 = vld [vmem:[%s2 + $0x8] sm:$0xff]
        %v537 = vld [vmem:[%s2 + $0x10] sm:$0xff]
        %v538 = vld [vmem:[%s2 + $0x18] sm:$0xff]
        %v539 = vld [vmem:[%s2 + $0x20] sm:$0xff]
        %v540 = vld [vmem:[%s2 + $0x28] sm:$0xff]
        %v541 = vld [vmem:[%s2 + $0x30] sm:$0xff]
        %v542 = vld [vmem:[%s2 + $0x38] sm:$0xff]
        %544 = vset.pattern.permute.xlu0 0
        %545 = vperm.xlu0 %544, %v535
        %v546 = vpop.permute.xlu0 %545
        %549 = vset.pattern.permute.xlu0 0
        %550 = vperm.xlu0 %549, %v536
        %v551 = vpop.permute.xlu0 %550
        %554 = vset.pattern.permute.xlu0 0
        %555 = vperm.xlu0 %554, %v537
        %v556 = vpop.permute.xlu0 %555
        %559 = vset.pattern.permute.xlu0 0
        %560 = vperm.xlu0 %559, %v538
        %v561 = vpop.permute.xlu0 %560
        %564 = vset.pattern.permute.xlu0 0
        %565 = vperm.xlu0 %564, %v539
        %v566 = vpop.permute.xlu0 %565
        %569 = vset.pattern.permute.xlu0 0
        %570 = vperm.xlu0 %569, %v540
        %v571 = vpop.permute.xlu0 %570
        %574 = vset.pattern.permute.xlu0 0
        %575 = vperm.xlu0 %574, %v541
        %v576 = vpop.permute.xlu0 %575
        %579 = vset.pattern.permute.xlu0 0
        %580 = vperm.xlu0 %579, %v542
        %v581 = vpop.permute.xlu0 %580
        %v599 = vunpack.c.l.b16 %v455
        %v600 = vunpack.c.h.b16 %v455
        %v601 = vunpack.c.l.b16 %v456
        %v602 = vunpack.c.h.b16 %v456
        %v603 = vunpack.c.l.b16 %v457
        %v604 = vunpack.c.h.b16 %v457
        %v605 = vunpack.c.l.b16 %v458
        %v606 = vunpack.c.h.b16 %v458
        %v607 = vunpack.c.l.b16 %v459
        %v608 = vunpack.c.h.b16 %v459
        %v609 = vunpack.c.l.b16 %v460
        %v610 = vunpack.c.h.b16 %v460
        %v611 = vunpack.c.l.b16 %v461
        %v612 = vunpack.c.h.b16 %v461
        %v613 = vunpack.c.l.b16 %v462
        %v614 = vunpack.c.h.b16 %v462
        %v615 = vunpack.c.l.b16 %v463
        %v616 = vunpack.c.h.b16 %v463
        %v617 = vunpack.c.l.b16 %v464
        %v618 = vunpack.c.h.b16 %v464
        %v619 = vunpack.c.l.b16 %v465
        %v620 = vunpack.c.h.b16 %v465
        %v621 = vunpack.c.l.b16 %v466
        %v622 = vunpack.c.h.b16 %v466
        %v623 = vunpack.c.l.b16 %v467
        %v624 = vunpack.c.h.b16 %v467
        %v625 = vunpack.c.l.b16 %v468
        %v626 = vunpack.c.h.b16 %v468
        %v627 = vunpack.c.l.b16 %v469
        %v628 = vunpack.c.h.b16 %v469
        %v629 = vunpack.c.l.b16 %v470
        %v630 = vunpack.c.h.b16 %v470
        %v631 = vpack.c.b16 %v603, %v599
        %v632 = vpack.c.b16 %v604, %v600
        %v633 = vpack.c.b16 %v605, %v601
        %v634 = vpack.c.b16 %v606, %v602
        %v635 = vpack.c.b16 %v611, %v607
        %v636 = vpack.c.b16 %v612, %v608
        %v637 = vpack.c.b16 %v613, %v609
        %v638 = vpack.c.b16 %v614, %v610
        %v639 = vpack.c.b16 %v619, %v615
        %v640 = vpack.c.b16 %v620, %v616
        %v641 = vpack.c.b16 %v621, %v617
        %v642 = vpack.c.b16 %v622, %v618
        %v643 = vpack.c.b16 %v627, %v623
        %v644 = vpack.c.b16 %v628, %v624
        %v645 = vpack.c.b16 %v629, %v625
        %v646 = vpack.c.b16 %v630, %v626
        %v727 = vunpack.c.l.b16 %v471
        %v728 = vunpack.c.h.b16 %v471
        %v729 = vunpack.c.l.b16 %v472
        %v730 = vunpack.c.h.b16 %v472
        %v731 = vunpack.c.l.b16 %v473
        %v732 = vunpack.c.h.b16 %v473
        %v733 = vunpack.c.l.b16 %v474
        %v734 = vunpack.c.h.b16 %v474
        %v735 = vunpack.c.l.b16 %v475
        %v736 = vunpack.c.h.b16 %v475
        %v737 = vunpack.c.l.b16 %v476
        %v738 = vunpack.c.h.b16 %v476
        %v739 = vunpack.c.l.b16 %v477
        %v740 = vunpack.c.h.b16 %v477
        %v741 = vunpack.c.l.b16 %v478
        %v742 = vunpack.c.h.b16 %v478
        %v743 = vunpack.c.l.b16 %v479
        %v744 = vunpack.c.h.b16 %v479
        %v745 = vunpack.c.l.b16 %v480
        %v746 = vunpack.c.h.b16 %v480
        %v747 = vunpack.c.l.b16 %v481
        %v748 = vunpack.c.h.b16 %v481
        %v749 = vunpack.c.l.b16 %v482
        %v750 = vunpack.c.h.b16 %v482
        %v751 = vunpack.c.l.b16 %v483
        %v752 = vunpack.c.h.b16 %v483
        %v753 = vunpack.c.l.b16 %v484
        %v754 = vunpack.c.h.b16 %v484
        %v755 = vunpack.c.l.b16 %v485
        %v756 = vunpack.c.h.b16 %v485
        %v757 = vunpack.c.l.b16 %v486
        %v758 = vunpack.c.h.b16 %v486
        %v759 = vunpack.c.l.b16 %v487
        %v760 = vunpack.c.h.b16 %v487
        %v761 = vunpack.c.l.b16 %v488
        %v762 = vunpack.c.h.b16 %v488
        %v763 = vunpack.c.l.b16 %v489
        %v764 = vunpack.c.h.b16 %v489
        %v765 = vunpack.c.l.b16 %v490
        %v766 = vunpack.c.h.b16 %v490
        %v767 = vunpack.c.l.b16 %v491
        %v768 = vunpack.c.h.b16 %v491
        %v769 = vunpack.c.l.b16 %v492
        %v770 = vunpack.c.h.b16 %v492
        %v771 = vunpack.c.l.b16 %v493
        %v772 = vunpack.c.h.b16 %v493
        %v773 = vunpack.c.l.b16 %v494
        %v774 = vunpack.c.h.b16 %v494
        %v775 = vunpack.c.l.b16 %v495
        %v776 = vunpack.c.h.b16 %v495
        %v777 = vunpack.c.l.b16 %v496
        %v778 = vunpack.c.h.b16 %v496
        %v779 = vunpack.c.l.b16 %v497
        %v780 = vunpack.c.h.b16 %v497
        %v781 = vunpack.c.l.b16 %v498
        %v782 = vunpack.c.h.b16 %v498
        %v783 = vunpack.c.l.b16 %v499
        %v784 = vunpack.c.h.b16 %v499
        %v785 = vunpack.c.l.b16 %v500
        %v786 = vunpack.c.h.b16 %v500
        %v787 = vunpack.c.l.b16 %v501
        %v788 = vunpack.c.h.b16 %v501
        %v789 = vunpack.c.l.b16 %v502
        %v790 = vunpack.c.h.b16 %v502
        %v791 = vunpack.c.l.b16 %v503
        %v792 = vunpack.c.h.b16 %v503
        %v793 = vunpack.c.l.b16 %v504
        %v794 = vunpack.c.h.b16 %v504
        %v795 = vunpack.c.l.b16 %v505
        %v796 = vunpack.c.h.b16 %v505
        %v797 = vunpack.c.l.b16 %v506
        %v798 = vunpack.c.h.b16 %v506
        %v799 = vunpack.c.l.b16 %v507
        %v800 = vunpack.c.h.b16 %v507
        %v801 = vunpack.c.l.b16 %v508
        %v802 = vunpack.c.h.b16 %v508
        %v803 = vunpack.c.l.b16 %v509
        %v804 = vunpack.c.h.b16 %v509
        %v805 = vunpack.c.l.b16 %v510
        %v806 = vunpack.c.h.b16 %v510
        %v807 = vunpack.c.l.b16 %v511
        %v808 = vunpack.c.h.b16 %v511
        %v809 = vunpack.c.l.b16 %v512
        %v810 = vunpack.c.h.b16 %v512
        %v811 = vunpack.c.l.b16 %v513
        %v812 = vunpack.c.h.b16 %v513
        %v813 = vunpack.c.l.b16 %v514
        %v814 = vunpack.c.h.b16 %v514
        %v815 = vunpack.c.l.b16 %v515
        %v816 = vunpack.c.h.b16 %v515
        %v817 = vunpack.c.l.b16 %v516
        %v818 = vunpack.c.h.b16 %v516
        %v819 = vunpack.c.l.b16 %v517
        %v820 = vunpack.c.h.b16 %v517
        %v821 = vunpack.c.l.b16 %v518
        %v822 = vunpack.c.h.b16 %v518
        %v823 = vunpack.c.l.b16 %v519
        %v824 = vunpack.c.h.b16 %v519
        %v825 = vunpack.c.l.b16 %v520
        %v826 = vunpack.c.h.b16 %v520
        %v827 = vunpack.c.l.b16 %v521
        %v828 = vunpack.c.h.b16 %v521
        %v829 = vunpack.c.l.b16 %v522
        %v830 = vunpack.c.h.b16 %v522
        %v831 = vunpack.c.l.b16 %v523
        %v832 = vunpack.c.h.b16 %v523
        %v833 = vunpack.c.l.b16 %v524
        %v834 = vunpack.c.h.b16 %v524
        %v835 = vunpack.c.l.b16 %v525
        %v836 = vunpack.c.h.b16 %v525
        %v837 = vunpack.c.l.b16 %v526
        %v838 = vunpack.c.h.b16 %v526
        %v839 = vunpack.c.l.b16 %v527
        %v840 = vunpack.c.h.b16 %v527
        %v841 = vunpack.c.l.b16 %v528
        %v842 = vunpack.c.h.b16 %v528
        %v843 = vunpack.c.l.b16 %v529
        %v844 = vunpack.c.h.b16 %v529
        %v845 = vunpack.c.l.b16 %v530
        %v846 = vunpack.c.h.b16 %v530
        %v847 = vunpack.c.l.b16 %v531
        %v848 = vunpack.c.h.b16 %v531
        %v849 = vunpack.c.l.b16 %v532
        %v850 = vunpack.c.h.b16 %v532
        %v851 = vunpack.c.l.b16 %v533
        %v852 = vunpack.c.h.b16 %v533
        %v853 = vunpack.c.l.b16 %v534
        %v854 = vunpack.c.h.b16 %v534
        %v855 = vpack.c.b16 %v729, %v727
        %v856 = vpack.c.b16 %v730, %v728
        %v857 = vpack.c.b16 %v733, %v731
        %v858 = vpack.c.b16 %v734, %v732
        %v859 = vpack.c.b16 %v737, %v735
        %v860 = vpack.c.b16 %v738, %v736
        %v861 = vpack.c.b16 %v741, %v739
        %v862 = vpack.c.b16 %v742, %v740
        %v863 = vpack.c.b16 %v745, %v743
        %v864 = vpack.c.b16 %v746, %v744
        %v865 = vpack.c.b16 %v749, %v747
        %v866 = vpack.c.b16 %v750, %v748
        %v867 = vpack.c.b16 %v753, %v751
        %v868 = vpack.c.b16 %v754, %v752
        %v869 = vpack.c.b16 %v757, %v755
        %v870 = vpack.c.b16 %v758, %v756
        %v871 = vpack.c.b16 %v761, %v759
        %v872 = vpack.c.b16 %v762, %v760
        %v873 = vpack.c.b16 %v765, %v763
        %v874 = vpack.c.b16 %v766, %v764
        %v875 = vpack.c.b16 %v769, %v767
        %v876 = vpack.c.b16 %v770, %v768
        %v877 = vpack.c.b16 %v773, %v771
        %v878 = vpack.c.b16 %v774, %v772
        %v879 = vpack.c.b16 %v777, %v775
        %v880 = vpack.c.b16 %v778, %v776
        %v881 = vpack.c.b16 %v781, %v779
        %v882 = vpack.c.b16 %v782, %v780
        %v883 = vpack.c.b16 %v785, %v783
        %v884 = vpack.c.b16 %v786, %v784
        %v885 = vpack.c.b16 %v789, %v787
        %v886 = vpack.c.b16 %v790, %v788
        %v887 = vpack.c.b16 %v793, %v791
        %v888 = vpack.c.b16 %v794, %v792
        %v889 = vpack.c.b16 %v797, %v795
        %v890 = vpack.c.b16 %v798, %v796
        %v891 = vpack.c.b16 %v801, %v799
        %v892 = vpack.c.b16 %v802, %v800
        %v893 = vpack.c.b16 %v805, %v803
        %v894 = vpack.c.b16 %v806, %v804
        %v895 = vpack.c.b16 %v809, %v807
        %v896 = vpack.c.b16 %v810, %v808
        %v897 = vpack.c.b16 %v813, %v811
        %v898 = vpack.c.b16 %v814, %v812
        %v899 = vpack.c.b16 %v817, %v815
        %v900 = vpack.c.b16 %v818, %v816
        %v901 = vpack.c.b16 %v821, %v819
        %v902 = vpack.c.b16 %v822, %v820
        %v903 = vpack.c.b16 %v825, %v823
        %v904 = vpack.c.b16 %v826, %v824
        %v905 = vpack.c.b16 %v829, %v827
        %v906 = vpack.c.b16 %v830, %v828
        %v907 = vpack.c.b16 %v833, %v831
        %v908 = vpack.c.b16 %v834, %v832
        %v909 = vpack.c.b16 %v837, %v835
        %v910 = vpack.c.b16 %v838, %v836
        %v911 = vpack.c.b16 %v841, %v839
        %v912 = vpack.c.b16 %v842, %v840
        %v913 = vpack.c.b16 %v845, %v843
        %v914 = vpack.c.b16 %v846, %v844
        %v915 = vpack.c.b16 %v849, %v847
        %v916 = vpack.c.b16 %v850, %v848
        %v917 = vpack.c.b16 %v853, %v851
        %v918 = vpack.c.b16 %v854, %v852
        %983 = vmatpush.bf16.msra.mxu0 %v869
        %984 = vmatpush.bf16.msra.mxu0 %v867
        %985 = vmatpush.bf16.msra.mxu0 %v865
        %986 = vmatpush.bf16.msra.mxu0 %v863
        %987 = vmatpush.bf16.msra.mxu0 %v861
        %988 = vmatpush.bf16.msra.mxu0 %v859
        %989 = vmatpush.bf16.msra.mxu0 %v857
        %990 = vmatpush.bf16.msra.mxu0 %v855
        %991 = vmatmul.bf16.gmra.mxu0 %v631
        %v992 = vpop.f32.mrf.mxu0
        %v993 = vadd.f32 %v546, %v992
        %v994 = vpop.f32.mrf.mxu0
        %v995 = vadd.f32 %v551, %v994
        %996 = vmatmul.bf16.gmra.mxu0 %v635
        %v997 = vpop.f32.mrf.mxu0
        %v998 = vadd.f32 %v556, %v997
        %v999 = vpop.f32.mrf.mxu0
        %v1000 = vadd.f32 %v561, %v999
        %1001 = vmatmul.bf16.gmra.mxu0 %v639
        %v1002 = vpop.f32.mrf.mxu0
        %v1003 = vadd.f32 %v566, %v1002
        %v1004 = vpop.f32.mrf.mxu0
        %v1005 = vadd.f32 %v571, %v1004
        %1006 = vmatmul.bf16.gmra.mxu0 %v643
        %v1007 = vpop.f32.mrf.mxu0
        %v1008 = vadd.f32 %v576, %v1007
        %v1009 = vpop.f32.mrf.mxu0
        %v1010 = vadd.f32 %v581, %v1009
        %1011 = vdwg.mxu0
        %1012 = vmatpush.bf16.msra.mxu0 %v885
        %1013 = vmatpush.bf16.msra.mxu0 %v883
        %1014 = vmatpush.bf16.msra.mxu0 %v881
        %1015 = vmatpush.bf16.msra.mxu0 %v879
        %1016 = vmatpush.bf16.msra.mxu0 %v877
        %1017 = vmatpush.bf16.msra.mxu0 %v875
        %1018 = vmatpush.bf16.msra.mxu0 %v873
        %1019 = vmatpush.bf16.msra.mxu0 %v871
        %1020 = vmatmul.bf16.gmra.mxu0 %v632
        %v1021 = vpop.f32.mrf.mxu0
        %v1022 = vadd.f32 %v993, %v1021
        %v1023 = vpop.f32.mrf.mxu0
        %v1024 = vadd.f32 %v995, %v1023
        %1025 = vmatmul.bf16.gmra.mxu0 %v636
        %v1026 = vpop.f32.mrf.mxu0
        %v1027 = vadd.f32 %v998, %v1026
        %v1028 = vpop.f32.mrf.mxu0
        %v1029 = vadd.f32 %v1000, %v1028
        %1030 = vmatmul.bf16.gmra.mxu0 %v640
        %v1031 = vpop.f32.mrf.mxu0
        %v1032 = vadd.f32 %v1003, %v1031
        %v1033 = vpop.f32.mrf.mxu0
        %v1034 = vadd.f32 %v1005, %v1033
        %1035 = vmatmul.bf16.gmra.mxu0 %v644
        %v1036 = vpop.f32.mrf.mxu0
        %v1037 = vadd.f32 %v1008, %v1036
        %v1038 = vpop.f32.mrf.mxu0
        %v1039 = vadd.f32 %v1010, %v1038
        %1040 = vdwg.mxu0
        %1041 = vmatpush.bf16.msra.mxu0 %v901
        %1042 = vmatpush.bf16.msra.mxu0 %v899
        %1043 = vmatpush.bf16.msra.mxu0 %v897
        %1044 = vmatpush.bf16.msra.mxu0 %v895
        %1045 = vmatpush.bf16.msra.mxu0 %v893
        %1046 = vmatpush.bf16.msra.mxu0 %v891
        %1047 = vmatpush.bf16.msra.mxu0 %v889
        %1048 = vmatpush.bf16.msra.mxu0 %v887
        %1049 = vmatmul.bf16.gmra.mxu0 %v633
        %v1050 = vpop.f32.mrf.mxu0
        %v1051 = vadd.f32 %v1022, %v1050
        %v1052 = vpop.f32.mrf.mxu0
        %v1053 = vadd.f32 %v1024, %v1052
        %1054 = vmatmul.bf16.gmra.mxu0 %v637
        %v1055 = vpop.f32.mrf.mxu0
        %v1056 = vadd.f32 %v1027, %v1055
        %v1057 = vpop.f32.mrf.mxu0
        %v1058 = vadd.f32 %v1029, %v1057
        %1059 = vmatmul.bf16.gmra.mxu0 %v641
        %v1060 = vpop.f32.mrf.mxu0
        %v1061 = vadd.f32 %v1032, %v1060
        %v1062 = vpop.f32.mrf.mxu0
        %v1063 = vadd.f32 %v1034, %v1062
        %1064 = vmatmul.bf16.gmra.mxu0 %v645
        %v1065 = vpop.f32.mrf.mxu0
        %v1066 = vadd.f32 %v1037, %v1065
        %v1067 = vpop.f32.mrf.mxu0
        %v1068 = vadd.f32 %v1039, %v1067
        %1069 = vdwg.mxu0
        %1070 = vmatpush.bf16.msra.mxu0 %v917
        %1071 = vmatpush.bf16.msra.mxu0 %v915
        %1072 = vmatpush.bf16.msra.mxu0 %v913
        %1073 = vmatpush.bf16.msra.mxu0 %v911
        %1074 = vmatpush.bf16.msra.mxu0 %v909
        %1075 = vmatpush.bf16.msra.mxu0 %v907
        %1076 = vmatpush.bf16.msra.mxu0 %v905
        %1077 = vmatpush.bf16.msra.mxu0 %v903
        %1078 = vmatmul.bf16.gmra.mxu0 %v634
        %v1079 = vpop.f32.mrf.mxu0
        %v1080 = vadd.f32 %v1051, %v1079
        %v1081 = vpop.f32.mrf.mxu0
        %v1082 = vadd.f32 %v1053, %v1081
        %1083 = vmatmul.bf16.gmra.mxu0 %v638
        %v1084 = vpop.f32.mrf.mxu0
        %v1085 = vadd.f32 %v1056, %v1084
        %v1086 = vpop.f32.mrf.mxu0
        %v1087 = vadd.f32 %v1058, %v1086
        %1088 = vmatmul.bf16.gmra.mxu0 %v642
        %v1089 = vpop.f32.mrf.mxu0
        %v1090 = vadd.f32 %v1061, %v1089
        %v1091 = vpop.f32.mrf.mxu0
        %v1092 = vadd.f32 %v1063, %v1091
        %1093 = vmatmul.bf16.gmra.mxu0 %v646
        %v1094 = vpop.f32.mrf.mxu0
        %v1095 = vadd.f32 %v1066, %v1094
        %v1096 = vpop.f32.mrf.mxu0
        %v1097 = vadd.f32 %v1068, %v1096
        %1098 = vdwg.mxu0
        %1099 = vmatpush.bf16.msra.mxu0 %v870
        %1100 = vmatpush.bf16.msra.mxu0 %v868
        %1101 = vmatpush.bf16.msra.mxu0 %v866
        %1102 = vmatpush.bf16.msra.mxu0 %v864
        %1103 = vmatpush.bf16.msra.mxu0 %v862
        %1104 = vmatpush.bf16.msra.mxu0 %v860
        %1105 = vmatpush.bf16.msra.mxu0 %v858
        %1106 = vmatpush.bf16.msra.mxu0 %v856
        %1107 = vmatmul.bf16.gmra.mxu0 %v631
        %v1108 = vpop.f32.mrf.mxu0
        %v1109 = vadd.f32 %v546, %v1108
        %v1110 = vpop.f32.mrf.mxu0
        %v1111 = vadd.f32 %v551, %v1110
        %1112 = vmatmul.bf16.gmra.mxu0 %v635
        %v1113 = vpop.f32.mrf.mxu0
        %v1114 = vadd.f32 %v556, %v1113
        %v1115 = vpop.f32.mrf.mxu0
        %v1116 = vadd.f32 %v561, %v1115
        %1117 = vmatmul.bf16.gmra.mxu0 %v639
        %v1118 = vpop.f32.mrf.mxu0
        %v1119 = vadd.f32 %v566, %v1118
        %v1120 = vpop.f32.mrf.mxu0
        %v1121 = vadd.f32 %v571, %v1120
        %1122 = vmatmul.bf16.gmra.mxu0 %v643
        %v1123 = vpop.f32.mrf.mxu0
        %v1124 = vadd.f32 %v576, %v1123
        %v1125 = vpop.f32.mrf.mxu0
        %v1126 = vadd.f32 %v581, %v1125
        %1127 = vdwg.mxu0
        %1128 = vmatpush.bf16.msra.mxu0 %v886
        %1129 = vmatpush.bf16.msra.mxu0 %v884
        %1130 = vmatpush.bf16.msra.mxu0 %v882
        %1131 = vmatpush.bf16.msra.mxu0 %v880
        %1132 = vmatpush.bf16.msra.mxu0 %v878
        %1133 = vmatpush.bf16.msra.mxu0 %v876
        %1134 = vmatpush.bf16.msra.mxu0 %v874
        %1135 = vmatpush.bf16.msra.mxu0 %v872
        %1136 = vmatmul.bf16.gmra.mxu0 %v632
        %v1137 = vpop.f32.mrf.mxu0
        %v1138 = vadd.f32 %v1109, %v1137
        %v1139 = vpop.f32.mrf.mxu0
        %v1140 = vadd.f32 %v1111, %v1139
        %1141 = vmatmul.bf16.gmra.mxu0 %v636
        %v1142 = vpop.f32.mrf.mxu0
        %v1143 = vadd.f32 %v1114, %v1142
        %v1144 = vpop.f32.mrf.mxu0
        %v1145 = vadd.f32 %v1116, %v1144
        %1146 = vmatmul.bf16.gmra.mxu0 %v640
        %v1147 = vpop.f32.mrf.mxu0
        %v1148 = vadd.f32 %v1119, %v1147
        %v1149 = vpop.f32.mrf.mxu0
        %v1150 = vadd.f32 %v1121, %v1149
        %1151 = vmatmul.bf16.gmra.mxu0 %v644
        %v1152 = vpop.f32.mrf.mxu0
        %v1153 = vadd.f32 %v1124, %v1152
        %v1154 = vpop.f32.mrf.mxu0
        %v1155 = vadd.f32 %v1126, %v1154
        %1156 = vdwg.mxu0
        %1157 = vmatpush.bf16.msra.mxu0 %v902
        %1158 = vmatpush.bf16.msra.mxu0 %v900
        %1159 = vmatpush.bf16.msra.mxu0 %v898
        %1160 = vmatpush.bf16.msra.mxu0 %v896
        %1161 = vmatpush.bf16.msra.mxu0 %v894
        %1162 = vmatpush.bf16.msra.mxu0 %v892
        %1163 = vmatpush.bf16.msra.mxu0 %v890
        %1164 = vmatpush.bf16.msra.mxu0 %v888
        %1165 = vmatmul.bf16.gmra.mxu0 %v633
        %v1166 = vpop.f32.mrf.mxu0
        %v1167 = vadd.f32 %v1138, %v1166
        %v1168 = vpop.f32.mrf.mxu0
        %v1169 = vadd.f32 %v1140, %v1168
        %1170 = vmatmul.bf16.gmra.mxu0 %v637
        %v1171 = vpop.f32.mrf.mxu0
        %v1172 = vadd.f32 %v1143, %v1171
        %v1173 = vpop.f32.mrf.mxu0
        %v1174 = vadd.f32 %v1145, %v1173
        %1175 = vmatmul.bf16.gmra.mxu0 %v641
        %v1176 = vpop.f32.mrf.mxu0
        %v1177 = vadd.f32 %v1148, %v1176
        %v1178 = vpop.f32.mrf.mxu0
        %v1179 = vadd.f32 %v1150, %v1178
        %1180 = vmatmul.bf16.gmra.mxu0 %v645
        %v1181 = vpop.f32.mrf.mxu0
        %v1182 = vadd.f32 %v1153, %v1181
        %v1183 = vpop.f32.mrf.mxu0
        %v1184 = vadd.f32 %v1155, %v1183
        %1185 = vdwg.mxu0
        %1186 = vmatpush.bf16.msra.mxu0 %v918
        %1187 = vmatpush.bf16.msra.mxu0 %v916
        %1188 = vmatpush.bf16.msra.mxu0 %v914
        %1189 = vmatpush.bf16.msra.mxu0 %v912
        %1190 = vmatpush.bf16.msra.mxu0 %v910
        %1191 = vmatpush.bf16.msra.mxu0 %v908
        %1192 = vmatpush.bf16.msra.mxu0 %v906
        %1193 = vmatpush.bf16.msra.mxu0 %v904
        %1194 = vmatmul.bf16.gmra.mxu0 %v634
        %v1195 = vpop.f32.mrf.mxu0
        %v1196 = vadd.f32 %v1167, %v1195
        %v1197 = vpop.f32.mrf.mxu0
        %v1198 = vadd.f32 %v1169, %v1197
        %1199 = vmatmul.bf16.gmra.mxu0 %v638
        %v1200 = vpop.f32.mrf.mxu0
        %v1201 = vadd.f32 %v1172, %v1200
        %v1202 = vpop.f32.mrf.mxu0
        %v1203 = vadd.f32 %v1174, %v1202
        %1204 = vmatmul.bf16.gmra.mxu0 %v642
        %v1205 = vpop.f32.mrf.mxu0
        %v1206 = vadd.f32 %v1177, %v1205
        %v1207 = vpop.f32.mrf.mxu0
        %v1208 = vadd.f32 %v1179, %v1207
        %1209 = vmatmul.bf16.gmra.mxu0 %v646
        %v1210 = vpop.f32.mrf.mxu0
        %v1211 = vadd.f32 %v1182, %v1210
        %v1212 = vpop.f32.mrf.mxu0
        %v1213 = vadd.f32 %v1184, %v1212
        %1214 = vdwg.mxu0
        %v1215 = vmul.f32 %v1080, 0.02
        %v1216 = vmul.f32 %v1196, 0.02
        %v1217 = vmul.f32 %v1082, 0.02
        %v1218 = vmul.f32 %v1198, 0.02
        %v1219 = vmul.f32 %v1085, 0.02
        %v1220 = vmul.f32 %v1201, 0.02
        %v1221 = vmul.f32 %v1087, 0.02
        %v1222 = vmul.f32 %v1203, 0.02
        %v1223 = vmul.f32 %v1090, 0.02
        %v1224 = vmul.f32 %v1206, 0.02
        %v1225 = vmul.f32 %v1092, 0.02
        %v1226 = vmul.f32 %v1208, 0.02
        %v1227 = vmul.f32 %v1095, 0.02
        %v1228 = vmul.f32 %v1211, 0.02
        %v1229 = vmul.f32 %v1097, 0.02
        %v1230 = vmul.f32 %v1213, 0.02
        %v1231 = vmax.f32 %v1080, %v1215
        %v1232 = vmax.f32 %v1196, %v1216
        %v1233 = vmax.f32 %v1082, %v1217
        %v1234 = vmax.f32 %v1198, %v1218
        %v1235 = vmax.f32 %v1085, %v1219
        %v1236 = vmax.f32 %v1201, %v1220
        %v1237 = vmax.f32 %v1087, %v1221
        %v1238 = vmax.f32 %v1203, %v1222
        %v1239 = vmax.f32 %v1090, %v1223
        %v1240 = vmax.f32 %v1206, %v1224
        %v1241 = vmax.f32 %v1092, %v1225
        %v1242 = vmax.f32 %v1208, %v1226
        %v1243 = vmax.f32 %v1095, %v1227
        %v1244 = vmax.f32 %v1211, %v1228
        %v1245 = vmax.f32 %v1097, %v1229
        %v1246 = vmax.f32 %v1213, %v1230
        %v1247 = vpack.c.bf16 %v1232, %v1231
        %v1248 = vpack.c.bf16 %v1234, %v1233
        %v1249 = vpack.c.bf16 %v1236, %v1235
        %v1250 = vpack.c.bf16 %v1238, %v1237
        %v1251 = vpack.c.bf16 %v1240, %v1239
        %v1252 = vpack.c.bf16 %v1242, %v1241
        %v1253 = vpack.c.bf16 %v1244, %v1243
        %v1254 = vpack.c.bf16 %v1246, %v1245
        %1255 = vst [vmem:[%s452] sm:$0xff] %v1247
        %1256 = vst [vmem:[%s452 + $0x8] sm:$0xff] %v1248
        %1257 = vst [vmem:[%s452 + $0x10] sm:$0xff] %v1249
        %1258 = vst [vmem:[%s452 + $0x18] sm:$0xff] %v1250
        %1259 = vst [vmem:[%s452 + $0x20] sm:$0xff] %v1251
        %1260 = vst [vmem:[%s452 + $0x28] sm:$0xff] %v1252
        %1261 = vst [vmem:[%s452 + $0x30] sm:$0xff] %v1253
        %1262 = vst [vmem:[%s452 + $0x38] sm:$0xff] %v1254
        %s1263 = sand.u32 %s90, 1
        %s1264 = sand.u32 %s90, 1
        %s1265 = smul.addr %s1264, 64
        %s1266 = scalar_lea.vmem [#allocation3], %s1265
        // Predicated region
        $region71: #{discriminator_forward.5} parent=65 // pred_check
          %p1267 = pneg %p100
        $region72: #{discriminator_forward.5} parent=65 // pred_check_branch
          %1269 = sbr.rel (%p1267) target = $region74
        $region73: #{discriminator_forward.5} parent=65 // pred_region
          %s1270 = smul.u32 2, %s14
          %s1271 = smul.addr %s1270, 4
          %s1272 = scalar_lea.vmem %s3, %s1271
          // Predicated region
          $region75: #{discriminator_forward.5} parent=73 // pred_check
            _
          $region76: #{discriminator_forward.5} parent=73 // pred_check_branch
            %1274 = sbr.rel (0) target = $region78
          $region77: #{discriminator_forward.5} parent=73 // pred_region
            // Predicated region
            $region79: #{discriminator_forward.5} parent=77 // pred_check
              _
            $region80: #{discriminator_forward.5} parent=77 // pred_check_branch
              %1276 = sbr.rel (0) target = $region82
            $region81: #{discriminator_forward.5} parent=77 // pred_region
              // Predicated region
              $region94: #{discriminator_forward.5} parent=81 // pred_check
                _
              $region95: #{discriminator_forward.5} parent=81 // pred_check_branch
                %1306 = sbr.rel (0) target = $region97
              $region96: #{discriminator_forward.5} parent=81 // pred_region
                loop: start=0, step=1, limit=1
                $region98: #{discriminator_forward.5} parent=96 // loop_pre_header
                  _
                $region99: #{discriminator_forward.5} parent=96 // loop_header
                  %s1308 = sphi 0, %s1312
                  %p1309 = scmp.ge.s32.totalorder %s1308, 1
                  %s1313 = sphi %s1266, %s1266
                  %s1314 = sphi %s1272, %s1272
                $region100: #{discriminator_forward.5} parent=96 // loop_header_branch
                  %1311 = sbr.rel (%p1309) target = $region104
                $region101: #{discriminator_forward.5} parent=96 // loop_body
                  %v1315 = vld [vmem:[%s1313] sm:$0xff]
                  %1316 = vst [vmem:[%s1314] sm:$0xff] %v1315
                  %v1317 = vld [vmem:[%s1313 + $0x8] sm:$0xff]
                  %1318 = vst [vmem:[%s1314 + $0x10] sm:$0xff] %v1317
                  %v1319 = vld [vmem:[%s1313 + $0x10] sm:$0xff]
                  %1320 = vst [vmem:[%s1314 + $0x20] sm:$0xff] %v1319
                  %v1321 = vld [vmem:[%s1313 + $0x18] sm:$0xff]
                  %1322 = vst [vmem:[%s1314 + $0x30] sm:$0xff] %v1321
                  %v1323 = vld [vmem:[%s1313 + $0x20] sm:$0xff]
                  %1324 = vst [vmem:[%s1314 + $0x40] sm:$0xff] %v1323
                  %v1325 = vld [vmem:[%s1313 + $0x28] sm:$0xff]
                  %1326 = vst [vmem:[%s1314 + $0x50] sm:$0xff] %v1325
                  %v1327 = vld [vmem:[%s1313 + $0x30] sm:$0xff]
                  %1328 = vst [vmem:[%s1314 + $0x60] sm:$0xff] %v1327
                  %v1329 = vld [vmem:[%s1313 + $0x38] sm:$0xff]
                  %1330 = vst [vmem:[%s1314 + $0x70] sm:$0xff] %v1329
                $region102: #{discriminator_forward.5} parent=96 // loop_footer
                  %s1312 = sadd.s32 1, %s1308
                $region103: #{discriminator_forward.5} parent=96 // loop_footer_branch
                  %1307 = sbr.rel target = $region99
                $region104: #{discriminator_forward.5} parent=96 // loop_exit
                  _
              $region97: #{discriminator_forward.5} parent=81 // pred_fallthru
                _
              // Predicated region
              $region105: #{discriminator_forward.5} parent=81 // pred_check
                _
              $region106: #{discriminator_forward.5} parent=81 // pred_check_branch
                %1332 = sbr.rel target = $region108
              $region107: #{discriminator_forward.5} parent=81 // pred_region
                _
              $region108: #{discriminator_forward.5} parent=81 // pred_fallthru
                _
            $region82: #{discriminator_forward.5} parent=77 // pred_fallthru
              _
            // Predicated region
            $region83: #{discriminator_forward.5} parent=77 // pred_check
              _
            $region84: #{discriminator_forward.5} parent=77 // pred_check_branch
              %1278 = sbr.rel target = $region86
            $region85: #{discriminator_forward.5} parent=77 // pred_region
              %s1280 = ssub.s32 256, 1
              loop: start=0, step=1, limit=1
              $region87: #{discriminator_forward.5} parent=85 // loop_pre_header
                _
              $region88: #{discriminator_forward.5} parent=85 // loop_header
                %s1282 = sphi 0, %s1286
                %p1283 = scmp.ge.s32.totalorder %s1282, 1
                %s1287 = sphi %s1266, %s1266
                %s1288 = sphi %s1272, %s1272
              $region89: #{discriminator_forward.5} parent=85 // loop_header_branch
                %1285 = sbr.rel (%p1283) target = $region93
              $region90: #{discriminator_forward.5} parent=85 // loop_body
                %v1289 = vld [vmem:[%s1287] sm:%s1280]
                %1290 = vst [vmem:[%s1288] sm:%s1280] %v1289
                %v1291 = vld [vmem:[%s1287 + $0x8] sm:%s1280]
                %1292 = vst [vmem:[%s1288 + $0x10] sm:%s1280] %v1291
                %v1293 = vld [vmem:[%s1287 + $0x10] sm:%s1280]
                %1294 = vst [vmem:[%s1288 + $0x20] sm:%s1280] %v1293
                %v1295 = vld [vmem:[%s1287 + $0x18] sm:%s1280]
                %1296 = vst [vmem:[%s1288 + $0x30] sm:%s1280] %v1295
                %v1297 = vld [vmem:[%s1287 + $0x20] sm:%s1280]
                %1298 = vst [vmem:[%s1288 + $0x40] sm:%s1280] %v1297
                %v1299 = vld [vmem:[%s1287 + $0x28] sm:%s1280]
                %1300 = vst [vmem:[%s1288 + $0x50] sm:%s1280] %v1299
                %v1301 = vld [vmem:[%s1287 + $0x30] sm:%s1280]
                %1302 = vst [vmem:[%s1288 + $0x60] sm:%s1280] %v1301
                %v1303 = vld [vmem:[%s1287 + $0x38] sm:%s1280]
                %1304 = vst [vmem:[%s1288 + $0x70] sm:%s1280] %v1303
              $region91: #{discriminator_forward.5} parent=85 // loop_footer
                %s1286 = sadd.s32 1, %s1282
              $region92: #{discriminator_forward.5} parent=85 // loop_footer_branch
                %1281 = sbr.rel target = $region88
              $region93: #{discriminator_forward.5} parent=85 // loop_exit
                _
            $region86: #{discriminator_forward.5} parent=77 // pred_fallthru
              _
          $region78: #{discriminator_forward.5} parent=73 // pred_fallthru
            _
          %1333 = vnop
        $region74: #{discriminator_forward.5} parent=65 // pred_fallthru
          _
      $region66: #{discriminator_forward.5} parent=5 // pred_fallthru
        _
      %p1334 = scmp.le.s32.totalorder 2, %s9
      // Predicated region
      $region109: #{discriminator_forward.5} parent=5 // pred_check
        %p1335 = pneg %p1334
      $region110: #{discriminator_forward.5} parent=5 // pred_check_branch
        %1337 = sbr.rel (%p1335) target = $region112
      $region111: #{discriminator_forward.5} parent=5 // pred_region
        %s1338 = ssub.s32 %s9, 2
        // Predicated region
        $region113: #{discriminator_forward.5} parent=111 // pred_check
          %p1339 = pneg %p106
        $region114: #{discriminator_forward.5} parent=111 // pred_check_branch
          %1341 = sbr.rel (%p1339) target = $region116
        $region115: #{discriminator_forward.5} parent=111 // pred_region
          %s1342 = sand.u32 %s91, 1
          %s1343 = sand.u32 %s91, 1
          %s1344 = smul.addr %s1343, 64
          %s1345 = scalar_lea.vmem [#allocation3], %s1344
        $region116: #{discriminator_forward.5} parent=111 // pred_fallthru
          _
      $region112: #{discriminator_forward.5} parent=5 // pred_fallthru
        _
    $region6: #{discriminator_forward.5} parent=1 // loop_footer
      %s13 = sadd.s32 1, %s9
    $region7: #{discriminator_forward.5} parent=1 // loop_footer_branch
      %8 = sbr.rel target = $region3
    $region8: #{discriminator_forward.5} parent=1 // loop_exit
      _

// kernel: discriminator_forward.6
$region0: #{discriminator_forward.6}
  #allocation0 [shape = 'u32[]', space=smem, size = 0x4, offset = 0x4, fixed_abs, tag = 'smem constant byte address 0x4 - core index']
  #allocation1 [shape = 'u32[72,128]{1,0:T(1,128)}', space=vmem, size = 0x9000, scoped, tag = 'internal scratch']
  %s0 = inlined_call_operand.vmem [shape: bf16[128,1024], index: 0, kind: input, shape index: {}]
  %s1 = inlined_call_operand.vmem [shape: bf16[1024,128], index: 1, kind: input, shape index: {}]
  %s2 = inlined_call_operand.vmem [shape: f32[128,1], index: 2, kind: input, shape index: {}]
  %s3 = inlined_call_operand.vmem [shape: bf16[128,128], index: 3, kind: output, shape index: {}]
  %s4 = sld [smem:[#allocation0]]
  $region22: #{discriminator_forward.6} parent=0
    _
  %s6 = ssub.s32 1, %s4
  %s7 = scalar_select 0, %s6, %s4
  // Predicated region
  $region2: #{discriminator_forward.6} parent=0 // pred_check
    _
  $region3: #{discriminator_forward.6} parent=0 // pred_check_branch
    %9 = sbr.rel (0) target = $region5
  $region4: #{discriminator_forward.6} parent=0 // pred_region
    _
  $region5: #{discriminator_forward.6} parent=0 // pred_fallthru
    _
  // Predicated region
  $region6: #{discriminator_forward.6} parent=0 // pred_check
    _
  $region7: #{discriminator_forward.6} parent=0 // pred_check_branch
    %11 = sbr.rel (0) target = $region9
  $region8: #{discriminator_forward.6} parent=0 // pred_region
    _
  $region9: #{discriminator_forward.6} parent=0 // pred_fallthru
    _
  // Predicated region
  $region10: #{discriminator_forward.6} parent=0 // pred_check
    _
  $region11: #{discriminator_forward.6} parent=0 // pred_check_branch
    %13 = sbr.rel (0) target = $region13
  $region12: #{discriminator_forward.6} parent=0 // pred_region
    _
  $region13: #{discriminator_forward.6} parent=0 // pred_fallthru
    _
  %v14 = vld [vmem:[%s0] sm:$0xff]
  %v15 = vld [vmem:[%s0 + $0x8] sm:$0xff]
  %v16 = vld [vmem:[%s0 + $0x10] sm:$0xff]
  %v17 = vld [vmem:[%s0 + $0x18] sm:$0xff]
  %v18 = vld [vmem:[%s0 + $0x20] sm:$0xff]
  %v19 = vld [vmem:[%s0 + $0x28] sm:$0xff]
  %v20 = vld [vmem:[%s0 + $0x30] sm:$0xff]
  %v21 = vld [vmem:[%s0 + $0x38] sm:$0xff]
  %v22 = vld [vmem:[%s0 + $0x40] sm:$0xff]
  %v23 = vld [vmem:[%s0 + $0x48] sm:$0xff]
  %v24 = vld [vmem:[%s0 + $0x50] sm:$0xff]
  %v25 = vld [vmem:[%s0 + $0x58] sm:$0xff]
  %v26 = vld [vmem:[%s0 + $0x60] sm:$0xff]
  %v27 = vld [vmem:[%s0 + $0x68] sm:$0xff]
  %v28 = vld [vmem:[%s0 + $0x70] sm:$0xff]
  %v29 = vld [vmem:[%s0 + $0x78] sm:$0xff]
  %v30 = vld [vmem:[%s0 + $0x80] sm:$0xff]
  %v31 = vld [vmem:[%s0 + $0x88] sm:$0xff]
  %v32 = vld [vmem:[%s0 + $0x90] sm:$0xff]
  %v33 = vld [vmem:[%s0 + $0x98] sm:$0xff]
  %v34 = vld [vmem:[%s0 + $0xa0] sm:$0xff]
  %v35 = vld [vmem:[%s0 + $0xa8] sm:$0xff]
  %v36 = vld [vmem:[%s0 + $0xb0] sm:$0xff]
  %v37 = vld [vmem:[%s0 + $0xb8] sm:$0xff]
  %v38 = vld [vmem:[%s0 + $0xc0] sm:$0xff]
  %v39 = vld [vmem:[%s0 + $0xc8] sm:$0xff]
  %v40 = vld [vmem:[%s0 + $0xd0] sm:$0xff]
  %v41 = vld [vmem:[%s0 + $0xd8] sm:$0xff]
  %v42 = vld [vmem:[%s0 + $0xe0] sm:$0xff]
  %v43 = vld [vmem:[%s0 + $0xe8] sm:$0xff]
  %v44 = vld [vmem:[%s0 + $0xf0] sm:$0xff]
  %v45 = vld [vmem:[%s0 + $0xf8] sm:$0xff]
  %v46 = vld [vmem:[%s0 + $0x100] sm:$0xff]
  %v47 = vld [vmem:[%s0 + $0x108] sm:$0xff]
  %v48 = vld [vmem:[%s0 + $0x110] sm:$0xff]
  %v49 = vld [vmem:[%s0 + $0x118] sm:$0xff]
  %v50 = vld [vmem:[%s0 + $0x120] sm:$0xff]
  %v51 = vld [vmem:[%s0 + $0x128] sm:$0xff]
  %v52 = vld [vmem:[%s0 + $0x130] sm:$0xff]
  %v53 = vld [vmem:[%s0 + $0x138] sm:$0xff]
  %v54 = vld [vmem:[%s0 + $0x140] sm:$0xff]
  %v55 = vld [vmem:[%s0 + $0x148] sm:$0xff]
  %v56 = vld [vmem:[%s0 + $0x150] sm:$0xff]
  %v57 = vld [vmem:[%s0 + $0x158] sm:$0xff]
  %v58 = vld [vmem:[%s0 + $0x160] sm:$0xff]
  %v59 = vld [vmem:[%s0 + $0x168] sm:$0xff]
  %v60 = vld [vmem:[%s0 + $0x170] sm:$0xff]
  %v61 = vld [vmem:[%s0 + $0x178] sm:$0xff]
  %v62 = vld [vmem:[%s0 + $0x180] sm:$0xff]
  %v63 = vld [vmem:[%s0 + $0x188] sm:$0xff]
  %v64 = vld [vmem:[%s0 + $0x190] sm:$0xff]
  %v65 = vld [vmem:[%s0 + $0x198] sm:$0xff]
  %v66 = vld [vmem:[%s0 + $0x1a0] sm:$0xff]
  %v67 = vld [vmem:[%s0 + $0x1a8] sm:$0xff]
  %v68 = vld [vmem:[%s0 + $0x1b0] sm:$0xff]
  %v69 = vld [vmem:[%s0 + $0x1b8] sm:$0xff]
  %v70 = vld [vmem:[%s0 + $0x1c0] sm:$0xff]
  %v71 = vld [vmem:[%s0 + $0x1c8] sm:$0xff]
  %v72 = vld [vmem:[%s0 + $0x1d0] sm:$0xff]
  %v73 = vld [vmem:[%s0 + $0x1d8] sm:$0xff]
  %v74 = vld [vmem:[%s0 + $0x1e0] sm:$0xff]
  %v75 = vld [vmem:[%s0 + $0x1e8] sm:$0xff]
  %v76 = vld [vmem:[%s0 + $0x1f0] sm:$0xff]
  %v77 = vld [vmem:[%s0 + $0x1f8] sm:$0xff]
  %v78 = vld [vmem:[%s1] sm:$0xf]
  %v79 = vld [vmem:[%s1 + $0x4] sm:$0xf]
  %v80 = vld [vmem:[%s1 + $0x8] sm:$0xf]
  %v81 = vld [vmem:[%s1 + $0xc] sm:$0xf]
  %v82 = vld [vmem:[%s1 + $0x10] sm:$0xf]
  %v83 = vld [vmem:[%s1 + $0x14] sm:$0xf]
  %v84 = vld [vmem:[%s1 + $0x18] sm:$0xf]
  %v85 = vld [vmem:[%s1 + $0x1c] sm:$0xf]
  %v86 = vld [vmem:[%s1 + $0x20] sm:$0xf]
  %v87 = vld [vmem:[%s1 + $0x24] sm:$0xf]
  %v88 = vld [vmem:[%s1 + $0x28] sm:$0xf]
  %v89 = vld [vmem:[%s1 + $0x2c] sm:$0xf]
  %v90 = vld [vmem:[%s1 + $0x30] sm:$0xf]
  %v91 = vld [vmem:[%s1 + $0x34] sm:$0xf]
  %v92 = vld [vmem:[%s1 + $0x38] sm:$0xf]
  %v93 = vld [vmem:[%s1 + $0x3c] sm:$0xf]
  %v94 = vld [vmem:[%s1 + $0x40] sm:$0xf]
  %v95 = vld [vmem:[%s1 + $0x44] sm:$0xf]
  %v96 = vld [vmem:[%s1 + $0x48] sm:$0xf]
  %v97 = vld [vmem:[%s1 + $0x4c] sm:$0xf]
  %v98 = vld [vmem:[%s1 + $0x50] sm:$0xf]
  %v99 = vld [vmem:[%s1 + $0x54] sm:$0xf]
  %v100 = vld [vmem:[%s1 + $0x58] sm:$0xf]
  %v101 = vld [vmem:[%s1 + $0x5c] sm:$0xf]
  %v102 = vld [vmem:[%s1 + $0x60] sm:$0xf]
  %v103 = vld [vmem:[%s1 + $0x64] sm:$0xf]
  %v104 = vld [vmem:[%s1 + $0x68] sm:$0xf]
  %v105 = vld [vmem:[%s1 + $0x6c] sm:$0xf]
  %v106 = vld [vmem:[%s1 + $0x70] sm:$0xf]
  %v107 = vld [vmem:[%s1 + $0x74] sm:$0xf]
  %v108 = vld [vmem:[%s1 + $0x78] sm:$0xf]
  %v109 = vld [vmem:[%s1 + $0x7c] sm:$0xf]
  %v110 = vld [vmem:[%s1 + $0x80] sm:$0xf]
  %v111 = vld [vmem:[%s1 + $0x84] sm:$0xf]
  %v112 = vld [vmem:[%s1 + $0x88] sm:$0xf]
  %v113 = vld [vmem:[%s1 + $0x8c] sm:$0xf]
  %v114 = vld [vmem:[%s1 + $0x90] sm:$0xf]
  %v115 = vld [vmem:[%s1 + $0x94] sm:$0xf]
  %v116 = vld [vmem:[%s1 + $0x98] sm:$0xf]
  %v117 = vld [vmem:[%s1 + $0x9c] sm:$0xf]
  %v118 = vld [vmem:[%s1 + $0xa0] sm:$0xf]
  %v119 = vld [vmem:[%s1 + $0xa4] sm:$0xf]
  %v120 = vld [vmem:[%s1 + $0xa8] sm:$0xf]
  %v121 = vld [vmem:[%s1 + $0xac] sm:$0xf]
  %v122 = vld [vmem:[%s1 + $0xb0] sm:$0xf]
  %v123 = vld [vmem:[%s1 + $0xb4] sm:$0xf]
  %v124 = vld [vmem:[%s1 + $0xb8] sm:$0xf]
  %v125 = vld [vmem:[%s1 + $0xbc] sm:$0xf]
  %v126 = vld [vmem:[%s1 + $0xc0] sm:$0xf]
  %v127 = vld [vmem:[%s1 + $0xc4] sm:$0xf]
  %v128 = vld [vmem:[%s1 + $0xc8] sm:$0xf]
  %v129 = vld [vmem:[%s1 + $0xcc] sm:$0xf]
  %v130 = vld [vmem:[%s1 + $0xd0] sm:$0xf]
  %v131 = vld [vmem:[%s1 + $0xd4] sm:$0xf]
  %v132 = vld [vmem:[%s1 + $0xd8] sm:$0xf]
  %v133 = vld [vmem:[%s1 + $0xdc] sm:$0xf]
  %v134 = vld [vmem:[%s1 + $0xe0] sm:$0xf]
  %v135 = vld [vmem:[%s1 + $0xe4] sm:$0xf]
  %v136 = vld [vmem:[%s1 + $0xe8] sm:$0xf]
  %v137 = vld [vmem:[%s1 + $0xec] sm:$0xf]
  %v138 = vld [vmem:[%s1 + $0xf0] sm:$0xf]
  %v139 = vld [vmem:[%s1 + $0xf4] sm:$0xf]
  %v140 = vld [vmem:[%s1 + $0xf8] sm:$0xf]
  %v141 = vld [vmem:[%s1 + $0xfc] sm:$0xf]
  %v142 = vld [vmem:[%s1 + $0x100] sm:$0xf]
  %v143 = vld [vmem:[%s1 + $0x104] sm:$0xf]
  %v144 = vld [vmem:[%s1 + $0x108] sm:$0xf]
  %v145 = vld [vmem:[%s1 + $0x10c] sm:$0xf]
  %v146 = vld [vmem:[%s1 + $0x110] sm:$0xf]
  %v147 = vld [vmem:[%s1 + $0x114] sm:$0xf]
  %v148 = vld [vmem:[%s1 + $0x118] sm:$0xf]
  %v149 = vld [vmem:[%s1 + $0x11c] sm:$0xf]
  %v150 = vld [vmem:[%s1 + $0x120] sm:$0xf]
  %v151 = vld [vmem:[%s1 + $0x124] sm:$0xf]
  %v152 = vld [vmem:[%s1 + $0x128] sm:$0xf]
  %v153 = vld [vmem:[%s1 + $0x12c] sm:$0xf]
  %v154 = vld [vmem:[%s1 + $0x130] sm:$0xf]
  %v155 = vld [vmem:[%s1 + $0x134] sm:$0xf]
  %v156 = vld [vmem:[%s1 + $0x138] sm:$0xf]
  %v157 = vld [vmem:[%s1 + $0x13c] sm:$0xf]
  %v158 = vld [vmem:[%s1 + $0x140] sm:$0xf]
  %v159 = vld [vmem:[%s1 + $0x144] sm:$0xf]
  %v160 = vld [vmem:[%s1 + $0x148] sm:$0xf]
  %v161 = vld [vmem:[%s1 + $0x14c] sm:$0xf]
  %v162 = vld [vmem:[%s1 + $0x150] sm:$0xf]
  %v163 = vld [vmem:[%s1 + $0x154] sm:$0xf]
  %v164 = vld [vmem:[%s1 + $0x158] sm:$0xf]
  %v165 = vld [vmem:[%s1 + $0x15c] sm:$0xf]
  %v166 = vld [vmem:[%s1 + $0x160] sm:$0xf]
  %v167 = vld [vmem:[%s1 + $0x164] sm:$0xf]
  %v168 = vld [vmem:[%s1 + $0x168] sm:$0xf]
  %v169 = vld [vmem:[%s1 + $0x16c] sm:$0xf]
  %v170 = vld [vmem:[%s1 + $0x170] sm:$0xf]
  %v171 = vld [vmem:[%s1 + $0x174] sm:$0xf]
  %v172 = vld [vmem:[%s1 + $0x178] sm:$0xf]
  %v173 = vld [vmem:[%s1 + $0x17c] sm:$0xf]
  %v174 = vld [vmem:[%s1 + $0x180] sm:$0xf]
  %v175 = vld [vmem:[%s1 + $0x184] sm:$0xf]
  %v176 = vld [vmem:[%s1 + $0x188] sm:$0xf]
  %v177 = vld [vmem:[%s1 + $0x18c] sm:$0xf]
  %v178 = vld [vmem:[%s1 + $0x190] sm:$0xf]
  %v179 = vld [vmem:[%s1 + $0x194] sm:$0xf]
  %v180 = vld [vmem:[%s1 + $0x198] sm:$0xf]
  %v181 = vld [vmem:[%s1 + $0x19c] sm:$0xf]
  %v182 = vld [vmem:[%s1 + $0x1a0] sm:$0xf]
  %v183 = vld [vmem:[%s1 + $0x1a4] sm:$0xf]
  %v184 = vld [vmem:[%s1 + $0x1a8] sm:$0xf]
  %v185 = vld [vmem:[%s1 + $0x1ac] sm:$0xf]
  %v186 = vld [vmem:[%s1 + $0x1b0] sm:$0xf]
  %v187 = vld [vmem:[%s1 + $0x1b4] sm:$0xf]
  %v188 = vld [vmem:[%s1 + $0x1b8] sm:$0xf]
  %v189 = vld [vmem:[%s1 + $0x1bc] sm:$0xf]
  %v190 = vld [vmem:[%s1 + $0x1c0] sm:$0xf]
  %v191 = vld [vmem:[%s1 + $0x1c4] sm:$0xf]
  %v192 = vld [vmem:[%s1 + $0x1c8] sm:$0xf]
  %v193 = vld [vmem:[%s1 + $0x1cc] sm:$0xf]
  %v194 = vld [vmem:[%s1 + $0x1d0] sm:$0xf]
  %v195 = vld [vmem:[%s1 + $0x1d4] sm:$0xf]
  %v196 = vld [vmem:[%s1 + $0x1d8] sm:$0xf]
  %v197 = vld [vmem:[%s1 + $0x1dc] sm:$0xf]
  %v198 = vld [vmem:[%s1 + $0x1e0] sm:$0xf]
  %v199 = vld [vmem:[%s1 + $0x1e4] sm:$0xf]
  %v200 = vld [vmem:[%s1 + $0x1e8] sm:$0xf]
  %v201 = vld [vmem:[%s1 + $0x1ec] sm:$0xf]
  %v202 = vld [vmem:[%s1 + $0x1f0] sm:$0xf]
  %v203 = vld [vmem:[%s1 + $0x1f4] sm:$0xf]
  %v204 = vld [vmem:[%s1 + $0x1f8] sm:$0xf]
  %v205 = vld [vmem:[%s1 + $0x1fc] sm:$0xf]
  %v206 = vld [vmem:[%s2] sm:$0xff]
  %v207 = vld [vmem:[%s2 + $0x8] sm:$0xff]
  %v208 = vld [vmem:[%s2 + $0x10] sm:$0xff]
  %v209 = vld [vmem:[%s2 + $0x18] sm:$0xff]
  %v210 = vld [vmem:[%s2 + $0x20] sm:$0xff]
  %v211 = vld [vmem:[%s2 + $0x28] sm:$0xff]
  %v212 = vld [vmem:[%s2 + $0x30] sm:$0xff]
  %v213 = vld [vmem:[%s2 + $0x38] sm:$0xff]
  %v214 = vld [vmem:[%s2 + $0x40] sm:$0xff]
  %v215 = vld [vmem:[%s2 + $0x48] sm:$0xff]
  %v216 = vld [vmem:[%s2 + $0x50] sm:$0xff]
  %v217 = vld [vmem:[%s2 + $0x58] sm:$0xff]
  %v218 = vld [vmem:[%s2 + $0x60] sm:$0xff]
  %v219 = vld [vmem:[%s2 + $0x68] sm:$0xff]
  %v220 = vld [vmem:[%s2 + $0x70] sm:$0xff]
  %v221 = vld [vmem:[%s2 + $0x78] sm:$0xff]
  %223 = vset.pattern.permute.xlu0 0
  %224 = vperm.xlu0 %223, %v206
  %v225 = vpop.permute.xlu0 %224
  %228 = vset.pattern.permute.xlu0 0
  %229 = vperm.xlu0 %228, %v207
  %v230 = vpop.permute.xlu0 %229
  %233 = vset.pattern.permute.xlu0 0
  %234 = vperm.xlu0 %233, %v208
  %v235 = vpop.permute.xlu0 %234
  %238 = vset.pattern.permute.xlu0 0
  %239 = vperm.xlu0 %238, %v209
  %v240 = vpop.permute.xlu0 %239
  %243 = vset.pattern.permute.xlu0 0
  %244 = vperm.xlu0 %243, %v210
  %v245 = vpop.permute.xlu0 %244
  %248 = vset.pattern.permute.xlu0 0
  %249 = vperm.xlu0 %248, %v211
  %v250 = vpop.permute.xlu0 %249
  %253 = vset.pattern.permute.xlu0 0
  %254 = vperm.xlu0 %253, %v212
  %v255 = vpop.permute.xlu0 %254
  %258 = vset.pattern.permute.xlu0 0
  %259 = vperm.xlu0 %258, %v213
  %v260 = vpop.permute.xlu0 %259
  %263 = vset.pattern.permute.xlu0 0
  %264 = vperm.xlu0 %263, %v214
  %v265 = vpop.permute.xlu0 %264
  %268 = vset.pattern.permute.xlu0 0
  %269 = vperm.xlu0 %268, %v215
  %v270 = vpop.permute.xlu0 %269
  %273 = vset.pattern.permute.xlu0 0
  %274 = vperm.xlu0 %273, %v216
  %v275 = vpop.permute.xlu0 %274
  %278 = vset.pattern.permute.xlu0 0
  %279 = vperm.xlu0 %278, %v217
  %v280 = vpop.permute.xlu0 %279
  %283 = vset.pattern.permute.xlu0 0
  %284 = vperm.xlu0 %283, %v218
  %v285 = vpop.permute.xlu0 %284
  %288 = vset.pattern.permute.xlu0 0
  %289 = vperm.xlu0 %288, %v219
  %v290 = vpop.permute.xlu0 %289
  %293 = vset.pattern.permute.xlu0 0
  %294 = vperm.xlu0 %293, %v220
  %v295 = vpop.permute.xlu0 %294
  %298 = vset.pattern.permute.xlu0 0
  %299 = vperm.xlu0 %298, %v221
  %v300 = vpop.permute.xlu0 %299
  %v366 = vunpack.c.l.b16 %v14
  %v367 = vunpack.c.h.b16 %v14
  %v368 = vunpack.c.l.b16 %v15
  %v369 = vunpack.c.h.b16 %v15
  %v370 = vunpack.c.l.b16 %v16
  %v371 = vunpack.c.h.b16 %v16
  %v372 = vunpack.c.l.b16 %v17
  %v373 = vunpack.c.h.b16 %v17
  %v374 = vunpack.c.l.b16 %v18
  %v375 = vunpack.c.h.b16 %v18
  %v376 = vunpack.c.l.b16 %v19
  %v377 = vunpack.c.h.b16 %v19
  %v378 = vunpack.c.l.b16 %v20
  %v379 = vunpack.c.h.b16 %v20
  %v380 = vunpack.c.l.b16 %v21
  %v381 = vunpack.c.h.b16 %v21
  %v382 = vunpack.c.l.b16 %v22
  %v383 = vunpack.c.h.b16 %v22
  %v384 = vunpack.c.l.b16 %v23
  %v385 = vunpack.c.h.b16 %v23
  %v386 = vunpack.c.l.b16 %v24
  %v387 = vunpack.c.h.b16 %v24
  %v388 = vunpack.c.l.b16 %v25
  %v389 = vunpack.c.h.b16 %v25
  %v390 = vunpack.c.l.b16 %v26
  %v391 = vunpack.c.h.b16 %v26
  %v392 = vunpack.c.l.b16 %v27
  %v393 = vunpack.c.h.b16 %v27
  %v394 = vunpack.c.l.b16 %v28
  %v395 = vunpack.c.h.b16 %v28
  %v396 = vunpack.c.l.b16 %v29
  %v397 = vunpack.c.h.b16 %v29
  %v398 = vunpack.c.l.b16 %v30
  %v399 = vunpack.c.h.b16 %v30
  %v400 = vunpack.c.l.b16 %v31
  %v401 = vunpack.c.h.b16 %v31
  %v402 = vunpack.c.l.b16 %v32
  %v403 = vunpack.c.h.b16 %v32
  %v404 = vunpack.c.l.b16 %v33
  %v405 = vunpack.c.h.b16 %v33
  %v406 = vunpack.c.l.b16 %v34
  %v407 = vunpack.c.h.b16 %v34
  %v408 = vunpack.c.l.b16 %v35
  %v409 = vunpack.c.h.b16 %v35
  %v410 = vunpack.c.l.b16 %v36
  %v411 = vunpack.c.h.b16 %v36
  %v412 = vunpack.c.l.b16 %v37
  %v413 = vunpack.c.h.b16 %v37
  %v414 = vunpack.c.l.b16 %v38
  %v415 = vunpack.c.h.b16 %v38
  %v416 = vunpack.c.l.b16 %v39
  %v417 = vunpack.c.h.b16 %v39
  %v418 = vunpack.c.l.b16 %v40
  %v419 = vunpack.c.h.b16 %v40
  %v420 = vunpack.c.l.b16 %v41
  %v421 = vunpack.c.h.b16 %v41
  %v422 = vunpack.c.l.b16 %v42
  %v423 = vunpack.c.h.b16 %v42
  %v424 = vunpack.c.l.b16 %v43
  %v425 = vunpack.c.h.b16 %v43
  %v426 = vunpack.c.l.b16 %v44
  %v427 = vunpack.c.h.b16 %v44
  %v428 = vunpack.c.l.b16 %v45
  %v429 = vunpack.c.h.b16 %v45
  %v430 = vunpack.c.l.b16 %v46
  %v431 = vunpack.c.h.b16 %v46
  %v432 = vunpack.c.l.b16 %v47
  %v433 = vunpack.c.h.b16 %v47
  %v434 = vunpack.c.l.b16 %v48
  %v435 = vunpack.c.h.b16 %v48
  %v436 = vunpack.c.l.b16 %v49
  %v437 = vunpack.c.h.b16 %v49
  %v438 = vunpack.c.l.b16 %v50
  %v439 = vunpack.c.h.b16 %v50
  %v440 = vunpack.c.l.b16 %v51
  %v441 = vunpack.c.h.b16 %v51
  %v442 = vunpack.c.l.b16 %v52
  %v443 = vunpack.c.h.b16 %v52
  %v444 = vunpack.c.l.b16 %v53
  %v445 = vunpack.c.h.b16 %v53
  %v446 = vunpack.c.l.b16 %v54
  %v447 = vunpack.c.h.b16 %v54
  %v448 = vunpack.c.l.b16 %v55
  %v449 = vunpack.c.h.b16 %v55
  %v450 = vunpack.c.l.b16 %v56
  %v451 = vunpack.c.h.b16 %v56
  %v452 = vunpack.c.l.b16 %v57
  %v453 = vunpack.c.h.b16 %v57
  %v454 = vunpack.c.l.b16 %v58
  %v455 = vunpack.c.h.b16 %v58
  %v456 = vunpack.c.l.b16 %v59
  %v457 = vunpack.c.h.b16 %v59
  %v458 = vunpack.c.l.b16 %v60
  %v459 = vunpack.c.h.b16 %v60
  %v460 = vunpack.c.l.b16 %v61
  %v461 = vunpack.c.h.b16 %v61
  %v462 = vunpack.c.l.b16 %v62
  %v463 = vunpack.c.h.b16 %v62
  %v464 = vunpack.c.l.b16 %v63
  %v465 = vunpack.c.h.b16 %v63
  %v466 = vunpack.c.l.b16 %v64
  %v467 = vunpack.c.h.b16 %v64
  %v468 = vunpack.c.l.b16 %v65
  %v469 = vunpack.c.h.b16 %v65
  %v470 = vunpack.c.l.b16 %v66
  %v471 = vunpack.c.h.b16 %v66
  %v472 = vunpack.c.l.b16 %v67
  %v473 = vunpack.c.h.b16 %v67
  %v474 = vunpack.c.l.b16 %v68
  %v475 = vunpack.c.h.b16 %v68
  %v476 = vunpack.c.l.b16 %v69
  %v477 = vunpack.c.h.b16 %v69
  %v478 = vunpack.c.l.b16 %v70
  %v479 = vunpack.c.h.b16 %v70
  %v480 = vunpack.c.l.b16 %v71
  %v481 = vunpack.c.h.b16 %v71
  %v482 = vunpack.c.l.b16 %v72
  %v483 = vunpack.c.h.b16 %v72
  %v484 = vunpack.c.l.b16 %v73
  %v485 = vunpack.c.h.b16 %v73
  %v486 = vunpack.c.l.b16 %v74
  %v487 = vunpack.c.h.b16 %v74
  %v488 = vunpack.c.l.b16 %v75
  %v489 = vunpack.c.h.b16 %v75
  %v490 = vunpack.c.l.b16 %v76
  %v491 = vunpack.c.h.b16 %v76
  %v492 = vunpack.c.l.b16 %v77
  %v493 = vunpack.c.h.b16 %v77
  %v494 = vpack.c.b16 %v374, %v366
  %v495 = vpack.c.b16 %v375, %v367
  %v496 = vpack.c.b16 %v376, %v368
  %v497 = vpack.c.b16 %v377, %v369
  %v498 = vpack.c.b16 %v378, %v370
  %v499 = vpack.c.b16 %v379, %v371
  %v500 = vpack.c.b16 %v380, %v372
  %v501 = vpack.c.b16 %v381, %v373
  %v502 = vpack.c.b16 %v390, %v382
  %v503 = vpack.c.b16 %v391, %v383
  %v504 = vpack.c.b16 %v392, %v384
  %v505 = vpack.c.b16 %v393, %v385
  %v506 = vpack.c.b16 %v394, %v386
  %v507 = vpack.c.b16 %v395, %v387
  %v508 = vpack.c.b16 %v396, %v388
  %v509 = vpack.c.b16 %v397, %v389
  %v510 = vpack.c.b16 %v406, %v398
  %v511 = vpack.c.b16 %v407, %v399
  %v512 = vpack.c.b16 %v408, %v400
  %v513 = vpack.c.b16 %v409, %v401
  %v514 = vpack.c.b16 %v410, %v402
  %v515 = vpack.c.b16 %v411, %v403
  %v516 = vpack.c.b16 %v412, %v404
  %v517 = vpack.c.b16 %v413, %v405
  %v518 = vpack.c.b16 %v422, %v414
  %v519 = vpack.c.b16 %v423, %v415
  %v520 = vpack.c.b16 %v424, %v416
  %v521 = vpack.c.b16 %v425, %v417
  %v522 = vpack.c.b16 %v426, %v418
  %v523 = vpack.c.b16 %v427, %v419
  %v524 = vpack.c.b16 %v428, %v420
  %v525 = vpack.c.b16 %v429, %v421
  %v526 = vpack.c.b16 %v438, %v430
  %v527 = vpack.c.b16 %v439, %v431
  %v528 = vpack.c.b16 %v440, %v432
  %v529 = vpack.c.b16 %v441, %v433
  %v530 = vpack.c.b16 %v442, %v434
  %v531 = vpack.c.b16 %v443, %v435
  %v532 = vpack.c.b16 %v444, %v436
  %v533 = vpack.c.b16 %v445, %v437
  %v534 = vpack.c.b16 %v454, %v446
  %v535 = vpack.c.b16 %v455, %v447
  %v536 = vpack.c.b16 %v456, %v448
  %v537 = vpack.c.b16 %v457, %v449
  %v538 = vpack.c.b16 %v458, %v450
  %v539 = vpack.c.b16 %v459, %v451
  %v540 = vpack.c.b16 %v460, %v452
  %v541 = vpack.c.b16 %v461, %v453
  %v542 = vpack.c.b16 %v470, %v462
  %v543 = vpack.c.b16 %v471, %v463
  %v544 = vpack.c.b16 %v472, %v464
  %v545 = vpack.c.b16 %v473, %v465
  %v546 = vpack.c.b16 %v474, %v466
  %v547 = vpack.c.b16 %v475, %v467
  %v548 = vpack.c.b16 %v476, %v468
  %v549 = vpack.c.b16 %v477, %v469
  %v550 = vpack.c.b16 %v486, %v478
  %v551 = vpack.c.b16 %v487, %v479
  %v552 = vpack.c.b16 %v488, %v480
  %v553 = vpack.c.b16 %v489, %v481
  %v554 = vpack.c.b16 %v490, %v482
  %v555 = vpack.c.b16 %v491, %v483
  %v556 = vpack.c.b16 %v492, %v484
  %v557 = vpack.c.b16 %v493, %v485
  %v750 = vunpack.c.l.b16 %v78
  %v751 = vunpack.c.l.b16 %v79
  %v752 = vunpack.c.l.b16 %v80
  %v753 = vunpack.c.l.b16 %v81
  %v754 = vunpack.c.l.b16 %v82
  %v755 = vunpack.c.l.b16 %v83
  %v756 = vunpack.c.l.b16 %v84
  %v757 = vunpack.c.l.b16 %v85
  %v758 = vunpack.c.l.b16 %v86
  %v759 = vunpack.c.l.b16 %v87
  %v760 = vunpack.c.l.b16 %v88
  %v761 = vunpack.c.l.b16 %v89
  %v762 = vunpack.c.l.b16 %v90
  %v763 = vunpack.c.l.b16 %v91
  %v764 = vunpack.c.l.b16 %v92
  %v765 = vunpack.c.l.b16 %v93
  %v766 = vunpack.c.l.b16 %v94
  %v767 = vunpack.c.l.b16 %v95
  %v768 = vunpack.c.l.b16 %v96
  %v769 = vunpack.c.l.b16 %v97
  %v770 = vunpack.c.l.b16 %v98
  %v771 = vunpack.c.l.b16 %v99
  %v772 = vunpack.c.l.b16 %v100
  %v773 = vunpack.c.l.b16 %v101
  %v774 = vunpack.c.l.b16 %v102
  %v775 = vunpack.c.l.b16 %v103
  %v776 = vunpack.c.l.b16 %v104
  %v777 = vunpack.c.l.b16 %v105
  %v778 = vunpack.c.l.b16 %v106
  %v779 = vunpack.c.l.b16 %v107
  %v780 = vunpack.c.l.b16 %v108
  %v781 = vunpack.c.l.b16 %v109
  %v782 = vunpack.c.l.b16 %v110
  %v783 = vunpack.c.l.b16 %v111
  %v784 = vunpack.c.l.b16 %v112
  %v785 = vunpack.c.l.b16 %v113
  %v786 = vunpack.c.l.b16 %v114
  %v787 = vunpack.c.l.b16 %v115
  %v788 = vunpack.c.l.b16 %v116
  %v789 = vunpack.c.l.b16 %v117
  %v790 = vunpack.c.l.b16 %v118
  %v791 = vunpack.c.l.b16 %v119
  %v792 = vunpack.c.l.b16 %v120
  %v793 = vunpack.c.l.b16 %v121
  %v794 = vunpack.c.l.b16 %v122
  %v795 = vunpack.c.l.b16 %v123
  %v796 = vunpack.c.l.b16 %v124
  %v797 = vunpack.c.l.b16 %v125
  %v798 = vunpack.c.l.b16 %v126
  %v799 = vunpack.c.l.b16 %v127
  %v800 = vunpack.c.l.b16 %v128
  %v801 = vunpack.c.l.b16 %v129
  %v802 = vunpack.c.l.b16 %v130
  %v803 = vunpack.c.l.b16 %v131
  %v804 = vunpack.c.l.b16 %v132
  %v805 = vunpack.c.l.b16 %v133
  %v806 = vunpack.c.l.b16 %v134
  %v807 = vunpack.c.l.b16 %v135
  %v808 = vunpack.c.l.b16 %v136
  %v809 = vunpack.c.l.b16 %v137
  %v810 = vunpack.c.l.b16 %v138
  %v811 = vunpack.c.l.b16 %v139
  %v812 = vunpack.c.l.b16 %v140
  %v813 = vunpack.c.l.b16 %v141
  %v814 = vunpack.c.l.b16 %v142
  %v815 = vunpack.c.l.b16 %v143
  %v816 = vunpack.c.l.b16 %v144
  %v817 = vunpack.c.l.b16 %v145
  %v818 = vunpack.c.l.b16 %v146
  %v819 = vunpack.c.l.b16 %v147
  %v820 = vunpack.c.l.b16 %v148
  %v821 = vunpack.c.l.b16 %v149
  %v822 = vunpack.c.l.b16 %v150
  %v823 = vunpack.c.l.b16 %v151
  %v824 = vunpack.c.l.b16 %v152
  %v825 = vunpack.c.l.b16 %v153
  %v826 = vunpack.c.l.b16 %v154
  %v827 = vunpack.c.l.b16 %v155
  %v828 = vunpack.c.l.b16 %v156
  %v829 = vunpack.c.l.b16 %v157
  %v830 = vunpack.c.l.b16 %v158
  %v831 = vunpack.c.l.b16 %v159
  %v832 = vunpack.c.l.b16 %v160
  %v833 = vunpack.c.l.b16 %v161
  %v834 = vunpack.c.l.b16 %v162
  %v835 = vunpack.c.l.b16 %v163
  %v836 = vunpack.c.l.b16 %v164
  %v837 = vunpack.c.l.b16 %v165
  %v838 = vunpack.c.l.b16 %v166
  %v839 = vunpack.c.l.b16 %v167
  %v840 = vunpack.c.l.b16 %v168
  %v841 = vunpack.c.l.b16 %v169
  %v842 = vunpack.c.l.b16 %v170
  %v843 = vunpack.c.l.b16 %v171
  %v844 = vunpack.c.l.b16 %v172
  %v845 = vunpack.c.l.b16 %v173
  %v846 = vunpack.c.l.b16 %v174
  %v847 = vunpack.c.l.b16 %v175
  %v848 = vunpack.c.l.b16 %v176
  %v849 = vunpack.c.l.b16 %v177
  %v850 = vunpack.c.l.b16 %v178
  %v851 = vunpack.c.l.b16 %v179
  %v852 = vunpack.c.l.b16 %v180
  %v853 = vunpack.c.l.b16 %v181
  %v854 = vunpack.c.l.b16 %v182
  %v855 = vunpack.c.l.b16 %v183
  %v856 = vunpack.c.l.b16 %v184
  %v857 = vunpack.c.l.b16 %v185
  %v858 = vunpack.c.l.b16 %v186
  %v859 = vunpack.c.l.b16 %v187
  %v860 = vunpack.c.l.b16 %v188
  %v861 = vunpack.c.l.b16 %v189
  %v862 = vunpack.c.l.b16 %v190
  %v863 = vunpack.c.l.b16 %v191
  %v864 = vunpack.c.l.b16 %v192
  %v865 = vunpack.c.l.b16 %v193
  %v866 = vunpack.c.l.b16 %v194
  %v867 = vunpack.c.l.b16 %v195
  %v868 = vunpack.c.l.b16 %v196
  %v869 = vunpack.c.l.b16 %v197
  %v870 = vunpack.c.l.b16 %v198
  %v871 = vunpack.c.l.b16 %v199
  %v872 = vunpack.c.l.b16 %v200
  %v873 = vunpack.c.l.b16 %v201
  %v874 = vunpack.c.l.b16 %v202
  %v875 = vunpack.c.l.b16 %v203
  %v876 = vunpack.c.l.b16 %v204
  %v877 = vunpack.c.l.b16 %v205
  %v878 = vpack.c.b16 %v751, %v750
  %v879 = vpack.c.b16 %v753, %v752
  %v880 = vpack.c.b16 %v755, %v754
  %v881 = vpack.c.b16 %v757, %v756
  %v882 = vpack.c.b16 %v759, %v758
  %v883 = vpack.c.b16 %v761, %v760
  %v884 = vpack.c.b16 %v763, %v762
  %v885 = vpack.c.b16 %v765, %v764
  %v886 = vpack.c.b16 %v767, %v766
  %v887 = vpack.c.b16 %v769, %v768
  %v888 = vpack.c.b16 %v771, %v770
  %v889 = vpack.c.b16 %v773, %v772
  %v890 = vpack.c.b16 %v775, %v774
  %v891 = vpack.c.b16 %v777, %v776
  %v892 = vpack.c.b16 %v779, %v778
  %v893 = vpack.c.b16 %v781, %v780
  %v894 = vpack.c.b16 %v783, %v782
  %v895 = vpack.c.b16 %v785, %v784
  %v896 = vpack.c.b16 %v787, %v786
  %v897 = vpack.c.b16 %v789, %v788
  %v898 = vpack.c.b16 %v791, %v790
  %v899 = vpack.c.b16 %v793, %v792
  %v900 = vpack.c.b16 %v795, %v794
  %v901 = vpack.c.b16 %v797, %v796
  %v902 = vpack.c.b16 %v799, %v798
  %v903 = vpack.c.b16 %v801, %v800
  %v904 = vpack.c.b16 %v803, %v802
  %v905 = vpack.c.b16 %v805, %v804
  %v906 = vpack.c.b16 %v807, %v806
  %v907 = vpack.c.b16 %v809, %v808
  %v908 = vpack.c.b16 %v811, %v810
  %v909 = vpack.c.b16 %v813, %v812
  %v910 = vpack.c.b16 %v815, %v814
  %v911 = vpack.c.b16 %v817, %v816
  %v912 = vpack.c.b16 %v819, %v818
  %v913 = vpack.c.b16 %v821, %v820
  %v914 = vpack.c.b16 %v823, %v822
  %v915 = vpack.c.b16 %v825, %v824
  %v916 = vpack.c.b16 %v827, %v826
  %v917 = vpack.c.b16 %v829, %v828
  %v918 = vpack.c.b16 %v831, %v830
  %v919 = vpack.c.b16 %v833, %v832
  %v920 = vpack.c.b16 %v835, %v834
  %v921 = vpack.c.b16 %v837, %v836
  %v922 = vpack.c.b16 %v839, %v838
  %v923 = vpack.c.b16 %v841, %v840
  %v924 = vpack.c.b16 %v843, %v842
  %v925 = vpack.c.b16 %v845, %v844
  %v926 = vpack.c.b16 %v847, %v846
  %v927 = vpack.c.b16 %v849, %v848
  %v928 = vpack.c.b16 %v851, %v850
  %v929 = vpack.c.b16 %v853, %v852
  %v930 = vpack.c.b16 %v855, %v854
  %v931 = vpack.c.b16 %v857, %v856
  %v932 = vpack.c.b16 %v859, %v858
  %v933 = vpack.c.b16 %v861, %v860
  %v934 = vpack.c.b16 %v863, %v862
  %v935 = vpack.c.b16 %v865, %v864
  %v936 = vpack.c.b16 %v867, %v866
  %v937 = vpack.c.b16 %v869, %v868
  %v938 = vpack.c.b16 %v871, %v870
  %v939 = vpack.c.b16 %v873, %v872
  %v940 = vpack.c.b16 %v875, %v874
  %v941 = vpack.c.b16 %v877, %v876
  %1006 = vmatpush.bf16.msra.mxu0 %v885
  %1007 = vmatpush.bf16.msra.mxu0 %v884
  %1008 = vmatpush.bf16.msra.mxu0 %v883
  %1009 = vmatpush.bf16.msra.mxu0 %v882
  %1010 = vmatpush.bf16.msra.mxu0 %v881
  %1011 = vmatpush.bf16.msra.mxu0 %v880
  %1012 = vmatpush.bf16.msra.mxu0 %v879
  %1013 = vmatpush.bf16.msra.mxu0 %v878
  %1014 = vmatmul.bf16.gmra.mxu0 %v494
  %v1015 = vpop.f32.mrf.mxu0
  %v1016 = vadd.f32 %v225, %v1015
  %v1017 = vpop.f32.mrf.mxu0
  %v1018 = vadd.f32 %v230, %v1017
  %1019 = vmatmul.bf16.gmra.mxu0 %v502
  %v1020 = vpop.f32.mrf.mxu0
  %v1021 = vadd.f32 %v235, %v1020
  %v1022 = vpop.f32.mrf.mxu0
  %v1023 = vadd.f32 %v240, %v1022
  %1024 = vmatmul.bf16.gmra.mxu0 %v510
  %v1025 = vpop.f32.mrf.mxu0
  %v1026 = vadd.f32 %v245, %v1025
  %v1027 = vpop.f32.mrf.mxu0
  %v1028 = vadd.f32 %v250, %v1027
  %1029 = vmatmul.bf16.gmra.mxu0 %v518
  %v1030 = vpop.f32.mrf.mxu0
  %v1031 = vadd.f32 %v255, %v1030
  %v1032 = vpop.f32.mrf.mxu0
  %v1033 = vadd.f32 %v260, %v1032
  %1034 = vmatmul.bf16.gmra.mxu0 %v526
  %v1035 = vpop.f32.mrf.mxu0
  %v1036 = vadd.f32 %v265, %v1035
  %v1037 = vpop.f32.mrf.mxu0
  %v1038 = vadd.f32 %v270, %v1037
  %1039 = vmatmul.bf16.gmra.mxu0 %v534
  %v1040 = vpop.f32.mrf.mxu0
  %v1041 = vadd.f32 %v275, %v1040
  %v1042 = vpop.f32.mrf.mxu0
  %v1043 = vadd.f32 %v280, %v1042
  %1044 = vmatmul.bf16.gmra.mxu0 %v542
  %v1045 = vpop.f32.mrf.mxu0
  %v1046 = vadd.f32 %v285, %v1045
  %v1047 = vpop.f32.mrf.mxu0
  %v1048 = vadd.f32 %v290, %v1047
  %1049 = vmatmul.bf16.gmra.mxu0 %v550
  %v1050 = vpop.f32.mrf.mxu0
  %v1051 = vadd.f32 %v295, %v1050
  %v1052 = vpop.f32.mrf.mxu0
  %v1053 = vadd.f32 %v300, %v1052
  %1054 = vdwg.mxu0
  %1055 = vmatpush.bf16.msra.mxu0 %v893
  %1056 = vmatpush.bf16.msra.mxu0 %v892
  %1057 = vmatpush.bf16.msra.mxu0 %v891
  %1058 = vmatpush.bf16.msra.mxu0 %v890
  %1059 = vmatpush.bf16.msra.mxu0 %v889
  %1060 = vmatpush.bf16.msra.mxu0 %v888
  %1061 = vmatpush.bf16.msra.mxu0 %v887
  %1062 = vmatpush.bf16.msra.mxu0 %v886
  %1063 = vmatmul.bf16.gmra.mxu0 %v495
  %v1064 = vpop.f32.mrf.mxu0
  %v1065 = vadd.f32 %v1016, %v1064
  %v1066 = vpop.f32.mrf.mxu0
  %v1067 = vadd.f32 %v1018, %v1066
  %1068 = vmatmul.bf16.gmra.mxu0 %v503
  %v1069 = vpop.f32.mrf.mxu0
  %v1070 = vadd.f32 %v1021, %v1069
  %v1071 = vpop.f32.mrf.mxu0
  %v1072 = vadd.f32 %v1023, %v1071
  %1073 = vmatmul.bf16.gmra.mxu0 %v511
  %v1074 = vpop.f32.mrf.mxu0
  %v1075 = vadd.f32 %v1026, %v1074
  %v1076 = vpop.f32.mrf.mxu0
  %v1077 = vadd.f32 %v1028, %v1076
  %1078 = vmatmul.bf16.gmra.mxu0 %v519
  %v1079 = vpop.f32.mrf.mxu0
  %v1080 = vadd.f32 %v1031, %v1079
  %v1081 = vpop.f32.mrf.mxu0
  %v1082 = vadd.f32 %v1033, %v1081
  %1083 = vmatmul.bf16.gmra.mxu0 %v527
  %v1084 = vpop.f32.mrf.mxu0
  %v1085 = vadd.f32 %v1036, %v1084
  %v1086 = vpop.f32.mrf.mxu0
  %v1087 = vadd.f32 %v1038, %v1086
  %1088 = vmatmul.bf16.gmra.mxu0 %v535
  %v1089 = vpop.f32.mrf.mxu0
  %v1090 = vadd.f32 %v1041, %v1089
  %v1091 = vpop.f32.mrf.mxu0
  %v1092 = vadd.f32 %v1043, %v1091
  %1093 = vmatmul.bf16.gmra.mxu0 %v543
  %v1094 = vpop.f32.mrf.mxu0
  %v1095 = vadd.f32 %v1046, %v1094
  %v1096 = vpop.f32.mrf.mxu0
  %v1097 = vadd.f32 %v1048, %v1096
  %1098 = vmatmul.bf16.gmra.mxu0 %v551
  %v1099 = vpop.f32.mrf.mxu0
  %v1100 = vadd.f32 %v1051, %v1099
  %v1101 = vpop.f32.mrf.mxu0
  %v1102 = vadd.f32 %v1053, %v1101
  %1103 = vdwg.mxu0
  %1104 = vmatpush.bf16.msra.mxu0 %v901
  %1105 = vmatpush.bf16.msra.mxu0 %v900
  %1106 = vmatpush.bf16.msra.mxu0 %v899
  %1107 = vmatpush.bf16.msra.mxu0 %v898
  %1108 = vmatpush.bf16.msra.mxu0 %v897
  %1109 = vmatpush.bf16.msra.mxu0 %v896
  %1110 = vmatpush.bf16.msra.mxu0 %v895
  %1111 = vmatpush.bf16.msra.mxu0 %v894
  %1112 = vmatmul.bf16.gmra.mxu0 %v496
  %v1113 = vpop.f32.mrf.mxu0
  %v1114 = vadd.f32 %v1065, %v1113
  %v1115 = vpop.f32.mrf.mxu0
  %v1116 = vadd.f32 %v1067, %v1115
  %1117 = vmatmul.bf16.gmra.mxu0 %v504
  %v1118 = vpop.f32.mrf.mxu0
  %v1119 = vadd.f32 %v1070, %v1118
  %v1120 = vpop.f32.mrf.mxu0
  %v1121 = vadd.f32 %v1072, %v1120
  %1122 = vmatmul.bf16.gmra.mxu0 %v512
  %v1123 = vpop.f32.mrf.mxu0
  %v1124 = vadd.f32 %v1075, %v1123
  %v1125 = vpop.f32.mrf.mxu0
  %v1126 = vadd.f32 %v1077, %v1125
  %1127 = vmatmul.bf16.gmra.mxu0 %v520
  %v1128 = vpop.f32.mrf.mxu0
  %v1129 = vadd.f32 %v1080, %v1128
  %v1130 = vpop.f32.mrf.mxu0
  %v1131 = vadd.f32 %v1082, %v1130
  %1132 = vmatmul.bf16.gmra.mxu0 %v528
  %v1133 = vpop.f32.mrf.mxu0
  %v1134 = vadd.f32 %v1085, %v1133
  %v1135 = vpop.f32.mrf.mxu0
  %v1136 = vadd.f32 %v1087, %v1135
  %1137 = vmatmul.bf16.gmra.mxu0 %v536
  %v1138 = vpop.f32.mrf.mxu0
  %v1139 = vadd.f32 %v1090, %v1138
  %v1140 = vpop.f32.mrf.mxu0
  %v1141 = vadd.f32 %v1092, %v1140
  %1142 = vmatmul.bf16.gmra.mxu0 %v544
  %v1143 = vpop.f32.mrf.mxu0
  %v1144 = vadd.f32 %v1095, %v1143
  %v1145 = vpop.f32.mrf.mxu0
  %v1146 = vadd.f32 %v1097, %v1145
  %1147 = vmatmul.bf16.gmra.mxu0 %v552
  %v1148 = vpop.f32.mrf.mxu0
  %v1149 = vadd.f32 %v1100, %v1148
  %v1150 = vpop.f32.mrf.mxu0
  %v1151 = vadd.f32 %v1102, %v1150
  %1152 = vdwg.mxu0
  %1153 = vmatpush.bf16.msra.mxu0 %v909
  %1154 = vmatpush.bf16.msra.mxu0 %v908
  %1155 = vmatpush.bf16.msra.mxu0 %v907
  %1156 = vmatpush.bf16.msra.mxu0 %v906
  %1157 = vmatpush.bf16.msra.mxu0 %v905
  %1158 = vmatpush.bf16.msra.mxu0 %v904
  %1159 = vmatpush.bf16.msra.mxu0 %v903
  %1160 = vmatpush.bf16.msra.mxu0 %v902
  %1161 = vmatmul.bf16.gmra.mxu0 %v497
  %v1162 = vpop.f32.mrf.mxu0
  %v1163 = vadd.f32 %v1114, %v1162
  %v1164 = vpop.f32.mrf.mxu0
  %v1165 = vadd.f32 %v1116, %v1164
  %1166 = vmatmul.bf16.gmra.mxu0 %v505
  %v1167 = vpop.f32.mrf.mxu0
  %v1168 = vadd.f32 %v1119, %v1167
  %v1169 = vpop.f32.mrf.mxu0
  %v1170 = vadd.f32 %v1121, %v1169
  %1171 = vmatmul.bf16.gmra.mxu0 %v513
  %v1172 = vpop.f32.mrf.mxu0
  %v1173 = vadd.f32 %v1124, %v1172
  %v1174 = vpop.f32.mrf.mxu0
  %v1175 = vadd.f32 %v1126, %v1174
  %1176 = vmatmul.bf16.gmra.mxu0 %v521
  %v1177 = vpop.f32.mrf.mxu0
  %v1178 = vadd.f32 %v1129, %v1177
  %v1179 = vpop.f32.mrf.mxu0
  %v1180 = vadd.f32 %v1131, %v1179
  %1181 = vmatmul.bf16.gmra.mxu0 %v529
  %v1182 = vpop.f32.mrf.mxu0
  %v1183 = vadd.f32 %v1134, %v1182
  %v1184 = vpop.f32.mrf.mxu0
  %v1185 = vadd.f32 %v1136, %v1184
  %1186 = vmatmul.bf16.gmra.mxu0 %v537
  %v1187 = vpop.f32.mrf.mxu0
  %v1188 = vadd.f32 %v1139, %v1187
  %v1189 = vpop.f32.mrf.mxu0
  %v1190 = vadd.f32 %v1141, %v1189
  %1191 = vmatmul.bf16.gmra.mxu0 %v545
  %v1192 = vpop.f32.mrf.mxu0
  %v1193 = vadd.f32 %v1144, %v1192
  %v1194 = vpop.f32.mrf.mxu0
  %v1195 = vadd.f32 %v1146, %v1194
  %1196 = vmatmul.bf16.gmra.mxu0 %v553
  %v1197 = vpop.f32.mrf.mxu0
  %v1198 = vadd.f32 %v1149, %v1197
  %v1199 = vpop.f32.mrf.mxu0
  %v1200 = vadd.f32 %v1151, %v1199
  %1201 = vdwg.mxu0
  %1202 = vmatpush.bf16.msra.mxu0 %v917
  %1203 = vmatpush.bf16.msra.mxu0 %v916
  %1204 = vmatpush.bf16.msra.mxu0 %v915
  %1205 = vmatpush.bf16.msra.mxu0 %v914
  %1206 = vmatpush.bf16.msra.mxu0 %v913
  %1207 = vmatpush.bf16.msra.mxu0 %v912
  %1208 = vmatpush.bf16.msra.mxu0 %v911
  %1209 = vmatpush.bf16.msra.mxu0 %v910
  %1210 = vmatmul.bf16.gmra.mxu0 %v498
  %v1211 = vpop.f32.mrf.mxu0
  %v1212 = vadd.f32 %v1163, %v1211
  %v1213 = vpop.f32.mrf.mxu0
  %v1214 = vadd.f32 %v1165, %v1213
  %1215 = vmatmul.bf16.gmra.mxu0 %v506
  %v1216 = vpop.f32.mrf.mxu0
  %v1217 = vadd.f32 %v1168, %v1216
  %v1218 = vpop.f32.mrf.mxu0
  %v1219 = vadd.f32 %v1170, %v1218
  %1220 = vmatmul.bf16.gmra.mxu0 %v514
  %v1221 = vpop.f32.mrf.mxu0
  %v1222 = vadd.f32 %v1173, %v1221
  %v1223 = vpop.f32.mrf.mxu0
  %v1224 = vadd.f32 %v1175, %v1223
  %1225 = vmatmul.bf16.gmra.mxu0 %v522
  %v1226 = vpop.f32.mrf.mxu0
  %v1227 = vadd.f32 %v1178, %v1226
  %v1228 = vpop.f32.mrf.mxu0
  %v1229 = vadd.f32 %v1180, %v1228
  %1230 = vmatmul.bf16.gmra.mxu0 %v530
  %v1231 = vpop.f32.mrf.mxu0
  %v1232 = vadd.f32 %v1183, %v1231
  %v1233 = vpop.f32.mrf.mxu0
  %v1234 = vadd.f32 %v1185, %v1233
  %1235 = vmatmul.bf16.gmra.mxu0 %v538
  %v1236 = vpop.f32.mrf.mxu0
  %v1237 = vadd.f32 %v1188, %v1236
  %v1238 = vpop.f32.mrf.mxu0
  %v1239 = vadd.f32 %v1190, %v1238
  %1240 = vmatmul.bf16.gmra.mxu0 %v546
  %v1241 = vpop.f32.mrf.mxu0
  %v1242 = vadd.f32 %v1193, %v1241
  %v1243 = vpop.f32.mrf.mxu0
  %v1244 = vadd.f32 %v1195, %v1243
  %1245 = vmatmul.bf16.gmra.mxu0 %v554
  %v1246 = vpop.f32.mrf.mxu0
  %v1247 = vadd.f32 %v1198, %v1246
  %v1248 = vpop.f32.mrf.mxu0
  %v1249 = vadd.f32 %v1200, %v1248
  %1250 = vdwg.mxu0
  %1251 = vmatpush.bf16.msra.mxu0 %v925
  %1252 = vmatpush.bf16.msra.mxu0 %v924
  %1253 = vmatpush.bf16.msra.mxu0 %v923
  %1254 = vmatpush.bf16.msra.mxu0 %v922
  %1255 = vmatpush.bf16.msra.mxu0 %v921
  %1256 = vmatpush.bf16.msra.mxu0 %v920
  %1257 = vmatpush.bf16.msra.mxu0 %v919
  %1258 = vmatpush.bf16.msra.mxu0 %v918
  %1259 = vmatmul.bf16.gmra.mxu0 %v499
  %v1260 = vpop.f32.mrf.mxu0
  %v1261 = vadd.f32 %v1212, %v1260
  %v1262 = vpop.f32.mrf.mxu0
  %v1263 = vadd.f32 %v1214, %v1262
  %1264 = vmatmul.bf16.gmra.mxu0 %v507
  %v1265 = vpop.f32.mrf.mxu0
  %v1266 = vadd.f32 %v1217, %v1265
  %v1267 = vpop.f32.mrf.mxu0
  %v1268 = vadd.f32 %v1219, %v1267
  %1269 = vmatmul.bf16.gmra.mxu0 %v515
  %v1270 = vpop.f32.mrf.mxu0
  %v1271 = vadd.f32 %v1222, %v1270
  %v1272 = vpop.f32.mrf.mxu0
  %v1273 = vadd.f32 %v1224, %v1272
  %1274 = vmatmul.bf16.gmra.mxu0 %v523
  %v1275 = vpop.f32.mrf.mxu0
  %v1276 = vadd.f32 %v1227, %v1275
  %v1277 = vpop.f32.mrf.mxu0
  %v1278 = vadd.f32 %v1229, %v1277
  %1279 = vmatmul.bf16.gmra.mxu0 %v531
  %v1280 = vpop.f32.mrf.mxu0
  %v1281 = vadd.f32 %v1232, %v1280
  %v1282 = vpop.f32.mrf.mxu0
  %v1283 = vadd.f32 %v1234, %v1282
  %1284 = vmatmul.bf16.gmra.mxu0 %v539
  %v1285 = vpop.f32.mrf.mxu0
  %v1286 = vadd.f32 %v1237, %v1285
  %v1287 = vpop.f32.mrf.mxu0
  %v1288 = vadd.f32 %v1239, %v1287
  %1289 = vmatmul.bf16.gmra.mxu0 %v547
  %v1290 = vpop.f32.mrf.mxu0
  %v1291 = vadd.f32 %v1242, %v1290
  %v1292 = vpop.f32.mrf.mxu0
  %v1293 = vadd.f32 %v1244, %v1292
  %1294 = vmatmul.bf16.gmra.mxu0 %v555
  %v1295 = vpop.f32.mrf.mxu0
  %v1296 = vadd.f32 %v1247, %v1295
  %v1297 = vpop.f32.mrf.mxu0
  %v1298 = vadd.f32 %v1249, %v1297
  %1299 = vdwg.mxu0
  %1300 = vmatpush.bf16.msra.mxu0 %v933
  %1301 = vmatpush.bf16.msra.mxu0 %v932
  %1302 = vmatpush.bf16.msra.mxu0 %v931
  %1303 = vmatpush.bf16.msra.mxu0 %v930
  %1304 = vmatpush.bf16.msra.mxu0 %v929
  %1305 = vmatpush.bf16.msra.mxu0 %v928
  %1306 = vmatpush.bf16.msra.mxu0 %v927
  %1307 = vmatpush.bf16.msra.mxu0 %v926
  %1308 = vmatmul.bf16.gmra.mxu0 %v500
  %v1309 = vpop.f32.mrf.mxu0
  %v1310 = vadd.f32 %v1261, %v1309
  %v1311 = vpop.f32.mrf.mxu0
  %v1312 = vadd.f32 %v1263, %v1311
  %1313 = vmatmul.bf16.gmra.mxu0 %v508
  %v1314 = vpop.f32.mrf.mxu0
  %v1315 = vadd.f32 %v1266, %v1314
  %v1316 = vpop.f32.mrf.mxu0
  %v1317 = vadd.f32 %v1268, %v1316
  %1318 = vmatmul.bf16.gmra.mxu0 %v516
  %v1319 = vpop.f32.mrf.mxu0
  %v1320 = vadd.f32 %v1271, %v1319
  %v1321 = vpop.f32.mrf.mxu0
  %v1322 = vadd.f32 %v1273, %v1321
  %1323 = vmatmul.bf16.gmra.mxu0 %v524
  %v1324 = vpop.f32.mrf.mxu0
  %v1325 = vadd.f32 %v1276, %v1324
  %v1326 = vpop.f32.mrf.mxu0
  %v1327 = vadd.f32 %v1278, %v1326
  %1328 = vmatmul.bf16.gmra.mxu0 %v532
  %v1329 = vpop.f32.mrf.mxu0
  %v1330 = vadd.f32 %v1281, %v1329
  %v1331 = vpop.f32.mrf.mxu0
  %v1332 = vadd.f32 %v1283, %v1331
  %1333 = vmatmul.bf16.gmra.mxu0 %v540
  %v1334 = vpop.f32.mrf.mxu0
  %v1335 = vadd.f32 %v1286, %v1334
  %v1336 = vpop.f32.mrf.mxu0
  %v1337 = vadd.f32 %v1288, %v1336
  %1338 = vmatmul.bf16.gmra.mxu0 %v548
  %v1339 = vpop.f32.mrf.mxu0
  %v1340 = vadd.f32 %v1291, %v1339
  %v1341 = vpop.f32.mrf.mxu0
  %v1342 = vadd.f32 %v1293, %v1341
  %1343 = vmatmul.bf16.gmra.mxu0 %v556
  %v1344 = vpop.f32.mrf.mxu0
  %v1345 = vadd.f32 %v1296, %v1344
  %v1346 = vpop.f32.mrf.mxu0
  %v1347 = vadd.f32 %v1298, %v1346
  %1348 = vdwg.mxu0
  %1349 = vmatpush.bf16.msra.mxu0 %v941
  %1350 = vmatpush.bf16.msra.mxu0 %v940
  %1351 = vmatpush.bf16.msra.mxu0 %v939
  %1352 = vmatpush.bf16.msra.mxu0 %v938
  %1353 = vmatpush.bf16.msra.mxu0 %v937
  %1354 = vmatpush.bf16.msra.mxu0 %v936
  %1355 = vmatpush.bf16.msra.mxu0 %v935
  %1356 = vmatpush.bf16.msra.mxu0 %v934
  %1357 = vmatmul.bf16.gmra.mxu0 %v501
  %v1358 = vpop.f32.mrf.mxu0
  %v1359 = vadd.f32 %v1310, %v1358
  %v1360 = vpop.f32.mrf.mxu0
  %v1361 = vadd.f32 %v1312, %v1360
  %1362 = vmatmul.bf16.gmra.mxu0 %v509
  %v1363 = vpop.f32.mrf.mxu0
  %v1364 = vadd.f32 %v1315, %v1363
  %v1365 = vpop.f32.mrf.mxu0
  %v1366 = vadd.f32 %v1317, %v1365
  %1367 = vmatmul.bf16.gmra.mxu0 %v517
  %v1368 = vpop.f32.mrf.mxu0
  %v1369 = vadd.f32 %v1320, %v1368
  %v1370 = vpop.f32.mrf.mxu0
  %v1371 = vadd.f32 %v1322, %v1370
  %1372 = vmatmul.bf16.gmra.mxu0 %v525
  %v1373 = vpop.f32.mrf.mxu0
  %v1374 = vadd.f32 %v1325, %v1373
  %v1375 = vpop.f32.mrf.mxu0
  %v1376 = vadd.f32 %v1327, %v1375
  %1377 = vmatmul.bf16.gmra.mxu0 %v533
  %v1378 = vpop.f32.mrf.mxu0
  %v1379 = vadd.f32 %v1330, %v1378
  %v1380 = vpop.f32.mrf.mxu0
  %v1381 = vadd.f32 %v1332, %v1380
  %1382 = vmatmul.bf16.gmra.mxu0 %v541
  %v1383 = vpop.f32.mrf.mxu0
  %v1384 = vadd.f32 %v1335, %v1383
  %v1385 = vpop.f32.mrf.mxu0
  %v1386 = vadd.f32 %v1337, %v1385
  %1387 = vmatmul.bf16.gmra.mxu0 %v549
  %v1388 = vpop.f32.mrf.mxu0
  %v1389 = vadd.f32 %v1340, %v1388
  %v1390 = vpop.f32.mrf.mxu0
  %v1391 = vadd.f32 %v1342, %v1390
  %1392 = vmatmul.bf16.gmra.mxu0 %v557
  %v1393 = vpop.f32.mrf.mxu0
  %v1394 = vadd.f32 %v1345, %v1393
  %v1395 = vpop.f32.mrf.mxu0
  %v1396 = vadd.f32 %v1347, %v1395
  %1397 = vdwg.mxu0
  %v1398 = vmul.f32 %v1359, 0.02
  %v1399 = vmul.f32 %v1361, 0.02
  %v1400 = vmul.f32 %v1364, 0.02
  %v1401 = vmul.f32 %v1366, 0.02
  %v1402 = vmul.f32 %v1369, 0.02
  %v1403 = vmul.f32 %v1371, 0.02
  %v1404 = vmul.f32 %v1374, 0.02
  %v1405 = vmul.f32 %v1376, 0.02
  %v1406 = vmul.f32 %v1379, 0.02
  %v1407 = vmul.f32 %v1381, 0.02
  %v1408 = vmul.f32 %v1384, 0.02
  %v1409 = vmul.f32 %v1386, 0.02
  %v1410 = vmul.f32 %v1389, 0.02
  %v1411 = vmul.f32 %v1391, 0.02
  %v1412 = vmul.f32 %v1394, 0.02
  %v1413 = vmul.f32 %v1396, 0.02
  %v1414 = vmax.f32 %v1359, %v1398
  %v1415 = vmax.f32 %v1361, %v1399
  %v1416 = vmax.f32 %v1364, %v1400
  %v1417 = vmax.f32 %v1366, %v1401
  %v1418 = vmax.f32 %v1369, %v1402
  %v1419 = vmax.f32 %v1371, %v1403
  %v1420 = vmax.f32 %v1374, %v1404
  %v1421 = vmax.f32 %v1376, %v1405
  %v1422 = vmax.f32 %v1379, %v1406
  %v1423 = vmax.f32 %v1381, %v1407
  %v1424 = vmax.f32 %v1384, %v1408
  %v1425 = vmax.f32 %v1386, %v1409
  %v1426 = vmax.f32 %v1389, %v1410
  %v1427 = vmax.f32 %v1391, %v1411
  %v1428 = vmax.f32 %v1394, %v1412
  %v1429 = vmax.f32 %v1396, %v1413
  %v1430 = vpack.c.bf16 %v1414, %v1414
  %v1431 = vpack.c.bf16 %v1415, %v1415
  %v1432 = vpack.c.bf16 %v1416, %v1416
  %v1433 = vpack.c.bf16 %v1417, %v1417
  %v1434 = vpack.c.bf16 %v1418, %v1418
  %v1435 = vpack.c.bf16 %v1419, %v1419
  %v1436 = vpack.c.bf16 %v1420, %v1420
  %v1437 = vpack.c.bf16 %v1421, %v1421
  %v1438 = vpack.c.bf16 %v1422, %v1422
  %v1439 = vpack.c.bf16 %v1423, %v1423
  %v1440 = vpack.c.bf16 %v1424, %v1424
  %v1441 = vpack.c.bf16 %v1425, %v1425
  %v1442 = vpack.c.bf16 %v1426, %v1426
  %v1443 = vpack.c.bf16 %v1427, %v1427
  %v1444 = vpack.c.bf16 %v1428, %v1428
  %v1445 = vpack.c.bf16 %v1429, %v1429
  %1446 = vst [vmem:[%s3] sm:$0xf] %v1430
  %1447 = vst [vmem:[%s3 + $0x4] sm:$0xf] %v1431
  %1448 = vst [vmem:[%s3 + $0x8] sm:$0xf] %v1432
  %1449 = vst [vmem:[%s3 + $0xc] sm:$0xf] %v1433
  %1450 = vst [vmem:[%s3 + $0x10] sm:$0xf] %v1434
  %1451 = vst [vmem:[%s3 + $0x14] sm:$0xf] %v1435
  %1452 = vst [vmem:[%s3 + $0x18] sm:$0xf] %v1436
  %1453 = vst [vmem:[%s3 + $0x1c] sm:$0xf] %v1437
  %1454 = vst [vmem:[%s3 + $0x20] sm:$0xf] %v1438
  %1455 = vst [vmem:[%s3 + $0x24] sm:$0xf] %v1439
  %1456 = vst [vmem:[%s3 + $0x28] sm:$0xf] %v1440
  %1457 = vst [vmem:[%s3 + $0x2c] sm:$0xf] %v1441
  %1458 = vst [vmem:[%s3 + $0x30] sm:$0xf] %v1442
  %1459 = vst [vmem:[%s3 + $0x34] sm:$0xf] %v1443
  %1460 = vst [vmem:[%s3 + $0x38] sm:$0xf] %v1444
  %1461 = vst [vmem:[%s3 + $0x3c] sm:$0xf] %v1445
  // Predicated region
  $region14: #{discriminator_forward.6} parent=0 // pred_check
    _
  $region15: #{discriminator_forward.6} parent=0 // pred_check_branch
    %1463 = sbr.rel (0) target = $region17
  $region16: #{discriminator_forward.6} parent=0 // pred_region
    _
  $region17: #{discriminator_forward.6} parent=0 // pred_fallthru
    _
  // Predicated region
  $region18: #{discriminator_forward.6} parent=0 // pred_check
    _
  $region19: #{discriminator_forward.6} parent=0 // pred_check_branch
    %1465 = sbr.rel (0) target = $region21
  $region20: #{discriminator_forward.6} parent=0 // pred_region
    _
  $region21: #{discriminator_forward.6} parent=0 // pred_fallthru
    _

// kernel: discriminator_forward.7
$region0: #{discriminator_forward.7}
  #allocation0 [shape = 'u32[]', space=smem, size = 0x4, offset = 0x4, fixed_abs, tag = 'smem constant byte address 0x4 - core index']
  #allocation1 [shape = 'u32[72,128]{1,0:T(1,128)}', space=vmem, size = 0x9000, scoped, tag = 'internal scratch']
  %s0 = inlined_call_operand.vmem [shape: bf16[256,2048], index: 0, kind: input, shape index: {}]
  %s1 = inlined_call_operand.vmem [shape: bf16[2048,32], index: 1, kind: input, shape index: {}]
  %s2 = inlined_call_operand.vmem [shape: f32[256,1], index: 2, kind: input, shape index: {}]
  %s3 = inlined_call_operand.vmem [shape: f32[256,32], index: 3, kind: input, shape index: {}]
  %s4 = inlined_call_operand.vmem [shape: f32[2,32], index: 4, kind: input, shape index: {}]
  %s5 = inlined_call_operand.vmem [shape: f32[2,1], index: 5, kind: output, shape index: {}]
  %s6 = sld [smem:[#allocation0]]
  $region30: #{discriminator_forward.7} parent=0
    _
  %s8 = ssub.s32 1, %s6
  %s9 = scalar_select 0, %s8, %s6
  // Predicated region
  $region2: #{discriminator_forward.7} parent=0 // pred_check
    _
  $region3: #{discriminator_forward.7} parent=0 // pred_check_branch
    %11 = sbr.rel (0) target = $region5
  $region4: #{discriminator_forward.7} parent=0 // pred_region
    _
  $region5: #{discriminator_forward.7} parent=0 // pred_fallthru
    _
  // Predicated region
  $region6: #{discriminator_forward.7} parent=0 // pred_check
    _
  $region7: #{discriminator_forward.7} parent=0 // pred_check_branch
    %13 = sbr.rel (0) target = $region9
  $region8: #{discriminator_forward.7} parent=0 // pred_region
    _
  $region9: #{discriminator_forward.7} parent=0 // pred_fallthru
    _
  // Predicated region
  $region10: #{discriminator_forward.7} parent=0 // pred_check
    _
  $region11: #{discriminator_forward.7} parent=0 // pred_check_branch
    %15 = sbr.rel (0) target = $region13
  $region12: #{discriminator_forward.7} parent=0 // pred_region
    _
  $region13: #{discriminator_forward.7} parent=0 // pred_fallthru
    _
  // Predicated region
  $region14: #{discriminator_forward.7} parent=0 // pred_check
    _
  $region15: #{discriminator_forward.7} parent=0 // pred_check_branch
    %17 = sbr.rel (0) target = $region17
  $region16: #{discriminator_forward.7} parent=0 // pred_region
    _
  $region17: #{discriminator_forward.7} parent=0 // pred_fallthru
    _
  // Predicated region
  $region18: #{discriminator_forward.7} parent=0 // pred_check
    _
  $region19: #{discriminator_forward.7} parent=0 // pred_check_branch
    %19 = sbr.rel (0) target = $region21
  $region20: #{discriminator_forward.7} parent=0 // pred_region
    _
  $region21: #{discriminator_forward.7} parent=0 // pred_fallthru
    _
  %v20 = vld [vmem:[%s0] sm:$0xff]
  %v21 = vld [vmem:[%s0 + $0x8] sm:$0xff]
  %v22 = vld [vmem:[%s0 + $0x10] sm:$0xff]
  %v23 = vld [vmem:[%s0 + $0x18] sm:$0xff]
  %v24 = vld [vmem:[%s0 + $0x20] sm:$0xff]
  %v25 = vld [vmem:[%s0 + $0x28] sm:$0xff]
  %v26 = vld [vmem:[%s0 + $0x30] sm:$0xff]
  %v27 = vld [vmem:[%s0 + $0x38] sm:$0xff]
  %v28 = vld [vmem:[%s0 + $0x40] sm:$0xff]
  %v29 = vld [vmem:[%s0 + $0x48] sm:$0xff]
  %v30 = vld [vmem:[%s0 + $0x50] sm:$0xff]
  %v31 = vld [vmem:[%s0 + $0x58] sm:$0xff]
  %v32 = vld [vmem:[%s0 + $0x60] sm:$0xff]
  %v33 = vld [vmem:[%s0 + $0x68] sm:$0xff]
  %v34 = vld [vmem:[%s0 + $0x70] sm:$0xff]
  %v35 = vld [vmem:[%s0 + $0x78] sm:$0xff]
  %v36 = vld [vmem:[%s0 + $0x80] sm:$0xff]
  %v37 = vld [vmem:[%s0 + $0x88] sm:$0xff]
  %v38 = vld [vmem:[%s0 + $0x90] sm:$0xff]
  %v39 = vld [vmem:[%s0 + $0x98] sm:$0xff]
  %v40 = vld [vmem:[%s0 + $0xa0] sm:$0xff]
  %v41 = vld [vmem:[%s0 + $0xa8] sm:$0xff]
  %v42 = vld [vmem:[%s0 + $0xb0] sm:$0xff]
  %v43 = vld [vmem:[%s0 + $0xb8] sm:$0xff]
  %v44 = vld [vmem:[%s0 + $0xc0] sm:$0xff]
  %v45 = vld [vmem:[%s0 + $0xc8] sm:$0xff]
  %v46 = vld [vmem:[%s0 + $0xd0] sm:$0xff]
  %v47 = vld [vmem:[%s0 + $0xd8] sm:$0xff]
  %v48 = vld [vmem:[%s0 + $0xe0] sm:$0xff]
  %v49 = vld [vmem:[%s0 + $0xe8] sm:$0xff]
  %v50 = vld [vmem:[%s0 + $0xf0] sm:$0xff]
  %v51 = vld [vmem:[%s0 + $0xf8] sm:$0xff]
  %v52 = vld [vmem:[%s0 + $0x100] sm:$0xff]
  %v53 = vld [vmem:[%s0 + $0x108] sm:$0xff]
  %v54 = vld [vmem:[%s0 + $0x110] sm:$0xff]
  %v55 = vld [vmem:[%s0 + $0x118] sm:$0xff]
  %v56 = vld [vmem:[%s0 + $0x120] sm:$0xff]
  %v57 = vld [vmem:[%s0 + $0x128] sm:$0xff]
  %v58 = vld [vmem:[%s0 + $0x130] sm:$0xff]
  %v59 = vld [vmem:[%s0 + $0x138] sm:$0xff]
  %v60 = vld [vmem:[%s0 + $0x140] sm:$0xff]
  %v61 = vld [vmem:[%s0 + $0x148] sm:$0xff]
  %v62 = vld [vmem:[%s0 + $0x150] sm:$0xff]
  %v63 = vld [vmem:[%s0 + $0x158] sm:$0xff]
  %v64 = vld [vmem:[%s0 + $0x160] sm:$0xff]
  %v65 = vld [vmem:[%s0 + $0x168] sm:$0xff]
  %v66 = vld [vmem:[%s0 + $0x170] sm:$0xff]
  %v67 = vld [vmem:[%s0 + $0x178] sm:$0xff]
  %v68 = vld [vmem:[%s0 + $0x180] sm:$0xff]
  %v69 = vld [vmem:[%s0 + $0x188] sm:$0xff]
  %v70 = vld [vmem:[%s0 + $0x190] sm:$0xff]
  %v71 = vld [vmem:[%s0 + $0x198] sm:$0xff]
  %v72 = vld [vmem:[%s0 + $0x1a0] sm:$0xff]
  %v73 = vld [vmem:[%s0 + $0x1a8] sm:$0xff]
  %v74 = vld [vmem:[%s0 + $0x1b0] sm:$0xff]
  %v75 = vld [vmem:[%s0 + $0x1b8] sm:$0xff]
  %v76 = vld [vmem:[%s0 + $0x1c0] sm:$0xff]
  %v77 = vld [vmem:[%s0 + $0x1c8] sm:$0xff]
  %v78 = vld [vmem:[%s0 + $0x1d0] sm:$0xff]
  %v79 = vld [vmem:[%s0 + $0x1d8] sm:$0xff]
  %v80 = vld [vmem:[%s0 + $0x1e0] sm:$0xff]
  %v81 = vld [vmem:[%s0 + $0x1e8] sm:$0xff]
  %v82 = vld [vmem:[%s0 + $0x1f0] sm:$0xff]
  %v83 = vld [vmem:[%s0 + $0x1f8] sm:$0xff]
  %v84 = vld [vmem:[%s0 + $0x200] sm:$0xff]
  %v85 = vld [vmem:[%s0 + $0x208] sm:$0xff]
  %v86 = vld [vmem:[%s0 + $0x210] sm:$0xff]
  %v87 = vld [vmem:[%s0 + $0x218] sm:$0xff]
  %v88 = vld [vmem:[%s0 + $0x220] sm:$0xff]
  %v89 = vld [vmem:[%s0 + $0x228] sm:$0xff]
  %v90 = vld [vmem:[%s0 + $0x230] sm:$0xff]
  %v91 = vld [vmem:[%s0 + $0x238] sm:$0xff]
  %v92 = vld [vmem:[%s0 + $0x240] sm:$0xff]
  %v93 = vld [vmem:[%s0 + $0x248] sm:$0xff]
  %v94 = vld [vmem:[%s0 + $0x250] sm:$0xff]
  %v95 = vld [vmem:[%s0 + $0x258] sm:$0xff]
  %v96 = vld [vmem:[%s0 + $0x260] sm:$0xff]
  %v97 = vld [vmem:[%s0 + $0x268] sm:$0xff]
  %v98 = vld [vmem:[%s0 + $0x270] sm:$0xff]
  %v99 = vld [vmem:[%s0 + $0x278] sm:$0xff]
  %v100 = vld [vmem:[%s0 + $0x280] sm:$0xff]
  %v101 = vld [vmem:[%s0 + $0x288] sm:$0xff]
  %v102 = vld [vmem:[%s0 + $0x290] sm:$0xff]
  %v103 = vld [vmem:[%s0 + $0x298] sm:$0xff]
  %v104 = vld [vmem:[%s0 + $0x2a0] sm:$0xff]
  %v105 = vld [vmem:[%s0 + $0x2a8] sm:$0xff]
  %v106 = vld [vmem:[%s0 + $0x2b0] sm:$0xff]
  %v107 = vld [vmem:[%s0 + $0x2b8] sm:$0xff]
  %v108 = vld [vmem:[%s0 + $0x2c0] sm:$0xff]
  %v109 = vld [vmem:[%s0 + $0x2c8] sm:$0xff]
  %v110 = vld [vmem:[%s0 + $0x2d0] sm:$0xff]
  %v111 = vld [vmem:[%s0 + $0x2d8] sm:$0xff]
  %v112 = vld [vmem:[%s0 + $0x2e0] sm:$0xff]
  %v113 = vld [vmem:[%s0 + $0x2e8] sm:$0xff]
  %v114 = vld [vmem:[%s0 + $0x2f0] sm:$0xff]
  %v115 = vld [vmem:[%s0 + $0x2f8] sm:$0xff]
  %v116 = vld [vmem:[%s0 + $0x300] sm:$0xff]
  %v117 = vld [vmem:[%s0 + $0x308] sm:$0xff]
  %v118 = vld [vmem:[%s0 + $0x310] sm:$0xff]
  %v119 = vld [vmem:[%s0 + $0x318] sm:$0xff]
  %v120 = vld [vmem:[%s0 + $0x320] sm:$0xff]
  %v121 = vld [vmem:[%s0 + $0x328] sm:$0xff]
  %v122 = vld [vmem:[%s0 + $0x330] sm:$0xff]
  %v123 = vld [vmem:[%s0 + $0x338] sm:$0xff]
  %v124 = vld [vmem:[%s0 + $0x340] sm:$0xff]
  %v125 = vld [vmem:[%s0 + $0x348] sm:$0xff]
  %v126 = vld [vmem:[%s0 + $0x350] sm:$0xff]
  %v127 = vld [vmem:[%s0 + $0x358] sm:$0xff]
  %v128 = vld [vmem:[%s0 + $0x360] sm:$0xff]
  %v129 = vld [vmem:[%s0 + $0x368] sm:$0xff]
  %v130 = vld [vmem:[%s0 + $0x370] sm:$0xff]
  %v131 = vld [vmem:[%s0 + $0x378] sm:$0xff]
  %v132 = vld [vmem:[%s0 + $0x380] sm:$0xff]
  %v133 = vld [vmem:[%s0 + $0x388] sm:$0xff]
  %v134 = vld [vmem:[%s0 + $0x390] sm:$0xff]
  %v135 = vld [vmem:[%s0 + $0x398] sm:$0xff]
  %v136 = vld [vmem:[%s0 + $0x3a0] sm:$0xff]
  %v137 = vld [vmem:[%s0 + $0x3a8] sm:$0xff]
  %v138 = vld [vmem:[%s0 + $0x3b0] sm:$0xff]
  %v139 = vld [vmem:[%s0 + $0x3b8] sm:$0xff]
  %v140 = vld [vmem:[%s0 + $0x3c0] sm:$0xff]
  %v141 = vld [vmem:[%s0 + $0x3c8] sm:$0xff]
  %v142 = vld [vmem:[%s0 + $0x3d0] sm:$0xff]
  %v143 = vld [vmem:[%s0 + $0x3d8] sm:$0xff]
  %v144 = vld [vmem:[%s0 + $0x3e0] sm:$0xff]
  %v145 = vld [vmem:[%s0 + $0x3e8] sm:$0xff]
  %v146 = vld [vmem:[%s0 + $0x3f0] sm:$0xff]
  %v147 = vld [vmem:[%s0 + $0x3f8] sm:$0xff]
  %v148 = vld [vmem:[%s0 + $0x400] sm:$0xff]
  %v149 = vld [vmem:[%s0 + $0x408] sm:$0xff]
  %v150 = vld [vmem:[%s0 + $0x410] sm:$0xff]
  %v151 = vld [vmem:[%s0 + $0x418] sm:$0xff]
  %v152 = vld [vmem:[%s0 + $0x420] sm:$0xff]
  %v153 = vld [vmem:[%s0 + $0x428] sm:$0xff]
  %v154 = vld [vmem:[%s0 + $0x430] sm:$0xff]
  %v155 = vld [vmem:[%s0 + $0x438] sm:$0xff]
  %v156 = vld [vmem:[%s0 + $0x440] sm:$0xff]
  %v157 = vld [vmem:[%s0 + $0x448] sm:$0xff]
  %v158 = vld [vmem:[%s0 + $0x450] sm:$0xff]
  %v159 = vld [vmem:[%s0 + $0x458] sm:$0xff]
  %v160 = vld [vmem:[%s0 + $0x460] sm:$0xff]
  %v161 = vld [vmem:[%s0 + $0x468] sm:$0xff]
  %v162 = vld [vmem:[%s0 + $0x470] sm:$0xff]
  %v163 = vld [vmem:[%s0 + $0x478] sm:$0xff]
  %v164 = vld [vmem:[%s0 + $0x480] sm:$0xff]
  %v165 = vld [vmem:[%s0 + $0x488] sm:$0xff]
  %v166 = vld [vmem:[%s0 + $0x490] sm:$0xff]
  %v167 = vld [vmem:[%s0 + $0x498] sm:$0xff]
  %v168 = vld [vmem:[%s0 + $0x4a0] sm:$0xff]
  %v169 = vld [vmem:[%s0 + $0x4a8] sm:$0xff]
  %v170 = vld [vmem:[%s0 + $0x4b0] sm:$0xff]
  %v171 = vld [vmem:[%s0 + $0x4b8] sm:$0xff]
  %v172 = vld [vmem:[%s0 + $0x4c0] sm:$0xff]
  %v173 = vld [vmem:[%s0 + $0x4c8] sm:$0xff]
  %v174 = vld [vmem:[%s0 + $0x4d0] sm:$0xff]
  %v175 = vld [vmem:[%s0 + $0x4d8] sm:$0xff]
  %v176 = vld [vmem:[%s0 + $0x4e0] sm:$0xff]
  %v177 = vld [vmem:[%s0 + $0x4e8] sm:$0xff]
  %v178 = vld [vmem:[%s0 + $0x4f0] sm:$0xff]
  %v179 = vld [vmem:[%s0 + $0x4f8] sm:$0xff]
  %v180 = vld [vmem:[%s0 + $0x500] sm:$0xff]
  %v181 = vld [vmem:[%s0 + $0x508] sm:$0xff]
  %v182 = vld [vmem:[%s0 + $0x510] sm:$0xff]
  %v183 = vld [vmem:[%s0 + $0x518] sm:$0xff]
  %v184 = vld [vmem:[%s0 + $0x520] sm:$0xff]
  %v185 = vld [vmem:[%s0 + $0x528] sm:$0xff]
  %v186 = vld [vmem:[%s0 + $0x530] sm:$0xff]
  %v187 = vld [vmem:[%s0 + $0x538] sm:$0xff]
  %v188 = vld [vmem:[%s0 + $0x540] sm:$0xff]
  %v189 = vld [vmem:[%s0 + $0x548] sm:$0xff]
  %v190 = vld [vmem:[%s0 + $0x550] sm:$0xff]
  %v191 = vld [vmem:[%s0 + $0x558] sm:$0xff]
  %v192 = vld [vmem:[%s0 + $0x560] sm:$0xff]
  %v193 = vld [vmem:[%s0 + $0x568] sm:$0xff]
  %v194 = vld [vmem:[%s0 + $0x570] sm:$0xff]
  %v195 = vld [vmem:[%s0 + $0x578] sm:$0xff]
  %v196 = vld [vmem:[%s0 + $0x580] sm:$0xff]
  %v197 = vld [vmem:[%s0 + $0x588] sm:$0xff]
  %v198 = vld [vmem:[%s0 + $0x590] sm:$0xff]
  %v199 = vld [vmem:[%s0 + $0x598] sm:$0xff]
  %v200 = vld [vmem:[%s0 + $0x5a0] sm:$0xff]
  %v201 = vld [vmem:[%s0 + $0x5a8] sm:$0xff]
  %v202 = vld [vmem:[%s0 + $0x5b0] sm:$0xff]
  %v203 = vld [vmem:[%s0 + $0x5b8] sm:$0xff]
  %v204 = vld [vmem:[%s0 + $0x5c0] sm:$0xff]
  %v205 = vld [vmem:[%s0 + $0x5c8] sm:$0xff]
  %v206 = vld [vmem:[%s0 + $0x5d0] sm:$0xff]
  %v207 = vld [vmem:[%s0 + $0x5d8] sm:$0xff]
  %v208 = vld [vmem:[%s0 + $0x5e0] sm:$0xff]
  %v209 = vld [vmem:[%s0 + $0x5e8] sm:$0xff]
  %v210 = vld [vmem:[%s0 + $0x5f0] sm:$0xff]
  %v211 = vld [vmem:[%s0 + $0x5f8] sm:$0xff]
  %v212 = vld [vmem:[%s0 + $0x600] sm:$0xff]
  %v213 = vld [vmem:[%s0 + $0x608] sm:$0xff]
  %v214 = vld [vmem:[%s0 + $0x610] sm:$0xff]
  %v215 = vld [vmem:[%s0 + $0x618] sm:$0xff]
  %v216 = vld [vmem:[%s0 + $0x620] sm:$0xff]
  %v217 = vld [vmem:[%s0 + $0x628] sm:$0xff]
  %v218 = vld [vmem:[%s0 + $0x630] sm:$0xff]
  %v219 = vld [vmem:[%s0 + $0x638] sm:$0xff]
  %v220 = vld [vmem:[%s0 + $0x640] sm:$0xff]
  %v221 = vld [vmem:[%s0 + $0x648] sm:$0xff]
  %v222 = vld [vmem:[%s0 + $0x650] sm:$0xff]
  %v223 = vld [vmem:[%s0 + $0x658] sm:$0xff]
  %v224 = vld [vmem:[%s0 + $0x660] sm:$0xff]
  %v225 = vld [vmem:[%s0 + $0x668] sm:$0xff]
  %v226 = vld [vmem:[%s0 + $0x670] sm:$0xff]
  %v227 = vld [vmem:[%s0 + $0x678] sm:$0xff]
  %v228 = vld [vmem:[%s0 + $0x680] sm:$0xff]
  %v229 = vld [vmem:[%s0 + $0x688] sm:$0xff]
  %v230 = vld [vmem:[%s0 + $0x690] sm:$0xff]
  %v231 = vld [vmem:[%s0 + $0x698] sm:$0xff]
  %v232 = vld [vmem:[%s0 + $0x6a0] sm:$0xff]
  %v233 = vld [vmem:[%s0 + $0x6a8] sm:$0xff]
  %v234 = vld [vmem:[%s0 + $0x6b0] sm:$0xff]
  %v235 = vld [vmem:[%s0 + $0x6b8] sm:$0xff]
  %v236 = vld [vmem:[%s0 + $0x6c0] sm:$0xff]
  %v237 = vld [vmem:[%s0 + $0x6c8] sm:$0xff]
  %v238 = vld [vmem:[%s0 + $0x6d0] sm:$0xff]
  %v239 = vld [vmem:[%s0 + $0x6d8] sm:$0xff]
  %v240 = vld [vmem:[%s0 + $0x6e0] sm:$0xff]
  %v241 = vld [vmem:[%s0 + $0x6e8] sm:$0xff]
  %v242 = vld [vmem:[%s0 + $0x6f0] sm:$0xff]
  %v243 = vld [vmem:[%s0 + $0x6f8] sm:$0xff]
  %v244 = vld [vmem:[%s0 + $0x700] sm:$0xff]
  %v245 = vld [vmem:[%s0 + $0x708] sm:$0xff]
  %v246 = vld [vmem:[%s0 + $0x710] sm:$0xff]
  %v247 = vld [vmem:[%s0 + $0x718] sm:$0xff]
  %v248 = vld [vmem:[%s0 + $0x720] sm:$0xff]
  %v249 = vld [vmem:[%s0 + $0x728] sm:$0xff]
  %v250 = vld [vmem:[%s0 + $0x730] sm:$0xff]
  %v251 = vld [vmem:[%s0 + $0x738] sm:$0xff]
  %v252 = vld [vmem:[%s0 + $0x740] sm:$0xff]
  %v253 = vld [vmem:[%s0 + $0x748] sm:$0xff]
  %v254 = vld [vmem:[%s0 + $0x750] sm:$0xff]
  %v255 = vld [vmem:[%s0 + $0x758] sm:$0xff]
  %v256 = vld [vmem:[%s0 + $0x760] sm:$0xff]
  %v257 = vld [vmem:[%s0 + $0x768] sm:$0xff]
  %v258 = vld [vmem:[%s0 + $0x770] sm:$0xff]
  %v259 = vld [vmem:[%s0 + $0x778] sm:$0xff]
  %v260 = vld [vmem:[%s0 + $0x780] sm:$0xff]
  %v261 = vld [vmem:[%s0 + $0x788] sm:$0xff]
  %v262 = vld [vmem:[%s0 + $0x790] sm:$0xff]
  %v263 = vld [vmem:[%s0 + $0x798] sm:$0xff]
  %v264 = vld [vmem:[%s0 + $0x7a0] sm:$0xff]
  %v265 = vld [vmem:[%s0 + $0x7a8] sm:$0xff]
  %v266 = vld [vmem:[%s0 + $0x7b0] sm:$0xff]
  %v267 = vld [vmem:[%s0 + $0x7b8] sm:$0xff]
  %v268 = vld [vmem:[%s0 + $0x7c0] sm:$0xff]
  %v269 = vld [vmem:[%s0 + $0x7c8] sm:$0xff]
  %v270 = vld [vmem:[%s0 + $0x7d0] sm:$0xff]
  %v271 = vld [vmem:[%s0 + $0x7d8] sm:$0xff]
  %v272 = vld [vmem:[%s0 + $0x7e0] sm:$0xff]
  %v273 = vld [vmem:[%s0 + $0x7e8] sm:$0xff]
  %v274 = vld [vmem:[%s0 + $0x7f0] sm:$0xff]
  %v275 = vld [vmem:[%s0 + $0x7f8] sm:$0xff]
  %v276 = vld [vmem:[%s1] sm:$0xf]
  %v277 = vld [vmem:[%s1 + $0x4] sm:$0xf]
  %v278 = vld [vmem:[%s1 + $0x8] sm:$0xf]
  %v279 = vld [vmem:[%s1 + $0xc] sm:$0xf]
  %v280 = vld [vmem:[%s1 + $0x10] sm:$0xf]
  %v281 = vld [vmem:[%s1 + $0x14] sm:$0xf]
  %v282 = vld [vmem:[%s1 + $0x18] sm:$0xf]
  %v283 = vld [vmem:[%s1 + $0x1c] sm:$0xf]
  %v284 = vld [vmem:[%s1 + $0x20] sm:$0xf]
  %v285 = vld [vmem:[%s1 + $0x24] sm:$0xf]
  %v286 = vld [vmem:[%s1 + $0x28] sm:$0xf]
  %v287 = vld [vmem:[%s1 + $0x2c] sm:$0xf]
  %v288 = vld [vmem:[%s1 + $0x30] sm:$0xf]
  %v289 = vld [vmem:[%s1 + $0x34] sm:$0xf]
  %v290 = vld [vmem:[%s1 + $0x38] sm:$0xf]
  %v291 = vld [vmem:[%s1 + $0x3c] sm:$0xf]
  %v292 = vld [vmem:[%s1 + $0x40] sm:$0xf]
  %v293 = vld [vmem:[%s1 + $0x44] sm:$0xf]
  %v294 = vld [vmem:[%s1 + $0x48] sm:$0xf]
  %v295 = vld [vmem:[%s1 + $0x4c] sm:$0xf]
  %v296 = vld [vmem:[%s1 + $0x50] sm:$0xf]
  %v297 = vld [vmem:[%s1 + $0x54] sm:$0xf]
  %v298 = vld [vmem:[%s1 + $0x58] sm:$0xf]
  %v299 = vld [vmem:[%s1 + $0x5c] sm:$0xf]
  %v300 = vld [vmem:[%s1 + $0x60] sm:$0xf]
  %v301 = vld [vmem:[%s1 + $0x64] sm:$0xf]
  %v302 = vld [vmem:[%s1 + $0x68] sm:$0xf]
  %v303 = vld [vmem:[%s1 + $0x6c] sm:$0xf]
  %v304 = vld [vmem:[%s1 + $0x70] sm:$0xf]
  %v305 = vld [vmem:[%s1 + $0x74] sm:$0xf]
  %v306 = vld [vmem:[%s1 + $0x78] sm:$0xf]
  %v307 = vld [vmem:[%s1 + $0x7c] sm:$0xf]
  %v308 = vld [vmem:[%s1 + $0x80] sm:$0xf]
  %v309 = vld [vmem:[%s1 + $0x84] sm:$0xf]
  %v310 = vld [vmem:[%s1 + $0x88] sm:$0xf]
  %v311 = vld [vmem:[%s1 + $0x8c] sm:$0xf]
  %v312 = vld [vmem:[%s1 + $0x90] sm:$0xf]
  %v313 = vld [vmem:[%s1 + $0x94] sm:$0xf]
  %v314 = vld [vmem:[%s1 + $0x98] sm:$0xf]
  %v315 = vld [vmem:[%s1 + $0x9c] sm:$0xf]
  %v316 = vld [vmem:[%s1 + $0xa0] sm:$0xf]
  %v317 = vld [vmem:[%s1 + $0xa4] sm:$0xf]
  %v318 = vld [vmem:[%s1 + $0xa8] sm:$0xf]
  %v319 = vld [vmem:[%s1 + $0xac] sm:$0xf]
  %v320 = vld [vmem:[%s1 + $0xb0] sm:$0xf]
  %v321 = vld [vmem:[%s1 + $0xb4] sm:$0xf]
  %v322 = vld [vmem:[%s1 + $0xb8] sm:$0xf]
  %v323 = vld [vmem:[%s1 + $0xbc] sm:$0xf]
  %v324 = vld [vmem:[%s1 + $0xc0] sm:$0xf]
  %v325 = vld [vmem:[%s1 + $0xc4] sm:$0xf]
  %v326 = vld [vmem:[%s1 + $0xc8] sm:$0xf]
  %v327 = vld [vmem:[%s1 + $0xcc] sm:$0xf]
  %v328 = vld [vmem:[%s1 + $0xd0] sm:$0xf]
  %v329 = vld [vmem:[%s1 + $0xd4] sm:$0xf]
  %v330 = vld [vmem:[%s1 + $0xd8] sm:$0xf]
  %v331 = vld [vmem:[%s1 + $0xdc] sm:$0xf]
  %v332 = vld [vmem:[%s1 + $0xe0] sm:$0xf]
  %v333 = vld [vmem:[%s1 + $0xe4] sm:$0xf]
  %v334 = vld [vmem:[%s1 + $0xe8] sm:$0xf]
  %v335 = vld [vmem:[%s1 + $0xec] sm:$0xf]
  %v336 = vld [vmem:[%s1 + $0xf0] sm:$0xf]
  %v337 = vld [vmem:[%s1 + $0xf4] sm:$0xf]
  %v338 = vld [vmem:[%s1 + $0xf8] sm:$0xf]
  %v339 = vld [vmem:[%s1 + $0xfc] sm:$0xf]
  %v340 = vld [vmem:[%s1 + $0x100] sm:$0xf]
  %v341 = vld [vmem:[%s1 + $0x104] sm:$0xf]
  %v342 = vld [vmem:[%s1 + $0x108] sm:$0xf]
  %v343 = vld [vmem:[%s1 + $0x10c] sm:$0xf]
  %v344 = vld [vmem:[%s1 + $0x110] sm:$0xf]
  %v345 = vld [vmem:[%s1 + $0x114] sm:$0xf]
  %v346 = vld [vmem:[%s1 + $0x118] sm:$0xf]
  %v347 = vld [vmem:[%s1 + $0x11c] sm:$0xf]
  %v348 = vld [vmem:[%s1 + $0x120] sm:$0xf]
  %v349 = vld [vmem:[%s1 + $0x124] sm:$0xf]
  %v350 = vld [vmem:[%s1 + $0x128] sm:$0xf]
  %v351 = vld [vmem:[%s1 + $0x12c] sm:$0xf]
  %v352 = vld [vmem:[%s1 + $0x130] sm:$0xf]
  %v353 = vld [vmem:[%s1 + $0x134] sm:$0xf]
  %v354 = vld [vmem:[%s1 + $0x138] sm:$0xf]
  %v355 = vld [vmem:[%s1 + $0x13c] sm:$0xf]
  %v356 = vld [vmem:[%s1 + $0x140] sm:$0xf]
  %v357 = vld [vmem:[%s1 + $0x144] sm:$0xf]
  %v358 = vld [vmem:[%s1 + $0x148] sm:$0xf]
  %v359 = vld [vmem:[%s1 + $0x14c] sm:$0xf]
  %v360 = vld [vmem:[%s1 + $0x150] sm:$0xf]
  %v361 = vld [vmem:[%s1 + $0x154] sm:$0xf]
  %v362 = vld [vmem:[%s1 + $0x158] sm:$0xf]
  %v363 = vld [vmem:[%s1 + $0x15c] sm:$0xf]
  %v364 = vld [vmem:[%s1 + $0x160] sm:$0xf]
  %v365 = vld [vmem:[%s1 + $0x164] sm:$0xf]
  %v366 = vld [vmem:[%s1 + $0x168] sm:$0xf]
  %v367 = vld [vmem:[%s1 + $0x16c] sm:$0xf]
  %v368 = vld [vmem:[%s1 + $0x170] sm:$0xf]
  %v369 = vld [vmem:[%s1 + $0x174] sm:$0xf]
  %v370 = vld [vmem:[%s1 + $0x178] sm:$0xf]
  %v371 = vld [vmem:[%s1 + $0x17c] sm:$0xf]
  %v372 = vld [vmem:[%s1 + $0x180] sm:$0xf]
  %v373 = vld [vmem:[%s1 + $0x184] sm:$0xf]
  %v374 = vld [vmem:[%s1 + $0x188] sm:$0xf]
  %v375 = vld [vmem:[%s1 + $0x18c] sm:$0xf]
  %v376 = vld [vmem:[%s1 + $0x190] sm:$0xf]
  %v377 = vld [vmem:[%s1 + $0x194] sm:$0xf]
  %v378 = vld [vmem:[%s1 + $0x198] sm:$0xf]
  %v379 = vld [vmem:[%s1 + $0x19c] sm:$0xf]
  %v380 = vld [vmem:[%s1 + $0x1a0] sm:$0xf]
  %v381 = vld [vmem:[%s1 + $0x1a4] sm:$0xf]
  %v382 = vld [vmem:[%s1 + $0x1a8] sm:$0xf]
  %v383 = vld [vmem:[%s1 + $0x1ac] sm:$0xf]
  %v384 = vld [vmem:[%s1 + $0x1b0] sm:$0xf]
  %v385 = vld [vmem:[%s1 + $0x1b4] sm:$0xf]
  %v386 = vld [vmem:[%s1 + $0x1b8] sm:$0xf]
  %v387 = vld [vmem:[%s1 + $0x1bc] sm:$0xf]
  %v388 = vld [vmem:[%s1 + $0x1c0] sm:$0xf]
  %v389 = vld [vmem:[%s1 + $0x1c4] sm:$0xf]
  %v390 = vld [vmem:[%s1 + $0x1c8] sm:$0xf]
  %v391 = vld [vmem:[%s1 + $0x1cc] sm:$0xf]
  %v392 = vld [vmem:[%s1 + $0x1d0] sm:$0xf]
  %v393 = vld [vmem:[%s1 + $0x1d4] sm:$0xf]
  %v394 = vld [vmem:[%s1 + $0x1d8] sm:$0xf]
  %v395 = vld [vmem:[%s1 + $0x1dc] sm:$0xf]
  %v396 = vld [vmem:[%s1 + $0x1e0] sm:$0xf]
  %v397 = vld [vmem:[%s1 + $0x1e4] sm:$0xf]
  %v398 = vld [vmem:[%s1 + $0x1e8] sm:$0xf]
  %v399 = vld [vmem:[%s1 + $0x1ec] sm:$0xf]
  %v400 = vld [vmem:[%s1 + $0x1f0] sm:$0xf]
  %v401 = vld [vmem:[%s1 + $0x1f4] sm:$0xf]
  %v402 = vld [vmem:[%s1 + $0x1f8] sm:$0xf]
  %v403 = vld [vmem:[%s1 + $0x1fc] sm:$0xf]
  %v404 = vld [vmem:[%s1 + $0x200] sm:$0xf]
  %v405 = vld [vmem:[%s1 + $0x204] sm:$0xf]
  %v406 = vld [vmem:[%s1 + $0x208] sm:$0xf]
  %v407 = vld [vmem:[%s1 + $0x20c] sm:$0xf]
  %v408 = vld [vmem:[%s1 + $0x210] sm:$0xf]
  %v409 = vld [vmem:[%s1 + $0x214] sm:$0xf]
  %v410 = vld [vmem:[%s1 + $0x218] sm:$0xf]
  %v411 = vld [vmem:[%s1 + $0x21c] sm:$0xf]
  %v412 = vld [vmem:[%s1 + $0x220] sm:$0xf]
  %v413 = vld [vmem:[%s1 + $0x224] sm:$0xf]
  %v414 = vld [vmem:[%s1 + $0x228] sm:$0xf]
  %v415 = vld [vmem:[%s1 + $0x22c] sm:$0xf]
  %v416 = vld [vmem:[%s1 + $0x230] sm:$0xf]
  %v417 = vld [vmem:[%s1 + $0x234] sm:$0xf]
  %v418 = vld [vmem:[%s1 + $0x238] sm:$0xf]
  %v419 = vld [vmem:[%s1 + $0x23c] sm:$0xf]
  %v420 = vld [vmem:[%s1 + $0x240] sm:$0xf]
  %v421 = vld [vmem:[%s1 + $0x244] sm:$0xf]
  %v422 = vld [vmem:[%s1 + $0x248] sm:$0xf]
  %v423 = vld [vmem:[%s1 + $0x24c] sm:$0xf]
  %v424 = vld [vmem:[%s1 + $0x250] sm:$0xf]
  %v425 = vld [vmem:[%s1 + $0x254] sm:$0xf]
  %v426 = vld [vmem:[%s1 + $0x258] sm:$0xf]
  %v427 = vld [vmem:[%s1 + $0x25c] sm:$0xf]
  %v428 = vld [vmem:[%s1 + $0x260] sm:$0xf]
  %v429 = vld [vmem:[%s1 + $0x264] sm:$0xf]
  %v430 = vld [vmem:[%s1 + $0x268] sm:$0xf]
  %v431 = vld [vmem:[%s1 + $0x26c] sm:$0xf]
  %v432 = vld [vmem:[%s1 + $0x270] sm:$0xf]
  %v433 = vld [vmem:[%s1 + $0x274] sm:$0xf]
  %v434 = vld [vmem:[%s1 + $0x278] sm:$0xf]
  %v435 = vld [vmem:[%s1 + $0x27c] sm:$0xf]
  %v436 = vld [vmem:[%s1 + $0x280] sm:$0xf]
  %v437 = vld [vmem:[%s1 + $0x284] sm:$0xf]
  %v438 = vld [vmem:[%s1 + $0x288] sm:$0xf]
  %v439 = vld [vmem:[%s1 + $0x28c] sm:$0xf]
  %v440 = vld [vmem:[%s1 + $0x290] sm:$0xf]
  %v441 = vld [vmem:[%s1 + $0x294] sm:$0xf]
  %v442 = vld [vmem:[%s1 + $0x298] sm:$0xf]
  %v443 = vld [vmem:[%s1 + $0x29c] sm:$0xf]
  %v444 = vld [vmem:[%s1 + $0x2a0] sm:$0xf]
  %v445 = vld [vmem:[%s1 + $0x2a4] sm:$0xf]
  %v446 = vld [vmem:[%s1 + $0x2a8] sm:$0xf]
  %v447 = vld [vmem:[%s1 + $0x2ac] sm:$0xf]
  %v448 = vld [vmem:[%s1 + $0x2b0] sm:$0xf]
  %v449 = vld [vmem:[%s1 + $0x2b4] sm:$0xf]
  %v450 = vld [vmem:[%s1 + $0x2b8] sm:$0xf]
  %v451 = vld [vmem:[%s1 + $0x2bc] sm:$0xf]
  %v452 = vld [vmem:[%s1 + $0x2c0] sm:$0xf]
  %v453 = vld [vmem:[%s1 + $0x2c4] sm:$0xf]
  %v454 = vld [vmem:[%s1 + $0x2c8] sm:$0xf]
  %v455 = vld [vmem:[%s1 + $0x2cc] sm:$0xf]
  %v456 = vld [vmem:[%s1 + $0x2d0] sm:$0xf]
  %v457 = vld [vmem:[%s1 + $0x2d4] sm:$0xf]
  %v458 = vld [vmem:[%s1 + $0x2d8] sm:$0xf]
  %v459 = vld [vmem:[%s1 + $0x2dc] sm:$0xf]
  %v460 = vld [vmem:[%s1 + $0x2e0] sm:$0xf]
  %v461 = vld [vmem:[%s1 + $0x2e4] sm:$0xf]
  %v462 = vld [vmem:[%s1 + $0x2e8] sm:$0xf]
  %v463 = vld [vmem:[%s1 + $0x2ec] sm:$0xf]
  %v464 = vld [vmem:[%s1 + $0x2f0] sm:$0xf]
  %v465 = vld [vmem:[%s1 + $0x2f4] sm:$0xf]
  %v466 = vld [vmem:[%s1 + $0x2f8] sm:$0xf]
  %v467 = vld [vmem:[%s1 + $0x2fc] sm:$0xf]
  %v468 = vld [vmem:[%s1 + $0x300] sm:$0xf]
  %v469 = vld [vmem:[%s1 + $0x304] sm:$0xf]
  %v470 = vld [vmem:[%s1 + $0x308] sm:$0xf]
  %v471 = vld [vmem:[%s1 + $0x30c] sm:$0xf]
  %v472 = vld [vmem:[%s1 + $0x310] sm:$0xf]
  %v473 = vld [vmem:[%s1 + $0x314] sm:$0xf]
  %v474 = vld [vmem:[%s1 + $0x318] sm:$0xf]
  %v475 = vld [vmem:[%s1 + $0x31c] sm:$0xf]
  %v476 = vld [vmem:[%s1 + $0x320] sm:$0xf]
  %v477 = vld [vmem:[%s1 + $0x324] sm:$0xf]
  %v478 = vld [vmem:[%s1 + $0x328] sm:$0xf]
  %v479 = vld [vmem:[%s1 + $0x32c] sm:$0xf]
  %v480 = vld [vmem:[%s1 + $0x330] sm:$0xf]
  %v481 = vld [vmem:[%s1 + $0x334] sm:$0xf]
  %v482 = vld [vmem:[%s1 + $0x338] sm:$0xf]
  %v483 = vld [vmem:[%s1 + $0x33c] sm:$0xf]
  %v484 = vld [vmem:[%s1 + $0x340] sm:$0xf]
  %v485 = vld [vmem:[%s1 + $0x344] sm:$0xf]
  %v486 = vld [vmem:[%s1 + $0x348] sm:$0xf]
  %v487 = vld [vmem:[%s1 + $0x34c] sm:$0xf]
  %v488 = vld [vmem:[%s1 + $0x350] sm:$0xf]
  %v489 = vld [vmem:[%s1 + $0x354] sm:$0xf]
  %v490 = vld [vmem:[%s1 + $0x358] sm:$0xf]
  %v491 = vld [vmem:[%s1 + $0x35c] sm:$0xf]
  %v492 = vld [vmem:[%s1 + $0x360] sm:$0xf]
  %v493 = vld [vmem:[%s1 + $0x364] sm:$0xf]
  %v494 = vld [vmem:[%s1 + $0x368] sm:$0xf]
  %v495 = vld [vmem:[%s1 + $0x36c] sm:$0xf]
  %v496 = vld [vmem:[%s1 + $0x370] sm:$0xf]
  %v497 = vld [vmem:[%s1 + $0x374] sm:$0xf]
  %v498 = vld [vmem:[%s1 + $0x378] sm:$0xf]
  %v499 = vld [vmem:[%s1 + $0x37c] sm:$0xf]
  %v500 = vld [vmem:[%s1 + $0x380] sm:$0xf]
  %v501 = vld [vmem:[%s1 + $0x384] sm:$0xf]
  %v502 = vld [vmem:[%s1 + $0x388] sm:$0xf]
  %v503 = vld [vmem:[%s1 + $0x38c] sm:$0xf]
  %v504 = vld [vmem:[%s1 + $0x390] sm:$0xf]
  %v505 = vld [vmem:[%s1 + $0x394] sm:$0xf]
  %v506 = vld [vmem:[%s1 + $0x398] sm:$0xf]
  %v507 = vld [vmem:[%s1 + $0x39c] sm:$0xf]
  %v508 = vld [vmem:[%s1 + $0x3a0] sm:$0xf]
  %v509 = vld [vmem:[%s1 + $0x3a4] sm:$0xf]
  %v510 = vld [vmem:[%s1 + $0x3a8] sm:$0xf]
  %v511 = vld [vmem:[%s1 + $0x3ac] sm:$0xf]
  %v512 = vld [vmem:[%s1 + $0x3b0] sm:$0xf]
  %v513 = vld [vmem:[%s1 + $0x3b4] sm:$0xf]
  %v514 = vld [vmem:[%s1 + $0x3b8] sm:$0xf]
  %v515 = vld [vmem:[%s1 + $0x3bc] sm:$0xf]
  %v516 = vld [vmem:[%s1 + $0x3c0] sm:$0xf]
  %v517 = vld [vmem:[%s1 + $0x3c4] sm:$0xf]
  %v518 = vld [vmem:[%s1 + $0x3c8] sm:$0xf]
  %v519 = vld [vmem:[%s1 + $0x3cc] sm:$0xf]
  %v520 = vld [vmem:[%s1 + $0x3d0] sm:$0xf]
  %v521 = vld [vmem:[%s1 + $0x3d4] sm:$0xf]
  %v522 = vld [vmem:[%s1 + $0x3d8] sm:$0xf]
  %v523 = vld [vmem:[%s1 + $0x3dc] sm:$0xf]
  %v524 = vld [vmem:[%s1 + $0x3e0] sm:$0xf]
  %v525 = vld [vmem:[%s1 + $0x3e4] sm:$0xf]
  %v526 = vld [vmem:[%s1 + $0x3e8] sm:$0xf]
  %v527 = vld [vmem:[%s1 + $0x3ec] sm:$0xf]
  %v528 = vld [vmem:[%s1 + $0x3f0] sm:$0xf]
  %v529 = vld [vmem:[%s1 + $0x3f4] sm:$0xf]
  %v530 = vld [vmem:[%s1 + $0x3f8] sm:$0xf]
  %v531 = vld [vmem:[%s1 + $0x3fc] sm:$0xf]
  %v532 = vld [vmem:[%s2] sm:$0xff]
  %v533 = vld [vmem:[%s2 + $0x8] sm:$0xff]
  %v534 = vld [vmem:[%s2 + $0x10] sm:$0xff]
  %v535 = vld [vmem:[%s2 + $0x18] sm:$0xff]
  %v536 = vld [vmem:[%s2 + $0x20] sm:$0xff]
  %v537 = vld [vmem:[%s2 + $0x28] sm:$0xff]
  %v538 = vld [vmem:[%s2 + $0x30] sm:$0xff]
  %v539 = vld [vmem:[%s2 + $0x38] sm:$0xff]
  %v540 = vld [vmem:[%s2 + $0x40] sm:$0xff]
  %v541 = vld [vmem:[%s2 + $0x48] sm:$0xff]
  %v542 = vld [vmem:[%s2 + $0x50] sm:$0xff]
  %v543 = vld [vmem:[%s2 + $0x58] sm:$0xff]
  %v544 = vld [vmem:[%s2 + $0x60] sm:$0xff]
  %v545 = vld [vmem:[%s2 + $0x68] sm:$0xff]
  %v546 = vld [vmem:[%s2 + $0x70] sm:$0xff]
  %v547 = vld [vmem:[%s2 + $0x78] sm:$0xff]
  %v548 = vld [vmem:[%s2 + $0x80] sm:$0xff]
  %v549 = vld [vmem:[%s2 + $0x88] sm:$0xff]
  %v550 = vld [vmem:[%s2 + $0x90] sm:$0xff]
  %v551 = vld [vmem:[%s2 + $0x98] sm:$0xff]
  %v552 = vld [vmem:[%s2 + $0xa0] sm:$0xff]
  %v553 = vld [vmem:[%s2 + $0xa8] sm:$0xff]
  %v554 = vld [vmem:[%s2 + $0xb0] sm:$0xff]
  %v555 = vld [vmem:[%s2 + $0xb8] sm:$0xff]
  %v556 = vld [vmem:[%s2 + $0xc0] sm:$0xff]
  %v557 = vld [vmem:[%s2 + $0xc8] sm:$0xff]
  %v558 = vld [vmem:[%s2 + $0xd0] sm:$0xff]
  %v559 = vld [vmem:[%s2 + $0xd8] sm:$0xff]
  %v560 = vld [vmem:[%s2 + $0xe0] sm:$0xff]
  %v561 = vld [vmem:[%s2 + $0xe8] sm:$0xff]
  %v562 = vld [vmem:[%s2 + $0xf0] sm:$0xff]
  %v563 = vld [vmem:[%s2 + $0xf8] sm:$0xff]
  %565 = vset.pattern.permute.xlu0 0
  %566 = vperm.xlu0 %565, %v532
  %v567 = vpop.permute.xlu0 %566
  %570 = vset.pattern.permute.xlu0 0
  %571 = vperm.xlu0 %570, %v533
  %v572 = vpop.permute.xlu0 %571
  %575 = vset.pattern.permute.xlu0 0
  %576 = vperm.xlu0 %575, %v534
  %v577 = vpop.permute.xlu0 %576
  %580 = vset.pattern.permute.xlu0 0
  %581 = vperm.xlu0 %580, %v535
  %v582 = vpop.permute.xlu0 %581
  %585 = vset.pattern.permute.xlu0 0
  %586 = vperm.xlu0 %585, %v536
  %v587 = vpop.permute.xlu0 %586
  %590 = vset.pattern.permute.xlu0 0
  %591 = vperm.xlu0 %590, %v537
  %v592 = vpop.permute.xlu0 %591
  %595 = vset.pattern.permute.xlu0 0
  %596 = vperm.xlu0 %595, %v538
  %v597 = vpop.permute.xlu0 %596
  %600 = vset.pattern.permute.xlu0 0
  %601 = vperm.xlu0 %600, %v539
  %v602 = vpop.permute.xlu0 %601
  %605 = vset.pattern.permute.xlu0 0
  %606 = vperm.xlu0 %605, %v540
  %v607 = vpop.permute.xlu0 %606
  %610 = vset.pattern.permute.xlu0 0
  %611 = vperm.xlu0 %610, %v541
  %v612 = vpop.permute.xlu0 %611
  %615 = vset.pattern.permute.xlu0 0
  %616 = vperm.xlu0 %615, %v542
  %v617 = vpop.permute.xlu0 %616
  %620 = vset.pattern.permute.xlu0 0
  %621 = vperm.xlu0 %620, %v543
  %v622 = vpop.permute.xlu0 %621
  %625 = vset.pattern.permute.xlu0 0
  %626 = vperm.xlu0 %625, %v544
  %v627 = vpop.permute.xlu0 %626
  %630 = vset.pattern.permute.xlu0 0
  %631 = vperm.xlu0 %630, %v545
  %v632 = vpop.permute.xlu0 %631
  %635 = vset.pattern.permute.xlu0 0
  %636 = vperm.xlu0 %635, %v546
  %v637 = vpop.permute.xlu0 %636
  %640 = vset.pattern.permute.xlu0 0
  %641 = vperm.xlu0 %640, %v547
  %v642 = vpop.permute.xlu0 %641
  %645 = vset.pattern.permute.xlu0 0
  %646 = vperm.xlu0 %645, %v548
  %v647 = vpop.permute.xlu0 %646
  %650 = vset.pattern.permute.xlu0 0
  %651 = vperm.xlu0 %650, %v549
  %v652 = vpop.permute.xlu0 %651
  %655 = vset.pattern.permute.xlu0 0
  %656 = vperm.xlu0 %655, %v550
  %v657 = vpop.permute.xlu0 %656
  %660 = vset.pattern.permute.xlu0 0
  %661 = vperm.xlu0 %660, %v551
  %v662 = vpop.permute.xlu0 %661
  %665 = vset.pattern.permute.xlu0 0
  %666 = vperm.xlu0 %665, %v552
  %v667 = vpop.permute.xlu0 %666
  %670 = vset.pattern.permute.xlu0 0
  %671 = vperm.xlu0 %670, %v553
  %v672 = vpop.permute.xlu0 %671
  %675 = vset.pattern.permute.xlu0 0
  %676 = vperm.xlu0 %675, %v554
  %v677 = vpop.permute.xlu0 %676
  %680 = vset.pattern.permute.xlu0 0
  %681 = vperm.xlu0 %680, %v555
  %v682 = vpop.permute.xlu0 %681
  %685 = vset.pattern.permute.xlu0 0
  %686 = vperm.xlu0 %685, %v556
  %v687 = vpop.permute.xlu0 %686
  %690 = vset.pattern.permute.xlu0 0
  %691 = vperm.xlu0 %690, %v557
  %v692 = vpop.permute.xlu0 %691
  %695 = vset.pattern.permute.xlu0 0
  %696 = vperm.xlu0 %695, %v558
  %v697 = vpop.permute.xlu0 %696
  %700 = vset.pattern.permute.xlu0 0
  %701 = vperm.xlu0 %700, %v559
  %v702 = vpop.permute.xlu0 %701
  %705 = vset.pattern.permute.xlu0 0
  %706 = vperm.xlu0 %705, %v560
  %v707 = vpop.permute.xlu0 %706
  %710 = vset.pattern.permute.xlu0 0
  %711 = vperm.xlu0 %710, %v561
  %v712 = vpop.permute.xlu0 %711
  %715 = vset.pattern.permute.xlu0 0
  %716 = vperm.xlu0 %715, %v562
  %v717 = vpop.permute.xlu0 %716
  %720 = vset.pattern.permute.xlu0 0
  %721 = vperm.xlu0 %720, %v563
  %v722 = vpop.permute.xlu0 %721
  %v980 = vunpack.c.l.b16 %v20
  %v981 = vunpack.c.h.b16 %v20
  %v982 = vunpack.c.l.b16 %v21
  %v983 = vunpack.c.h.b16 %v21
  %v984 = vunpack.c.l.b16 %v22
  %v985 = vunpack.c.h.b16 %v22
  %v986 = vunpack.c.l.b16 %v23
  %v987 = vunpack.c.h.b16 %v23
  %v988 = vunpack.c.l.b16 %v24
  %v989 = vunpack.c.h.b16 %v24
  %v990 = vunpack.c.l.b16 %v25
  %v991 = vunpack.c.h.b16 %v25
  %v992 = vunpack.c.l.b16 %v26
  %v993 = vunpack.c.h.b16 %v26
  %v994 = vunpack.c.l.b16 %v27
  %v995 = vunpack.c.h.b16 %v27
  %v996 = vunpack.c.l.b16 %v28
  %v997 = vunpack.c.h.b16 %v28
  %v998 = vunpack.c.l.b16 %v29
  %v999 = vunpack.c.h.b16 %v29
  %v1000 = vunpack.c.l.b16 %v30
  %v1001 = vunpack.c.h.b16 %v30
  %v1002 = vunpack.c.l.b16 %v31
  %v1003 = vunpack.c.h.b16 %v31
  %v1004 = vunpack.c.l.b16 %v32
  %v1005 = vunpack.c.h.b16 %v32
  %v1006 = vunpack.c.l.b16 %v33
  %v1007 = vunpack.c.h.b16 %v33
  %v1008 = vunpack.c.l.b16 %v34
  %v1009 = vunpack.c.h.b16 %v34
  %v1010 = vunpack.c.l.b16 %v35
  %v1011 = vunpack.c.h.b16 %v35
  %v1012 = vunpack.c.l.b16 %v36
  %v1013 = vunpack.c.h.b16 %v36
  %v1014 = vunpack.c.l.b16 %v37
  %v1015 = vunpack.c.h.b16 %v37
  %v1016 = vunpack.c.l.b16 %v38
  %v1017 = vunpack.c.h.b16 %v38
  %v1018 = vunpack.c.l.b16 %v39
  %v1019 = vunpack.c.h.b16 %v39
  %v1020 = vunpack.c.l.b16 %v40
  %v1021 = vunpack.c.h.b16 %v40
  %v1022 = vunpack.c.l.b16 %v41
  %v1023 = vunpack.c.h.b16 %v41
  %v1024 = vunpack.c.l.b16 %v42
  %v1025 = vunpack.c.h.b16 %v42
  %v1026 = vunpack.c.l.b16 %v43
  %v1027 = vunpack.c.h.b16 %v43
  %v1028 = vunpack.c.l.b16 %v44
  %v1029 = vunpack.c.h.b16 %v44
  %v1030 = vunpack.c.l.b16 %v45
  %v1031 = vunpack.c.h.b16 %v45
  %v1032 = vunpack.c.l.b16 %v46
  %v1033 = vunpack.c.h.b16 %v46
  %v1034 = vunpack.c.l.b16 %v47
  %v1035 = vunpack.c.h.b16 %v47
  %v1036 = vunpack.c.l.b16 %v48
  %v1037 = vunpack.c.h.b16 %v48
  %v1038 = vunpack.c.l.b16 %v49
  %v1039 = vunpack.c.h.b16 %v49
  %v1040 = vunpack.c.l.b16 %v50
  %v1041 = vunpack.c.h.b16 %v50
  %v1042 = vunpack.c.l.b16 %v51
  %v1043 = vunpack.c.h.b16 %v51
  %v1044 = vunpack.c.l.b16 %v52
  %v1045 = vunpack.c.h.b16 %v52
  %v1046 = vunpack.c.l.b16 %v53
  %v1047 = vunpack.c.h.b16 %v53
  %v1048 = vunpack.c.l.b16 %v54
  %v1049 = vunpack.c.h.b16 %v54
  %v1050 = vunpack.c.l.b16 %v55
  %v1051 = vunpack.c.h.b16 %v55
  %v1052 = vunpack.c.l.b16 %v56
  %v1053 = vunpack.c.h.b16 %v56
  %v1054 = vunpack.c.l.b16 %v57
  %v1055 = vunpack.c.h.b16 %v57
  %v1056 = vunpack.c.l.b16 %v58
  %v1057 = vunpack.c.h.b16 %v58
  %v1058 = vunpack.c.l.b16 %v59
  %v1059 = vunpack.c.h.b16 %v59
  %v1060 = vunpack.c.l.b16 %v60
  %v1061 = vunpack.c.h.b16 %v60
  %v1062 = vunpack.c.l.b16 %v61
  %v1063 = vunpack.c.h.b16 %v61
  %v1064 = vunpack.c.l.b16 %v62
  %v1065 = vunpack.c.h.b16 %v62
  %v1066 = vunpack.c.l.b16 %v63
  %v1067 = vunpack.c.h.b16 %v63
  %v1068 = vunpack.c.l.b16 %v64
  %v1069 = vunpack.c.h.b16 %v64
  %v1070 = vunpack.c.l.b16 %v65
  %v1071 = vunpack.c.h.b16 %v65
  %v1072 = vunpack.c.l.b16 %v66
  %v1073 = vunpack.c.h.b16 %v66
  %v1074 = vunpack.c.l.b16 %v67
  %v1075 = vunpack.c.h.b16 %v67
  %v1076 = vunpack.c.l.b16 %v68
  %v1077 = vunpack.c.h.b16 %v68
  %v1078 = vunpack.c.l.b16 %v69
  %v1079 = vunpack.c.h.b16 %v69
  %v1080 = vunpack.c.l.b16 %v70
  %v1081 = vunpack.c.h.b16 %v70
  %v1082 = vunpack.c.l.b16 %v71
  %v1083 = vunpack.c.h.b16 %v71
  %v1084 = vunpack.c.l.b16 %v72
  %v1085 = vunpack.c.h.b16 %v72
  %v1086 = vunpack.c.l.b16 %v73
  %v1087 = vunpack.c.h.b16 %v73
  %v1088 = vunpack.c.l.b16 %v74
  %v1089 = vunpack.c.h.b16 %v74
  %v1090 = vunpack.c.l.b16 %v75
  %v1091 = vunpack.c.h.b16 %v75
  %v1092 = vunpack.c.l.b16 %v76
  %v1093 = vunpack.c.h.b16 %v76
  %v1094 = vunpack.c.l.b16 %v77
  %v1095 = vunpack.c.h.b16 %v77
  %v1096 = vunpack.c.l.b16 %v78
  %v1097 = vunpack.c.h.b16 %v78
  %v1098 = vunpack.c.l.b16 %v79
  %v1099 = vunpack.c.h.b16 %v79
  %v1100 = vunpack.c.l.b16 %v80
  %v1101 = vunpack.c.h.b16 %v80
  %v1102 = vunpack.c.l.b16 %v81
  %v1103 = vunpack.c.h.b16 %v81
  %v1104 = vunpack.c.l.b16 %v82
  %v1105 = vunpack.c.h.b16 %v82
  %v1106 = vunpack.c.l.b16 %v83
  %v1107 = vunpack.c.h.b16 %v83
  %v1108 = vunpack.c.l.b16 %v84
  %v1109 = vunpack.c.h.b16 %v84
  %v1110 = vunpack.c.l.b16 %v85
  %v1111 = vunpack.c.h.b16 %v85
  %v1112 = vunpack.c.l.b16 %v86
  %v1113 = vunpack.c.h.b16 %v86
  %v1114 = vunpack.c.l.b16 %v87
  %v1115 = vunpack.c.h.b16 %v87
  %v1116 = vunpack.c.l.b16 %v88
  %v1117 = vunpack.c.h.b16 %v88
  %v1118 = vunpack.c.l.b16 %v89
  %v1119 = vunpack.c.h.b16 %v89
  %v1120 = vunpack.c.l.b16 %v90
  %v1121 = vunpack.c.h.b16 %v90
  %v1122 = vunpack.c.l.b16 %v91
  %v1123 = vunpack.c.h.b16 %v91
  %v1124 = vunpack.c.l.b16 %v92
  %v1125 = vunpack.c.h.b16 %v92
  %v1126 = vunpack.c.l.b16 %v93
  %v1127 = vunpack.c.h.b16 %v93
  %v1128 = vunpack.c.l.b16 %v94
  %v1129 = vunpack.c.h.b16 %v94
  %v1130 = vunpack.c.l.b16 %v95
  %v1131 = vunpack.c.h.b16 %v95
  %v1132 = vunpack.c.l.b16 %v96
  %v1133 = vunpack.c.h.b16 %v96
  %v1134 = vunpack.c.l.b16 %v97
  %v1135 = vunpack.c.h.b16 %v97
  %v1136 = vunpack.c.l.b16 %v98
  %v1137 = vunpack.c.h.b16 %v98
  %v1138 = vunpack.c.l.b16 %v99
  %v1139 = vunpack.c.h.b16 %v99
  %v1140 = vunpack.c.l.b16 %v100
  %v1141 = vunpack.c.h.b16 %v100
  %v1142 = vunpack.c.l.b16 %v101
  %v1143 = vunpack.c.h.b16 %v101
  %v1144 = vunpack.c.l.b16 %v102
  %v1145 = vunpack.c.h.b16 %v102
  %v1146 = vunpack.c.l.b16 %v103
  %v1147 = vunpack.c.h.b16 %v103
  %v1148 = vunpack.c.l.b16 %v104
  %v1149 = vunpack.c.h.b16 %v104
  %v1150 = vunpack.c.l.b16 %v105
  %v1151 = vunpack.c.h.b16 %v105
  %v1152 = vunpack.c.l.b16 %v106
  %v1153 = vunpack.c.h.b16 %v106
  %v1154 = vunpack.c.l.b16 %v107
  %v1155 = vunpack.c.h.b16 %v107
  %v1156 = vunpack.c.l.b16 %v108
  %v1157 = vunpack.c.h.b16 %v108
  %v1158 = vunpack.c.l.b16 %v109
  %v1159 = vunpack.c.h.b16 %v109
  %v1160 = vunpack.c.l.b16 %v110
  %v1161 = vunpack.c.h.b16 %v110
  %v1162 = vunpack.c.l.b16 %v111
  %v1163 = vunpack.c.h.b16 %v111
  %v1164 = vunpack.c.l.b16 %v112
  %v1165 = vunpack.c.h.b16 %v112
  %v1166 = vunpack.c.l.b16 %v113
  %v1167 = vunpack.c.h.b16 %v113
  %v1168 = vunpack.c.l.b16 %v114
  %v1169 = vunpack.c.h.b16 %v114
  %v1170 = vunpack.c.l.b16 %v115
  %v1171 = vunpack.c.h.b16 %v115
  %v1172 = vunpack.c.l.b16 %v116
  %v1173 = vunpack.c.h.b16 %v116
  %v1174 = vunpack.c.l.b16 %v117
  %v1175 = vunpack.c.h.b16 %v117
  %v1176 = vunpack.c.l.b16 %v118
  %v1177 = vunpack.c.h.b16 %v118
  %v1178 = vunpack.c.l.b16 %v119
  %v1179 = vunpack.c.h.b16 %v119
  %v1180 = vunpack.c.l.b16 %v120
  %v1181 = vunpack.c.h.b16 %v120
  %v1182 = vunpack.c.l.b16 %v121
  %v1183 = vunpack.c.h.b16 %v121
  %v1184 = vunpack.c.l.b16 %v122
  %v1185 = vunpack.c.h.b16 %v122
  %v1186 = vunpack.c.l.b16 %v123
  %v1187 = vunpack.c.h.b16 %v123
  %v1188 = vunpack.c.l.b16 %v124
  %v1189 = vunpack.c.h.b16 %v124
  %v1190 = vunpack.c.l.b16 %v125
  %v1191 = vunpack.c.h.b16 %v125
  %v1192 = vunpack.c.l.b16 %v126
  %v1193 = vunpack.c.h.b16 %v126
  %v1194 = vunpack.c.l.b16 %v127
  %v1195 = vunpack.c.h.b16 %v127
  %v1196 = vunpack.c.l.b16 %v128
  %v1197 = vunpack.c.h.b16 %v128
  %v1198 = vunpack.c.l.b16 %v129
  %v1199 = vunpack.c.h.b16 %v129
  %v1200 = vunpack.c.l.b16 %v130
  %v1201 = vunpack.c.h.b16 %v130
  %v1202 = vunpack.c.l.b16 %v131
  %v1203 = vunpack.c.h.b16 %v131
  %v1204 = vunpack.c.l.b16 %v132
  %v1205 = vunpack.c.h.b16 %v132
  %v1206 = vunpack.c.l.b16 %v133
  %v1207 = vunpack.c.h.b16 %v133
  %v1208 = vunpack.c.l.b16 %v134
  %v1209 = vunpack.c.h.b16 %v134
  %v1210 = vunpack.c.l.b16 %v135
  %v1211 = vunpack.c.h.b16 %v135
  %v1212 = vunpack.c.l.b16 %v136
  %v1213 = vunpack.c.h.b16 %v136
  %v1214 = vunpack.c.l.b16 %v137
  %v1215 = vunpack.c.h.b16 %v137
  %v1216 = vunpack.c.l.b16 %v138
  %v1217 = vunpack.c.h.b16 %v138
  %v1218 = vunpack.c.l.b16 %v139
  %v1219 = vunpack.c.h.b16 %v139
  %v1220 = vunpack.c.l.b16 %v140
  %v1221 = vunpack.c.h.b16 %v140
  %v1222 = vunpack.c.l.b16 %v141
  %v1223 = vunpack.c.h.b16 %v141
  %v1224 = vunpack.c.l.b16 %v142
  %v1225 = vunpack.c.h.b16 %v142
  %v1226 = vunpack.c.l.b16 %v143
  %v1227 = vunpack.c.h.b16 %v143
  %v1228 = vunpack.c.l.b16 %v144
  %v1229 = vunpack.c.h.b16 %v144
  %v1230 = vunpack.c.l.b16 %v145
  %v1231 = vunpack.c.h.b16 %v145
  %v1232 = vunpack.c.l.b16 %v146
  %v1233 = vunpack.c.h.b16 %v146
  %v1234 = vunpack.c.l.b16 %v147
  %v1235 = vunpack.c.h.b16 %v147
  %v1236 = vunpack.c.l.b16 %v148
  %v1237 = vunpack.c.h.b16 %v148
  %v1238 = vunpack.c.l.b16 %v149
  %v1239 = vunpack.c.h.b16 %v149
  %v1240 = vunpack.c.l.b16 %v150
  %v1241 = vunpack.c.h.b16 %v150
  %v1242 = vunpack.c.l.b16 %v151
  %v1243 = vunpack.c.h.b16 %v151
  %v1244 = vunpack.c.l.b16 %v152
  %v1245 = vunpack.c.h.b16 %v152
  %v1246 = vunpack.c.l.b16 %v153
  %v1247 = vunpack.c.h.b16 %v153
  %v1248 = vunpack.c.l.b16 %v154
  %v1249 = vunpack.c.h.b16 %v154
  %v1250 = vunpack.c.l.b16 %v155
  %v1251 = vunpack.c.h.b16 %v155
  %v1252 = vunpack.c.l.b16 %v156
  %v1253 = vunpack.c.h.b16 %v156
  %v1254 = vunpack.c.l.b16 %v157
  %v1255 = vunpack.c.h.b16 %v157
  %v1256 = vunpack.c.l.b16 %v158
  %v1257 = vunpack.c.h.b16 %v158
  %v1258 = vunpack.c.l.b16 %v159
  %v1259 = vunpack.c.h.b16 %v159
  %v1260 = vunpack.c.l.b16 %v160
  %v1261 = vunpack.c.h.b16 %v160
  %v1262 = vunpack.c.l.b16 %v161
  %v1263 = vunpack.c.h.b16 %v161
  %v1264 = vunpack.c.l.b16 %v162
  %v1265 = vunpack.c.h.b16 %v162
  %v1266 = vunpack.c.l.b16 %v163
  %v1267 = vunpack.c.h.b16 %v163
  %v1268 = vunpack.c.l.b16 %v164
  %v1269 = vunpack.c.h.b16 %v164
  %v1270 = vunpack.c.l.b16 %v165
  %v1271 = vunpack.c.h.b16 %v165
  %v1272 = vunpack.c.l.b16 %v166
  %v1273 = vunpack.c.h.b16 %v166
  %v1274 = vunpack.c.l.b16 %v167
  %v1275 = vunpack.c.h.b16 %v167
  %v1276 = vunpack.c.l.b16 %v168
  %v1277 = vunpack.c.h.b16 %v168
  %v1278 = vunpack.c.l.b16 %v169
  %v1279 = vunpack.c.h.b16 %v169
  %v1280 = vunpack.c.l.b16 %v170
  %v1281 = vunpack.c.h.b16 %v170
  %v1282 = vunpack.c.l.b16 %v171
  %v1283 = vunpack.c.h.b16 %v171
  %v1284 = vunpack.c.l.b16 %v172
  %v1285 = vunpack.c.h.b16 %v172
  %v1286 = vunpack.c.l.b16 %v173
  %v1287 = vunpack.c.h.b16 %v173
  %v1288 = vunpack.c.l.b16 %v174
  %v1289 = vunpack.c.h.b16 %v174
  %v1290 = vunpack.c.l.b16 %v175
  %v1291 = vunpack.c.h.b16 %v175
  %v1292 = vunpack.c.l.b16 %v176
  %v1293 = vunpack.c.h.b16 %v176
  %v1294 = vunpack.c.l.b16 %v177
  %v1295 = vunpack.c.h.b16 %v177
  %v1296 = vunpack.c.l.b16 %v178
  %v1297 = vunpack.c.h.b16 %v178
  %v1298 = vunpack.c.l.b16 %v179
  %v1299 = vunpack.c.h.b16 %v179
  %v1300 = vunpack.c.l.b16 %v180
  %v1301 = vunpack.c.h.b16 %v180
  %v1302 = vunpack.c.l.b16 %v181
  %v1303 = vunpack.c.h.b16 %v181
  %v1304 = vunpack.c.l.b16 %v182
  %v1305 = vunpack.c.h.b16 %v182
  %v1306 = vunpack.c.l.b16 %v183
  %v1307 = vunpack.c.h.b16 %v183
  %v1308 = vunpack.c.l.b16 %v184
  %v1309 = vunpack.c.h.b16 %v184
  %v1310 = vunpack.c.l.b16 %v185
  %v1311 = vunpack.c.h.b16 %v185
  %v1312 = vunpack.c.l.b16 %v186
  %v1313 = vunpack.c.h.b16 %v186
  %v1314 = vunpack.c.l.b16 %v187
  %v1315 = vunpack.c.h.b16 %v187
  %v1316 = vunpack.c.l.b16 %v188
  %v1317 = vunpack.c.h.b16 %v188
  %v1318 = vunpack.c.l.b16 %v189
  %v1319 = vunpack.c.h.b16 %v189
  %v1320 = vunpack.c.l.b16 %v190
  %v1321 = vunpack.c.h.b16 %v190
  %v1322 = vunpack.c.l.b16 %v191
  %v1323 = vunpack.c.h.b16 %v191
  %v1324 = vunpack.c.l.b16 %v192
  %v1325 = vunpack.c.h.b16 %v192
  %v1326 = vunpack.c.l.b16 %v193
  %v1327 = vunpack.c.h.b16 %v193
  %v1328 = vunpack.c.l.b16 %v194
  %v1329 = vunpack.c.h.b16 %v194
  %v1330 = vunpack.c.l.b16 %v195
  %v1331 = vunpack.c.h.b16 %v195
  %v1332 = vunpack.c.l.b16 %v196
  %v1333 = vunpack.c.h.b16 %v196
  %v1334 = vunpack.c.l.b16 %v197
  %v1335 = vunpack.c.h.b16 %v197
  %v1336 = vunpack.c.l.b16 %v198
  %v1337 = vunpack.c.h.b16 %v198
  %v1338 = vunpack.c.l.b16 %v199
  %v1339 = vunpack.c.h.b16 %v199
  %v1340 = vunpack.c.l.b16 %v200
  %v1341 = vunpack.c.h.b16 %v200
  %v1342 = vunpack.c.l.b16 %v201
  %v1343 = vunpack.c.h.b16 %v201
  %v1344 = vunpack.c.l.b16 %v202
  %v1345 = vunpack.c.h.b16 %v202
  %v1346 = vunpack.c.l.b16 %v203
  %v1347 = vunpack.c.h.b16 %v203
  %v1348 = vunpack.c.l.b16 %v204
  %v1349 = vunpack.c.h.b16 %v204
  %v1350 = vunpack.c.l.b16 %v205
  %v1351 = vunpack.c.h.b16 %v205
  %v1352 = vunpack.c.l.b16 %v206
  %v1353 = vunpack.c.h.b16 %v206
  %v1354 = vunpack.c.l.b16 %v207
  %v1355 = vunpack.c.h.b16 %v207
  %v1356 = vunpack.c.l.b16 %v208
  %v1357 = vunpack.c.h.b16 %v208
  %v1358 = vunpack.c.l.b16 %v209
  %v1359 = vunpack.c.h.b16 %v209
  %v1360 = vunpack.c.l.b16 %v210
  %v1361 = vunpack.c.h.b16 %v210
  %v1362 = vunpack.c.l.b16 %v211
  %v1363 = vunpack.c.h.b16 %v211
  %v1364 = vunpack.c.l.b16 %v212
  %v1365 = vunpack.c.h.b16 %v212
  %v1366 = vunpack.c.l.b16 %v213
  %v1367 = vunpack.c.h.b16 %v213
  %v1368 = vunpack.c.l.b16 %v214
  %v1369 = vunpack.c.h.b16 %v214
  %v1370 = vunpack.c.l.b16 %v215
  %v1371 = vunpack.c.h.b16 %v215
  %v1372 = vunpack.c.l.b16 %v216
  %v1373 = vunpack.c.h.b16 %v216
  %v1374 = vunpack.c.l.b16 %v217
  %v1375 = vunpack.c.h.b16 %v217
  %v1376 = vunpack.c.l.b16 %v218
  %v1377 = vunpack.c.h.b16 %v218
  %v1378 = vunpack.c.l.b16 %v219
  %v1379 = vunpack.c.h.b16 %v219
  %v1380 = vunpack.c.l.b16 %v220
  %v1381 = vunpack.c.h.b16 %v220
  %v1382 = vunpack.c.l.b16 %v221
  %v1383 = vunpack.c.h.b16 %v221
  %v1384 = vunpack.c.l.b16 %v222
  %v1385 = vunpack.c.h.b16 %v222
  %v1386 = vunpack.c.l.b16 %v223
  %v1387 = vunpack.c.h.b16 %v223
  %v1388 = vunpack.c.l.b16 %v224
  %v1389 = vunpack.c.h.b16 %v224
  %v1390 = vunpack.c.l.b16 %v225
  %v1391 = vunpack.c.h.b16 %v225
  %v1392 = vunpack.c.l.b16 %v226
  %v1393 = vunpack.c.h.b16 %v226
  %v1394 = vunpack.c.l.b16 %v227
  %v1395 = vunpack.c.h.b16 %v227
  %v1396 = vunpack.c.l.b16 %v228
  %v1397 = vunpack.c.h.b16 %v228
  %v1398 = vunpack.c.l.b16 %v229
  %v1399 = vunpack.c.h.b16 %v229
  %v1400 = vunpack.c.l.b16 %v230
  %v1401 = vunpack.c.h.b16 %v230
  %v1402 = vunpack.c.l.b16 %v231
  %v1403 = vunpack.c.h.b16 %v231
  %v1404 = vunpack.c.l.b16 %v232
  %v1405 = vunpack.c.h.b16 %v232
  %v1406 = vunpack.c.l.b16 %v233
  %v1407 = vunpack.c.h.b16 %v233
  %v1408 = vunpack.c.l.b16 %v234
  %v1409 = vunpack.c.h.b16 %v234
  %v1410 = vunpack.c.l.b16 %v235
  %v1411 = vunpack.c.h.b16 %v235
  %v1412 = vunpack.c.l.b16 %v236
  %v1413 = vunpack.c.h.b16 %v236
  %v1414 = vunpack.c.l.b16 %v237
  %v1415 = vunpack.c.h.b16 %v237
  %v1416 = vunpack.c.l.b16 %v238
  %v1417 = vunpack.c.h.b16 %v238
  %v1418 = vunpack.c.l.b16 %v239
  %v1419 = vunpack.c.h.b16 %v239
  %v1420 = vunpack.c.l.b16 %v240
  %v1421 = vunpack.c.h.b16 %v240
  %v1422 = vunpack.c.l.b16 %v241
  %v1423 = vunpack.c.h.b16 %v241
  %v1424 = vunpack.c.l.b16 %v242
  %v1425 = vunpack.c.h.b16 %v242
  %v1426 = vunpack.c.l.b16 %v243
  %v1427 = vunpack.c.h.b16 %v243
  %v1428 = vunpack.c.l.b16 %v244
  %v1429 = vunpack.c.h.b16 %v244
  %v1430 = vunpack.c.l.b16 %v245
  %v1431 = vunpack.c.h.b16 %v245
  %v1432 = vunpack.c.l.b16 %v246
  %v1433 = vunpack.c.h.b16 %v246
  %v1434 = vunpack.c.l.b16 %v247
  %v1435 = vunpack.c.h.b16 %v247
  %v1436 = vunpack.c.l.b16 %v248
  %v1437 = vunpack.c.h.b16 %v248
  %v1438 = vunpack.c.l.b16 %v249
  %v1439 = vunpack.c.h.b16 %v249
  %v1440 = vunpack.c.l.b16 %v250
  %v1441 = vunpack.c.h.b16 %v250
  %v1442 = vunpack.c.l.b16 %v251
  %v1443 = vunpack.c.h.b16 %v251
  %v1444 = vunpack.c.l.b16 %v252
  %v1445 = vunpack.c.h.b16 %v252
  %v1446 = vunpack.c.l.b16 %v253
  %v1447 = vunpack.c.h.b16 %v253
  %v1448 = vunpack.c.l.b16 %v254
  %v1449 = vunpack.c.h.b16 %v254
  %v1450 = vunpack.c.l.b16 %v255
  %v1451 = vunpack.c.h.b16 %v255
  %v1452 = vunpack.c.l.b16 %v256
  %v1453 = vunpack.c.h.b16 %v256
  %v1454 = vunpack.c.l.b16 %v257
  %v1455 = vunpack.c.h.b16 %v257
  %v1456 = vunpack.c.l.b16 %v258
  %v1457 = vunpack.c.h.b16 %v258
  %v1458 = vunpack.c.l.b16 %v259
  %v1459 = vunpack.c.h.b16 %v259
  %v1460 = vunpack.c.l.b16 %v260
  %v1461 = vunpack.c.h.b16 %v260
  %v1462 = vunpack.c.l.b16 %v261
  %v1463 = vunpack.c.h.b16 %v261
  %v1464 = vunpack.c.l.b16 %v262
  %v1465 = vunpack.c.h.b16 %v262
  %v1466 = vunpack.c.l.b16 %v263
  %v1467 = vunpack.c.h.b16 %v263
  %v1468 = vunpack.c.l.b16 %v264
  %v1469 = vunpack.c.h.b16 %v264
  %v1470 = vunpack.c.l.b16 %v265
  %v1471 = vunpack.c.h.b16 %v265
  %v1472 = vunpack.c.l.b16 %v266
  %v1473 = vunpack.c.h.b16 %v266
  %v1474 = vunpack.c.l.b16 %v267
  %v1475 = vunpack.c.h.b16 %v267
  %v1476 = vunpack.c.l.b16 %v268
  %v1477 = vunpack.c.h.b16 %v268
  %v1478 = vunpack.c.l.b16 %v269
  %v1479 = vunpack.c.h.b16 %v269
  %v1480 = vunpack.c.l.b16 %v270
  %v1481 = vunpack.c.h.b16 %v270
  %v1482 = vunpack.c.l.b16 %v271
  %v1483 = vunpack.c.h.b16 %v271
  %v1484 = vunpack.c.l.b16 %v272
  %v1485 = vunpack.c.h.b16 %v272
  %v1486 = vunpack.c.l.b16 %v273
  %v1487 = vunpack.c.h.b16 %v273
  %v1488 = vunpack.c.l.b16 %v274
  %v1489 = vunpack.c.h.b16 %v274
  %v1490 = vunpack.c.l.b16 %v275
  %v1491 = vunpack.c.h.b16 %v275
  %v1492 = vpack.c.b16 %v996, %v980
  %v1493 = vpack.c.b16 %v997, %v981
  %v1494 = vpack.c.b16 %v998, %v982
  %v1495 = vpack.c.b16 %v999, %v983
  %v1496 = vpack.c.b16 %v1000, %v984
  %v1497 = vpack.c.b16 %v1001, %v985
  %v1498 = vpack.c.b16 %v1002, %v986
  %v1499 = vpack.c.b16 %v1003, %v987
  %v1500 = vpack.c.b16 %v1004, %v988
  %v1501 = vpack.c.b16 %v1005, %v989
  %v1502 = vpack.c.b16 %v1006, %v990
  %v1503 = vpack.c.b16 %v1007, %v991
  %v1504 = vpack.c.b16 %v1008, %v992
  %v1505 = vpack.c.b16 %v1009, %v993
  %v1506 = vpack.c.b16 %v1010, %v994
  %v1507 = vpack.c.b16 %v1011, %v995
  %v1508 = vpack.c.b16 %v1028, %v1012
  %v1509 = vpack.c.b16 %v1029, %v1013
  %v1510 = vpack.c.b16 %v1030, %v1014
  %v1511 = vpack.c.b16 %v1031, %v1015
  %v1512 = vpack.c.b16 %v1032, %v1016
  %v1513 = vpack.c.b16 %v1033, %v1017
  %v1514 = vpack.c.b16 %v1034, %v1018
  %v1515 = vpack.c.b16 %v1035, %v1019
  %v1516 = vpack.c.b16 %v1036, %v1020
  %v1517 = vpack.c.b16 %v1037, %v1021
  %v1518 = vpack.c.b16 %v1038, %v1022
  %v1519 = vpack.c.b16 %v1039, %v1023
  %v1520 = vpack.c.b16 %v1040, %v1024
  %v1521 = vpack.c.b16 %v1041, %v1025
  %v1522 = vpack.c.b16 %v1042, %v1026
  %v1523 = vpack.c.b16 %v1043, %v1027
  %v1524 = vpack.c.b16 %v1060, %v1044
  %v1525 = vpack.c.b16 %v1061, %v1045
  %v1526 = vpack.c.b16 %v1062, %v1046
  %v1527 = vpack.c.b16 %v1063, %v1047
  %v1528 = vpack.c.b16 %v1064, %v1048
  %v1529 = vpack.c.b16 %v1065, %v1049
  %v1530 = vpack.c.b16 %v1066, %v1050
  %v1531 = vpack.c.b16 %v1067, %v1051
  %v1532 = vpack.c.b16 %v1068, %v1052
  %v1533 = vpack.c.b16 %v1069, %v1053
  %v1534 = vpack.c.b16 %v1070, %v1054
  %v1535 = vpack.c.b16 %v1071, %v1055
  %v1536 = vpack.c.b16 %v1072, %v1056
  %v1537 = vpack.c.b16 %v1073, %v1057
  %v1538 = vpack.c.b16 %v1074, %v1058
  %v1539 = vpack.c.b16 %v1075, %v1059
  %v1540 = vpack.c.b16 %v1092, %v1076
  %v1541 = vpack.c.b16 %v1093, %v1077
  %v1542 = vpack.c.b16 %v1094, %v1078
  %v1543 = vpack.c.b16 %v1095, %v1079
  %v1544 = vpack.c.b16 %v1096, %v1080
  %v1545 = vpack.c.b16 %v1097, %v1081
  %v1546 = vpack.c.b16 %v1098, %v1082
  %v1547 = vpack.c.b16 %v1099, %v1083
  %v1548 = vpack.c.b16 %v1100, %v1084
  %v1549 = vpack.c.b16 %v1101, %v1085
  %v1550 = vpack.c.b16 %v1102, %v1086
  %v1551 = vpack.c.b16 %v1103, %v1087
  %v1552 = vpack.c.b16 %v1104, %v1088
  %v1553 = vpack.c.b16 %v1105, %v1089
  %v1554 = vpack.c.b16 %v1106, %v1090
  %v1555 = vpack.c.b16 %v1107, %v1091
  %v1556 = vpack.c.b16 %v1124, %v1108
  %v1557 = vpack.c.b16 %v1125, %v1109
  %v1558 = vpack.c.b16 %v1126, %v1110
  %v1559 = vpack.c.b16 %v1127, %v1111
  %v1560 = vpack.c.b16 %v1128, %v1112
  %v1561 = vpack.c.b16 %v1129, %v1113
  %v1562 = vpack.c.b16 %v1130, %v1114
  %v1563 = vpack.c.b16 %v1131, %v1115
  %v1564 = vpack.c.b16 %v1132, %v1116
  %v1565 = vpack.c.b16 %v1133, %v1117
  %v1566 = vpack.c.b16 %v1134, %v1118
  %v1567 = vpack.c.b16 %v1135, %v1119
  %v1568 = vpack.c.b16 %v1136, %v1120
  %v1569 = vpack.c.b16 %v1137, %v1121
  %v1570 = vpack.c.b16 %v1138, %v1122
  %v1571 = vpack.c.b16 %v1139, %v1123
  %v1572 = vpack.c.b16 %v1156, %v1140
  %v1573 = vpack.c.b16 %v1157, %v1141
  %v1574 = vpack.c.b16 %v1158, %v1142
  %v1575 = vpack.c.b16 %v1159, %v1143
  %v1576 = vpack.c.b16 %v1160, %v1144
  %v1577 = vpack.c.b16 %v1161, %v1145
  %v1578 = vpack.c.b16 %v1162, %v1146
  %v1579 = vpack.c.b16 %v1163, %v1147
  %v1580 = vpack.c.b16 %v1164, %v1148
  %v1581 = vpack.c.b16 %v1165, %v1149
  %v1582 = vpack.c.b16 %v1166, %v1150
  %v1583 = vpack.c.b16 %v1167, %v1151
  %v1584 = vpack.c.b16 %v1168, %v1152
  %v1585 = vpack.c.b16 %v1169, %v1153
  %v1586 = vpack.c.b16 %v1170, %v1154
  %v1587 = vpack.c.b16 %v1171, %v1155
  %v1588 = vpack.c.b16 %v1188, %v1172
  %v1589 = vpack.c.b16 %v1189, %v1173
  %v1590 = vpack.c.b16 %v1190, %v1174
  %v1591 = vpack.c.b16 %v1191, %v1175
  %v1592 = vpack.c.b16 %v1192, %v1176
  %v1593 = vpack.c.b16 %v1193, %v1177
  %v1594 = vpack.c.b16 %v1194, %v1178
  %v1595 = vpack.c.b16 %v1195, %v1179
  %v1596 = vpack.c.b16 %v1196, %v1180
  %v1597 = vpack.c.b16 %v1197, %v1181
  %v1598 = vpack.c.b16 %v1198, %v1182
  %v1599 = vpack.c.b16 %v1199, %v1183
  %v1600 = vpack.c.b16 %v1200, %v1184
  %v1601 = vpack.c.b16 %v1201, %v1185
  %v1602 = vpack.c.b16 %v1202, %v1186
  %v1603 = vpack.c.b16 %v1203, %v1187
  %v1604 = vpack.c.b16 %v1220, %v1204
  %v1605 = vpack.c.b16 %v1221, %v1205
  %v1606 = vpack.c.b16 %v1222, %v1206
  %v1607 = vpack.c.b16 %v1223, %v1207
  %v1608 = vpack.c.b16 %v1224, %v1208
  %v1609 = vpack.c.b16 %v1225, %v1209
  %v1610 = vpack.c.b16 %v1226, %v1210
  %v1611 = vpack.c.b16 %v1227, %v1211
  %v1612 = vpack.c.b16 %v1228, %v1212
  %v1613 = vpack.c.b16 %v1229, %v1213
  %v1614 = vpack.c.b16 %v1230, %v1214
  %v1615 = vpack.c.b16 %v1231, %v1215
  %v1616 = vpack.c.b16 %v1232, %v1216
  %v1617 = vpack.c.b16 %v1233, %v1217
  %v1618 = vpack.c.b16 %v1234, %v1218
  %v1619 = vpack.c.b16 %v1235, %v1219
  %v1620 = vpack.c.b16 %v1252, %v1236
  %v1621 = vpack.c.b16 %v1253, %v1237
  %v1622 = vpack.c.b16 %v1254, %v1238
  %v1623 = vpack.c.b16 %v1255, %v1239
  %v1624 = vpack.c.b16 %v1256, %v1240
  %v1625 = vpack.c.b16 %v1257, %v1241
  %v1626 = vpack.c.b16 %v1258, %v1242
  %v1627 = vpack.c.b16 %v1259, %v1243
  %v1628 = vpack.c.b16 %v1260, %v1244
  %v1629 = vpack.c.b16 %v1261, %v1245
  %v1630 = vpack.c.b16 %v1262, %v1246
  %v1631 = vpack.c.b16 %v1263, %v1247
  %v1632 = vpack.c.b16 %v1264, %v1248
  %v1633 = vpack.c.b16 %v1265, %v1249
  %v1634 = vpack.c.b16 %v1266, %v1250
  %v1635 = vpack.c.b16 %v1267, %v1251
  %v1636 = vpack.c.b16 %v1284, %v1268
  %v1637 = vpack.c.b16 %v1285, %v1269
  %v1638 = vpack.c.b16 %v1286, %v1270
  %v1639 = vpack.c.b16 %v1287, %v1271
  %v1640 = vpack.c.b16 %v1288, %v1272
  %v1641 = vpack.c.b16 %v1289, %v1273
  %v1642 = vpack.c.b16 %v1290, %v1274
  %v1643 = vpack.c.b16 %v1291, %v1275
  %v1644 = vpack.c.b16 %v1292, %v1276
  %v1645 = vpack.c.b16 %v1293, %v1277
  %v1646 = vpack.c.b16 %v1294, %v1278
  %v1647 = vpack.c.b16 %v1295, %v1279
  %v1648 = vpack.c.b16 %v1296, %v1280
  %v1649 = vpack.c.b16 %v1297, %v1281
  %v1650 = vpack.c.b16 %v1298, %v1282
  %v1651 = vpack.c.b16 %v1299, %v1283
  %v1652 = vpack.c.b16 %v1316, %v1300
  %v1653 = vpack.c.b16 %v1317, %v1301
  %v1654 = vpack.c.b16 %v1318, %v1302
  %v1655 = vpack.c.b16 %v1319, %v1303
  %v1656 = vpack.c.b16 %v1320, %v1304
  %v1657 = vpack.c.b16 %v1321, %v1305
  %v1658 = vpack.c.b16 %v1322, %v1306
  %v1659 = vpack.c.b16 %v1323, %v1307
  %v1660 = vpack.c.b16 %v1324, %v1308
  %v1661 = vpack.c.b16 %v1325, %v1309
  %v1662 = vpack.c.b16 %v1326, %v1310
  %v1663 = vpack.c.b16 %v1327, %v1311
  %v1664 = vpack.c.b16 %v1328, %v1312
  %v1665 = vpack.c.b16 %v1329, %v1313
  %v1666 = vpack.c.b16 %v1330, %v1314
  %v1667 = vpack.c.b16 %v1331, %v1315
  %v1668 = vpack.c.b16 %v1348, %v1332
  %v1669 = vpack.c.b16 %v1349, %v1333
  %v1670 = vpack.c.b16 %v1350, %v1334
  %v1671 = vpack.c.b16 %v1351, %v1335
  %v1672 = vpack.c.b16 %v1352, %v1336
  %v1673 = vpack.c.b16 %v1353, %v1337
  %v1674 = vpack.c.b16 %v1354, %v1338
  %v1675 = vpack.c.b16 %v1355, %v1339
  %v1676 = vpack.c.b16 %v1356, %v1340
  %v1677 = vpack.c.b16 %v1357, %v1341
  %v1678 = vpack.c.b16 %v1358, %v1342
  %v1679 = vpack.c.b16 %v1359, %v1343
  %v1680 = vpack.c.b16 %v1360, %v1344
  %v1681 = vpack.c.b16 %v1361, %v1345
  %v1682 = vpack.c.b16 %v1362, %v1346
  %v1683 = vpack.c.b16 %v1363, %v1347
  %v1684 = vpack.c.b16 %v1380, %v1364
  %v1685 = vpack.c.b16 %v1381, %v1365
  %v1686 = vpack.c.b16 %v1382, %v1366
  %v1687 = vpack.c.b16 %v1383, %v1367
  %v1688 = vpack.c.b16 %v1384, %v1368
  %v1689 = vpack.c.b16 %v1385, %v1369
  %v1690 = vpack.c.b16 %v1386, %v1370
  %v1691 = vpack.c.b16 %v1387, %v1371
  %v1692 = vpack.c.b16 %v1388, %v1372
  %v1693 = vpack.c.b16 %v1389, %v1373
  %v1694 = vpack.c.b16 %v1390, %v1374
  %v1695 = vpack.c.b16 %v1391, %v1375
  %v1696 = vpack.c.b16 %v1392, %v1376
  %v1697 = vpack.c.b16 %v1393, %v1377
  %v1698 = vpack.c.b16 %v1394, %v1378
  %v1699 = vpack.c.b16 %v1395, %v1379
  %v1700 = vpack.c.b16 %v1412, %v1396
  %v1701 = vpack.c.b16 %v1413, %v1397
  %v1702 = vpack.c.b16 %v1414, %v1398
  %v1703 = vpack.c.b16 %v1415, %v1399
  %v1704 = vpack.c.b16 %v1416, %v1400
  %v1705 = vpack.c.b16 %v1417, %v1401
  %v1706 = vpack.c.b16 %v1418, %v1402
  %v1707 = vpack.c.b16 %v1419, %v1403
  %v1708 = vpack.c.b16 %v1420, %v1404
  %v1709 = vpack.c.b16 %v1421, %v1405
  %v1710 = vpack.c.b16 %v1422, %v1406
  %v1711 = vpack.c.b16 %v1423, %v1407
  %v1712 = vpack.c.b16 %v1424, %v1408
  %v1713 = vpack.c.b16 %v1425, %v1409
  %v1714 = vpack.c.b16 %v1426, %v1410
  %v1715 = vpack.c.b16 %v1427, %v1411
  %v1716 = vpack.c.b16 %v1444, %v1428
  %v1717 = vpack.c.b16 %v1445, %v1429
  %v1718 = vpack.c.b16 %v1446, %v1430
  %v1719 = vpack.c.b16 %v1447, %v1431
  %v1720 = vpack.c.b16 %v1448, %v1432
  %v1721 = vpack.c.b16 %v1449, %v1433
  %v1722 = vpack.c.b16 %v1450, %v1434
  %v1723 = vpack.c.b16 %v1451, %v1435
  %v1724 = vpack.c.b16 %v1452, %v1436
  %v1725 = vpack.c.b16 %v1453, %v1437
  %v1726 = vpack.c.b16 %v1454, %v1438
  %v1727 = vpack.c.b16 %v1455, %v1439
  %v1728 = vpack.c.b16 %v1456, %v1440
  %v1729 = vpack.c.b16 %v1457, %v1441
  %v1730 = vpack.c.b16 %v1458, %v1442
  %v1731 = vpack.c.b16 %v1459, %v1443
  %v1732 = vpack.c.b16 %v1476, %v1460
  %v1733 = vpack.c.b16 %v1477, %v1461
  %v1734 = vpack.c.b16 %v1478, %v1462
  %v1735 = vpack.c.b16 %v1479, %v1463
  %v1736 = vpack.c.b16 %v1480, %v1464
  %v1737 = vpack.c.b16 %v1481, %v1465
  %v1738 = vpack.c.b16 %v1482, %v1466
  %v1739 = vpack.c.b16 %v1483, %v1467
  %v1740 = vpack.c.b16 %v1484, %v1468
  %v1741 = vpack.c.b16 %v1485, %v1469
  %v1742 = vpack.c.b16 %v1486, %v1470
  %v1743 = vpack.c.b16 %v1487, %v1471
  %v1744 = vpack.c.b16 %v1488, %v1472
  %v1745 = vpack.c.b16 %v1489, %v1473
  %v1746 = vpack.c.b16 %v1490, %v1474
  %v1747 = vpack.c.b16 %v1491, %v1475
  %v2260 = vunpack.c.l.b16 %v276
  %v2261 = vunpack.c.l.b16 %v277
  %v2262 = vunpack.c.l.b16 %v278
  %v2263 = vunpack.c.l.b16 %v279
  %v2264 = vunpack.c.l.b16 %v280
  %v2265 = vunpack.c.l.b16 %v281
  %v2266 = vunpack.c.l.b16 %v282
  %v2267 = vunpack.c.l.b16 %v283
  %v2268 = vunpack.c.l.b16 %v284
  %v2269 = vunpack.c.l.b16 %v285
  %v2270 = vunpack.c.l.b16 %v286
  %v2271 = vunpack.c.l.b16 %v287
  %v2272 = vunpack.c.l.b16 %v288
  %v2273 = vunpack.c.l.b16 %v289
  %v2274 = vunpack.c.l.b16 %v290
  %v2275 = vunpack.c.l.b16 %v291
  %v2276 = vunpack.c.l.b16 %v292
  %v2277 = vunpack.c.l.b16 %v293
  %v2278 = vunpack.c.l.b16 %v294
  %v2279 = vunpack.c.l.b16 %v295
  %v2280 = vunpack.c.l.b16 %v296
  %v2281 = vunpack.c.l.b16 %v297
  %v2282 = vunpack.c.l.b16 %v298
  %v2283 = vunpack.c.l.b16 %v299
  %v2284 = vunpack.c.l.b16 %v300
  %v2285 = vunpack.c.l.b16 %v301
  %v2286 = vunpack.c.l.b16 %v302
  %v2287 = vunpack.c.l.b16 %v303
  %v2288 = vunpack.c.l.b16 %v304
  %v2289 = vunpack.c.l.b16 %v305
  %v2290 = vunpack.c.l.b16 %v306
  %v2291 = vunpack.c.l.b16 %v307
  %v2292 = vunpack.c.l.b16 %v308
  %v2293 = vunpack.c.l.b16 %v309
  %v2294 = vunpack.c.l.b16 %v310
  %v2295 = vunpack.c.l.b16 %v311
  %v2296 = vunpack.c.l.b16 %v312
  %v2297 = vunpack.c.l.b16 %v313
  %v2298 = vunpack.c.l.b16 %v314
  %v2299 = vunpack.c.l.b16 %v315
  %v2300 = vunpack.c.l.b16 %v316
  %v2301 = vunpack.c.l.b16 %v317
  %v2302 = vunpack.c.l.b16 %v318
  %v2303 = vunpack.c.l.b16 %v319
  %v2304 = vunpack.c.l.b16 %v320
  %v2305 = vunpack.c.l.b16 %v321
  %v2306 = vunpack.c.l.b16 %v322
  %v2307 = vunpack.c.l.b16 %v323
  %v2308 = vunpack.c.l.b16 %v324
  %v2309 = vunpack.c.l.b16 %v325
  %v2310 = vunpack.c.l.b16 %v326
  %v2311 = vunpack.c.l.b16 %v327
  %v2312 = vunpack.c.l.b16 %v328
  %v2313 = vunpack.c.l.b16 %v329
  %v2314 = vunpack.c.l.b16 %v330
  %v2315 = vunpack.c.l.b16 %v331
  %v2316 = vunpack.c.l.b16 %v332
  %v2317 = vunpack.c.l.b16 %v333
  %v2318 = vunpack.c.l.b16 %v334
  %v2319 = vunpack.c.l.b16 %v335
  %v2320 = vunpack.c.l.b16 %v336
  %v2321 = vunpack.c.l.b16 %v337
  %v2322 = vunpack.c.l.b16 %v338
  %v2323 = vunpack.c.l.b16 %v339
  %v2324 = vunpack.c.l.b16 %v340
  %v2325 = vunpack.c.l.b16 %v341
  %v2326 = vunpack.c.l.b16 %v342
  %v2327 = vunpack.c.l.b16 %v343
  %v2328 = vunpack.c.l.b16 %v344
  %v2329 = vunpack.c.l.b16 %v345
  %v2330 = vunpack.c.l.b16 %v346
  %v2331 = vunpack.c.l.b16 %v347
  %v2332 = vunpack.c.l.b16 %v348
  %v2333 = vunpack.c.l.b16 %v349
  %v2334 = vunpack.c.l.b16 %v350
  %v2335 = vunpack.c.l.b16 %v351
  %v2336 = vunpack.c.l.b16 %v352
  %v2337 = vunpack.c.l.b16 %v353
  %v2338 = vunpack.c.l.b16 %v354
  %v2339 = vunpack.c.l.b16 %v355
  %v2340 = vunpack.c.l.b16 %v356
  %v2341 = vunpack.c.l.b16 %v357
  %v2342 = vunpack.c.l.b16 %v358
  %v2343 = vunpack.c.l.b16 %v359
  %v2344 = vunpack.c.l.b16 %v360
  %v2345 = vunpack.c.l.b16 %v361
  %v2346 = vunpack.c.l.b16 %v362
  %v2347 = vunpack.c.l.b16 %v363
  %v2348 = vunpack.c.l.b16 %v364
  %v2349 = vunpack.c.l.b16 %v365
  %v2350 = vunpack.c.l.b16 %v366
  %v2351 = vunpack.c.l.b16 %v367
  %v2352 = vunpack.c.l.b16 %v368
  %v2353 = vunpack.c.l.b16 %v369
  %v2354 = vunpack.c.l.b16 %v370
  %v2355 = vunpack.c.l.b16 %v371
  %v2356 = vunpack.c.l.b16 %v372
  %v2357 = vunpack.c.l.b16 %v373
  %v2358 = vunpack.c.l.b16 %v374
  %v2359 = vunpack.c.l.b16 %v375
  %v2360 = vunpack.c.l.b16 %v376
  %v2361 = vunpack.c.l.b16 %v377
  %v2362 = vunpack.c.l.b16 %v378
  %v2363 = vunpack.c.l.b16 %v379
  %v2364 = vunpack.c.l.b16 %v380
  %v2365 = vunpack.c.l.b16 %v381
  %v2366 = vunpack.c.l.b16 %v382
  %v2367 = vunpack.c.l.b16 %v383
  %v2368 = vunpack.c.l.b16 %v384
  %v2369 = vunpack.c.l.b16 %v385
  %v2370 = vunpack.c.l.b16 %v386
  %v2371 = vunpack.c.l.b16 %v387
  %v2372 = vunpack.c.l.b16 %v388
  %v2373 = vunpack.c.l.b16 %v389
  %v2374 = vunpack.c.l.b16 %v390
  %v2375 = vunpack.c.l.b16 %v391
  %v2376 = vunpack.c.l.b16 %v392
  %v2377 = vunpack.c.l.b16 %v393
  %v2378 = vunpack.c.l.b16 %v394
  %v2379 = vunpack.c.l.b16 %v395
  %v2380 = vunpack.c.l.b16 %v396
  %v2381 = vunpack.c.l.b16 %v397
  %v2382 = vunpack.c.l.b16 %v398
  %v2383 = vunpack.c.l.b16 %v399
  %v2384 = vunpack.c.l.b16 %v400
  %v2385 = vunpack.c.l.b16 %v401
  %v2386 = vunpack.c.l.b16 %v402
  %v2387 = vunpack.c.l.b16 %v403
  %v2388 = vunpack.c.l.b16 %v404
  %v2389 = vunpack.c.l.b16 %v405
  %v2390 = vunpack.c.l.b16 %v406
  %v2391 = vunpack.c.l.b16 %v407
  %v2392 = vunpack.c.l.b16 %v408
  %v2393 = vunpack.c.l.b16 %v409
  %v2394 = vunpack.c.l.b16 %v410
  %v2395 = vunpack.c.l.b16 %v411
  %v2396 = vunpack.c.l.b16 %v412
  %v2397 = vunpack.c.l.b16 %v413
  %v2398 = vunpack.c.l.b16 %v414
  %v2399 = vunpack.c.l.b16 %v415
  %v2400 = vunpack.c.l.b16 %v416
  %v2401 = vunpack.c.l.b16 %v417
  %v2402 = vunpack.c.l.b16 %v418
  %v2403 = vunpack.c.l.b16 %v419
  %v2404 = vunpack.c.l.b16 %v420
  %v2405 = vunpack.c.l.b16 %v421
  %v2406 = vunpack.c.l.b16 %v422
  %v2407 = vunpack.c.l.b16 %v423
  %v2408 = vunpack.c.l.b16 %v424
  %v2409 = vunpack.c.l.b16 %v425
  %v2410 = vunpack.c.l.b16 %v426
  %v2411 = vunpack.c.l.b16 %v427
  %v2412 = vunpack.c.l.b16 %v428
  %v2413 = vunpack.c.l.b16 %v429
  %v2414 = vunpack.c.l.b16 %v430
  %v2415 = vunpack.c.l.b16 %v431
  %v2416 = vunpack.c.l.b16 %v432
  %v2417 = vunpack.c.l.b16 %v433
  %v2418 = vunpack.c.l.b16 %v434
  %v2419 = vunpack.c.l.b16 %v435
  %v2420 = vunpack.c.l.b16 %v436
  %v2421 = vunpack.c.l.b16 %v437
  %v2422 = vunpack.c.l.b16 %v438
  %v2423 = vunpack.c.l.b16 %v439
  %v2424 = vunpack.c.l.b16 %v440
  %v2425 = vunpack.c.l.b16 %v441
  %v2426 = vunpack.c.l.b16 %v442
  %v2427 = vunpack.c.l.b16 %v443
  %v2428 = vunpack.c.l.b16 %v444
  %v2429 = vunpack.c.l.b16 %v445
  %v2430 = vunpack.c.l.b16 %v446
  %v2431 = vunpack.c.l.b16 %v447
  %v2432 = vunpack.c.l.b16 %v448
  %v2433 = vunpack.c.l.b16 %v449
  %v2434 = vunpack.c.l.b16 %v450
  %v2435 = vunpack.c.l.b16 %v451
  %v2436 = vunpack.c.l.b16 %v452
  %v2437 = vunpack.c.l.b16 %v453
  %v2438 = vunpack.c.l.b16 %v454
  %v2439 = vunpack.c.l.b16 %v455
  %v2440 = vunpack.c.l.b16 %v456
  %v2441 = vunpack.c.l.b16 %v457
  %v2442 = vunpack.c.l.b16 %v458
  %v2443 = vunpack.c.l.b16 %v459
  %v2444 = vunpack.c.l.b16 %v460
  %v2445 = vunpack.c.l.b16 %v461
  %v2446 = vunpack.c.l.b16 %v462
  %v2447 = vunpack.c.l.b16 %v463
  %v2448 = vunpack.c.l.b16 %v464
  %v2449 = vunpack.c.l.b16 %v465
  %v2450 = vunpack.c.l.b16 %v466
  %v2451 = vunpack.c.l.b16 %v467
  %v2452 = vunpack.c.l.b16 %v468
  %v2453 = vunpack.c.l.b16 %v469
  %v2454 = vunpack.c.l.b16 %v470
  %v2455 = vunpack.c.l.b16 %v471
  %v2456 = vunpack.c.l.b16 %v472
  %v2457 = vunpack.c.l.b16 %v473
  %v2458 = vunpack.c.l.b16 %v474
  %v2459 = vunpack.c.l.b16 %v475
  %v2460 = vunpack.c.l.b16 %v476
  %v2461 = vunpack.c.l.b16 %v477
  %v2462 = vunpack.c.l.b16 %v478
  %v2463 = vunpack.c.l.b16 %v479
  %v2464 = vunpack.c.l.b16 %v480
  %v2465 = vunpack.c.l.b16 %v481
  %v2466 = vunpack.c.l.b16 %v482
  %v2467 = vunpack.c.l.b16 %v483
  %v2468 = vunpack.c.l.b16 %v484
  %v2469 = vunpack.c.l.b16 %v485
  %v2470 = vunpack.c.l.b16 %v486
  %v2471 = vunpack.c.l.b16 %v487
  %v2472 = vunpack.c.l.b16 %v488
  %v2473 = vunpack.c.l.b16 %v489
  %v2474 = vunpack.c.l.b16 %v490
  %v2475 = vunpack.c.l.b16 %v491
  %v2476 = vunpack.c.l.b16 %v492
  %v2477 = vunpack.c.l.b16 %v493
  %v2478 = vunpack.c.l.b16 %v494
  %v2479 = vunpack.c.l.b16 %v495
  %v2480 = vunpack.c.l.b16 %v496
  %v2481 = vunpack.c.l.b16 %v497
  %v2482 = vunpack.c.l.b16 %v498
  %v2483 = vunpack.c.l.b16 %v499
  %v2484 = vunpack.c.l.b16 %v500
  %v2485 = vunpack.c.l.b16 %v501
  %v2486 = vunpack.c.l.b16 %v502
  %v2487 = vunpack.c.l.b16 %v503
  %v2488 = vunpack.c.l.b16 %v504
  %v2489 = vunpack.c.l.b16 %v505
  %v2490 = vunpack.c.l.b16 %v506
  %v2491 = vunpack.c.l.b16 %v507
  %v2492 = vunpack.c.l.b16 %v508
  %v2493 = vunpack.c.l.b16 %v509
  %v2494 = vunpack.c.l.b16 %v510
  %v2495 = vunpack.c.l.b16 %v511
  %v2496 = vunpack.c.l.b16 %v512
  %v2497 = vunpack.c.l.b16 %v513
  %v2498 = vunpack.c.l.b16 %v514
  %v2499 = vunpack.c.l.b16 %v515
  %v2500 = vunpack.c.l.b16 %v516
  %v2501 = vunpack.c.l.b16 %v517
  %v2502 = vunpack.c.l.b16 %v518
  %v2503 = vunpack.c.l.b16 %v519
  %v2504 = vunpack.c.l.b16 %v520
  %v2505 = vunpack.c.l.b16 %v521
  %v2506 = vunpack.c.l.b16 %v522
  %v2507 = vunpack.c.l.b16 %v523
  %v2508 = vunpack.c.l.b16 %v524
  %v2509 = vunpack.c.l.b16 %v525
  %v2510 = vunpack.c.l.b16 %v526
  %v2511 = vunpack.c.l.b16 %v527
  %v2512 = vunpack.c.l.b16 %v528
  %v2513 = vunpack.c.l.b16 %v529
  %v2514 = vunpack.c.l.b16 %v530
  %v2515 = vunpack.c.l.b16 %v531
  %v2516 = vpack.c.b16 %v2261, %v2260
  %v2517 = vpack.c.b16 %v2263, %v2262
  %v2518 = vpack.c.b16 %v2265, %v2264
  %v2519 = vpack.c.b16 %v2267, %v2266
  %v2520 = vpack.c.b16 %v2269, %v2268
  %v2521 = vpack.c.b16 %v2271, %v2270
  %v2522 = vpack.c.b16 %v2273, %v2272
  %v2523 = vpack.c.b16 %v2275, %v2274
  %v2524 = vpack.c.b16 %v2277, %v2276
  %v2525 = vpack.c.b16 %v2279, %v2278
  %v2526 = vpack.c.b16 %v2281, %v2280
  %v2527 = vpack.c.b16 %v2283, %v2282
  %v2528 = vpack.c.b16 %v2285, %v2284
  %v2529 = vpack.c.b16 %v2287, %v2286
  %v2530 = vpack.c.b16 %v2289, %v2288
  %v2531 = vpack.c.b16 %v2291, %v2290
  %v2532 = vpack.c.b16 %v2293, %v2292
  %v2533 = vpack.c.b16 %v2295, %v2294
  %v2534 = vpack.c.b16 %v2297, %v2296
  %v2535 = vpack.c.b16 %v2299, %v2298
  %v2536 = vpack.c.b16 %v2301, %v2300
  %v2537 = vpack.c.b16 %v2303, %v2302
  %v2538 = vpack.c.b16 %v2305, %v2304
  %v2539 = vpack.c.b16 %v2307, %v2306
  %v2540 = vpack.c.b16 %v2309, %v2308
  %v2541 = vpack.c.b16 %v2311, %v2310
  %v2542 = vpack.c.b16 %v2313, %v2312
  %v2543 = vpack.c.b16 %v2315, %v2314
  %v2544 = vpack.c.b16 %v2317, %v2316
  %v2545 = vpack.c.b16 %v2319, %v2318
  %v2546 = vpack.c.b16 %v2321, %v2320
  %v2547 = vpack.c.b16 %v2323, %v2322
  %v2548 = vpack.c.b16 %v2325, %v2324
  %v2549 = vpack.c.b16 %v2327, %v2326
  %v2550 = vpack.c.b16 %v2329, %v2328
  %v2551 = vpack.c.b16 %v2331, %v2330
  %v2552 = vpack.c.b16 %v2333, %v2332
  %v2553 = vpack.c.b16 %v2335, %v2334
  %v2554 = vpack.c.b16 %v2337, %v2336
  %v2555 = vpack.c.b16 %v2339, %v2338
  %v2556 = vpack.c.b16 %v2341, %v2340
  %v2557 = vpack.c.b16 %v2343, %v2342
  %v2558 = vpack.c.b16 %v2345, %v2344
  %v2559 = vpack.c.b16 %v2347, %v2346
  %v2560 = vpack.c.b16 %v2349, %v2348
  %v2561 = vpack.c.b16 %v2351, %v2350
  %v2562 = vpack.c.b16 %v2353, %v2352
  %v2563 = vpack.c.b16 %v2355, %v2354
  %v2564 = vpack.c.b16 %v2357, %v2356
  %v2565 = vpack.c.b16 %v2359, %v2358
  %v2566 = vpack.c.b16 %v2361, %v2360
  %v2567 = vpack.c.b16 %v2363, %v2362
  %v2568 = vpack.c.b16 %v2365, %v2364
  %v2569 = vpack.c.b16 %v2367, %v2366
  %v2570 = vpack.c.b16 %v2369, %v2368
  %v2571 = vpack.c.b16 %v2371, %v2370
  %v2572 = vpack.c.b16 %v2373, %v2372
  %v2573 = vpack.c.b16 %v2375, %v2374
  %v2574 = vpack.c.b16 %v2377, %v2376
  %v2575 = vpack.c.b16 %v2379, %v2378
  %v2576 = vpack.c.b16 %v2381, %v2380
  %v2577 = vpack.c.b16 %v2383, %v2382
  %v2578 = vpack.c.b16 %v2385, %v2384
  %v2579 = vpack.c.b16 %v2387, %v2386
  %v2580 = vpack.c.b16 %v2389, %v2388
  %v2581 = vpack.c.b16 %v2391, %v2390
  %v2582 = vpack.c.b16 %v2393, %v2392
  %v2583 = vpack.c.b16 %v2395, %v2394
  %v2584 = vpack.c.b16 %v2397, %v2396
  %v2585 = vpack.c.b16 %v2399, %v2398
  %v2586 = vpack.c.b16 %v2401, %v2400
  %v2587 = vpack.c.b16 %v2403, %v2402
  %v2588 = vpack.c.b16 %v2405, %v2404
  %v2589 = vpack.c.b16 %v2407, %v2406
  %v2590 = vpack.c.b16 %v2409, %v2408
  %v2591 = vpack.c.b16 %v2411, %v2410
  %v2592 = vpack.c.b16 %v2413, %v2412
  %v2593 = vpack.c.b16 %v2415, %v2414
  %v2594 = vpack.c.b16 %v2417, %v2416
  %v2595 = vpack.c.b16 %v2419, %v2418
  %v2596 = vpack.c.b16 %v2421, %v2420
  %v2597 = vpack.c.b16 %v2423, %v2422
  %v2598 = vpack.c.b16 %v2425, %v2424
  %v2599 = vpack.c.b16 %v2427, %v2426
  %v2600 = vpack.c.b16 %v2429, %v2428
  %v2601 = vpack.c.b16 %v2431, %v2430
  %v2602 = vpack.c.b16 %v2433, %v2432
  %v2603 = vpack.c.b16 %v2435, %v2434
  %v2604 = vpack.c.b16 %v2437, %v2436
  %v2605 = vpack.c.b16 %v2439, %v2438
  %v2606 = vpack.c.b16 %v2441, %v2440
  %v2607 = vpack.c.b16 %v2443, %v2442
  %v2608 = vpack.c.b16 %v2445, %v2444
  %v2609 = vpack.c.b16 %v2447, %v2446
  %v2610 = vpack.c.b16 %v2449, %v2448
  %v2611 = vpack.c.b16 %v2451, %v2450
  %v2612 = vpack.c.b16 %v2453, %v2452
  %v2613 = vpack.c.b16 %v2455, %v2454
  %v2614 = vpack.c.b16 %v2457, %v2456
  %v2615 = vpack.c.b16 %v2459, %v2458
  %v2616 = vpack.c.b16 %v2461, %v2460
  %v2617 = vpack.c.b16 %v2463, %v2462
  %v2618 = vpack.c.b16 %v2465, %v2464
  %v2619 = vpack.c.b16 %v2467, %v2466
  %v2620 = vpack.c.b16 %v2469, %v2468
  %v2621 = vpack.c.b16 %v2471, %v2470
  %v2622 = vpack.c.b16 %v2473, %v2472
  %v2623 = vpack.c.b16 %v2475, %v2474
  %v2624 = vpack.c.b16 %v2477, %v2476
  %v2625 = vpack.c.b16 %v2479, %v2478
  %v2626 = vpack.c.b16 %v2481, %v2480
  %v2627 = vpack.c.b16 %v2483, %v2482
  %v2628 = vpack.c.b16 %v2485, %v2484
  %v2629 = vpack.c.b16 %v2487, %v2486
  %v2630 = vpack.c.b16 %v2489, %v2488
  %v2631 = vpack.c.b16 %v2491, %v2490
  %v2632 = vpack.c.b16 %v2493, %v2492
  %v2633 = vpack.c.b16 %v2495, %v2494
  %v2634 = vpack.c.b16 %v2497, %v2496
  %v2635 = vpack.c.b16 %v2499, %v2498
  %v2636 = vpack.c.b16 %v2501, %v2500
  %v2637 = vpack.c.b16 %v2503, %v2502
  %v2638 = vpack.c.b16 %v2505, %v2504
  %v2639 = vpack.c.b16 %v2507, %v2506
  %v2640 = vpack.c.b16 %v2509, %v2508
  %v2641 = vpack.c.b16 %v2511, %v2510
  %v2642 = vpack.c.b16 %v2513, %v2512
  %v2643 = vpack.c.b16 %v2515, %v2514
  %2772 = vmatpush.bf16.msra.mxu0 %v2523
  %2773 = vmatpush.bf16.msra.mxu0 %v2522
  %2774 = vmatpush.bf16.msra.mxu0 %v2521
  %2775 = vmatpush.bf16.msra.mxu0 %v2520
  %2776 = vmatpush.bf16.msra.mxu0 %v2519
  %2777 = vmatpush.bf16.msra.mxu0 %v2518
  %2778 = vmatpush.bf16.msra.mxu0 %v2517
  %2779 = vmatpush.bf16.msra.mxu0 %v2516
  %2780 = vmatmul.bf16.gmra.mxu0 %v1492
  %v2781 = vpop.f32.mrf.mxu0
  %v2782 = vadd.f32 %v567, %v2781
  %v2783 = vpop.f32.mrf.mxu0
  %v2784 = vadd.f32 %v572, %v2783
  %2785 = vmatmul.bf16.gmra.mxu0 %v1508
  %v2786 = vpop.f32.mrf.mxu0
  %v2787 = vadd.f32 %v577, %v2786
  %v2788 = vpop.f32.mrf.mxu0
  %v2789 = vadd.f32 %v582, %v2788
  %2790 = vmatmul.bf16.gmra.mxu0 %v1524
  %v2791 = vpop.f32.mrf.mxu0
  %v2792 = vadd.f32 %v587, %v2791
  %v2793 = vpop.f32.mrf.mxu0
  %v2794 = vadd.f32 %v592, %v2793
  %2795 = vmatmul.bf16.gmra.mxu0 %v1540
  %v2796 = vpop.f32.mrf.mxu0
  %v2797 = vadd.f32 %v597, %v2796
  %v2798 = vpop.f32.mrf.mxu0
  %v2799 = vadd.f32 %v602, %v2798
  %2800 = vmatmul.bf16.gmra.mxu0 %v1556
  %v2801 = vpop.f32.mrf.mxu0
  %v2802 = vadd.f32 %v607, %v2801
  %v2803 = vpop.f32.mrf.mxu0
  %v2804 = vadd.f32 %v612, %v2803
  %2805 = vmatmul.bf16.gmra.mxu0 %v1572
  %v2806 = vpop.f32.mrf.mxu0
  %v2807 = vadd.f32 %v617, %v2806
  %v2808 = vpop.f32.mrf.mxu0
  %v2809 = vadd.f32 %v622, %v2808
  %2810 = vmatmul.bf16.gmra.mxu0 %v1588
  %v2811 = vpop.f32.mrf.mxu0
  %v2812 = vadd.f32 %v627, %v2811
  %v2813 = vpop.f32.mrf.mxu0
  %v2814 = vadd.f32 %v632, %v2813
  %2815 = vmatmul.bf16.gmra.mxu0 %v1604
  %v2816 = vpop.f32.mrf.mxu0
  %v2817 = vadd.f32 %v637, %v2816
  %v2818 = vpop.f32.mrf.mxu0
  %v2819 = vadd.f32 %v642, %v2818
  %2820 = vmatmul.bf16.gmra.mxu0 %v1620
  %v2821 = vpop.f32.mrf.mxu0
  %v2822 = vadd.f32 %v647, %v2821
  %v2823 = vpop.f32.mrf.mxu0
  %v2824 = vadd.f32 %v652, %v2823
  %2825 = vmatmul.bf16.gmra.mxu0 %v1636
  %v2826 = vpop.f32.mrf.mxu0
  %v2827 = vadd.f32 %v657, %v2826
  %v2828 = vpop.f32.mrf.mxu0
  %v2829 = vadd.f32 %v662, %v2828
  %2830 = vmatmul.bf16.gmra.mxu0 %v1652
  %v2831 = vpop.f32.mrf.mxu0
  %v2832 = vadd.f32 %v667, %v2831
  %v2833 = vpop.f32.mrf.mxu0
  %v2834 = vadd.f32 %v672, %v2833
  %2835 = vmatmul.bf16.gmra.mxu0 %v1668
  %v2836 = vpop.f32.mrf.mxu0
  %v2837 = vadd.f32 %v677, %v2836
  %v2838 = vpop.f32.mrf.mxu0
  %v2839 = vadd.f32 %v682, %v2838
  %2840 = vmatmul.bf16.gmra.mxu0 %v1684
  %v2841 = vpop.f32.mrf.mxu0
  %v2842 = vadd.f32 %v687, %v2841
  %v2843 = vpop.f32.mrf.mxu0
  %v2844 = vadd.f32 %v692, %v2843
  %2845 = vmatmul.bf16.gmra.mxu0 %v1700
  %v2846 = vpop.f32.mrf.mxu0
  %v2847 = vadd.f32 %v697, %v2846
  %v2848 = vpop.f32.mrf.mxu0
  %v2849 = vadd.f32 %v702, %v2848
  %2850 = vmatmul.bf16.gmra.mxu0 %v1716
  %v2851 = vpop.f32.mrf.mxu0
  %v2852 = vadd.f32 %v707, %v2851
  %v2853 = vpop.f32.mrf.mxu0
  %v2854 = vadd.f32 %v712, %v2853
  %2855 = vmatmul.bf16.gmra.mxu0 %v1732
  %v2856 = vpop.f32.mrf.mxu0
  %v2857 = vadd.f32 %v717, %v2856
  %v2858 = vpop.f32.mrf.mxu0
  %v2859 = vadd.f32 %v722, %v2858
  %2860 = vdwg.mxu0
  %2861 = vmatpush.bf16.msra.mxu0 %v2531
  %2862 = vmatpush.bf16.msra.mxu0 %v2530
  %2863 = vmatpush.bf16.msra.mxu0 %v2529
  %2864 = vmatpush.bf16.msra.mxu0 %v2528
  %2865 = vmatpush.bf16.msra.mxu0 %v2527
  %2866 = vmatpush.bf16.msra.mxu0 %v2526
  %2867 = vmatpush.bf16.msra.mxu0 %v2525
  %2868 = vmatpush.bf16.msra.mxu0 %v2524
  %2869 = vmatmul.bf16.gmra.mxu0 %v1493
  %v2870 = vpop.f32.mrf.mxu0
  %v2871 = vadd.f32 %v2782, %v2870
  %v2872 = vpop.f32.mrf.mxu0
  %v2873 = vadd.f32 %v2784, %v2872
  %2874 = vmatmul.bf16.gmra.mxu0 %v1509
  %v2875 = vpop.f32.mrf.mxu0
  %v2876 = vadd.f32 %v2787, %v2875
  %v2877 = vpop.f32.mrf.mxu0
  %v2878 = vadd.f32 %v2789, %v2877
  %2879 = vmatmul.bf16.gmra.mxu0 %v1525
  %v2880 = vpop.f32.mrf.mxu0
  %v2881 = vadd.f32 %v2792, %v2880
  %v2882 = vpop.f32.mrf.mxu0
  %v2883 = vadd.f32 %v2794, %v2882
  %2884 = vmatmul.bf16.gmra.mxu0 %v1541
  %v2885 = vpop.f32.mrf.mxu0
  %v2886 = vadd.f32 %v2797, %v2885
  %v2887 = vpop.f32.mrf.mxu0
  %v2888 = vadd.f32 %v2799, %v2887
  %2889 = vmatmul.bf16.gmra.mxu0 %v1557
  %v2890 = vpop.f32.mrf.mxu0
  %v2891 = vadd.f32 %v2802, %v2890
  %v2892 = vpop.f32.mrf.mxu0
  %v2893 = vadd.f32 %v2804, %v2892
  %2894 = vmatmul.bf16.gmra.mxu0 %v1573
  %v2895 = vpop.f32.mrf.mxu0
  %v2896 = vadd.f32 %v2807, %v2895
  %v2897 = vpop.f32.mrf.mxu0
  %v2898 = vadd.f32 %v2809, %v2897
  %2899 = vmatmul.bf16.gmra.mxu0 %v1589
  %v2900 = vpop.f32.mrf.mxu0
  %v2901 = vadd.f32 %v2812, %v2900
  %v2902 = vpop.f32.mrf.mxu0
  %v2903 = vadd.f32 %v2814, %v2902
  %2904 = vmatmul.bf16.gmra.mxu0 %v1605
  %v2905 = vpop.f32.mrf.mxu0
  %v2906 = vadd.f32 %v2817, %v2905
  %v2907 = vpop.f32.mrf.mxu0
  %v2908 = vadd.f32 %v2819, %v2907
  %2909 = vmatmul.bf16.gmra.mxu0 %v1621
  %v2910 = vpop.f32.mrf.mxu0
  %v2911 = vadd.f32 %v2822, %v2910
  %v2912 = vpop.f32.mrf.mxu0
  %v2913 = vadd.f32 %v2824, %v2912
  %2914 = vmatmul.bf16.gmra.mxu0 %v1637
  %v2915 = vpop.f32.mrf.mxu0
  %v2916 = vadd.f32 %v2827, %v2915
  %v2917 = vpop.f32.mrf.mxu0
  %v2918 = vadd.f32 %v2829, %v2917
  %2919 = vmatmul.bf16.gmra.mxu0 %v1653
  %v2920 = vpop.f32.mrf.mxu0
  %v2921 = vadd.f32 %v2832, %v2920
  %v2922 = vpop.f32.mrf.mxu0
  %v2923 = vadd.f32 %v2834, %v2922
  %2924 = vmatmul.bf16.gmra.mxu0 %v1669
  %v2925 = vpop.f32.mrf.mxu0
  %v2926 = vadd.f32 %v2837, %v2925
  %v2927 = vpop.f32.mrf.mxu0
  %v2928 = vadd.f32 %v2839, %v2927
  %2929 = vmatmul.bf16.gmra.mxu0 %v1685
  %v2930 = vpop.f32.mrf.mxu0
  %v2931 = vadd.f32 %v2842, %v2930
  %v2932 = vpop.f32.mrf.mxu0
  %v2933 = vadd.f32 %v2844, %v2932
  %2934 = vmatmul.bf16.gmra.mxu0 %v1701
  %v2935 = vpop.f32.mrf.mxu0
  %v2936 = vadd.f32 %v2847, %v2935
  %v2937 = vpop.f32.mrf.mxu0
  %v2938 = vadd.f32 %v2849, %v2937
  %2939 = vmatmul.bf16.gmra.mxu0 %v1717
  %v2940 = vpop.f32.mrf.mxu0
  %v2941 = vadd.f32 %v2852, %v2940
  %v2942 = vpop.f32.mrf.mxu0
  %v2943 = vadd.f32 %v2854, %v2942
  %2944 = vmatmul.bf16.gmra.mxu0 %v1733
  %v2945 = vpop.f32.mrf.mxu0
  %v2946 = vadd.f32 %v2857, %v2945
  %v2947 = vpop.f32.mrf.mxu0
  %v2948 = vadd.f32 %v2859, %v2947
  %2949 = vdwg.mxu0
  %2950 = vmatpush.bf16.msra.mxu0 %v2539
  %2951 = vmatpush.bf16.msra.mxu0 %v2538
  %2952 = vmatpush.bf16.msra.mxu0 %v2537
  %2953 = vmatpush.bf16.msra.mxu0 %v2536
  %2954 = vmatpush.bf16.msra.mxu0 %v2535
  %2955 = vmatpush.bf16.msra.mxu0 %v2534
  %2956 = vmatpush.bf16.msra.mxu0 %v2533
  %2957 = vmatpush.bf16.msra.mxu0 %v2532
  %2958 = vmatmul.bf16.gmra.mxu0 %v1494
  %v2959 = vpop.f32.mrf.mxu0
  %v2960 = vadd.f32 %v2871, %v2959
  %v2961 = vpop.f32.mrf.mxu0
  %v2962 = vadd.f32 %v2873, %v2961
  %2963 = vmatmul.bf16.gmra.mxu0 %v1510
  %v2964 = vpop.f32.mrf.mxu0
  %v2965 = vadd.f32 %v2876, %v2964
  %v2966 = vpop.f32.mrf.mxu0
  %v2967 = vadd.f32 %v2878, %v2966
  %2968 = vmatmul.bf16.gmra.mxu0 %v1526
  %v2969 = vpop.f32.mrf.mxu0
  %v2970 = vadd.f32 %v2881, %v2969
  %v2971 = vpop.f32.mrf.mxu0
  %v2972 = vadd.f32 %v2883, %v2971
  %2973 = vmatmul.bf16.gmra.mxu0 %v1542
  %v2974 = vpop.f32.mrf.mxu0
  %v2975 = vadd.f32 %v2886, %v2974
  %v2976 = vpop.f32.mrf.mxu0
  %v2977 = vadd.f32 %v2888, %v2976
  %2978 = vmatmul.bf16.gmra.mxu0 %v1558
  %v2979 = vpop.f32.mrf.mxu0
  %v2980 = vadd.f32 %v2891, %v2979
  %v2981 = vpop.f32.mrf.mxu0
  %v2982 = vadd.f32 %v2893, %v2981
  %2983 = vmatmul.bf16.gmra.mxu0 %v1574
  %v2984 = vpop.f32.mrf.mxu0
  %v2985 = vadd.f32 %v2896, %v2984
  %v2986 = vpop.f32.mrf.mxu0
  %v2987 = vadd.f32 %v2898, %v2986
  %2988 = vmatmul.bf16.gmra.mxu0 %v1590
  %v2989 = vpop.f32.mrf.mxu0
  %v2990 = vadd.f32 %v2901, %v2989
  %v2991 = vpop.f32.mrf.mxu0
  %v2992 = vadd.f32 %v2903, %v2991
  %2993 = vmatmul.bf16.gmra.mxu0 %v1606
  %v2994 = vpop.f32.mrf.mxu0
  %v2995 = vadd.f32 %v2906, %v2994
  %v2996 = vpop.f32.mrf.mxu0
  %v2997 = vadd.f32 %v2908, %v2996
  %2998 = vmatmul.bf16.gmra.mxu0 %v1622
  %v2999 = vpop.f32.mrf.mxu0
  %v3000 = vadd.f32 %v2911, %v2999
  %v3001 = vpop.f32.mrf.mxu0
  %v3002 = vadd.f32 %v2913, %v3001
  %3003 = vmatmul.bf16.gmra.mxu0 %v1638
  %v3004 = vpop.f32.mrf.mxu0
  %v3005 = vadd.f32 %v2916, %v3004
  %v3006 = vpop.f32.mrf.mxu0
  %v3007 = vadd.f32 %v2918, %v3006
  %3008 = vmatmul.bf16.gmra.mxu0 %v1654
  %v3009 = vpop.f32.mrf.mxu0
  %v3010 = vadd.f32 %v2921, %v3009
  %v3011 = vpop.f32.mrf.mxu0
  %v3012 = vadd.f32 %v2923, %v3011
  %3013 = vmatmul.bf16.gmra.mxu0 %v1670
  %v3014 = vpop.f32.mrf.mxu0
  %v3015 = vadd.f32 %v2926, %v3014
  %v3016 = vpop.f32.mrf.mxu0
  %v3017 = vadd.f32 %v2928, %v3016
  %3018 = vmatmul.bf16.gmra.mxu0 %v1686
  %v3019 = vpop.f32.mrf.mxu0
  %v3020 = vadd.f32 %v2931, %v3019
  %v3021 = vpop.f32.mrf.mxu0
  %v3022 = vadd.f32 %v2933, %v3021
  %3023 = vmatmul.bf16.gmra.mxu0 %v1702
  %v3024 = vpop.f32.mrf.mxu0
  %v3025 = vadd.f32 %v2936, %v3024
  %v3026 = vpop.f32.mrf.mxu0
  %v3027 = vadd.f32 %v2938, %v3026
  %3028 = vmatmul.bf16.gmra.mxu0 %v1718
  %v3029 = vpop.f32.mrf.mxu0
  %v3030 = vadd.f32 %v2941, %v3029
  %v3031 = vpop.f32.mrf.mxu0
  %v3032 = vadd.f32 %v2943, %v3031
  %3033 = vmatmul.bf16.gmra.mxu0 %v1734
  %v3034 = vpop.f32.mrf.mxu0
  %v3035 = vadd.f32 %v2946, %v3034
  %v3036 = vpop.f32.mrf.mxu0
  %v3037 = vadd.f32 %v2948, %v3036
  %3038 = vdwg.mxu0
  %3039 = vmatpush.bf16.msra.mxu0 %v2547
  %3040 = vmatpush.bf16.msra.mxu0 %v2546
  %3041 = vmatpush.bf16.msra.mxu0 %v2545
  %3042 = vmatpush.bf16.msra.mxu0 %v2544
  %3043 = vmatpush.bf16.msra.mxu0 %v2543
  %3044 = vmatpush.bf16.msra.mxu0 %v2542
  %3045 = vmatpush.bf16.msra.mxu0 %v2541
  %3046 = vmatpush.bf16.msra.mxu0 %v2540
  %3047 = vmatmul.bf16.gmra.mxu0 %v1495
  %v3048 = vpop.f32.mrf.mxu0
  %v3049 = vadd.f32 %v2960, %v3048
  %v3050 = vpop.f32.mrf.mxu0
  %v3051 = vadd.f32 %v2962, %v3050
  %3052 = vmatmul.bf16.gmra.mxu0 %v1511
  %v3053 = vpop.f32.mrf.mxu0
  %v3054 = vadd.f32 %v2965, %v3053
  %v3055 = vpop.f32.mrf.mxu0
  %v3056 = vadd.f32 %v2967, %v3055
  %3057 = vmatmul.bf16.gmra.mxu0 %v1527
  %v3058 = vpop.f32.mrf.mxu0
  %v3059 = vadd.f32 %v2970, %v3058
  %v3060 = vpop.f32.mrf.mxu0
  %v3061 = vadd.f32 %v2972, %v3060
  %3062 = vmatmul.bf16.gmra.mxu0 %v1543
  %v3063 = vpop.f32.mrf.mxu0
  %v3064 = vadd.f32 %v2975, %v3063
  %v3065 = vpop.f32.mrf.mxu0
  %v3066 = vadd.f32 %v2977, %v3065
  %3067 = vmatmul.bf16.gmra.mxu0 %v1559
  %v3068 = vpop.f32.mrf.mxu0
  %v3069 = vadd.f32 %v2980, %v3068
  %v3070 = vpop.f32.mrf.mxu0
  %v3071 = vadd.f32 %v2982, %v3070
  %3072 = vmatmul.bf16.gmra.mxu0 %v1575
  %v3073 = vpop.f32.mrf.mxu0
  %v3074 = vadd.f32 %v2985, %v3073
  %v3075 = vpop.f32.mrf.mxu0
  %v3076 = vadd.f32 %v2987, %v3075
  %3077 = vmatmul.bf16.gmra.mxu0 %v1591
  %v3078 = vpop.f32.mrf.mxu0
  %v3079 = vadd.f32 %v2990, %v3078
  %v3080 = vpop.f32.mrf.mxu0
  %v3081 = vadd.f32 %v2992, %v3080
  %3082 = vmatmul.bf16.gmra.mxu0 %v1607
  %v3083 = vpop.f32.mrf.mxu0
  %v3084 = vadd.f32 %v2995, %v3083
  %v3085 = vpop.f32.mrf.mxu0
  %v3086 = vadd.f32 %v2997, %v3085
  %3087 = vmatmul.bf16.gmra.mxu0 %v1623
  %v3088 = vpop.f32.mrf.mxu0
  %v3089 = vadd.f32 %v3000, %v3088
  %v3090 = vpop.f32.mrf.mxu0
  %v3091 = vadd.f32 %v3002, %v3090
  %3092 = vmatmul.bf16.gmra.mxu0 %v1639
  %v3093 = vpop.f32.mrf.mxu0
  %v3094 = vadd.f32 %v3005, %v3093
  %v3095 = vpop.f32.mrf.mxu0
  %v3096 = vadd.f32 %v3007, %v3095
  %3097 = vmatmul.bf16.gmra.mxu0 %v1655
  %v3098 = vpop.f32.mrf.mxu0
  %v3099 = vadd.f32 %v3010, %v3098
  %v3100 = vpop.f32.mrf.mxu0
  %v3101 = vadd.f32 %v3012, %v3100
  %3102 = vmatmul.bf16.gmra.mxu0 %v1671
  %v3103 = vpop.f32.mrf.mxu0
  %v3104 = vadd.f32 %v3015, %v3103
  %v3105 = vpop.f32.mrf.mxu0
  %v3106 = vadd.f32 %v3017, %v3105
  %3107 = vmatmul.bf16.gmra.mxu0 %v1687
  %v3108 = vpop.f32.mrf.mxu0
  %v3109 = vadd.f32 %v3020, %v3108
  %v3110 = vpop.f32.mrf.mxu0
  %v3111 = vadd.f32 %v3022, %v3110
  %3112 = vmatmul.bf16.gmra.mxu0 %v1703
  %v3113 = vpop.f32.mrf.mxu0
  %v3114 = vadd.f32 %v3025, %v3113
  %v3115 = vpop.f32.mrf.mxu0
  %v3116 = vadd.f32 %v3027, %v3115
  %3117 = vmatmul.bf16.gmra.mxu0 %v1719
  %v3118 = vpop.f32.mrf.mxu0
  %v3119 = vadd.f32 %v3030, %v3118
  %v3120 = vpop.f32.mrf.mxu0
  %v3121 = vadd.f32 %v3032, %v3120
  %3122 = vmatmul.bf16.gmra.mxu0 %v1735
  %v3123 = vpop.f32.mrf.mxu0
  %v3124 = vadd.f32 %v3035, %v3123
  %v3125 = vpop.f32.mrf.mxu0
  %v3126 = vadd.f32 %v3037, %v3125
  %3127 = vdwg.mxu0
  %3128 = vmatpush.bf16.msra.mxu0 %v2555
  %3129 = vmatpush.bf16.msra.mxu0 %v2554
  %3130 = vmatpush.bf16.msra.mxu0 %v2553
  %3131 = vmatpush.bf16.msra.mxu0 %v2552
  %3132 = vmatpush.bf16.msra.mxu0 %v2551
  %3133 = vmatpush.bf16.msra.mxu0 %v2550
  %3134 = vmatpush.bf16.msra.mxu0 %v2549
  %3135 = vmatpush.bf16.msra.mxu0 %v2548
  %3136 = vmatmul.bf16.gmra.mxu0 %v1496
  %v3137 = vpop.f32.mrf.mxu0
  %v3138 = vadd.f32 %v3049, %v3137
  %v3139 = vpop.f32.mrf.mxu0
  %v3140 = vadd.f32 %v3051, %v3139
  %3141 = vmatmul.bf16.gmra.mxu0 %v1512
  %v3142 = vpop.f32.mrf.mxu0
  %v3143 = vadd.f32 %v3054, %v3142
  %v3144 = vpop.f32.mrf.mxu0
  %v3145 = vadd.f32 %v3056, %v3144
  %3146 = vmatmul.bf16.gmra.mxu0 %v1528
  %v3147 = vpop.f32.mrf.mxu0
  %v3148 = vadd.f32 %v3059, %v3147
  %v3149 = vpop.f32.mrf.mxu0
  %v3150 = vadd.f32 %v3061, %v3149
  %3151 = vmatmul.bf16.gmra.mxu0 %v1544
  %v3152 = vpop.f32.mrf.mxu0
  %v3153 = vadd.f32 %v3064, %v3152
  %v3154 = vpop.f32.mrf.mxu0
  %v3155 = vadd.f32 %v3066, %v3154
  %3156 = vmatmul.bf16.gmra.mxu0 %v1560
  %v3157 = vpop.f32.mrf.mxu0
  %v3158 = vadd.f32 %v3069, %v3157
  %v3159 = vpop.f32.mrf.mxu0
  %v3160 = vadd.f32 %v3071, %v3159
  %3161 = vmatmul.bf16.gmra.mxu0 %v1576
  %v3162 = vpop.f32.mrf.mxu0
  %v3163 = vadd.f32 %v3074, %v3162
  %v3164 = vpop.f32.mrf.mxu0
  %v3165 = vadd.f32 %v3076, %v3164
  %3166 = vmatmul.bf16.gmra.mxu0 %v1592
  %v3167 = vpop.f32.mrf.mxu0
  %v3168 = vadd.f32 %v3079, %v3167
  %v3169 = vpop.f32.mrf.mxu0
  %v3170 = vadd.f32 %v3081, %v3169
  %3171 = vmatmul.bf16.gmra.mxu0 %v1608
  %v3172 = vpop.f32.mrf.mxu0
  %v3173 = vadd.f32 %v3084, %v3172
  %v3174 = vpop.f32.mrf.mxu0
  %v3175 = vadd.f32 %v3086, %v3174
  %3176 = vmatmul.bf16.gmra.mxu0 %v1624
  %v3177 = vpop.f32.mrf.mxu0
  %v3178 = vadd.f32 %v3089, %v3177
  %v3179 = vpop.f32.mrf.mxu0
  %v3180 = vadd.f32 %v3091, %v3179
  %3181 = vmatmul.bf16.gmra.mxu0 %v1640
  %v3182 = vpop.f32.mrf.mxu0
  %v3183 = vadd.f32 %v3094, %v3182
  %v3184 = vpop.f32.mrf.mxu0
  %v3185 = vadd.f32 %v3096, %v3184
  %3186 = vmatmul.bf16.gmra.mxu0 %v1656
  %v3187 = vpop.f32.mrf.mxu0
  %v3188 = vadd.f32 %v3099, %v3187
  %v3189 = vpop.f32.mrf.mxu0
  %v3190 = vadd.f32 %v3101, %v3189
  %3191 = vmatmul.bf16.gmra.mxu0 %v1672
  %v3192 = vpop.f32.mrf.mxu0
  %v3193 = vadd.f32 %v3104, %v3192
  %v3194 = vpop.f32.mrf.mxu0
  %v3195 = vadd.f32 %v3106, %v3194
  %3196 = vmatmul.bf16.gmra.mxu0 %v1688
  %v3197 = vpop.f32.mrf.mxu0
  %v3198 = vadd.f32 %v3109, %v3197
  %v3199 = vpop.f32.mrf.mxu0
  %v3200 = vadd.f32 %v3111, %v3199
  %3201 = vmatmul.bf16.gmra.mxu0 %v1704
  %v3202 = vpop.f32.mrf.mxu0
  %v3203 = vadd.f32 %v3114, %v3202
  %v3204 = vpop.f32.mrf.mxu0
  %v3205 = vadd.f32 %v3116, %v3204
  %3206 = vmatmul.bf16.gmra.mxu0 %v1720
  %v3207 = vpop.f32.mrf.mxu0
  %v3208 = vadd.f32 %v3119, %v3207
  %v3209 = vpop.f32.mrf.mxu0
  %v3210 = vadd.f32 %v3121, %v3209
  %3211 = vmatmul.bf16.gmra.mxu0 %v1736
  %v3212 = vpop.f32.mrf.mxu0
  %v3213 = vadd.f32 %v3124, %v3212
  %v3214 = vpop.f32.mrf.mxu0
  %v3215 = vadd.f32 %v3126, %v3214
  %3216 = vdwg.mxu0
  %3217 = vmatpush.bf16.msra.mxu0 %v2563
  %3218 = vmatpush.bf16.msra.mxu0 %v2562
  %3219 = vmatpush.bf16.msra.mxu0 %v2561
  %3220 = vmatpush.bf16.msra.mxu0 %v2560
  %3221 = vmatpush.bf16.msra.mxu0 %v2559
  %3222 = vmatpush.bf16.msra.mxu0 %v2558
  %3223 = vmatpush.bf16.msra.mxu0 %v2557
  %3224 = vmatpush.bf16.msra.mxu0 %v2556
  %3225 = vmatmul.bf16.gmra.mxu0 %v1497
  %v3226 = vpop.f32.mrf.mxu0
  %v3227 = vadd.f32 %v3138, %v3226
  %v3228 = vpop.f32.mrf.mxu0
  %v3229 = vadd.f32 %v3140, %v3228
  %3230 = vmatmul.bf16.gmra.mxu0 %v1513
  %v3231 = vpop.f32.mrf.mxu0
  %v3232 = vadd.f32 %v3143, %v3231
  %v3233 = vpop.f32.mrf.mxu0
  %v3234 = vadd.f32 %v3145, %v3233
  %3235 = vmatmul.bf16.gmra.mxu0 %v1529
  %v3236 = vpop.f32.mrf.mxu0
  %v3237 = vadd.f32 %v3148, %v3236
  %v3238 = vpop.f32.mrf.mxu0
  %v3239 = vadd.f32 %v3150, %v3238
  %3240 = vmatmul.bf16.gmra.mxu0 %v1545
  %v3241 = vpop.f32.mrf.mxu0
  %v3242 = vadd.f32 %v3153, %v3241
  %v3243 = vpop.f32.mrf.mxu0
  %v3244 = vadd.f32 %v3155, %v3243
  %3245 = vmatmul.bf16.gmra.mxu0 %v1561
  %v3246 = vpop.f32.mrf.mxu0
  %v3247 = vadd.f32 %v3158, %v3246
  %v3248 = vpop.f32.mrf.mxu0
  %v3249 = vadd.f32 %v3160, %v3248
  %3250 = vmatmul.bf16.gmra.mxu0 %v1577
  %v3251 = vpop.f32.mrf.mxu0
  %v3252 = vadd.f32 %v3163, %v3251
  %v3253 = vpop.f32.mrf.mxu0
  %v3254 = vadd.f32 %v3165, %v3253
  %3255 = vmatmul.bf16.gmra.mxu0 %v1593
  %v3256 = vpop.f32.mrf.mxu0
  %v3257 = vadd.f32 %v3168, %v3256
  %v3258 = vpop.f32.mrf.mxu0
  %v3259 = vadd.f32 %v3170, %v3258
  %3260 = vmatmul.bf16.gmra.mxu0 %v1609
  %v3261 = vpop.f32.mrf.mxu0
  %v3262 = vadd.f32 %v3173, %v3261
  %v3263 = vpop.f32.mrf.mxu0
  %v3264 = vadd.f32 %v3175, %v3263
  %3265 = vmatmul.bf16.gmra.mxu0 %v1625
  %v3266 = vpop.f32.mrf.mxu0
  %v3267 = vadd.f32 %v3178, %v3266
  %v3268 = vpop.f32.mrf.mxu0
  %v3269 = vadd.f32 %v3180, %v3268
  %3270 = vmatmul.bf16.gmra.mxu0 %v1641
  %v3271 = vpop.f32.mrf.mxu0
  %v3272 = vadd.f32 %v3183, %v3271
  %v3273 = vpop.f32.mrf.mxu0
  %v3274 = vadd.f32 %v3185, %v3273
  %3275 = vmatmul.bf16.gmra.mxu0 %v1657
  %v3276 = vpop.f32.mrf.mxu0
  %v3277 = vadd.f32 %v3188, %v3276
  %v3278 = vpop.f32.mrf.mxu0
  %v3279 = vadd.f32 %v3190, %v3278
  %3280 = vmatmul.bf16.gmra.mxu0 %v1673
  %v3281 = vpop.f32.mrf.mxu0
  %v3282 = vadd.f32 %v3193, %v3281
  %v3283 = vpop.f32.mrf.mxu0
  %v3284 = vadd.f32 %v3195, %v3283
  %3285 = vmatmul.bf16.gmra.mxu0 %v1689
  %v3286 = vpop.f32.mrf.mxu0
  %v3287 = vadd.f32 %v3198, %v3286
  %v3288 = vpop.f32.mrf.mxu0
  %v3289 = vadd.f32 %v3200, %v3288
  %3290 = vmatmul.bf16.gmra.mxu0 %v1705
  %v3291 = vpop.f32.mrf.mxu0
  %v3292 = vadd.f32 %v3203, %v3291
  %v3293 = vpop.f32.mrf.mxu0
  %v3294 = vadd.f32 %v3205, %v3293
  %3295 = vmatmul.bf16.gmra.mxu0 %v1721
  %v3296 = vpop.f32.mrf.mxu0
  %v3297 = vadd.f32 %v3208, %v3296
  %v3298 = vpop.f32.mrf.mxu0
  %v3299 = vadd.f32 %v3210, %v3298
  %3300 = vmatmul.bf16.gmra.mxu0 %v1737
  %v3301 = vpop.f32.mrf.mxu0
  %v3302 = vadd.f32 %v3213, %v3301
  %v3303 = vpop.f32.mrf.mxu0
  %v3304 = vadd.f32 %v3215, %v3303
  %3305 = vdwg.mxu0
  %3306 = vmatpush.bf16.msra.mxu0 %v2571
  %3307 = vmatpush.bf16.msra.mxu0 %v2570
  %3308 = vmatpush.bf16.msra.mxu0 %v2569
  %3309 = vmatpush.bf16.msra.mxu0 %v2568
  %3310 = vmatpush.bf16.msra.mxu0 %v2567
  %3311 = vmatpush.bf16.msra.mxu0 %v2566
  %3312 = vmatpush.bf16.msra.mxu0 %v2565
  %3313 = vmatpush.bf16.msra.mxu0 %v2564
  %3314 = vmatmul.bf16.gmra.mxu0 %v1498
  %v3315 = vpop.f32.mrf.mxu0
  %v3316 = vadd.f32 %v3227, %v3315
  %v3317 = vpop.f32.mrf.mxu0
  %v3318 = vadd.f32 %v3229, %v3317
  %3319 = vmatmul.bf16.gmra.mxu0 %v1514
  %v3320 = vpop.f32.mrf.mxu0
  %v3321 = vadd.f32 %v3232, %v3320
  %v3322 = vpop.f32.mrf.mxu0
  %v3323 = vadd.f32 %v3234, %v3322
  %3324 = vmatmul.bf16.gmra.mxu0 %v1530
  %v3325 = vpop.f32.mrf.mxu0
  %v3326 = vadd.f32 %v3237, %v3325
  %v3327 = vpop.f32.mrf.mxu0
  %v3328 = vadd.f32 %v3239, %v3327
  %3329 = vmatmul.bf16.gmra.mxu0 %v1546
  %v3330 = vpop.f32.mrf.mxu0
  %v3331 = vadd.f32 %v3242, %v3330
  %v3332 = vpop.f32.mrf.mxu0
  %v3333 = vadd.f32 %v3244, %v3332
  %3334 = vmatmul.bf16.gmra.mxu0 %v1562
  %v3335 = vpop.f32.mrf.mxu0
  %v3336 = vadd.f32 %v3247, %v3335
  %v3337 = vpop.f32.mrf.mxu0
  %v3338 = vadd.f32 %v3249, %v3337
  %3339 = vmatmul.bf16.gmra.mxu0 %v1578
  %v3340 = vpop.f32.mrf.mxu0
  %v3341 = vadd.f32 %v3252, %v3340
  %v3342 = vpop.f32.mrf.mxu0
  %v3343 = vadd.f32 %v3254, %v3342
  %3344 = vmatmul.bf16.gmra.mxu0 %v1594
  %v3345 = vpop.f32.mrf.mxu0
  %v3346 = vadd.f32 %v3257, %v3345
  %v3347 = vpop.f32.mrf.mxu0
  %v3348 = vadd.f32 %v3259, %v3347
  %3349 = vmatmul.bf16.gmra.mxu0 %v1610
  %v3350 = vpop.f32.mrf.mxu0
  %v3351 = vadd.f32 %v3262, %v3350
  %v3352 = vpop.f32.mrf.mxu0
  %v3353 = vadd.f32 %v3264, %v3352
  %3354 = vmatmul.bf16.gmra.mxu0 %v1626
  %v3355 = vpop.f32.mrf.mxu0
  %v3356 = vadd.f32 %v3267, %v3355
  %v3357 = vpop.f32.mrf.mxu0
  %v3358 = vadd.f32 %v3269, %v3357
  %3359 = vmatmul.bf16.gmra.mxu0 %v1642
  %v3360 = vpop.f32.mrf.mxu0
  %v3361 = vadd.f32 %v3272, %v3360
  %v3362 = vpop.f32.mrf.mxu0
  %v3363 = vadd.f32 %v3274, %v3362
  %3364 = vmatmul.bf16.gmra.mxu0 %v1658
  %v3365 = vpop.f32.mrf.mxu0
  %v3366 = vadd.f32 %v3277, %v3365
  %v3367 = vpop.f32.mrf.mxu0
  %v3368 = vadd.f32 %v3279, %v3367
  %3369 = vmatmul.bf16.gmra.mxu0 %v1674
  %v3370 = vpop.f32.mrf.mxu0
  %v3371 = vadd.f32 %v3282, %v3370
  %v3372 = vpop.f32.mrf.mxu0
  %v3373 = vadd.f32 %v3284, %v3372
  %3374 = vmatmul.bf16.gmra.mxu0 %v1690
  %v3375 = vpop.f32.mrf.mxu0
  %v3376 = vadd.f32 %v3287, %v3375
  %v3377 = vpop.f32.mrf.mxu0
  %v3378 = vadd.f32 %v3289, %v3377
  %3379 = vmatmul.bf16.gmra.mxu0 %v1706
  %v3380 = vpop.f32.mrf.mxu0
  %v3381 = vadd.f32 %v3292, %v3380
  %v3382 = vpop.f32.mrf.mxu0
  %v3383 = vadd.f32 %v3294, %v3382
  %3384 = vmatmul.bf16.gmra.mxu0 %v1722
  %v3385 = vpop.f32.mrf.mxu0
  %v3386 = vadd.f32 %v3297, %v3385
  %v3387 = vpop.f32.mrf.mxu0
  %v3388 = vadd.f32 %v3299, %v3387
  %3389 = vmatmul.bf16.gmra.mxu0 %v1738
  %v3390 = vpop.f32.mrf.mxu0
  %v3391 = vadd.f32 %v3302, %v3390
  %v3392 = vpop.f32.mrf.mxu0
  %v3393 = vadd.f32 %v3304, %v3392
  %3394 = vdwg.mxu0
  %3395 = vmatpush.bf16.msra.mxu0 %v2579
  %3396 = vmatpush.bf16.msra.mxu0 %v2578
  %3397 = vmatpush.bf16.msra.mxu0 %v2577
  %3398 = vmatpush.bf16.msra.mxu0 %v2576
  %3399 = vmatpush.bf16.msra.mxu0 %v2575
  %3400 = vmatpush.bf16.msra.mxu0 %v2574
  %3401 = vmatpush.bf16.msra.mxu0 %v2573
  %3402 = vmatpush.bf16.msra.mxu0 %v2572
  %3403 = vmatmul.bf16.gmra.mxu0 %v1499
  %v3404 = vpop.f32.mrf.mxu0
  %v3405 = vadd.f32 %v3316, %v3404
  %v3406 = vpop.f32.mrf.mxu0
  %v3407 = vadd.f32 %v3318, %v3406
  %3408 = vmatmul.bf16.gmra.mxu0 %v1515
  %v3409 = vpop.f32.mrf.mxu0
  %v3410 = vadd.f32 %v3321, %v3409
  %v3411 = vpop.f32.mrf.mxu0
  %v3412 = vadd.f32 %v3323, %v3411
  %3413 = vmatmul.bf16.gmra.mxu0 %v1531
  %v3414 = vpop.f32.mrf.mxu0
  %v3415 = vadd.f32 %v3326, %v3414
  %v3416 = vpop.f32.mrf.mxu0
  %v3417 = vadd.f32 %v3328, %v3416
  %3418 = vmatmul.bf16.gmra.mxu0 %v1547
  %v3419 = vpop.f32.mrf.mxu0
  %v3420 = vadd.f32 %v3331, %v3419
  %v3421 = vpop.f32.mrf.mxu0
  %v3422 = vadd.f32 %v3333, %v3421
  %3423 = vmatmul.bf16.gmra.mxu0 %v1563
  %v3424 = vpop.f32.mrf.mxu0
  %v3425 = vadd.f32 %v3336, %v3424
  %v3426 = vpop.f32.mrf.mxu0
  %v3427 = vadd.f32 %v3338, %v3426
  %3428 = vmatmul.bf16.gmra.mxu0 %v1579
  %v3429 = vpop.f32.mrf.mxu0
  %v3430 = vadd.f32 %v3341, %v3429
  %v3431 = vpop.f32.mrf.mxu0
  %v3432 = vadd.f32 %v3343, %v3431
  %3433 = vmatmul.bf16.gmra.mxu0 %v1595
  %v3434 = vpop.f32.mrf.mxu0
  %v3435 = vadd.f32 %v3346, %v3434
  %v3436 = vpop.f32.mrf.mxu0
  %v3437 = vadd.f32 %v3348, %v3436
  %3438 = vmatmul.bf16.gmra.mxu0 %v1611
  %v3439 = vpop.f32.mrf.mxu0
  %v3440 = vadd.f32 %v3351, %v3439
  %v3441 = vpop.f32.mrf.mxu0
  %v3442 = vadd.f32 %v3353, %v3441
  %3443 = vmatmul.bf16.gmra.mxu0 %v1627
  %v3444 = vpop.f32.mrf.mxu0
  %v3445 = vadd.f32 %v3356, %v3444
  %v3446 = vpop.f32.mrf.mxu0
  %v3447 = vadd.f32 %v3358, %v3446
  %3448 = vmatmul.bf16.gmra.mxu0 %v1643
  %v3449 = vpop.f32.mrf.mxu0
  %v3450 = vadd.f32 %v3361, %v3449
  %v3451 = vpop.f32.mrf.mxu0
  %v3452 = vadd.f32 %v3363, %v3451
  %3453 = vmatmul.bf16.gmra.mxu0 %v1659
  %v3454 = vpop.f32.mrf.mxu0
  %v3455 = vadd.f32 %v3366, %v3454
  %v3456 = vpop.f32.mrf.mxu0
  %v3457 = vadd.f32 %v3368, %v3456
  %3458 = vmatmul.bf16.gmra.mxu0 %v1675
  %v3459 = vpop.f32.mrf.mxu0
  %v3460 = vadd.f32 %v3371, %v3459
  %v3461 = vpop.f32.mrf.mxu0
  %v3462 = vadd.f32 %v3373, %v3461
  %3463 = vmatmul.bf16.gmra.mxu0 %v1691
  %v3464 = vpop.f32.mrf.mxu0
  %v3465 = vadd.f32 %v3376, %v3464
  %v3466 = vpop.f32.mrf.mxu0
  %v3467 = vadd.f32 %v3378, %v3466
  %3468 = vmatmul.bf16.gmra.mxu0 %v1707
  %v3469 = vpop.f32.mrf.mxu0
  %v3470 = vadd.f32 %v3381, %v3469
  %v3471 = vpop.f32.mrf.mxu0
  %v3472 = vadd.f32 %v3383, %v3471
  %3473 = vmatmul.bf16.gmra.mxu0 %v1723
  %v3474 = vpop.f32.mrf.mxu0
  %v3475 = vadd.f32 %v3386, %v3474
  %v3476 = vpop.f32.mrf.mxu0
  %v3477 = vadd.f32 %v3388, %v3476
  %3478 = vmatmul.bf16.gmra.mxu0 %v1739
  %v3479 = vpop.f32.mrf.mxu0
  %v3480 = vadd.f32 %v3391, %v3479
  %v3481 = vpop.f32.mrf.mxu0
  %v3482 = vadd.f32 %v3393, %v3481
  %3483 = vdwg.mxu0
  %3484 = vmatpush.bf16.msra.mxu0 %v2587
  %3485 = vmatpush.bf16.msra.mxu0 %v2586
  %3486 = vmatpush.bf16.msra.mxu0 %v2585
  %3487 = vmatpush.bf16.msra.mxu0 %v2584
  %3488 = vmatpush.bf16.msra.mxu0 %v2583
  %3489 = vmatpush.bf16.msra.mxu0 %v2582
  %3490 = vmatpush.bf16.msra.mxu0 %v2581
  %3491 = vmatpush.bf16.msra.mxu0 %v2580
  %3492 = vmatmul.bf16.gmra.mxu0 %v1500
  %v3493 = vpop.f32.mrf.mxu0
  %v3494 = vadd.f32 %v3405, %v3493
  %v3495 = vpop.f32.mrf.mxu0
  %v3496 = vadd.f32 %v3407, %v3495
  %3497 = vmatmul.bf16.gmra.mxu0 %v1516
  %v3498 = vpop.f32.mrf.mxu0
  %v3499 = vadd.f32 %v3410, %v3498
  %v3500 = vpop.f32.mrf.mxu0
  %v3501 = vadd.f32 %v3412, %v3500
  %3502 = vmatmul.bf16.gmra.mxu0 %v1532
  %v3503 = vpop.f32.mrf.mxu0
  %v3504 = vadd.f32 %v3415, %v3503
  %v3505 = vpop.f32.mrf.mxu0
  %v3506 = vadd.f32 %v3417, %v3505
  %3507 = vmatmul.bf16.gmra.mxu0 %v1548
  %v3508 = vpop.f32.mrf.mxu0
  %v3509 = vadd.f32 %v3420, %v3508
  %v3510 = vpop.f32.mrf.mxu0
  %v3511 = vadd.f32 %v3422, %v3510
  %3512 = vmatmul.bf16.gmra.mxu0 %v1564
  %v3513 = vpop.f32.mrf.mxu0
  %v3514 = vadd.f32 %v3425, %v3513
  %v3515 = vpop.f32.mrf.mxu0
  %v3516 = vadd.f32 %v3427, %v3515
  %3517 = vmatmul.bf16.gmra.mxu0 %v1580
  %v3518 = vpop.f32.mrf.mxu0
  %v3519 = vadd.f32 %v3430, %v3518
  %v3520 = vpop.f32.mrf.mxu0
  %v3521 = vadd.f32 %v3432, %v3520
  %3522 = vmatmul.bf16.gmra.mxu0 %v1596
  %v3523 = vpop.f32.mrf.mxu0
  %v3524 = vadd.f32 %v3435, %v3523
  %v3525 = vpop.f32.mrf.mxu0
  %v3526 = vadd.f32 %v3437, %v3525
  %3527 = vmatmul.bf16.gmra.mxu0 %v1612
  %v3528 = vpop.f32.mrf.mxu0
  %v3529 = vadd.f32 %v3440, %v3528
  %v3530 = vpop.f32.mrf.mxu0
  %v3531 = vadd.f32 %v3442, %v3530
  %3532 = vmatmul.bf16.gmra.mxu0 %v1628
  %v3533 = vpop.f32.mrf.mxu0
  %v3534 = vadd.f32 %v3445, %v3533
  %v3535 = vpop.f32.mrf.mxu0
  %v3536 = vadd.f32 %v3447, %v3535
  %3537 = vmatmul.bf16.gmra.mxu0 %v1644
  %v3538 = vpop.f32.mrf.mxu0
  %v3539 = vadd.f32 %v3450, %v3538
  %v3540 = vpop.f32.mrf.mxu0
  %v3541 = vadd.f32 %v3452, %v3540
  %3542 = vmatmul.bf16.gmra.mxu0 %v1660
  %v3543 = vpop.f32.mrf.mxu0
  %v3544 = vadd.f32 %v3455, %v3543
  %v3545 = vpop.f32.mrf.mxu0
  %v3546 = vadd.f32 %v3457, %v3545
  %3547 = vmatmul.bf16.gmra.mxu0 %v1676
  %v3548 = vpop.f32.mrf.mxu0
  %v3549 = vadd.f32 %v3460, %v3548
  %v3550 = vpop.f32.mrf.mxu0
  %v3551 = vadd.f32 %v3462, %v3550
  %3552 = vmatmul.bf16.gmra.mxu0 %v1692
  %v3553 = vpop.f32.mrf.mxu0
  %v3554 = vadd.f32 %v3465, %v3553
  %v3555 = vpop.f32.mrf.mxu0
  %v3556 = vadd.f32 %v3467, %v3555
  %3557 = vmatmul.bf16.gmra.mxu0 %v1708
  %v3558 = vpop.f32.mrf.mxu0
  %v3559 = vadd.f32 %v3470, %v3558
  %v3560 = vpop.f32.mrf.mxu0
  %v3561 = vadd.f32 %v3472, %v3560
  %3562 = vmatmul.bf16.gmra.mxu0 %v1724
  %v3563 = vpop.f32.mrf.mxu0
  %v3564 = vadd.f32 %v3475, %v3563
  %v3565 = vpop.f32.mrf.mxu0
  %v3566 = vadd.f32 %v3477, %v3565
  %3567 = vmatmul.bf16.gmra.mxu0 %v1740
  %v3568 = vpop.f32.mrf.mxu0
  %v3569 = vadd.f32 %v3480, %v3568
  %v3570 = vpop.f32.mrf.mxu0
  %v3571 = vadd.f32 %v3482, %v3570
  %3572 = vdwg.mxu0
  %3573 = vmatpush.bf16.msra.mxu0 %v2595
  %3574 = vmatpush.bf16.msra.mxu0 %v2594
  %3575 = vmatpush.bf16.msra.mxu0 %v2593
  %3576 = vmatpush.bf16.msra.mxu0 %v2592
  %3577 = vmatpush.bf16.msra.mxu0 %v2591
  %3578 = vmatpush.bf16.msra.mxu0 %v2590
  %3579 = vmatpush.bf16.msra.mxu0 %v2589
  %3580 = vmatpush.bf16.msra.mxu0 %v2588
  %3581 = vmatmul.bf16.gmra.mxu0 %v1501
  %v3582 = vpop.f32.mrf.mxu0
  %v3583 = vadd.f32 %v3494, %v3582
  %v3584 = vpop.f32.mrf.mxu0
  %v3585 = vadd.f32 %v3496, %v3584
  %3586 = vmatmul.bf16.gmra.mxu0 %v1517
  %v3587 = vpop.f32.mrf.mxu0
  %v3588 = vadd.f32 %v3499, %v3587
  %v3589 = vpop.f32.mrf.mxu0
  %v3590 = vadd.f32 %v3501, %v3589
  %3591 = vmatmul.bf16.gmra.mxu0 %v1533
  %v3592 = vpop.f32.mrf.mxu0
  %v3593 = vadd.f32 %v3504, %v3592
  %v3594 = vpop.f32.mrf.mxu0
  %v3595 = vadd.f32 %v3506, %v3594
  %3596 = vmatmul.bf16.gmra.mxu0 %v1549
  %v3597 = vpop.f32.mrf.mxu0
  %v3598 = vadd.f32 %v3509, %v3597
  %v3599 = vpop.f32.mrf.mxu0
  %v3600 = vadd.f32 %v3511, %v3599
  %3601 = vmatmul.bf16.gmra.mxu0 %v1565
  %v3602 = vpop.f32.mrf.mxu0
  %v3603 = vadd.f32 %v3514, %v3602
  %v3604 = vpop.f32.mrf.mxu0
  %v3605 = vadd.f32 %v3516, %v3604
  %3606 = vmatmul.bf16.gmra.mxu0 %v1581
  %v3607 = vpop.f32.mrf.mxu0
  %v3608 = vadd.f32 %v3519, %v3607
  %v3609 = vpop.f32.mrf.mxu0
  %v3610 = vadd.f32 %v3521, %v3609
  %3611 = vmatmul.bf16.gmra.mxu0 %v1597
  %v3612 = vpop.f32.mrf.mxu0
  %v3613 = vadd.f32 %v3524, %v3612
  %v3614 = vpop.f32.mrf.mxu0
  %v3615 = vadd.f32 %v3526, %v3614
  %3616 = vmatmul.bf16.gmra.mxu0 %v1613
  %v3617 = vpop.f32.mrf.mxu0
  %v3618 = vadd.f32 %v3529, %v3617
  %v3619 = vpop.f32.mrf.mxu0
  %v3620 = vadd.f32 %v3531, %v3619
  %3621 = vmatmul.bf16.gmra.mxu0 %v1629
  %v3622 = vpop.f32.mrf.mxu0
  %v3623 = vadd.f32 %v3534, %v3622
  %v3624 = vpop.f32.mrf.mxu0
  %v3625 = vadd.f32 %v3536, %v3624
  %3626 = vmatmul.bf16.gmra.mxu0 %v1645
  %v3627 = vpop.f32.mrf.mxu0
  %v3628 = vadd.f32 %v3539, %v3627
  %v3629 = vpop.f32.mrf.mxu0
  %v3630 = vadd.f32 %v3541, %v3629
  %3631 = vmatmul.bf16.gmra.mxu0 %v1661
  %v3632 = vpop.f32.mrf.mxu0
  %v3633 = vadd.f32 %v3544, %v3632
  %v3634 = vpop.f32.mrf.mxu0
  %v3635 = vadd.f32 %v3546, %v3634
  %3636 = vmatmul.bf16.gmra.mxu0 %v1677
  %v3637 = vpop.f32.mrf.mxu0
  %v3638 = vadd.f32 %v3549, %v3637
  %v3639 = vpop.f32.mrf.mxu0
  %v3640 = vadd.f32 %v3551, %v3639
  %3641 = vmatmul.bf16.gmra.mxu0 %v1693
  %v3642 = vpop.f32.mrf.mxu0
  %v3643 = vadd.f32 %v3554, %v3642
  %v3644 = vpop.f32.mrf.mxu0
  %v3645 = vadd.f32 %v3556, %v3644
  %3646 = vmatmul.bf16.gmra.mxu0 %v1709
  %v3647 = vpop.f32.mrf.mxu0
  %v3648 = vadd.f32 %v3559, %v3647
  %v3649 = vpop.f32.mrf.mxu0
  %v3650 = vadd.f32 %v3561, %v3649
  %3651 = vmatmul.bf16.gmra.mxu0 %v1725
  %v3652 = vpop.f32.mrf.mxu0
  %v3653 = vadd.f32 %v3564, %v3652
  %v3654 = vpop.f32.mrf.mxu0
  %v3655 = vadd.f32 %v3566, %v3654
  %3656 = vmatmul.bf16.gmra.mxu0 %v1741
  %v3657 = vpop.f32.mrf.mxu0
  %v3658 = vadd.f32 %v3569, %v3657
  %v3659 = vpop.f32.mrf.mxu0
  %v3660 = vadd.f32 %v3571, %v3659
  %3661 = vdwg.mxu0
  %3662 = vmatpush.bf16.msra.mxu0 %v2603
  %3663 = vmatpush.bf16.msra.mxu0 %v2602
  %3664 = vmatpush.bf16.msra.mxu0 %v2601
  %3665 = vmatpush.bf16.msra.mxu0 %v2600
  %3666 = vmatpush.bf16.msra.mxu0 %v2599
  %3667 = vmatpush.bf16.msra.mxu0 %v2598
  %3668 = vmatpush.bf16.msra.mxu0 %v2597
  %3669 = vmatpush.bf16.msra.mxu0 %v2596
  %3670 = vmatmul.bf16.gmra.mxu0 %v1502
  %v3671 = vpop.f32.mrf.mxu0
  %v3672 = vadd.f32 %v3583, %v3671
  %v3673 = vpop.f32.mrf.mxu0
  %v3674 = vadd.f32 %v3585, %v3673
  %3675 = vmatmul.bf16.gmra.mxu0 %v1518
  %v3676 = vpop.f32.mrf.mxu0
  %v3677 = vadd.f32 %v3588, %v3676
  %v3678 = vpop.f32.mrf.mxu0
  %v3679 = vadd.f32 %v3590, %v3678
  %3680 = vmatmul.bf16.gmra.mxu0 %v1534
  %v3681 = vpop.f32.mrf.mxu0
  %v3682 = vadd.f32 %v3593, %v3681
  %v3683 = vpop.f32.mrf.mxu0
  %v3684 = vadd.f32 %v3595, %v3683
  %3685 = vmatmul.bf16.gmra.mxu0 %v1550
  %v3686 = vpop.f32.mrf.mxu0
  %v3687 = vadd.f32 %v3598, %v3686
  %v3688 = vpop.f32.mrf.mxu0
  %v3689 = vadd.f32 %v3600, %v3688
  %3690 = vmatmul.bf16.gmra.mxu0 %v1566
  %v3691 = vpop.f32.mrf.mxu0
  %v3692 = vadd.f32 %v3603, %v3691
  %v3693 = vpop.f32.mrf.mxu0
  %v3694 = vadd.f32 %v3605, %v3693
  %3695 = vmatmul.bf16.gmra.mxu0 %v1582
  %v3696 = vpop.f32.mrf.mxu0
  %v3697 = vadd.f32 %v3608, %v3696
  %v3698 = vpop.f32.mrf.mxu0
  %v3699 = vadd.f32 %v3610, %v3698
  %3700 = vmatmul.bf16.gmra.mxu0 %v1598
  %v3701 = vpop.f32.mrf.mxu0
  %v3702 = vadd.f32 %v3613, %v3701
  %v3703 = vpop.f32.mrf.mxu0
  %v3704 = vadd.f32 %v3615, %v3703
  %3705 = vmatmul.bf16.gmra.mxu0 %v1614
  %v3706 = vpop.f32.mrf.mxu0
  %v3707 = vadd.f32 %v3618, %v3706
  %v3708 = vpop.f32.mrf.mxu0
  %v3709 = vadd.f32 %v3620, %v3708
  %3710 = vmatmul.bf16.gmra.mxu0 %v1630
  %v3711 = vpop.f32.mrf.mxu0
  %v3712 = vadd.f32 %v3623, %v3711
  %v3713 = vpop.f32.mrf.mxu0
  %v3714 = vadd.f32 %v3625, %v3713
  %3715 = vmatmul.bf16.gmra.mxu0 %v1646
  %v3716 = vpop.f32.mrf.mxu0
  %v3717 = vadd.f32 %v3628, %v3716
  %v3718 = vpop.f32.mrf.mxu0
  %v3719 = vadd.f32 %v3630, %v3718
  %3720 = vmatmul.bf16.gmra.mxu0 %v1662
  %v3721 = vpop.f32.mrf.mxu0
  %v3722 = vadd.f32 %v3633, %v3721
  %v3723 = vpop.f32.mrf.mxu0
  %v3724 = vadd.f32 %v3635, %v3723
  %3725 = vmatmul.bf16.gmra.mxu0 %v1678
  %v3726 = vpop.f32.mrf.mxu0
  %v3727 = vadd.f32 %v3638, %v3726
  %v3728 = vpop.f32.mrf.mxu0
  %v3729 = vadd.f32 %v3640, %v3728
  %3730 = vmatmul.bf16.gmra.mxu0 %v1694
  %v3731 = vpop.f32.mrf.mxu0
  %v3732 = vadd.f32 %v3643, %v3731
  %v3733 = vpop.f32.mrf.mxu0
  %v3734 = vadd.f32 %v3645, %v3733
  %3735 = vmatmul.bf16.gmra.mxu0 %v1710
  %v3736 = vpop.f32.mrf.mxu0
  %v3737 = vadd.f32 %v3648, %v3736
  %v3738 = vpop.f32.mrf.mxu0
  %v3739 = vadd.f32 %v3650, %v3738
  %3740 = vmatmul.bf16.gmra.mxu0 %v1726
  %v3741 = vpop.f32.mrf.mxu0
  %v3742 = vadd.f32 %v3653, %v3741
  %v3743 = vpop.f32.mrf.mxu0
  %v3744 = vadd.f32 %v3655, %v3743
  %3745 = vmatmul.bf16.gmra.mxu0 %v1742
  %v3746 = vpop.f32.mrf.mxu0
  %v3747 = vadd.f32 %v3658, %v3746
  %v3748 = vpop.f32.mrf.mxu0
  %v3749 = vadd.f32 %v3660, %v3748
  %3750 = vdwg.mxu0
  %3751 = vmatpush.bf16.msra.mxu0 %v2611
  %3752 = vmatpush.bf16.msra.mxu0 %v2610
  %3753 = vmatpush.bf16.msra.mxu0 %v2609
  %3754 = vmatpush.bf16.msra.mxu0 %v2608
  %3755 = vmatpush.bf16.msra.mxu0 %v2607
  %3756 = vmatpush.bf16.msra.mxu0 %v2606
  %3757 = vmatpush.bf16.msra.mxu0 %v2605
  %3758 = vmatpush.bf16.msra.mxu0 %v2604
  %3759 = vmatmul.bf16.gmra.mxu0 %v1503
  %v3760 = vpop.f32.mrf.mxu0
  %v3761 = vadd.f32 %v3672, %v3760
  %v3762 = vpop.f32.mrf.mxu0
  %v3763 = vadd.f32 %v3674, %v3762
  %3764 = vmatmul.bf16.gmra.mxu0 %v1519
  %v3765 = vpop.f32.mrf.mxu0
  %v3766 = vadd.f32 %v3677, %v3765
  %v3767 = vpop.f32.mrf.mxu0
  %v3768 = vadd.f32 %v3679, %v3767
  %3769 = vmatmul.bf16.gmra.mxu0 %v1535
  %v3770 = vpop.f32.mrf.mxu0
  %v3771 = vadd.f32 %v3682, %v3770
  %v3772 = vpop.f32.mrf.mxu0
  %v3773 = vadd.f32 %v3684, %v3772
  %3774 = vmatmul.bf16.gmra.mxu0 %v1551
  %v3775 = vpop.f32.mrf.mxu0
  %v3776 = vadd.f32 %v3687, %v3775
  %v3777 = vpop.f32.mrf.mxu0
  %v3778 = vadd.f32 %v3689, %v3777
  %3779 = vmatmul.bf16.gmra.mxu0 %v1567
  %v3780 = vpop.f32.mrf.mxu0
  %v3781 = vadd.f32 %v3692, %v3780
  %v3782 = vpop.f32.mrf.mxu0
  %v3783 = vadd.f32 %v3694, %v3782
  %3784 = vmatmul.bf16.gmra.mxu0 %v1583
  %v3785 = vpop.f32.mrf.mxu0
  %v3786 = vadd.f32 %v3697, %v3785
  %v3787 = vpop.f32.mrf.mxu0
  %v3788 = vadd.f32 %v3699, %v3787
  %3789 = vmatmul.bf16.gmra.mxu0 %v1599
  %v3790 = vpop.f32.mrf.mxu0
  %v3791 = vadd.f32 %v3702, %v3790
  %v3792 = vpop.f32.mrf.mxu0
  %v3793 = vadd.f32 %v3704, %v3792
  %3794 = vmatmul.bf16.gmra.mxu0 %v1615
  %v3795 = vpop.f32.mrf.mxu0
  %v3796 = vadd.f32 %v3707, %v3795
  %v3797 = vpop.f32.mrf.mxu0
  %v3798 = vadd.f32 %v3709, %v3797
  %3799 = vmatmul.bf16.gmra.mxu0 %v1631
  %v3800 = vpop.f32.mrf.mxu0
  %v3801 = vadd.f32 %v3712, %v3800
  %v3802 = vpop.f32.mrf.mxu0
  %v3803 = vadd.f32 %v3714, %v3802
  %3804 = vmatmul.bf16.gmra.mxu0 %v1647
  %v3805 = vpop.f32.mrf.mxu0
  %v3806 = vadd.f32 %v3717, %v3805
  %v3807 = vpop.f32.mrf.mxu0
  %v3808 = vadd.f32 %v3719, %v3807
  %3809 = vmatmul.bf16.gmra.mxu0 %v1663
  %v3810 = vpop.f32.mrf.mxu0
  %v3811 = vadd.f32 %v3722, %v3810
  %v3812 = vpop.f32.mrf.mxu0
  %v3813 = vadd.f32 %v3724, %v3812
  %3814 = vmatmul.bf16.gmra.mxu0 %v1679
  %v3815 = vpop.f32.mrf.mxu0
  %v3816 = vadd.f32 %v3727, %v3815
  %v3817 = vpop.f32.mrf.mxu0
  %v3818 = vadd.f32 %v3729, %v3817
  %3819 = vmatmul.bf16.gmra.mxu0 %v1695
  %v3820 = vpop.f32.mrf.mxu0
  %v3821 = vadd.f32 %v3732, %v3820
  %v3822 = vpop.f32.mrf.mxu0
  %v3823 = vadd.f32 %v3734, %v3822
  %3824 = vmatmul.bf16.gmra.mxu0 %v1711
  %v3825 = vpop.f32.mrf.mxu0
  %v3826 = vadd.f32 %v3737, %v3825
  %v3827 = vpop.f32.mrf.mxu0
  %v3828 = vadd.f32 %v3739, %v3827
  %3829 = vmatmul.bf16.gmra.mxu0 %v1727
  %v3830 = vpop.f32.mrf.mxu0
  %v3831 = vadd.f32 %v3742, %v3830
  %v3832 = vpop.f32.mrf.mxu0
  %v3833 = vadd.f32 %v3744, %v3832
  %3834 = vmatmul.bf16.gmra.mxu0 %v1743
  %v3835 = vpop.f32.mrf.mxu0
  %v3836 = vadd.f32 %v3747, %v3835
  %v3837 = vpop.f32.mrf.mxu0
  %v3838 = vadd.f32 %v3749, %v3837
  %3839 = vdwg.mxu0
  %3840 = vmatpush.bf16.msra.mxu0 %v2619
  %3841 = vmatpush.bf16.msra.mxu0 %v2618
  %3842 = vmatpush.bf16.msra.mxu0 %v2617
  %3843 = vmatpush.bf16.msra.mxu0 %v2616
  %3844 = vmatpush.bf16.msra.mxu0 %v2615
  %3845 = vmatpush.bf16.msra.mxu0 %v2614
  %3846 = vmatpush.bf16.msra.mxu0 %v2613
  %3847 = vmatpush.bf16.msra.mxu0 %v2612
  %3848 = vmatmul.bf16.gmra.mxu0 %v1504
  %v3849 = vpop.f32.mrf.mxu0
  %v3850 = vadd.f32 %v3761, %v3849
  %v3851 = vpop.f32.mrf.mxu0
  %v3852 = vadd.f32 %v3763, %v3851
  %3853 = vmatmul.bf16.gmra.mxu0 %v1520
  %v3854 = vpop.f32.mrf.mxu0
  %v3855 = vadd.f32 %v3766, %v3854
  %v3856 = vpop.f32.mrf.mxu0
  %v3857 = vadd.f32 %v3768, %v3856
  %3858 = vmatmul.bf16.gmra.mxu0 %v1536
  %v3859 = vpop.f32.mrf.mxu0
  %v3860 = vadd.f32 %v3771, %v3859
  %v3861 = vpop.f32.mrf.mxu0
  %v3862 = vadd.f32 %v3773, %v3861
  %3863 = vmatmul.bf16.gmra.mxu0 %v1552
  %v3864 = vpop.f32.mrf.mxu0
  %v3865 = vadd.f32 %v3776, %v3864
  %v3866 = vpop.f32.mrf.mxu0
  %v3867 = vadd.f32 %v3778, %v3866
  %3868 = vmatmul.bf16.gmra.mxu0 %v1568
  %v3869 = vpop.f32.mrf.mxu0
  %v3870 = vadd.f32 %v3781, %v3869
  %v3871 = vpop.f32.mrf.mxu0
  %v3872 = vadd.f32 %v3783, %v3871
  %3873 = vmatmul.bf16.gmra.mxu0 %v1584
  %v3874 = vpop.f32.mrf.mxu0
  %v3875 = vadd.f32 %v3786, %v3874
  %v3876 = vpop.f32.mrf.mxu0
  %v3877 = vadd.f32 %v3788, %v3876
  %3878 = vmatmul.bf16.gmra.mxu0 %v1600
  %v3879 = vpop.f32.mrf.mxu0
  %v3880 = vadd.f32 %v3791, %v3879
  %v3881 = vpop.f32.mrf.mxu0
  %v3882 = vadd.f32 %v3793, %v3881
  %3883 = vmatmul.bf16.gmra.mxu0 %v1616
  %v3884 = vpop.f32.mrf.mxu0
  %v3885 = vadd.f32 %v3796, %v3884
  %v3886 = vpop.f32.mrf.mxu0
  %v3887 = vadd.f32 %v3798, %v3886
  %3888 = vmatmul.bf16.gmra.mxu0 %v1632
  %v3889 = vpop.f32.mrf.mxu0
  %v3890 = vadd.f32 %v3801, %v3889
  %v3891 = vpop.f32.mrf.mxu0
  %v3892 = vadd.f32 %v3803, %v3891
  %3893 = vmatmul.bf16.gmra.mxu0 %v1648
  %v3894 = vpop.f32.mrf.mxu0
  %v3895 = vadd.f32 %v3806, %v3894
  %v3896 = vpop.f32.mrf.mxu0
  %v3897 = vadd.f32 %v3808, %v3896
  %3898 = vmatmul.bf16.gmra.mxu0 %v1664
  %v3899 = vpop.f32.mrf.mxu0
  %v3900 = vadd.f32 %v3811, %v3899
  %v3901 = vpop.f32.mrf.mxu0
  %v3902 = vadd.f32 %v3813, %v3901
  %3903 = vmatmul.bf16.gmra.mxu0 %v1680
  %v3904 = vpop.f32.mrf.mxu0
  %v3905 = vadd.f32 %v3816, %v3904
  %v3906 = vpop.f32.mrf.mxu0
  %v3907 = vadd.f32 %v3818, %v3906
  %3908 = vmatmul.bf16.gmra.mxu0 %v1696
  %v3909 = vpop.f32.mrf.mxu0
  %v3910 = vadd.f32 %v3821, %v3909
  %v3911 = vpop.f32.mrf.mxu0
  %v3912 = vadd.f32 %v3823, %v3911
  %3913 = vmatmul.bf16.gmra.mxu0 %v1712
  %v3914 = vpop.f32.mrf.mxu0
  %v3915 = vadd.f32 %v3826, %v3914
  %v3916 = vpop.f32.mrf.mxu0
  %v3917 = vadd.f32 %v3828, %v3916
  %3918 = vmatmul.bf16.gmra.mxu0 %v1728
  %v3919 = vpop.f32.mrf.mxu0
  %v3920 = vadd.f32 %v3831, %v3919
  %v3921 = vpop.f32.mrf.mxu0
  %v3922 = vadd.f32 %v3833, %v3921
  %3923 = vmatmul.bf16.gmra.mxu0 %v1744
  %v3924 = vpop.f32.mrf.mxu0
  %v3925 = vadd.f32 %v3836, %v3924
  %v3926 = vpop.f32.mrf.mxu0
  %v3927 = vadd.f32 %v3838, %v3926
  %3928 = vdwg.mxu0
  %3929 = vmatpush.bf16.msra.mxu0 %v2627
  %3930 = vmatpush.bf16.msra.mxu0 %v2626
  %3931 = vmatpush.bf16.msra.mxu0 %v2625
  %3932 = vmatpush.bf16.msra.mxu0 %v2624
  %3933 = vmatpush.bf16.msra.mxu0 %v2623
  %3934 = vmatpush.bf16.msra.mxu0 %v2622
  %3935 = vmatpush.bf16.msra.mxu0 %v2621
  %3936 = vmatpush.bf16.msra.mxu0 %v2620
  %3937 = vmatmul.bf16.gmra.mxu0 %v1505
  %v3938 = vpop.f32.mrf.mxu0
  %v3939 = vadd.f32 %v3850, %v3938
  %v3940 = vpop.f32.mrf.mxu0
  %v3941 = vadd.f32 %v3852, %v3940
  %3942 = vmatmul.bf16.gmra.mxu0 %v1521
  %v3943 = vpop.f32.mrf.mxu0
  %v3944 = vadd.f32 %v3855, %v3943
  %v3945 = vpop.f32.mrf.mxu0
  %v3946 = vadd.f32 %v3857, %v3945
  %3947 = vmatmul.bf16.gmra.mxu0 %v1537
  %v3948 = vpop.f32.mrf.mxu0
  %v3949 = vadd.f32 %v3860, %v3948
  %v3950 = vpop.f32.mrf.mxu0
  %v3951 = vadd.f32 %v3862, %v3950
  %3952 = vmatmul.bf16.gmra.mxu0 %v1553
  %v3953 = vpop.f32.mrf.mxu0
  %v3954 = vadd.f32 %v3865, %v3953
  %v3955 = vpop.f32.mrf.mxu0
  %v3956 = vadd.f32 %v3867, %v3955
  %3957 = vmatmul.bf16.gmra.mxu0 %v1569
  %v3958 = vpop.f32.mrf.mxu0
  %v3959 = vadd.f32 %v3870, %v3958
  %v3960 = vpop.f32.mrf.mxu0
  %v3961 = vadd.f32 %v3872, %v3960
  %3962 = vmatmul.bf16.gmra.mxu0 %v1585
  %v3963 = vpop.f32.mrf.mxu0
  %v3964 = vadd.f32 %v3875, %v3963
  %v3965 = vpop.f32.mrf.mxu0
  %v3966 = vadd.f32 %v3877, %v3965
  %3967 = vmatmul.bf16.gmra.mxu0 %v1601
  %v3968 = vpop.f32.mrf.mxu0
  %v3969 = vadd.f32 %v3880, %v3968
  %v3970 = vpop.f32.mrf.mxu0
  %v3971 = vadd.f32 %v3882, %v3970
  %3972 = vmatmul.bf16.gmra.mxu0 %v1617
  %v3973 = vpop.f32.mrf.mxu0
  %v3974 = vadd.f32 %v3885, %v3973
  %v3975 = vpop.f32.mrf.mxu0
  %v3976 = vadd.f32 %v3887, %v3975
  %3977 = vmatmul.bf16.gmra.mxu0 %v1633
  %v3978 = vpop.f32.mrf.mxu0
  %v3979 = vadd.f32 %v3890, %v3978
  %v3980 = vpop.f32.mrf.mxu0
  %v3981 = vadd.f32 %v3892, %v3980
  %3982 = vmatmul.bf16.gmra.mxu0 %v1649
  %v3983 = vpop.f32.mrf.mxu0
  %v3984 = vadd.f32 %v3895, %v3983
  %v3985 = vpop.f32.mrf.mxu0
  %v3986 = vadd.f32 %v3897, %v3985
  %3987 = vmatmul.bf16.gmra.mxu0 %v1665
  %v3988 = vpop.f32.mrf.mxu0
  %v3989 = vadd.f32 %v3900, %v3988
  %v3990 = vpop.f32.mrf.mxu0
  %v3991 = vadd.f32 %v3902, %v3990
  %3992 = vmatmul.bf16.gmra.mxu0 %v1681
  %v3993 = vpop.f32.mrf.mxu0
  %v3994 = vadd.f32 %v3905, %v3993
  %v3995 = vpop.f32.mrf.mxu0
  %v3996 = vadd.f32 %v3907, %v3995
  %3997 = vmatmul.bf16.gmra.mxu0 %v1697
  %v3998 = vpop.f32.mrf.mxu0
  %v3999 = vadd.f32 %v3910, %v3998
  %v4000 = vpop.f32.mrf.mxu0
  %v4001 = vadd.f32 %v3912, %v4000
  %4002 = vmatmul.bf16.gmra.mxu0 %v1713
  %v4003 = vpop.f32.mrf.mxu0
  %v4004 = vadd.f32 %v3915, %v4003
  %v4005 = vpop.f32.mrf.mxu0
  %v4006 = vadd.f32 %v3917, %v4005
  %4007 = vmatmul.bf16.gmra.mxu0 %v1729
  %v4008 = vpop.f32.mrf.mxu0
  %v4009 = vadd.f32 %v3920, %v4008
  %v4010 = vpop.f32.mrf.mxu0
  %v4011 = vadd.f32 %v3922, %v4010
  %4012 = vmatmul.bf16.gmra.mxu0 %v1745
  %v4013 = vpop.f32.mrf.mxu0
  %v4014 = vadd.f32 %v3925, %v4013
  %v4015 = vpop.f32.mrf.mxu0
  %v4016 = vadd.f32 %v3927, %v4015
  %4017 = vdwg.mxu0
  %4018 = vmatpush.bf16.msra.mxu0 %v2635
  %4019 = vmatpush.bf16.msra.mxu0 %v2634
  %4020 = vmatpush.bf16.msra.mxu0 %v2633
  %4021 = vmatpush.bf16.msra.mxu0 %v2632
  %4022 = vmatpush.bf16.msra.mxu0 %v2631
  %4023 = vmatpush.bf16.msra.mxu0 %v2630
  %4024 = vmatpush.bf16.msra.mxu0 %v2629
  %4025 = vmatpush.bf16.msra.mxu0 %v2628
  %4026 = vmatmul.bf16.gmra.mxu0 %v1506
  %v4027 = vpop.f32.mrf.mxu0
  %v4028 = vadd.f32 %v3939, %v4027
  %v4029 = vpop.f32.mrf.mxu0
  %v4030 = vadd.f32 %v3941, %v4029
  %4031 = vmatmul.bf16.gmra.mxu0 %v1522
  %v4032 = vpop.f32.mrf.mxu0
  %v4033 = vadd.f32 %v3944, %v4032
  %v4034 = vpop.f32.mrf.mxu0
  %v4035 = vadd.f32 %v3946, %v4034
  %4036 = vmatmul.bf16.gmra.mxu0 %v1538
  %v4037 = vpop.f32.mrf.mxu0
  %v4038 = vadd.f32 %v3949, %v4037
  %v4039 = vpop.f32.mrf.mxu0
  %v4040 = vadd.f32 %v3951, %v4039
  %4041 = vmatmul.bf16.gmra.mxu0 %v1554
  %v4042 = vpop.f32.mrf.mxu0
  %v4043 = vadd.f32 %v3954, %v4042
  %v4044 = vpop.f32.mrf.mxu0
  %v4045 = vadd.f32 %v3956, %v4044
  %4046 = vmatmul.bf16.gmra.mxu0 %v1570
  %v4047 = vpop.f32.mrf.mxu0
  %v4048 = vadd.f32 %v3959, %v4047
  %v4049 = vpop.f32.mrf.mxu0
  %v4050 = vadd.f32 %v3961, %v4049
  %4051 = vmatmul.bf16.gmra.mxu0 %v1586
  %v4052 = vpop.f32.mrf.mxu0
  %v4053 = vadd.f32 %v3964, %v4052
  %v4054 = vpop.f32.mrf.mxu0
  %v4055 = vadd.f32 %v3966, %v4054
  %4056 = vmatmul.bf16.gmra.mxu0 %v1602
  %v4057 = vpop.f32.mrf.mxu0
  %v4058 = vadd.f32 %v3969, %v4057
  %v4059 = vpop.f32.mrf.mxu0
  %v4060 = vadd.f32 %v3971, %v4059
  %4061 = vmatmul.bf16.gmra.mxu0 %v1618
  %v4062 = vpop.f32.mrf.mxu0
  %v4063 = vadd.f32 %v3974, %v4062
  %v4064 = vpop.f32.mrf.mxu0
  %v4065 = vadd.f32 %v3976, %v4064
  %4066 = vmatmul.bf16.gmra.mxu0 %v1634
  %v4067 = vpop.f32.mrf.mxu0
  %v4068 = vadd.f32 %v3979, %v4067
  %v4069 = vpop.f32.mrf.mxu0
  %v4070 = vadd.f32 %v3981, %v4069
  %4071 = vmatmul.bf16.gmra.mxu0 %v1650
  %v4072 = vpop.f32.mrf.mxu0
  %v4073 = vadd.f32 %v3984, %v4072
  %v4074 = vpop.f32.mrf.mxu0
  %v4075 = vadd.f32 %v3986, %v4074
  %4076 = vmatmul.bf16.gmra.mxu0 %v1666
  %v4077 = vpop.f32.mrf.mxu0
  %v4078 = vadd.f32 %v3989, %v4077
  %v4079 = vpop.f32.mrf.mxu0
  %v4080 = vadd.f32 %v3991, %v4079
  %4081 = vmatmul.bf16.gmra.mxu0 %v1682
  %v4082 = vpop.f32.mrf.mxu0
  %v4083 = vadd.f32 %v3994, %v4082
  %v4084 = vpop.f32.mrf.mxu0
  %v4085 = vadd.f32 %v3996, %v4084
  %4086 = vmatmul.bf16.gmra.mxu0 %v1698
  %v4087 = vpop.f32.mrf.mxu0
  %v4088 = vadd.f32 %v3999, %v4087
  %v4089 = vpop.f32.mrf.mxu0
  %v4090 = vadd.f32 %v4001, %v4089
  %4091 = vmatmul.bf16.gmra.mxu0 %v1714
  %v4092 = vpop.f32.mrf.mxu0
  %v4093 = vadd.f32 %v4004, %v4092
  %v4094 = vpop.f32.mrf.mxu0
  %v4095 = vadd.f32 %v4006, %v4094
  %4096 = vmatmul.bf16.gmra.mxu0 %v1730
  %v4097 = vpop.f32.mrf.mxu0
  %v4098 = vadd.f32 %v4009, %v4097
  %v4099 = vpop.f32.mrf.mxu0
  %v4100 = vadd.f32 %v4011, %v4099
  %4101 = vmatmul.bf16.gmra.mxu0 %v1746
  %v4102 = vpop.f32.mrf.mxu0
  %v4103 = vadd.f32 %v4014, %v4102
  %v4104 = vpop.f32.mrf.mxu0
  %v4105 = vadd.f32 %v4016, %v4104
  %4106 = vdwg.mxu0
  %4107 = vmatpush.bf16.msra.mxu0 %v2643
  %4108 = vmatpush.bf16.msra.mxu0 %v2642
  %4109 = vmatpush.bf16.msra.mxu0 %v2641
  %4110 = vmatpush.bf16.msra.mxu0 %v2640
  %4111 = vmatpush.bf16.msra.mxu0 %v2639
  %4112 = vmatpush.bf16.msra.mxu0 %v2638
  %4113 = vmatpush.bf16.msra.mxu0 %v2637
  %4114 = vmatpush.bf16.msra.mxu0 %v2636
  %4115 = vmatmul.bf16.gmra.mxu0 %v1507
  %v4116 = vpop.f32.mrf.mxu0
  %v4117 = vadd.f32 %v4028, %v4116
  %v4118 = vpop.f32.mrf.mxu0
  %v4119 = vadd.f32 %v4030, %v4118
  %4120 = vmatmul.bf16.gmra.mxu0 %v1523
  %v4121 = vpop.f32.mrf.mxu0
  %v4122 = vadd.f32 %v4033, %v4121
  %v4123 = vpop.f32.mrf.mxu0
  %v4124 = vadd.f32 %v4035, %v4123
  %4125 = vmatmul.bf16.gmra.mxu0 %v1539
  %v4126 = vpop.f32.mrf.mxu0
  %v4127 = vadd.f32 %v4038, %v4126
  %v4128 = vpop.f32.mrf.mxu0
  %v4129 = vadd.f32 %v4040, %v4128
  %4130 = vmatmul.bf16.gmra.mxu0 %v1555
  %v4131 = vpop.f32.mrf.mxu0
  %v4132 = vadd.f32 %v4043, %v4131
  %v4133 = vpop.f32.mrf.mxu0
  %v4134 = vadd.f32 %v4045, %v4133
  %4135 = vmatmul.bf16.gmra.mxu0 %v1571
  %v4136 = vpop.f32.mrf.mxu0
  %v4137 = vadd.f32 %v4048, %v4136
  %v4138 = vpop.f32.mrf.mxu0
  %v4139 = vadd.f32 %v4050, %v4138
  %4140 = vmatmul.bf16.gmra.mxu0 %v1587
  %v4141 = vpop.f32.mrf.mxu0
  %v4142 = vadd.f32 %v4053, %v4141
  %v4143 = vpop.f32.mrf.mxu0
  %v4144 = vadd.f32 %v4055, %v4143
  %4145 = vmatmul.bf16.gmra.mxu0 %v1603
  %v4146 = vpop.f32.mrf.mxu0
  %v4147 = vadd.f32 %v4058, %v4146
  %v4148 = vpop.f32.mrf.mxu0
  %v4149 = vadd.f32 %v4060, %v4148
  %4150 = vmatmul.bf16.gmra.mxu0 %v1619
  %v4151 = vpop.f32.mrf.mxu0
  %v4152 = vadd.f32 %v4063, %v4151
  %v4153 = vpop.f32.mrf.mxu0
  %v4154 = vadd.f32 %v4065, %v4153
  %4155 = vmatmul.bf16.gmra.mxu0 %v1635
  %v4156 = vpop.f32.mrf.mxu0
  %v4157 = vadd.f32 %v4068, %v4156
  %v4158 = vpop.f32.mrf.mxu0
  %v4159 = vadd.f32 %v4070, %v4158
  %4160 = vmatmul.bf16.gmra.mxu0 %v1651
  %v4161 = vpop.f32.mrf.mxu0
  %v4162 = vadd.f32 %v4073, %v4161
  %v4163 = vpop.f32.mrf.mxu0
  %v4164 = vadd.f32 %v4075, %v4163
  %4165 = vmatmul.bf16.gmra.mxu0 %v1667
  %v4166 = vpop.f32.mrf.mxu0
  %v4167 = vadd.f32 %v4078, %v4166
  %v4168 = vpop.f32.mrf.mxu0
  %v4169 = vadd.f32 %v4080, %v4168
  %4170 = vmatmul.bf16.gmra.mxu0 %v1683
  %v4171 = vpop.f32.mrf.mxu0
  %v4172 = vadd.f32 %v4083, %v4171
  %v4173 = vpop.f32.mrf.mxu0
  %v4174 = vadd.f32 %v4085, %v4173
  %4175 = vmatmul.bf16.gmra.mxu0 %v1699
  %v4176 = vpop.f32.mrf.mxu0
  %v4177 = vadd.f32 %v4088, %v4176
  %v4178 = vpop.f32.mrf.mxu0
  %v4179 = vadd.f32 %v4090, %v4178
  %4180 = vmatmul.bf16.gmra.mxu0 %v1715
  %v4181 = vpop.f32.mrf.mxu0
  %v4182 = vadd.f32 %v4093, %v4181
  %v4183 = vpop.f32.mrf.mxu0
  %v4184 = vadd.f32 %v4095, %v4183
  %4185 = vmatmul.bf16.gmra.mxu0 %v1731
  %v4186 = vpop.f32.mrf.mxu0
  %v4187 = vadd.f32 %v4098, %v4186
  %v4188 = vpop.f32.mrf.mxu0
  %v4189 = vadd.f32 %v4100, %v4188
  %4190 = vmatmul.bf16.gmra.mxu0 %v1747
  %v4191 = vpop.f32.mrf.mxu0
  %v4192 = vadd.f32 %v4103, %v4191
  %v4193 = vpop.f32.mrf.mxu0
  %v4194 = vadd.f32 %v4105, %v4193
  %4195 = vdwg.mxu0
  %v4196 = vmul.f32 %v4117, 0.02
  %v4197 = vmul.f32 %v4119, 0.02
  %v4198 = vmul.f32 %v4122, 0.02
  %v4199 = vmul.f32 %v4124, 0.02
  %v4200 = vmul.f32 %v4127, 0.02
  %v4201 = vmul.f32 %v4129, 0.02
  %v4202 = vmul.f32 %v4132, 0.02
  %v4203 = vmul.f32 %v4134, 0.02
  %v4204 = vmul.f32 %v4137, 0.02
  %v4205 = vmul.f32 %v4139, 0.02
  %v4206 = vmul.f32 %v4142, 0.02
  %v4207 = vmul.f32 %v4144, 0.02
  %v4208 = vmul.f32 %v4147, 0.02
  %v4209 = vmul.f32 %v4149, 0.02
  %v4210 = vmul.f32 %v4152, 0.02
  %v4211 = vmul.f32 %v4154, 0.02
  %v4212 = vmul.f32 %v4157, 0.02
  %v4213 = vmul.f32 %v4159, 0.02
  %v4214 = vmul.f32 %v4162, 0.02
  %v4215 = vmul.f32 %v4164, 0.02
  %v4216 = vmul.f32 %v4167, 0.02
  %v4217 = vmul.f32 %v4169, 0.02
  %v4218 = vmul.f32 %v4172, 0.02
  %v4219 = vmul.f32 %v4174, 0.02
  %v4220 = vmul.f32 %v4177, 0.02
  %v4221 = vmul.f32 %v4179, 0.02
  %v4222 = vmul.f32 %v4182, 0.02
  %v4223 = vmul.f32 %v4184, 0.02
  %v4224 = vmul.f32 %v4187, 0.02
  %v4225 = vmul.f32 %v4189, 0.02
  %v4226 = vmul.f32 %v4192, 0.02
  %v4227 = vmul.f32 %v4194, 0.02
  %v4228 = vmax.f32 %v4117, %v4196
  %v4229 = vmax.f32 %v4119, %v4197
  %v4230 = vmax.f32 %v4122, %v4198
  %v4231 = vmax.f32 %v4124, %v4199
  %v4232 = vmax.f32 %v4127, %v4200
  %v4233 = vmax.f32 %v4129, %v4201
  %v4234 = vmax.f32 %v4132, %v4202
  %v4235 = vmax.f32 %v4134, %v4203
  %v4236 = vmax.f32 %v4137, %v4204
  %v4237 = vmax.f32 %v4139, %v4205
  %v4238 = vmax.f32 %v4142, %v4206
  %v4239 = vmax.f32 %v4144, %v4207
  %v4240 = vmax.f32 %v4147, %v4208
  %v4241 = vmax.f32 %v4149, %v4209
  %v4242 = vmax.f32 %v4152, %v4210
  %v4243 = vmax.f32 %v4154, %v4211
  %v4244 = vmax.f32 %v4157, %v4212
  %v4245 = vmax.f32 %v4159, %v4213
  %v4246 = vmax.f32 %v4162, %v4214
  %v4247 = vmax.f32 %v4164, %v4215
  %v4248 = vmax.f32 %v4167, %v4216
  %v4249 = vmax.f32 %v4169, %v4217
  %v4250 = vmax.f32 %v4172, %v4218
  %v4251 = vmax.f32 %v4174, %v4219
  %v4252 = vmax.f32 %v4177, %v4220
  %v4253 = vmax.f32 %v4179, %v4221
  %v4254 = vmax.f32 %v4182, %v4222
  %v4255 = vmax.f32 %v4184, %v4223
  %v4256 = vmax.f32 %v4187, %v4224
  %v4257 = vmax.f32 %v4189, %v4225
  %v4258 = vmax.f32 %v4192, %v4226
  %v4259 = vmax.f32 %v4194, %v4227
  %v4260 = vld [vmem:[%s3] sm:$0xff]
  %v4261 = vld [vmem:[%s3 + $0x8] sm:$0xff]
  %v4262 = vld [vmem:[%s3 + $0x10] sm:$0xff]
  %v4263 = vld [vmem:[%s3 + $0x18] sm:$0xff]
  %v4264 = vld [vmem:[%s3 + $0x20] sm:$0xff]
  %v4265 = vld [vmem:[%s3 + $0x28] sm:$0xff]
  %v4266 = vld [vmem:[%s3 + $0x30] sm:$0xff]
  %v4267 = vld [vmem:[%s3 + $0x38] sm:$0xff]
  %v4268 = vld [vmem:[%s3 + $0x40] sm:$0xff]
  %v4269 = vld [vmem:[%s3 + $0x48] sm:$0xff]
  %v4270 = vld [vmem:[%s3 + $0x50] sm:$0xff]
  %v4271 = vld [vmem:[%s3 + $0x58] sm:$0xff]
  %v4272 = vld [vmem:[%s3 + $0x60] sm:$0xff]
  %v4273 = vld [vmem:[%s3 + $0x68] sm:$0xff]
  %v4274 = vld [vmem:[%s3 + $0x70] sm:$0xff]
  %v4275 = vld [vmem:[%s3 + $0x78] sm:$0xff]
  %v4276 = vld [vmem:[%s3 + $0x80] sm:$0xff]
  %v4277 = vld [vmem:[%s3 + $0x88] sm:$0xff]
  %v4278 = vld [vmem:[%s3 + $0x90] sm:$0xff]
  %v4279 = vld [vmem:[%s3 + $0x98] sm:$0xff]
  %v4280 = vld [vmem:[%s3 + $0xa0] sm:$0xff]
  %v4281 = vld [vmem:[%s3 + $0xa8] sm:$0xff]
  %v4282 = vld [vmem:[%s3 + $0xb0] sm:$0xff]
  %v4283 = vld [vmem:[%s3 + $0xb8] sm:$0xff]
  %v4284 = vld [vmem:[%s3 + $0xc0] sm:$0xff]
  %v4285 = vld [vmem:[%s3 + $0xc8] sm:$0xff]
  %v4286 = vld [vmem:[%s3 + $0xd0] sm:$0xff]
  %v4287 = vld [vmem:[%s3 + $0xd8] sm:$0xff]
  %v4288 = vld [vmem:[%s3 + $0xe0] sm:$0xff]
  %v4289 = vld [vmem:[%s3 + $0xe8] sm:$0xff]
  %v4290 = vld [vmem:[%s3 + $0xf0] sm:$0xff]
  %v4291 = vld [vmem:[%s3 + $0xf8] sm:$0xff]
  %v4292 = vmul.f32 %v4228, %v4260
  %v4293 = vmul.f32 %v4229, %v4261
  %v4294 = vmul.f32 %v4230, %v4262
  %v4295 = vmul.f32 %v4231, %v4263
  %v4296 = vmul.f32 %v4232, %v4264
  %v4297 = vmul.f32 %v4233, %v4265
  %v4298 = vmul.f32 %v4234, %v4266
  %v4299 = vmul.f32 %v4235, %v4267
  %v4300 = vmul.f32 %v4236, %v4268
  %v4301 = vmul.f32 %v4237, %v4269
  %v4302 = vmul.f32 %v4238, %v4270
  %v4303 = vmul.f32 %v4239, %v4271
  %v4304 = vmul.f32 %v4240, %v4272
  %v4305 = vmul.f32 %v4241, %v4273
  %v4306 = vmul.f32 %v4242, %v4274
  %v4307 = vmul.f32 %v4243, %v4275
  %v4308 = vmul.f32 %v4244, %v4276
  %v4309 = vmul.f32 %v4245, %v4277
  %v4310 = vmul.f32 %v4246, %v4278
  %v4311 = vmul.f32 %v4247, %v4279
  %v4312 = vmul.f32 %v4248, %v4280
  %v4313 = vmul.f32 %v4249, %v4281
  %v4314 = vmul.f32 %v4250, %v4282
  %v4315 = vmul.f32 %v4251, %v4283
  %v4316 = vmul.f32 %v4252, %v4284
  %v4317 = vmul.f32 %v4253, %v4285
  %v4318 = vmul.f32 %v4254, %v4286
  %v4319 = vmul.f32 %v4255, %v4287
  %v4320 = vmul.f32 %v4256, %v4288
  %v4321 = vmul.f32 %v4257, %v4289
  %v4322 = vmul.f32 %v4258, %v4290
  %v4323 = vmul.f32 %v4259, %v4291
  %vm4324 = vcmask 261120
  %v4325 = vsel %vm4324, %v4292, 0.0
  %v4326 = vsel %vm4324, %v4293, 0.0
  %v4327 = vadd.f32 %v4325, %v4326
  %v4328 = vsel %vm4324, %v4294, 0.0
  %v4329 = vadd.f32 %v4327, %v4328
  %v4330 = vsel %vm4324, %v4295, 0.0
  %v4331 = vadd.f32 %v4329, %v4330
  %v4332 = vsel %vm4324, %v4296, 0.0
  %v4333 = vadd.f32 %v4331, %v4332
  %v4334 = vsel %vm4324, %v4297, 0.0
  %v4335 = vadd.f32 %v4333, %v4334
  %v4336 = vsel %vm4324, %v4298, 0.0
  %v4337 = vadd.f32 %v4335, %v4336
  %v4338 = vsel %vm4324, %v4299, 0.0
  %v4339 = vadd.f32 %v4337, %v4338
  %v4340 = vsel %vm4324, %v4300, 0.0
  %v4341 = vadd.f32 %v4339, %v4340
  %v4342 = vsel %vm4324, %v4301, 0.0
  %v4343 = vadd.f32 %v4341, %v4342
  %v4344 = vsel %vm4324, %v4302, 0.0
  %v4345 = vadd.f32 %v4343, %v4344
  %v4346 = vsel %vm4324, %v4303, 0.0
  %v4347 = vadd.f32 %v4345, %v4346
  %v4348 = vsel %vm4324, %v4304, 0.0
  %v4349 = vadd.f32 %v4347, %v4348
  %v4350 = vsel %vm4324, %v4305, 0.0
  %v4351 = vadd.f32 %v4349, %v4350
  %v4352 = vsel %vm4324, %v4306, 0.0
  %v4353 = vadd.f32 %v4351, %v4352
  %v4354 = vsel %vm4324, %v4307, 0.0
  %v4355 = vadd.f32 %v4353, %v4354
  %v4356 = vsel %vm4324, %v4308, 0.0
  %v4357 = vadd.f32 %v4355, %v4356
  %v4358 = vsel %vm4324, %v4309, 0.0
  %v4359 = vadd.f32 %v4357, %v4358
  %v4360 = vsel %vm4324, %v4310, 0.0
  %v4361 = vadd.f32 %v4359, %v4360
  %v4362 = vsel %vm4324, %v4311, 0.0
  %v4363 = vadd.f32 %v4361, %v4362
  %v4364 = vsel %vm4324, %v4312, 0.0
  %v4365 = vadd.f32 %v4363, %v4364
  %v4366 = vsel %vm4324, %v4313, 0.0
  %v4367 = vadd.f32 %v4365, %v4366
  %v4368 = vsel %vm4324, %v4314, 0.0
  %v4369 = vadd.f32 %v4367, %v4368
  %v4370 = vsel %vm4324, %v4315, 0.0
  %v4371 = vadd.f32 %v4369, %v4370
  %v4372 = vsel %vm4324, %v4316, 0.0
  %v4373 = vadd.f32 %v4371, %v4372
  %v4374 = vsel %vm4324, %v4317, 0.0
  %v4375 = vadd.f32 %v4373, %v4374
  %v4376 = vsel %vm4324, %v4318, 0.0
  %v4377 = vadd.f32 %v4375, %v4376
  %v4378 = vsel %vm4324, %v4319, 0.0
  %v4379 = vadd.f32 %v4377, %v4378
  %v4380 = vsel %vm4324, %v4320, 0.0
  %v4381 = vadd.f32 %v4379, %v4380
  %v4382 = vsel %vm4324, %v4321, 0.0
  %v4383 = vadd.f32 %v4381, %v4382
  %v4384 = vsel %vm4324, %v4322, 0.0
  %v4385 = vadd.f32 %v4383, %v4384
  %v4386 = vsel %vm4324, %v4323, 0.0
  %v4387 = vadd.f32 %v4385, %v4386
  %v4388 = vrot.slane %v4387, 4
  %v4389 = vadd.f32 %v4387, %v4388
  %v4390 = vrot.slane %v4389, 2
  %v4391 = vadd.f32 %v4389, %v4390
  %v4392 = vrot.slane %v4391, 1
  %v4393 = vadd.f32 %v4391, %v4392
  %v4394 = vld [vmem:[%s4] sm:$0x3]
  %v4395 = vmul.f32 %v4393, %v4394
  %vm4396 = vcmask 254976
  %v4397 = vsel %vm4396, %v4395, 0.0
  %4398 = vadd.xlane.f32.xlu0 %v4397
  %v4399 = vpop.xlane.xlu0 %4398
  %v4400 = vsub.f32 0.0, %v4399
  %v4401 = vmul.f32 %v4400, 1.442695
  %v4402 = vpow.pop %v4401
  %v4403 = vadd.f32 %v4402, 1.0
  %v4404 = vrcp.pop %v4403
  %v4405 = vmul.f32 %v4403, %v4404
  %v4406 = vsub.f32 1.0, %v4405
  %v4407 = vmul.f32 %v4404, %v4406
  %v4408 = vadd.f32 %v4404, %v4407
  %vm4409 = vweird.f32 %v4403
  %vm4410 = vweird.f32 %v4404
  %vm4411 = vmor %vm4409, %vm4410
  %v4412 = vsel %vm4411, %v4404, %v4408
  %v4413 = vand.u32 2147483647, %v4403
  %vm4414 = vcmp.eq.f32.partialorder %v4413, 8.507059e+37
  %v4415 = vand.u32 %v4403, 2147483648
  %v4416 = vor.u32 1.1754944e-38, %v4415
  %v4417 = vsel %vm4414, %v4416, %v4412
  %v4418 = vmul.f32 1.0, %v4417
  %vm4419 = vcmask 1024
  %4420 = vst.msk [vmem:[%s5] sm:$0x3] %vm4419, %v4418
  // Predicated region
  $region22: #{discriminator_forward.7} parent=0 // pred_check
    _
  $region23: #{discriminator_forward.7} parent=0 // pred_check_branch
    %4422 = sbr.rel (0) target = $region25
  $region24: #{discriminator_forward.7} parent=0 // pred_region
    _
  $region25: #{discriminator_forward.7} parent=0 // pred_fallthru
    _
  // Predicated region
  $region26: #{discriminator_forward.7} parent=0 // pred_check
    _
  $region27: #{discriminator_forward.7} parent=0 // pred_check_branch
    %4424 = sbr.rel (0) target = $region29
  $region28: #{discriminator_forward.7} parent=0 // pred_region
    _
  $region29: #{discriminator_forward.7} parent=0 // pred_fallthru
    _

</llo_original>
